<compile_context>
chip_gen: v7x
topology: tpu7x:2x2x1
jax: 0.10.0
libtpu: 0.0.40
codegen_flags: <defaults>
</compile_context>

<pallas_src>
import functools

import jax
import jax.numpy as jnp
from jax.experimental import pallas as pl
from jax.experimental.pallas import tpu as pltpu


# ----------------------------------------------------------------------------
# Fused conv3x3(pad=1) + bias + ReLU + maxpool2x2, one image per grid step.
#
# Input is the stack of the 4 row/col parity planes of the zero-padded image:
#   x[b, r*2+c, ci, m*wq + n] = xpad[b, ci, 2m + r, 2n + c]
# For padded tap offsets u = ph+dy, v = pw+dx (u, v in 0..3) the tap slice is
# plane (u%2)*2 + (v%2) at lane offset (u//2)*wq + (v//2), length ho*wq -- a
# contiguous static slice.  The 16 distinct taps form one (16*C, n_out) patch;
# a single matmul with the pre-scattered (4*Cout, 16*C) weight gives all four
# pool-window classes at once; max over the four Cout slabs = 2x2 max-pool.
# Columns n in [wo, wq) are padding garbage and are cropped by the wrapper.
# ----------------------------------------------------------------------------
def _conv_relu_pool_kernel(x_ref, w_ref, b_ref, o_ref, *, wq, cin, n_out):
    cout = o_ref.shape[1]
    taps = []
    for u in range(4):                         # padded row offset ph + dy
        for v in range(4):                     # padded col offset pw + dx
            plane = (u % 2) * 2 + (v % 2)
            off = (u // 2) * wq + (v // 2)
            taps.append(x_ref[0, plane, :, off:off + n_out])   # (C, n_out) bf16
    patches = jnp.concatenate(taps, axis=0)                    # (16*C, n_out) bf16
    z = jnp.dot(w_ref[...], patches,
                preferred_element_type=jnp.float32)            # (4*Cout, n_out) f32
    pooled = jnp.maximum(                                       # 2x2 max-pool
        jnp.maximum(z[0 * cout:1 * cout], z[1 * cout:2 * cout]),
        jnp.maximum(z[2 * cout:3 * cout], z[3 * cout:4 * cout]))
    y = jnp.maximum(pooled + b_ref[...], 0.0)                   # bias + ReLU (f32)
    o_ref[0] = y.astype(o_ref.dtype)                            # lane-dense store


def conv_relu_pool(xs, w_mat, bias, *, wq, ho, out_dtype):
    B, _four, cin, n_in = xs.shape
    rows, k16c = w_mat.shape
    cout = rows // 4
    n_out = ho * wq
    kernel = functools.partial(_conv_relu_pool_kernel, wq=wq, cin=cin, n_out=n_out)
    return pl.pallas_call(
        kernel,
        out_shape=jax.ShapeDtypeStruct((B, cout, n_out), out_dtype),
        grid_spec=pltpu.PrefetchScalarGridSpec(
            num_scalar_prefetch=0,
            grid=(B,),
            in_specs=[
                pl.BlockSpec((1, 4, cin, n_in), lambda b: (b, 0, 0, 0)),
                pl.BlockSpec((rows, k16c), lambda b: (0, 0)),
                pl.BlockSpec((cout, 1), lambda b: (0, 0)),
            ],
            out_specs=pl.BlockSpec((1, cout, n_out), lambda b: (b, 0, 0)),
        ),
        compiler_params=pltpu.CompilerParams(
            dimension_semantics=("parallel",)),
    )(xs, w_mat, bias)


# ----------------------------------------------------------------------------
# Fused MLP head: out = relu(x @ dequant(W1q) * s1 + b1) @ W2 + b2
# K-tiled over the int8 fc1 weight (dequantized to bf16 in-kernel -> MXU is
# always bf16, safe on v5e/v6e/v7x); fc2 fused into the finalize branch.
# ----------------------------------------------------------------------------
def _mlp_kernel(x_ref, w1_ref, s1_ref, b1_ref, w2_ref, b2_ref, o_ref, acc_ref):
    k = pl.program_id(0)

    @pl.when(k == 0)
    def _():
        acc_ref[...] = jnp.zeros_like(acc_ref)

    w1 = w1_ref[...].astype(jnp.bfloat16)        # weight-only int8 -> bf16
    acc_ref[...] += jnp.dot(x_ref[...], w1, preferred_element_type=jnp.float32)

    @pl.when(k == pl.num_programs(0) - 1)
    def _():
        # per-output-channel dequant scale + bias + ReLU, all in f32
        h = jnp.maximum(acc_ref[...] * s1_ref[...] + b1_ref[...], 0.0)   # (B, 128)
        y = jnp.dot(h, w2_ref[...], preferred_element_type=jnp.float32)
        o_ref[...] = (y + b2_ref[...]).astype(o_ref.dtype)


def mlp_head(x, w1q, s1, b1, w2, b2, *, tk=8192):
    B, K = x.shape
    n1 = w1q.shape[1]
    nc = w2.shape[1]
    tk = min(tk, K)
    assert K % tk == 0
    return pl.pallas_call(
        _mlp_kernel,
        out_shape=jax.ShapeDtypeStruct((B, nc), jnp.float32),
        grid_spec=pltpu.PrefetchScalarGridSpec(
            num_scalar_prefetch=0,
            grid=(K // tk,),
            in_specs=[
                pl.BlockSpec((B, tk), lambda k: (0, k)),
                pl.BlockSpec((tk, n1), lambda k: (k, 0)),   # 1 MiB int8, 2-buffered
                pl.BlockSpec((1, n1), lambda k: (0, 0)),
                pl.BlockSpec((1, n1), lambda k: (0, 0)),
                pl.BlockSpec((n1, nc), lambda k: (0, 0)),
                pl.BlockSpec((1, nc), lambda k: (0, 0)),
            ],
            out_specs=pl.BlockSpec((B, nc), lambda k: (0, 0)),
            scratch_shapes=[pltpu.VMEM((B, n1), jnp.float32)],
        ),
        compiler_params=pltpu.CompilerParams(
            dimension_semantics=("arbitrary",)),
    )(x, w1q, s1, b1, w2, b2)


# ----------------------------------------------------------------------------
# Wrapper glue: zero-pad + split the NCHW feature map into its 4 parity planes,
# stacked as one (B, 4, C, hq*wq) bf16 array (single DMA per grid step).
# Row pad (1,3); col pad (1,col_pad) chosen so every tap slice stays in-bounds
# and the conv output lane width is a multiple of 128.
# ----------------------------------------------------------------------------
def prep_conv_input(x, c_pad=None, col_pad=3):
    B, C, H, W = x.shape
    assert H % 2 == 0 and W % 2 == 0 and (W + 1 + col_pad) % 2 == 0
    if c_pad is not None and c_pad > C:          # pad Cin to a sublane multiple
        x = jnp.pad(x, ((0, 0), (0, c_pad - C), (0, 0), (0, 0)))
        C = c_pad
    x = x.astype(jnp.bfloat16)
    xp = jnp.pad(x, ((0, 0), (0, 0), (1, 3), (1, col_pad)))
    hq, wq = (H + 4) // 2, (W + 1 + col_pad) // 2
    planes = [xp[:, :, r::2, c::2].reshape(B, C, hq * wq)
              for r in (0, 1) for c in (0, 1)]
    return jnp.stack(planes, axis=1), wq          # (B, 4, C, hq*wq) bf16


def simple_cnn_forward(x, params):
    B, _, H, W = x.shape
    # conv1 + relu + pool (fused), bf16 out; n_out1 = 64*66 = 4224 = 33*128
    s1, wq1 = prep_conv_input(x, c_pad=8, col_pad=3)
    ho1, wo1 = H // 2, W // 2
    y1 = conv_relu_pool(s1, params["w1m"], params["b1"], wq=wq1, ho=ho1,
                        out_dtype=jnp.bfloat16)                   # (B,16,4224)
    y1 = y1.reshape(B, 16, ho1, wq1)[:, :, :, :wo1]               # (B,16,64,64)
    # conv2 + relu + pool (fused); col_pad=7 -> n_out2 = 32*36 = 1152 = 9*128
    s2, wq2 = prep_conv_input(y1, col_pad=7)
    ho2, wo2 = ho1 // 2, wo1 // 2
    y2 = conv_relu_pool(s2, params["w2m"], params["b2"], wq=wq2, ho=ho2,
                        out_dtype=jnp.bfloat16)                   # (B,32,1152)
    # Flatten: layout is channels-major NCHW => matches PyTorch x.view(B,-1)
    feat = y2.reshape(B, 32, ho2, wq2)[:, :, :, :wo2].reshape(B, -1)  # (B,32768)
    # fused fc1(int8 weights) + relu + fc2
    return mlp_head(feat, params["wf1_q"], params["wf1_s"], params["bf1"],
                    params["wf2"], params["bf2"], tk=8192)


# ----------------------------------------------------------------------------
# Parameters: PyTorch-layout init + one-time conversion to kernel layouts/dtypes.
# ----------------------------------------------------------------------------
def init_params(key, num_classes=2):
    ks = jax.random.split(key, 8)

    def u(k, shape, fan_in):
        b = 1.0 / jnp.sqrt(fan_in)
        return jax.random.uniform(k, shape, jnp.float32, -b, b)

    return {
        "conv1_w": u(ks[0], (16, 3, 3, 3), 3 * 9),        # (Cout, Cin, kh, kw)
        "conv1_b": u(ks[1], (16,), 3 * 9),
        "conv2_w": u(ks[2], (32, 16, 3, 3), 16 * 9),
        "conv2_b": u(ks[3], (32,), 16 * 9),
        "fc1_w": u(ks[4], (128, 32 * 32 * 32), 32 * 32 * 32),   # (out, in)
        "fc1_b": u(ks[5], (128,), 32 * 32 * 32),
        "fc2_w": u(ks[6], (num_classes, 128), 128),
        "fc2_b": u(ks[7], (128,), 128)[:num_classes] * 0 + u(ks[7], (num_classes,), 128),
    }


def pack_conv_weight(w, c_pad=None):
    """(Cout, Cin, 3, 3) -> pre-scattered (4*Cout, 16*Cpad) bf16 master weight.

    Row block p = ph*2 + pw (pool-window class); column block (u, v) = padded
    tap offsets; entry = w[co, ci, u-ph, v-pw] when 0 <= u-ph, v-pw < 3 else 0.
    """
    cout, cin, kh, kw = w.shape
    cp = cin if c_pad is None else max(c_pad, cin)
    wm = jnp.zeros((4, cout, 4, 4, cp), jnp.float32)
    for ph in range(2):
        for pw in range(2):
            p = ph * 2 + pw
            for dy in range(kh):
                for dx in range(kw):
                    wm = wm.at[p, :, ph + dy, pw + dx, :cin].set(w[:, :, dy, dx])
    return wm.reshape(4 * cout, 16 * cp).astype(jnp.bfloat16)


def quantize_cols_int8(w):
    """Per-output-channel symmetric int8 quantization of a (K, N) weight."""
    amax = jnp.max(jnp.abs(w), axis=0, keepdims=True)
    scale = jnp.maximum(amax, 1e-8) / 127.0                     # (1, N) f32
    wq = jnp.clip(jnp.round(w / scale), -127, 127).astype(jnp.int8)
    return wq, scale


def prepare_params(p, c1_pad=8):
    wf1 = p["fc1_w"].T                                          # (32768, 128)
    wf1_q, wf1_s = quantize_cols_int8(wf1)
    return {
        "w1m": pack_conv_weight(p["conv1_w"], c_pad=c1_pad),    # (64, 128) bf16
        "b1": p["conv1_b"].reshape(-1, 1),                      # f32
        "w2m": pack_conv_weight(p["conv2_w"]),                  # (128, 256) bf16
        "b2": p["conv2_b"].reshape(-1, 1),                      # f32
        "wf1_q": wf1_q,                                         # (32768,128) int8
        "wf1_s": wf1_s,                                         # (1,128) f32
        "bf1": p["fc1_b"].reshape(1, -1),                       # f32
        "wf2": p["fc2_w"].T,                                    # (128, nc) f32
        "bf2": p["fc2_b"].reshape(1, -1),                       # f32
    }


if __name__ == "__main__":
    key = jax.random.PRNGKey(0)
    kx, kp = jax.random.split(key)
    # Batch 2; fc1's 32*32*32 fan-in pins the spatial size to 128x128.
    x = jax.random.normal(kx, (2, 3, 128, 128), jnp.float32)
    params = prepare_params(init_params(kp, num_classes=2))

    fwd = jax.jit(simple_cnn_forward)
    out = fwd(x, params)
    jax.block_until_ready(out)
    assert out.shape == (2, 2) and out.dtype == jnp.float32
    print("KERNEL_OK")
</pallas_src>

<mosaic_0001>
module attributes {stable_mosaic.version = 11 : i64} {
  func.func @_conv_relu_pool_kernel(%arg0: i32, %arg1: memref<1x4x8x4356xbf16, #tpu.memory_space<vmem>>, %arg2: memref<64x128xbf16, #tpu.memory_space<vmem>>, %arg3: memref<16x1xf32, #tpu.memory_space<vmem>>, %arg4: memref<1x16x4224xbf16, #tpu.memory_space<vmem>>) attributes {dimension_semantics = [#tpu.dimension_semantics<parallel>], iteration_bounds = array<i64: 2>, scalar_prefetch = 0 : i64, scratch_operands = 0 : i64, tpu.core_type = #tpu.core_type<tc>, window_params = [{transform_indices = @transform_0, window_bounds = array<i64: 1, 4, 8, 4356>}, {pipeline_mode = #tpu.pipeline_mode<synchronous>, transform_indices = @transform_1, window_bounds = array<i64: 64, 128>}, {pipeline_mode = #tpu.pipeline_mode<synchronous>, transform_indices = @transform_2, window_bounds = array<i64: 16, 1>}, {transform_indices = @transform_3, window_bounds = array<i64: 1, 16, 4224>}]} {
    %c0 = arith.constant 0 : index
    %c0_0 = arith.constant 0 : index
    %c0_1 = arith.constant 0 : index
    %c0_2 = arith.constant 0 : index
    %0 = vector.load %arg1[%c0, %c0_0, %c0_1, %c0_2] : memref<1x4x8x4356xbf16, #tpu.memory_space<vmem>>, vector<1x1x8x4224xbf16>
    %1 = vector.shape_cast %0 : vector<1x1x8x4224xbf16> to vector<8x4224xbf16>
    %c0_3 = arith.constant 0 : index
    %c1 = arith.constant 1 : index
    %c0_4 = arith.constant 0 : index
    %c0_5 = arith.constant 0 : index
    %2 = vector.load %arg1[%c0_3, %c1, %c0_4, %c0_5] : memref<1x4x8x4356xbf16, #tpu.memory_space<vmem>>, vector<1x1x8x4224xbf16>
    %3 = vector.shape_cast %2 : vector<1x1x8x4224xbf16> to vector<8x4224xbf16>
    %c0_6 = arith.constant 0 : index
    %c0_7 = arith.constant 0 : index
    %c0_8 = arith.constant 0 : index
    %c1_9 = arith.constant 1 : index
    %4 = vector.load %arg1[%c0_6, %c0_7, %c0_8, %c1_9] : memref<1x4x8x4356xbf16, #tpu.memory_space<vmem>>, vector<1x1x8x4224xbf16>
    %5 = vector.shape_cast %4 : vector<1x1x8x4224xbf16> to vector<8x4224xbf16>
    %c0_10 = arith.constant 0 : index
    %c1_11 = arith.constant 1 : index
    %c0_12 = arith.constant 0 : index
    %c1_13 = arith.constant 1 : index
    %6 = vector.load %arg1[%c0_10, %c1_11, %c0_12, %c1_13] : memref<1x4x8x4356xbf16, #tpu.memory_space<vmem>>, vector<1x1x8x4224xbf16>
    %7 = vector.shape_cast %6 : vector<1x1x8x4224xbf16> to vector<8x4224xbf16>
    %c0_14 = arith.constant 0 : index
    %c2 = arith.constant 2 : index
    %c0_15 = arith.constant 0 : index
    %c0_16 = arith.constant 0 : index
    %8 = vector.load %arg1[%c0_14, %c2, %c0_15, %c0_16] : memref<1x4x8x4356xbf16, #tpu.memory_space<vmem>>, vector<1x1x8x4224xbf16>
    %9 = vector.shape_cast %8 : vector<1x1x8x4224xbf16> to vector<8x4224xbf16>
    %c0_17 = arith.constant 0 : index
    %c3 = arith.constant 3 : index
    %c0_18 = arith.constant 0 : index
    %c0_19 = arith.constant 0 : index
    %10 = vector.load %arg1[%c0_17, %c3, %c0_18, %c0_19] : memref<1x4x8x4356xbf16, #tpu.memory_space<vmem>>, vector<1x1x8x4224xbf16>
    %11 = vector.shape_cast %10 : vector<1x1x8x4224xbf16> to vector<8x4224xbf16>
    %c0_20 = arith.constant 0 : index
    %c2_21 = arith.constant 2 : index
    %c0_22 = arith.constant 0 : index
    %c1_23 = arith.constant 1 : index
    %12 = vector.load %arg1[%c0_20, %c2_21, %c0_22, %c1_23] : memref<1x4x8x4356xbf16, #tpu.memory_space<vmem>>, vector<1x1x8x4224xbf16>
    %13 = vector.shape_cast %12 : vector<1x1x8x4224xbf16> to vector<8x4224xbf16>
    %c0_24 = arith.constant 0 : index
    %c3_25 = arith.constant 3 : index
    %c0_26 = arith.constant 0 : index
    %c1_27 = arith.constant 1 : index
    %14 = vector.load %arg1[%c0_24, %c3_25, %c0_26, %c1_27] : memref<1x4x8x4356xbf16, #tpu.memory_space<vmem>>, vector<1x1x8x4224xbf16>
    %15 = vector.shape_cast %14 : vector<1x1x8x4224xbf16> to vector<8x4224xbf16>
    %c0_28 = arith.constant 0 : index
    %c0_29 = arith.constant 0 : index
    %c0_30 = arith.constant 0 : index
    %c66 = arith.constant 66 : index
    %16 = vector.load %arg1[%c0_28, %c0_29, %c0_30, %c66] : memref<1x4x8x4356xbf16, #tpu.memory_space<vmem>>, vector<1x1x8x4224xbf16>
    %17 = vector.shape_cast %16 : vector<1x1x8x4224xbf16> to vector<8x4224xbf16>
    %c0_31 = arith.constant 0 : index
    %c1_32 = arith.constant 1 : index
    %c0_33 = arith.constant 0 : index
    %c66_34 = arith.constant 66 : index
    %18 = vector.load %arg1[%c0_31, %c1_32, %c0_33, %c66_34] : memref<1x4x8x4356xbf16, #tpu.memory_space<vmem>>, vector<1x1x8x4224xbf16>
    %19 = vector.shape_cast %18 : vector<1x1x8x4224xbf16> to vector<8x4224xbf16>
    %c0_35 = arith.constant 0 : index
    %c0_36 = arith.constant 0 : index
    %c0_37 = arith.constant 0 : index
    %c67 = arith.constant 67 : index
    %20 = vector.load %arg1[%c0_35, %c0_36, %c0_37, %c67] : memref<1x4x8x4356xbf16, #tpu.memory_space<vmem>>, vector<1x1x8x4224xbf16>
    %21 = vector.shape_cast %20 : vector<1x1x8x4224xbf16> to vector<8x4224xbf16>
    %c0_38 = arith.constant 0 : index
    %c1_39 = arith.constant 1 : index
    %c0_40 = arith.constant 0 : index
    %c67_41 = arith.constant 67 : index
    %22 = vector.load %arg1[%c0_38, %c1_39, %c0_40, %c67_41] : memref<1x4x8x4356xbf16, #tpu.memory_space<vmem>>, vector<1x1x8x4224xbf16>
    %23 = vector.shape_cast %22 : vector<1x1x8x4224xbf16> to vector<8x4224xbf16>
    %c0_42 = arith.constant 0 : index
    %c2_43 = arith.constant 2 : index
    %c0_44 = arith.constant 0 : index
    %c66_45 = arith.constant 66 : index
    %24 = vector.load %arg1[%c0_42, %c2_43, %c0_44, %c66_45] : memref<1x4x8x4356xbf16, #tpu.memory_space<vmem>>, vector<1x1x8x4224xbf16>
    %25 = vector.shape_cast %24 : vector<1x1x8x4224xbf16> to vector<8x4224xbf16>
    %c0_46 = arith.constant 0 : index
    %c3_47 = arith.constant 3 : index
    %c0_48 = arith.constant 0 : index
    %c66_49 = arith.constant 66 : index
    %26 = vector.load %arg1[%c0_46, %c3_47, %c0_48, %c66_49] : memref<1x4x8x4356xbf16, #tpu.memory_space<vmem>>, vector<1x1x8x4224xbf16>
    %27 = vector.shape_cast %26 : vector<1x1x8x4224xbf16> to vector<8x4224xbf16>
    %c0_50 = arith.constant 0 : index
    %c2_51 = arith.constant 2 : index
    %c0_52 = arith.constant 0 : index
    %c67_53 = arith.constant 67 : index
    %28 = vector.load %arg1[%c0_50, %c2_51, %c0_52, %c67_53] : memref<1x4x8x4356xbf16, #tpu.memory_space<vmem>>, vector<1x1x8x4224xbf16>
    %29 = vector.shape_cast %28 : vector<1x1x8x4224xbf16> to vector<8x4224xbf16>
    %c0_54 = arith.constant 0 : index
    %c3_55 = arith.constant 3 : index
    %c0_56 = arith.constant 0 : index
    %c67_57 = arith.constant 67 : index
    %30 = vector.load %arg1[%c0_54, %c3_55, %c0_56, %c67_57] : memref<1x4x8x4356xbf16, #tpu.memory_space<vmem>>, vector<1x1x8x4224xbf16>
    %31 = vector.shape_cast %30 : vector<1x1x8x4224xbf16> to vector<8x4224xbf16>
    %32 = tpu.concatenate %1, %3, %5, %7, %9, %11, %13, %15, %17, %19, %21, %23, %25, %27, %29, %31 in 0 : vector<8x4224xbf16>, vector<8x4224xbf16>, vector<8x4224xbf16>, vector<8x4224xbf16>, vector<8x4224xbf16>, vector<8x4224xbf16>, vector<8x4224xbf16>, vector<8x4224xbf16>, vector<8x4224xbf16>, vector<8x4224xbf16>, vector<8x4224xbf16>, vector<8x4224xbf16>, vector<8x4224xbf16>, vector<8x4224xbf16>, vector<8x4224xbf16>, vector<8x4224xbf16> -> vector<128x4224xbf16>
    %c0_58 = arith.constant 0 : index
    %c0_59 = arith.constant 0 : index
    %33 = vector.load %arg2[%c0_58, %c0_59] : memref<64x128xbf16, #tpu.memory_space<vmem>>, vector<64x128xbf16>
    %cst = arith.constant dense<0.000000e+00> : vector<64x4224xf32>
    %34 = tpu.matmul %33, %32, %cst {dimension_numbers = #tpu.dot_dimension_numbers<[1], [0], [0], [1], [0, 0, 1, 1], [], []>} : vector<64x128xbf16>, vector<128x4224xbf16>, vector<64x4224xf32> -> vector<64x4224xf32>
    %35 = vector.extract_strided_slice %34 {offsets = [0, 0], sizes = [16, 4224], strides = [1, 1]} : vector<64x4224xf32> to vector<16x4224xf32>
    %36 = vector.extract_strided_slice %34 {offsets = [16, 0], sizes = [16, 4224], strides = [1, 1]} : vector<64x4224xf32> to vector<16x4224xf32>
    %37 = arith.maximumf %35, %36 : vector<16x4224xf32>
    %38 = vector.extract_strided_slice %34 {offsets = [32, 0], sizes = [16, 4224], strides = [1, 1]} : vector<64x4224xf32> to vector<16x4224xf32>
    %39 = vector.extract_strided_slice %34 {offsets = [48, 0], sizes = [16, 4224], strides = [1, 1]} : vector<64x4224xf32> to vector<16x4224xf32>
    %40 = arith.maximumf %38, %39 : vector<16x4224xf32>
    %41 = arith.maximumf %37, %40 : vector<16x4224xf32>
    %c0_60 = arith.constant 0 : index
    %c0_61 = arith.constant 0 : index
    %42 = vector.load %arg3[%c0_60, %c0_61] : memref<16x1xf32, #tpu.memory_space<vmem>>, vector<16x1xf32>
    %43 = vector.broadcast %42 : vector<16x1xf32> to vector<16x4224xf32>
    %44 = arith.addf %41, %43 : vector<16x4224xf32>
    %cst_62 = arith.constant 0.000000e+00 : f32
    %45 = vector.broadcast %cst_62 : f32 to vector<16x4224xf32>
    %46 = arith.maximumf %44, %45 : vector<16x4224xf32>
    %47 = arith.truncf %46 : vector<16x4224xf32> to vector<16x4224xbf16>
    %c0_63 = arith.constant 0 : index
    %c0_64 = arith.constant 0 : index
    %c0_65 = arith.constant 0 : index
    %48 = vector.load %arg4[%c0_63, %c0_64, %c0_65] : memref<1x16x4224xbf16, #tpu.memory_space<vmem>>, vector<1x16x4224xbf16>
    %49 = vector.shape_cast %48 : vector<1x16x4224xbf16> to vector<16x4224xbf16>
    %50 = vector.shape_cast %47 : vector<16x4224xbf16> to vector<1x16x4224xbf16>
    tpu.vector_store %arg4[%c0_63, %c0_64, %c0_65], %50 {strides = array<i32>} : memref<1x16x4224xbf16, #tpu.memory_space<vmem>>, vector<1x16x4224xbf16>,
    return
  }
  func.func @transform_0(%arg0: i32) -> (i32, i32, i32, i32) {
    %c0_i32 = arith.constant 0 : i32
    %c0_i32_0 = arith.constant 0 : i32
    %c0_i32_1 = arith.constant 0 : i32
    %c0_i32_2 = arith.constant 0 : i32
    return %arg0, %c0_i32, %c0_i32_0, %c0_i32_1 : i32, i32, i32, i32
  }
  func.func @transform_1(%arg0: i32) -> (i32, i32) {
    %c0_i32 = arith.constant 0 : i32
    %c0_i32_0 = arith.constant 0 : i32
    %c0_i32_1 = arith.constant 0 : i32
    return %c0_i32, %c0_i32_0 : i32, i32
  }
  func.func @transform_2(%arg0: i32) -> (i32, i32) {
    %c0_i32 = arith.constant 0 : i32
    %c0_i32_0 = arith.constant 0 : i32
    %c0_i32_1 = arith.constant 0 : i32
    return %c0_i32, %c0_i32_0 : i32, i32
  }
  func.func @transform_3(%arg0: i32) -> (i32, i32, i32) {
    %c0_i32 = arith.constant 0 : i32
    %c0_i32_0 = arith.constant 0 : i32
    %c0_i32_1 = arith.constant 0 : i32
    return %arg0, %c0_i32, %c0_i32_0 : i32, i32, i32
  }
}

module attributes {stable_mosaic.version = 11 : i64} {
  func.func @_conv_relu_pool_kernel(%arg0: i32, %arg1: memref<1x4x16x1224xbf16, #tpu.memory_space<vmem>>, %arg2: memref<128x256xbf16, #tpu.memory_space<vmem>>, %arg3: memref<32x1xf32, #tpu.memory_space<vmem>>, %arg4: memref<1x32x1152xbf16, #tpu.memory_space<vmem>>) attributes {dimension_semantics = [#tpu.dimension_semantics<parallel>], iteration_bounds = array<i64: 2>, scalar_prefetch = 0 : i64, scratch_operands = 0 : i64, tpu.core_type = #tpu.core_type<tc>, window_params = [{transform_indices = @transform_0, window_bounds = array<i64: 1, 4, 16, 1224>}, {pipeline_mode = #tpu.pipeline_mode<synchronous>, transform_indices = @transform_1, window_bounds = array<i64: 128, 256>}, {pipeline_mode = #tpu.pipeline_mode<synchronous>, transform_indices = @transform_2, window_bounds = array<i64: 32, 1>}, {transform_indices = @transform_3, window_bounds = array<i64: 1, 32, 1152>}]} {
    %c0 = arith.constant 0 : index
    %c0_0 = arith.constant 0 : index
    %c0_1 = arith.constant 0 : index
    %c0_2 = arith.constant 0 : index
    %0 = vector.load %arg1[%c0, %c0_0, %c0_1, %c0_2] : memref<1x4x16x1224xbf16, #tpu.memory_space<vmem>>, vector<1x1x16x1152xbf16>
    %1 = vector.shape_cast %0 : vector<1x1x16x1152xbf16> to vector<16x1152xbf16>
    %c0_3 = arith.constant 0 : index
    %c1 = arith.constant 1 : index
    %c0_4 = arith.constant 0 : index
    %c0_5 = arith.constant 0 : index
    %2 = vector.load %arg1[%c0_3, %c1, %c0_4, %c0_5] : memref<1x4x16x1224xbf16, #tpu.memory_space<vmem>>, vector<1x1x16x1152xbf16>
    %3 = vector.shape_cast %2 : vector<1x1x16x1152xbf16> to vector<16x1152xbf16>
    %c0_6 = arith.constant 0 : index
    %c0_7 = arith.constant 0 : index
    %c0_8 = arith.constant 0 : index
    %c1_9 = arith.constant 1 : index
    %4 = vector.load %arg1[%c0_6, %c0_7, %c0_8, %c1_9] : memref<1x4x16x1224xbf16, #tpu.memory_space<vmem>>, vector<1x1x16x1152xbf16>
    %5 = vector.shape_cast %4 : vector<1x1x16x1152xbf16> to vector<16x1152xbf16>
    %c0_10 = arith.constant 0 : index
    %c1_11 = arith.constant 1 : index
    %c0_12 = arith.constant 0 : index
    %c1_13 = arith.constant 1 : index
    %6 = vector.load %arg1[%c0_10, %c1_11, %c0_12, %c1_13] : memref<1x4x16x1224xbf16, #tpu.memory_space<vmem>>, vector<1x1x16x1152xbf16>
    %7 = vector.shape_cast %6 : vector<1x1x16x1152xbf16> to vector<16x1152xbf16>
    %c0_14 = arith.constant 0 : index
    %c2 = arith.constant 2 : index
    %c0_15 = arith.constant 0 : index
    %c0_16 = arith.constant 0 : index
    %8 = vector.load %arg1[%c0_14, %c2, %c0_15, %c0_16] : memref<1x4x16x1224xbf16, #tpu.memory_space<vmem>>, vector<1x1x16x1152xbf16>
    %9 = vector.shape_cast %8 : vector<1x1x16x1152xbf16> to vector<16x1152xbf16>
    %c0_17 = arith.constant 0 : index
    %c3 = arith.constant 3 : index
    %c0_18 = arith.constant 0 : index
    %c0_19 = arith.constant 0 : index
    %10 = vector.load %arg1[%c0_17, %c3, %c0_18, %c0_19] : memref<1x4x16x1224xbf16, #tpu.memory_space<vmem>>, vector<1x1x16x1152xbf16>
    %11 = vector.shape_cast %10 : vector<1x1x16x1152xbf16> to vector<16x1152xbf16>
    %c0_20 = arith.constant 0 : index
    %c2_21 = arith.constant 2 : index
    %c0_22 = arith.constant 0 : index
    %c1_23 = arith.constant 1 : index
    %12 = vector.load %arg1[%c0_20, %c2_21, %c0_22, %c1_23] : memref<1x4x16x1224xbf16, #tpu.memory_space<vmem>>, vector<1x1x16x1152xbf16>
    %13 = vector.shape_cast %12 : vector<1x1x16x1152xbf16> to vector<16x1152xbf16>
    %c0_24 = arith.constant 0 : index
    %c3_25 = arith.constant 3 : index
    %c0_26 = arith.constant 0 : index
    %c1_27 = arith.constant 1 : index
    %14 = vector.load %arg1[%c0_24, %c3_25, %c0_26, %c1_27] : memref<1x4x16x1224xbf16, #tpu.memory_space<vmem>>, vector<1x1x16x1152xbf16>
    %15 = vector.shape_cast %14 : vector<1x1x16x1152xbf16> to vector<16x1152xbf16>
    %c0_28 = arith.constant 0 : index
    %c0_29 = arith.constant 0 : index
    %c0_30 = arith.constant 0 : index
    %c36 = arith.constant 36 : index
    %16 = vector.load %arg1[%c0_28, %c0_29, %c0_30, %c36] : memref<1x4x16x1224xbf16, #tpu.memory_space<vmem>>, vector<1x1x16x1152xbf16>
    %17 = vector.shape_cast %16 : vector<1x1x16x1152xbf16> to vector<16x1152xbf16>
    %c0_31 = arith.constant 0 : index
    %c1_32 = arith.constant 1 : index
    %c0_33 = arith.constant 0 : index
    %c36_34 = arith.constant 36 : index
    %18 = vector.load %arg1[%c0_31, %c1_32, %c0_33, %c36_34] : memref<1x4x16x1224xbf16, #tpu.memory_space<vmem>>, vector<1x1x16x1152xbf16>
    %19 = vector.shape_cast %18 : vector<1x1x16x1152xbf16> to vector<16x1152xbf16>
    %c0_35 = arith.constant 0 : index
    %c0_36 = arith.constant 0 : index
    %c0_37 = arith.constant 0 : index
    %c37 = arith.constant 37 : index
    %20 = vector.load %arg1[%c0_35, %c0_36, %c0_37, %c37] : memref<1x4x16x1224xbf16, #tpu.memory_space<vmem>>, vector<1x1x16x1152xbf16>
    %21 = vector.shape_cast %20 : vector<1x1x16x1152xbf16> to vector<16x1152xbf16>
    %c0_38 = arith.constant 0 : index
    %c1_39 = arith.constant 1 : index
    %c0_40 = arith.constant 0 : index
    %c37_41 = arith.constant 37 : index
    %22 = vector.load %arg1[%c0_38, %c1_39, %c0_40, %c37_41] : memref<1x4x16x1224xbf16, #tpu.memory_space<vmem>>, vector<1x1x16x1152xbf16>
    %23 = vector.shape_cast %22 : vector<1x1x16x1152xbf16> to vector<16x1152xbf16>
    %c0_42 = arith.constant 0 : index
    %c2_43 = arith.constant 2 : index
    %c0_44 = arith.constant 0 : index
    %c36_45 = arith.constant 36 : index
    %24 = vector.load %arg1[%c0_42, %c2_43, %c0_44, %c36_45] : memref<1x4x16x1224xbf16, #tpu.memory_space<vmem>>, vector<1x1x16x1152xbf16>
    %25 = vector.shape_cast %24 : vector<1x1x16x1152xbf16> to vector<16x1152xbf16>
    %c0_46 = arith.constant 0 : index
    %c3_47 = arith.constant 3 : index
    %c0_48 = arith.constant 0 : index
    %c36_49 = arith.constant 36 : index
    %26 = vector.load %arg1[%c0_46, %c3_47, %c0_48, %c36_49] : memref<1x4x16x1224xbf16, #tpu.memory_space<vmem>>, vector<1x1x16x1152xbf16>
    %27 = vector.shape_cast %26 : vector<1x1x16x1152xbf16> to vector<16x1152xbf16>
    %c0_50 = arith.constant 0 : index
    %c2_51 = arith.constant 2 : index
    %c0_52 = arith.constant 0 : index
    %c37_53 = arith.constant 37 : index
    %28 = vector.load %arg1[%c0_50, %c2_51, %c0_52, %c37_53] : memref<1x4x16x1224xbf16, #tpu.memory_space<vmem>>, vector<1x1x16x1152xbf16>
    %29 = vector.shape_cast %28 : vector<1x1x16x1152xbf16> to vector<16x1152xbf16>
    %c0_54 = arith.constant 0 : index
    %c3_55 = arith.constant 3 : index
    %c0_56 = arith.constant 0 : index
    %c37_57 = arith.constant 37 : index
    %30 = vector.load %arg1[%c0_54, %c3_55, %c0_56, %c37_57] : memref<1x4x16x1224xbf16, #tpu.memory_space<vmem>>, vector<1x1x16x1152xbf16>
    %31 = vector.shape_cast %30 : vector<1x1x16x1152xbf16> to vector<16x1152xbf16>
    %32 = tpu.concatenate %1, %3, %5, %7, %9, %11, %13, %15, %17, %19, %21, %23, %25, %27, %29, %31 in 0 : vector<16x1152xbf16>, vector<16x1152xbf16>, vector<16x1152xbf16>, vector<16x1152xbf16>, vector<16x1152xbf16>, vector<16x1152xbf16>, vector<16x1152xbf16>, vector<16x1152xbf16>, vector<16x1152xbf16>, vector<16x1152xbf16>, vector<16x1152xbf16>, vector<16x1152xbf16>, vector<16x1152xbf16>, vector<16x1152xbf16>, vector<16x1152xbf16>, vector<16x1152xbf16> -> vector<256x1152xbf16>
    %c0_58 = arith.constant 0 : index
    %c0_59 = arith.constant 0 : index
    %33 = vector.load %arg2[%c0_58, %c0_59] : memref<128x256xbf16, #tpu.memory_space<vmem>>, vector<128x256xbf16>
    %cst = arith.constant dense<0.000000e+00> : vector<128x1152xf32>
    %34 = tpu.matmul %33, %32, %cst {dimension_numbers = #tpu.dot_dimension_numbers<[1], [0], [0], [1], [0, 0, 1, 1], [], []>} : vector<128x256xbf16>, vector<256x1152xbf16>, vector<128x1152xf32> -> vector<128x1152xf32>
    %35 = vector.extract_strided_slice %34 {offsets = [0, 0], sizes = [32, 1152], strides = [1, 1]} : vector<128x1152xf32> to vector<32x1152xf32>
    %36 = vector.extract_strided_slice %34 {offsets = [32, 0], sizes = [32, 1152], strides = [1, 1]} : vector<128x1152xf32> to vector<32x1152xf32>
    %37 = arith.maximumf %35, %36 : vector<32x1152xf32>
    %38 = vector.extract_strided_slice %34 {offsets = [64, 0], sizes = [32, 1152], strides = [1, 1]} : vector<128x1152xf32> to vector<32x1152xf32>
    %39 = vector.extract_strided_slice %34 {offsets = [96, 0], sizes = [32, 1152], strides = [1, 1]} : vector<128x1152xf32> to vector<32x1152xf32>
    %40 = arith.maximumf %38, %39 : vector<32x1152xf32>
    %41 = arith.maximumf %37, %40 : vector<32x1152xf32>
    %c0_60 = arith.constant 0 : index
    %c0_61 = arith.constant 0 : index
    %42 = vector.load %arg3[%c0_60, %c0_61] : memref<32x1xf32, #tpu.memory_space<vmem>>, vector<32x1xf32>
    %43 = vector.broadcast %42 : vector<32x1xf32> to vector<32x1152xf32>
    %44 = arith.addf %41, %43 : vector<32x1152xf32>
    %cst_62 = arith.constant 0.000000e+00 : f32
    %45 = vector.broadcast %cst_62 : f32 to vector<32x1152xf32>
    %46 = arith.maximumf %44, %45 : vector<32x1152xf32>
    %47 = arith.truncf %46 : vector<32x1152xf32> to vector<32x1152xbf16>
    %c0_63 = arith.constant 0 : index
    %c0_64 = arith.constant 0 : index
    %c0_65 = arith.constant 0 : index
    %48 = vector.load %arg4[%c0_63, %c0_64, %c0_65] : memref<1x32x1152xbf16, #tpu.memory_space<vmem>>, vector<1x32x1152xbf16>
    %49 = vector.shape_cast %48 : vector<1x32x1152xbf16> to vector<32x1152xbf16>
    %50 = vector.shape_cast %47 : vector<32x1152xbf16> to vector<1x32x1152xbf16>
    tpu.vector_store %arg4[%c0_63, %c0_64, %c0_65], %50 {strides = array<i32>} : memref<1x32x1152xbf16, #tpu.memory_space<vmem>>, vector<1x32x1152xbf16>,
    return
  }
  func.func @transform_0(%arg0: i32) -> (i32, i32, i32, i32) {
    %c0_i32 = arith.constant 0 : i32
    %c0_i32_0 = arith.constant 0 : i32
    %c0_i32_1 = arith.constant 0 : i32
    %c0_i32_2 = arith.constant 0 : i32
    return %arg0, %c0_i32, %c0_i32_0, %c0_i32_1 : i32, i32, i32, i32
  }
  func.func @transform_1(%arg0: i32) -> (i32, i32) {
    %c0_i32 = arith.constant 0 : i32
    %c0_i32_0 = arith.constant 0 : i32
    %c0_i32_1 = arith.constant 0 : i32
    return %c0_i32, %c0_i32_0 : i32, i32
  }
  func.func @transform_2(%arg0: i32) -> (i32, i32) {
    %c0_i32 = arith.constant 0 : i32
    %c0_i32_0 = arith.constant 0 : i32
    %c0_i32_1 = arith.constant 0 : i32
    return %c0_i32, %c0_i32_0 : i32, i32
  }
  func.func @transform_3(%arg0: i32) -> (i32, i32, i32) {
    %c0_i32 = arith.constant 0 : i32
    %c0_i32_0 = arith.constant 0 : i32
    %c0_i32_1 = arith.constant 0 : i32
    return %arg0, %c0_i32, %c0_i32_0 : i32, i32, i32
  }
}

module attributes {stable_mosaic.version = 11 : i64} {
  func.func @_mlp_kernel(%arg0: i32, %arg1: memref<2x8192xbf16, #tpu.memory_space<vmem>>, %arg2: memref<8192x128xi8, #tpu.memory_space<vmem>>, %arg3: memref<1x128xf32, #tpu.memory_space<vmem>>, %arg4: memref<1x128xf32, #tpu.memory_space<vmem>>, %arg5: memref<128x2xf32, #tpu.memory_space<vmem>>, %arg6: memref<1x2xf32, #tpu.memory_space<vmem>>, %arg7: memref<2x2xf32, #tpu.memory_space<vmem>>, %arg8: memref<2x128xf32, #tpu.memory_space<vmem>>) attributes {dimension_semantics = [#tpu.dimension_semantics<arbitrary>], iteration_bounds = array<i64: 4>, scalar_prefetch = 0 : i64, scratch_operands = 1 : i64, tpu.core_type = #tpu.core_type<tc>, window_params = [{transform_indices = @transform_0, window_bounds = array<i64: 2, 8192>}, {transform_indices = @transform_1, window_bounds = array<i64: 8192, 128>}, {pipeline_mode = #tpu.pipeline_mode<synchronous>, transform_indices = @transform_2, window_bounds = array<i64: 1, 128>}, {pipeline_mode = #tpu.pipeline_mode<synchronous>, transform_indices = @transform_3, window_bounds = array<i64: 1, 128>}, {pipeline_mode = #tpu.pipeline_mode<synchronous>, transform_indices = @transform_4, window_bounds = array<i64: 128, 2>}, {pipeline_mode = #tpu.pipeline_mode<synchronous>, transform_indices = @transform_5, window_bounds = array<i64: 1, 2>}, {pipeline_mode = #tpu.pipeline_mode<synchronous>, transform_indices = @transform_6, window_bounds = array<i64: 2, 2>}]} {
    %c0_i32 = arith.constant 0 : i32
    %0 = arith.cmpi eq, %arg0, %c0_i32 : i32
    %1 = arith.extui %0 : i1 to i32
    %c0_i32_0 = arith.constant 0 : i32
    %2 = arith.cmpi ne, %1, %c0_i32_0 : i32
    scf.if %2 {
      %cst_9 = arith.constant 0.000000e+00 : f32
      %13 = vector.broadcast %cst_9 : f32 to vector<2x128xf32>
      %c0_10 = arith.constant 0 : index
      %c0_11 = arith.constant 0 : index
      %14 = vector.load %arg8[%c0_10, %c0_11] : memref<2x128xf32, #tpu.memory_space<vmem>>, vector<2x128xf32>
      tpu.vector_store %arg8[%c0_10, %c0_11], %13 {strides = array<i32>} : memref<2x128xf32, #tpu.memory_space<vmem>>, vector<2x128xf32>,
    } else {
    }
    %c0 = arith.constant 0 : index
    %c0_1 = arith.constant 0 : index
    %3 = vector.load %arg2[%c0, %c0_1] : memref<8192x128xi8, #tpu.memory_space<vmem>>, vector<8192x128xi8>
    %4 = arith.sitofp %3 : vector<8192x128xi8> to vector<8192x128xbf16>
    %c0_2 = arith.constant 0 : index
    %c0_3 = arith.constant 0 : index
    %5 = vector.load %arg8[%c0_2, %c0_3] : memref<2x128xf32, #tpu.memory_space<vmem>>, vector<2x128xf32>
    %c0_4 = arith.constant 0 : index
    %c0_5 = arith.constant 0 : index
    %6 = vector.load %arg1[%c0_4, %c0_5] : memref<2x8192xbf16, #tpu.memory_space<vmem>>, vector<2x8192xbf16>
    %cst = arith.constant dense<0.000000e+00> : vector<2x128xf32>
    %7 = tpu.matmul %6, %4, %cst {dimension_numbers = #tpu.dot_dimension_numbers<[1], [0], [0], [1], [0, 0, 1, 1], [], []>} : vector<2x8192xbf16>, vector<8192x128xbf16>, vector<2x128xf32> -> vector<2x128xf32>
    %8 = arith.addf %5, %7 : vector<2x128xf32>
    %c0_6 = arith.constant 0 : index
    %c0_7 = arith.constant 0 : index
    %9 = vector.load %arg8[%c0_6, %c0_7] : memref<2x128xf32, #tpu.memory_space<vmem>>, vector<2x128xf32>
    tpu.vector_store %arg8[%c0_6, %c0_7], %8 {strides = array<i32>} : memref<2x128xf32, #tpu.memory_space<vmem>>, vector<2x128xf32>,
    %c3_i32 = arith.constant 3 : i32
    %10 = arith.cmpi eq, %arg0, %c3_i32 : i32
    %11 = arith.extui %10 : i1 to i32
    %c0_i32_8 = arith.constant 0 : i32
    %12 = arith.cmpi ne, %11, %c0_i32_8 : i32
    scf.if %12 {
      %c0_9 = arith.constant 0 : index
      %c0_10 = arith.constant 0 : index
      %13 = vector.load %arg8[%c0_9, %c0_10] : memref<2x128xf32, #tpu.memory_space<vmem>>, vector<2x128xf32>
      %c0_11 = arith.constant 0 : index
      %c0_12 = arith.constant 0 : index
      %14 = vector.load %arg3[%c0_11, %c0_12] : memref<1x128xf32, #tpu.memory_space<vmem>>, vector<1x128xf32>
      %15 = vector.broadcast %14 : vector<1x128xf32> to vector<2x128xf32>
      %16 = arith.mulf %13, %15 : vector<2x128xf32>
      %c0_13 = arith.constant 0 : index
      %c0_14 = arith.constant 0 : index
      %17 = vector.load %arg4[%c0_13, %c0_14] : memref<1x128xf32, #tpu.memory_space<vmem>>, vector<1x128xf32>
      %18 = vector.broadcast %17 : vector<1x128xf32> to vector<2x128xf32>
      %19 = arith.addf %16, %18 : vector<2x128xf32>
      %cst_15 = arith.constant 0.000000e+00 : f32
      %20 = vector.broadcast %cst_15 : f32 to vector<2x128xf32>
      %21 = arith.maximumf %19, %20 : vector<2x128xf32>
      %c0_16 = arith.constant 0 : index
      %c0_17 = arith.constant 0 : index
      %22 = vector.load %arg5[%c0_16, %c0_17] : memref<128x2xf32, #tpu.memory_space<vmem>>, vector<128x2xf32>
      %cst_18 = arith.constant dense<0.000000e+00> : vector<2x2xf32>
      %23 = tpu.matmul %21, %22, %cst_18 {dimension_numbers = #tpu.dot_dimension_numbers<[1], [0], [0], [1], [0, 0, 1, 1], [], []>} : vector<2x128xf32>, vector<128x2xf32>, vector<2x2xf32> -> vector<2x2xf32>
      %c0_19 = arith.constant 0 : index
      %c0_20 = arith.constant 0 : index
      %24 = vector.load %arg6[%c0_19, %c0_20] : memref<1x2xf32, #tpu.memory_space<vmem>>, vector<1x2xf32>
      %25 = vector.broadcast %24 : vector<1x2xf32> to vector<2x2xf32>
      %26 = arith.addf %23, %25 : vector<2x2xf32>
      %c0_21 = arith.constant 0 : index
      %c0_22 = arith.constant 0 : index
      %27 = vector.load %arg7[%c0_21, %c0_22] : memref<2x2xf32, #tpu.memory_space<vmem>>, vector<2x2xf32>
      tpu.vector_store %arg7[%c0_21, %c0_22], %26 {strides = array<i32>} : memref<2x2xf32, #tpu.memory_space<vmem>>, vector<2x2xf32>,
    } else {
    }
    return
  }
  func.func @transform_0(%arg0: i32) -> (i32, i32) {
    %c0_i32 = arith.constant 0 : i32
    %c0_i32_0 = arith.constant 0 : i32
    return %c0_i32, %arg0 : i32, i32
  }
  func.func @transform_1(%arg0: i32) -> (i32, i32) {
    %c0_i32 = arith.constant 0 : i32
    %c0_i32_0 = arith.constant 0 : i32
    return %arg0, %c0_i32 : i32, i32
  }
  func.func @transform_2(%arg0: i32) -> (i32, i32) {
    %c0_i32 = arith.constant 0 : i32
    %c0_i32_0 = arith.constant 0 : i32
    %c0_i32_1 = arith.constant 0 : i32
    return %c0_i32, %c0_i32_0 : i32, i32
  }
  func.func @transform_3(%arg0: i32) -> (i32, i32) {
    %c0_i32 = arith.constant 0 : i32
    %c0_i32_0 = arith.constant 0 : i32
    %c0_i32_1 = arith.constant 0 : i32
    return %c0_i32, %c0_i32_0 : i32, i32
  }
  func.func @transform_4(%arg0: i32) -> (i32, i32) {
    %c0_i32 = arith.constant 0 : i32
    %c0_i32_0 = arith.constant 0 : i32
    %c0_i32_1 = arith.constant 0 : i32
    return %c0_i32, %c0_i32_0 : i32, i32
  }
  func.func @transform_5(%arg0: i32) -> (i32, i32) {
    %c0_i32 = arith.constant 0 : i32
    %c0_i32_0 = arith.constant 0 : i32
    %c0_i32_1 = arith.constant 0 : i32
    return %c0_i32, %c0_i32_0 : i32, i32
  }
  func.func @transform_6(%arg0: i32) -> (i32, i32) {
    %c0_i32 = arith.constant 0 : i32
    %c0_i32_0 = arith.constant 0 : i32
    %c0_i32_1 = arith.constant 0 : i32
    return %c0_i32, %c0_i32_0 : i32, i32
  }
}

</mosaic_0001>

<llo_original>
// kernel: simple_cnn_forward.3
$region0: #{simple_cnn_forward.3}
  #allocation0 [shape = 'u32[]', space=smem, size = 0x4, offset = 0x4, fixed_abs, tag = 'smem constant byte address 0x4 - core index']
  #allocation1 [shape = 'u32[144,128]{1,0:T(1,128)}', space=vmem, size = 0x12000, scoped, tag = 'internal scratch']
  %s0 = inlined_call_operand.vmem [shape: bf16[2,4,8,4356], index: 0, kind: input, shape index: {}]
  %s1 = inlined_call_operand.vmem [shape: bf16[64,128], index: 1, kind: input, shape index: {}]
  %s2 = inlined_call_operand.vmem [shape: f32[16,1], index: 2, kind: input, shape index: {}]
  %s3 = inlined_call_operand.vmem [shape: bf16[2,16,4224], index: 3, kind: output, shape index: {}]
  %s4 = sld [smem:[#allocation0]]
  $region45: #{simple_cnn_forward.3} parent=0
    _
  %s6 = ssub.s32 1, %s4
  %s7 = scalar_select 0, %s6, %s4
  loop: start=0, step=1, limit=4
  $region2: #{simple_cnn_forward.3} parent=0 // loop_pre_header
    _
  $region3: #{simple_cnn_forward.3} parent=0 // loop_header
    %s9 = sphi 0, %s13
    %p10 = scmp.ge.s32.totalorder %s9, 4
    %s19 = sphi 0, %s21
    %s22 = sphi 0, %s19
    %s23 = sphi 0, %s22
    %s39 = sphi 0, %s23
    %s43 = sphi 0, %s43
    %s45 = sphi 0, %s43
    %s46 = sphi 0, %s45
    %s60 = sphi 0, %s46
    %s64 = sphi 0, %s64
    %s66 = sphi 0, %s64
    %s67 = sphi 0, %s66
    %s81 = sphi 0, %s67
    %s87 = sphi 0, %s89
    %s90 = sphi 0, %s87
    %s91 = sphi 0, %s90
    %s107 = sphi 0, %s91
  $region4: #{simple_cnn_forward.3} parent=0 // loop_header_branch
    %12 = sbr.rel (%p10) target = $region8
  $region5: #{simple_cnn_forward.3} parent=0 // loop_body
    %s14 = ssub.s32 %s9, 1
    %s15 = ssub.s32 %s9, 2
    %s16 = sadd.s32 %s9, 1
    %s17 = ssub.s32 %s9, %s16
    %p18 = scmp.eq.s32.totalorder %s17, 0
    %s20 = sadd.s32 %s19, 1
    %s21 = scalar_select %p18, %s19, %s20
    %p24 = pneg %p18
    %p25 = scmp.eq.s32.totalorder %s9, 1
    %p26 = por %p24, %p25
    %p27 = scmp.ne.s32.totalorder %s19, %s22
    %p28 = scmp.eq.s32.totalorder %s9, 0
    %p29 = por %p27, %p28
    %p30 = scmp.ne.s32.totalorder %s19, %s22
    %p31 = scmp.eq.s32.totalorder %s14, 1
    %p32 = por %p30, %p31
    %p33 = scmp.ne.s32.totalorder %s22, %s23
    %p34 = scmp.eq.s32.totalorder %s14, 0
    %p35 = por %p33, %p34
    %p36 = scmp.ne.s32.totalorder %s22, %s23
    %p37 = scmp.eq.s32.totalorder %s15, 1
    %p38 = por %p36, %p37
    %p40 = scmp.ne.s32.totalorder %s23, %s39
    %p41 = scmp.eq.s32.totalorder %s15, 0
    %p42 = por %p40, %p41
    %s44 = sadd.s32 %s43, 1
    %p47 = scmp.eq.s32.totalorder %s9, 1
    %p48 = scmp.ne.s32.totalorder %s43, %s45
    %p49 = scmp.eq.s32.totalorder %s9, 0
    %p50 = por %p48, %p49
    %p51 = scmp.ne.s32.totalorder %s43, %s45
    %p52 = scmp.eq.s32.totalorder %s14, 1
    %p53 = por %p51, %p52
    %p54 = scmp.ne.s32.totalorder %s45, %s46
    %p55 = scmp.eq.s32.totalorder %s14, 0
    %p56 = por %p54, %p55
    %p57 = scmp.ne.s32.totalorder %s45, %s46
    %p58 = scmp.eq.s32.totalorder %s15, 1
    %p59 = por %p57, %p58
    %p61 = scmp.ne.s32.totalorder %s46, %s60
    %p62 = scmp.eq.s32.totalorder %s15, 0
    %p63 = por %p61, %p62
    %s65 = sadd.s32 %s64, 1
    %p68 = scmp.eq.s32.totalorder %s9, 1
    %p69 = scmp.ne.s32.totalorder %s64, %s66
    %p70 = scmp.eq.s32.totalorder %s9, 0
    %p71 = por %p69, %p70
    %p72 = scmp.ne.s32.totalorder %s64, %s66
    %p73 = scmp.eq.s32.totalorder %s14, 1
    %p74 = por %p72, %p73
    %p75 = scmp.ne.s32.totalorder %s66, %s67
    %p76 = scmp.eq.s32.totalorder %s14, 0
    %p77 = por %p75, %p76
    %p78 = scmp.ne.s32.totalorder %s66, %s67
    %p79 = scmp.eq.s32.totalorder %s15, 1
    %p80 = por %p78, %p79
    %p82 = scmp.ne.s32.totalorder %s67, %s81
    %p83 = scmp.eq.s32.totalorder %s15, 0
    %p84 = por %p82, %p83
    %s85 = ssub.s32 %s9, %s16
    %p86 = scmp.eq.s32.totalorder %s85, 0
    %s88 = sadd.s32 %s87, 1
    %s89 = scalar_select %p86, %s87, %s88
    %p92 = pneg %p86
    %p93 = scmp.eq.s32.totalorder %s9, 1
    %p94 = por %p92, %p93
    %p95 = scmp.ne.s32.totalorder %s87, %s90
    %p96 = scmp.eq.s32.totalorder %s9, 0
    %p97 = por %p95, %p96
    %p98 = scmp.ne.s32.totalorder %s87, %s90
    %p99 = scmp.eq.s32.totalorder %s14, 1
    %p100 = por %p98, %p99
    %p101 = scmp.ne.s32.totalorder %s90, %s91
    %p102 = scmp.eq.s32.totalorder %s14, 0
    %p103 = por %p101, %p102
    %p104 = scmp.ne.s32.totalorder %s90, %s91
    %p105 = scmp.eq.s32.totalorder %s15, 1
    %p106 = por %p104, %p105
    %p108 = scmp.ne.s32.totalorder %s91, %s107
    %p109 = scmp.eq.s32.totalorder %s15, 0
    %p110 = por %p108, %p109
    %p111 = scmp.le.s32.totalorder 1, %s9
    %p112 = scmp.lt.s32.totalorder %s9, 3
    %p113 = pnand %p111, %p112
    %p114 = pneg %p113
    // Predicated region
    $region9: #{simple_cnn_forward.3} parent=5 // pred_check
      _
    $region10: #{simple_cnn_forward.3} parent=5 // pred_check_branch
      %116 = sbr.rel (%p113) target = $region12
    $region11: #{simple_cnn_forward.3} parent=5 // pred_region
      %s117 = ssub.s32 %s9, 1
      // Predicated region
      $region13: #{simple_cnn_forward.3} parent=11 // pred_check
        %p118 = pneg %p56
      $region14: #{simple_cnn_forward.3} parent=11 // pred_check_branch
        %120 = sbr.rel (%p118) target = $region16
      $region15: #{simple_cnn_forward.3} parent=11 // pred_region
        _
      $region16: #{simple_cnn_forward.3} parent=11 // pred_fallthru
        _
      // Predicated region
      $region17: #{simple_cnn_forward.3} parent=11 // pred_check
        %p121 = pneg %p77
      $region18: #{simple_cnn_forward.3} parent=11 // pred_check_branch
        %123 = sbr.rel (%p121) target = $region20
      $region19: #{simple_cnn_forward.3} parent=11 // pred_region
        _
      $region20: #{simple_cnn_forward.3} parent=11 // pred_fallthru
        _
    $region12: #{simple_cnn_forward.3} parent=5 // pred_fallthru
      _
    %p124 = scmp.lt.s32.totalorder %s9, 2
    // Predicated region
    $region21: #{simple_cnn_forward.3} parent=5 // pred_check
      %p125 = pneg %p124
    $region22: #{simple_cnn_forward.3} parent=5 // pred_check_branch
      %127 = sbr.rel (%p125) target = $region24
    $region23: #{simple_cnn_forward.3} parent=5 // pred_region
      // Predicated region
      $region25: #{simple_cnn_forward.3} parent=23 // pred_check
        %p128 = pneg %p29
      $region26: #{simple_cnn_forward.3} parent=23 // pred_check_branch
        %130 = sbr.rel (%p128) target = $region28
      $region27: #{simple_cnn_forward.3} parent=23 // pred_region
        %p131 = scmp.lt.s32.totalorder %s9, 1
        %s132 = scalar_select %p131, %s9, 1
        %s133 = smul.addr %s132, 140
        %s134 = smul.addr %s133, 4
        %s135 = scalar_lea.vmem %s0, %s134
      $region28: #{simple_cnn_forward.3} parent=23 // pred_fallthru
        _
    $region24: #{simple_cnn_forward.3} parent=5 // pred_fallthru
      _
    %p136 = scmp.le.s32.totalorder 1, %s9
    %p137 = scmp.lt.s32.totalorder %s9, 3
    %p138 = pnand %p136, %p137
    %p139 = pneg %p138
    // Predicated region
    $region29: #{simple_cnn_forward.3} parent=5 // pred_check
      _
    $region30: #{simple_cnn_forward.3} parent=5 // pred_check_branch
      %141 = sbr.rel (%p138) target = $region32
    $region31: #{simple_cnn_forward.3} parent=5 // pred_region
      %s142 = ssub.s32 %s9, 1
      %p143 = scmp.lt.s32.totalorder %s14, 1
      %s144 = scalar_select %p143, %s14, 1
      %s145 = smul.addr %s144, 140
      %s146 = smul.addr %s145, 4
      %s147 = scalar_lea.vmem %s0, %s146
      %p148 = pneg %p35
      %p149 = pneg %p32
      %p150 = pneg %p56
      %p151 = pneg %p53
      %p152 = pneg %p77
      %p153 = pneg %p74
      %p154 = pneg %p103
      %p155 = pneg %p100
      %p156 = scmp.lt.s32.totalorder %s14, 1
      %s157 = scalar_select %p156, %s14, 1
      %s158 = smul.addr %s157, 66
      %s159 = smul.addr %s158, 4
      %s160 = scalar_lea.vmem %s3, %s159
      %p161 = scmp.lt.s32.totalorder %s14, 1
      %s162 = scalar_select %p161, %s14, 1
      %s163 = smul.addr %s162, 140
      %s164 = smul.addr %s163, 4
      %s165 = scalar_lea.vmem %s0, %s164
      %p166 = scmp.lt.s32.totalorder %s14, 1
      %s167 = scalar_select %p166, %s14, 1
      %s168 = smul.addr %s167, 66
      %s169 = smul.addr %s168, 4
      %s170 = scalar_lea.vmem %s3, %s169
      %v172 = vld [vmem:[%s165] sm:$0xff]
      %v173 = vld [vmem:[%s165 + $0x8] sm:$0xff]
      %v174 = vld [vmem:[%s165 + $0x10] sm:$0xff]
      %v175 = vld [vmem:[%s165 + $0x18] sm:$0xff]
      %v176 = vld [vmem:[%s165 + $0x20] sm:$0xff]
      %v177 = vld [vmem:[%s165 + $0x28] sm:$0xff]
      %v178 = vld [vmem:[%s165 + $0x30] sm:$0xff]
      %v179 = vld [vmem:[%s165 + $0x38] sm:$0xff]
      %v180 = vld [vmem:[%s165 + $0x40] sm:$0xff]
      %v181 = vld [vmem:[%s165 + $0x48] sm:$0xff]
      %v182 = vld [vmem:[%s165 + $0x50] sm:$0xff]
      %v183 = vld [vmem:[%s165 + $0x58] sm:$0xff]
      %v184 = vld [vmem:[%s165 + $0x60] sm:$0xff]
      %v185 = vld [vmem:[%s165 + $0x68] sm:$0xff]
      %v186 = vld [vmem:[%s165 + $0x70] sm:$0xff]
      %v187 = vld [vmem:[%s165 + $0x78] sm:$0xff]
      %v188 = vld [vmem:[%s165 + $0x80] sm:$0xf]
      %s189 = scalar_lea.vmem %s165, 140
      %v190 = vld [vmem:[%s189] sm:$0xff]
      %v191 = vld [vmem:[%s189 + $0x8] sm:$0xff]
      %v192 = vld [vmem:[%s189 + $0x10] sm:$0xff]
      %v193 = vld [vmem:[%s189 + $0x18] sm:$0xff]
      %v194 = vld [vmem:[%s189 + $0x20] sm:$0xff]
      %v195 = vld [vmem:[%s189 + $0x28] sm:$0xff]
      %v196 = vld [vmem:[%s189 + $0x30] sm:$0xff]
      %v197 = vld [vmem:[%s189 + $0x38] sm:$0xff]
      %v198 = vld [vmem:[%s189 + $0x40] sm:$0xff]
      %v199 = vld [vmem:[%s189 + $0x48] sm:$0xff]
      %v200 = vld [vmem:[%s189 + $0x50] sm:$0xff]
      %v201 = vld [vmem:[%s189 + $0x58] sm:$0xff]
      %v202 = vld [vmem:[%s189 + $0x60] sm:$0xff]
      %v203 = vld [vmem:[%s189 + $0x68] sm:$0xff]
      %v204 = vld [vmem:[%s189 + $0x70] sm:$0xff]
      %v205 = vld [vmem:[%s189 + $0x78] sm:$0xff]
      %v206 = vld [vmem:[%s189 + $0x80] sm:$0xf]
      %v207 = vld [vmem:[%s165 + $0x80] sm:$0xff]
      %v208 = vld [vmem:[%s189 + $0x80] sm:$0xff]
      %s209 = scalar_lea.vmem %s165, 280
      %v210 = vld [vmem:[%s209] sm:$0xff]
      %v211 = vld [vmem:[%s209 + $0x8] sm:$0xff]
      %v212 = vld [vmem:[%s209 + $0x10] sm:$0xff]
      %v213 = vld [vmem:[%s209 + $0x18] sm:$0xff]
      %v214 = vld [vmem:[%s209 + $0x20] sm:$0xff]
      %v215 = vld [vmem:[%s209 + $0x28] sm:$0xff]
      %v216 = vld [vmem:[%s209 + $0x30] sm:$0xff]
      %v217 = vld [vmem:[%s209 + $0x38] sm:$0xff]
      %v218 = vld [vmem:[%s209 + $0x40] sm:$0xff]
      %v219 = vld [vmem:[%s209 + $0x48] sm:$0xff]
      %v220 = vld [vmem:[%s209 + $0x50] sm:$0xff]
      %v221 = vld [vmem:[%s209 + $0x58] sm:$0xff]
      %v222 = vld [vmem:[%s209 + $0x60] sm:$0xff]
      %v223 = vld [vmem:[%s209 + $0x68] sm:$0xff]
      %v224 = vld [vmem:[%s209 + $0x70] sm:$0xff]
      %v225 = vld [vmem:[%s209 + $0x78] sm:$0xff]
      %v226 = vld [vmem:[%s209 + $0x80] sm:$0xf]
      %s227 = scalar_lea.vmem %s165, 420
      %v228 = vld [vmem:[%s227] sm:$0xff]
      %v229 = vld [vmem:[%s227 + $0x8] sm:$0xff]
      %v230 = vld [vmem:[%s227 + $0x10] sm:$0xff]
      %v231 = vld [vmem:[%s227 + $0x18] sm:$0xff]
      %v232 = vld [vmem:[%s227 + $0x20] sm:$0xff]
      %v233 = vld [vmem:[%s227 + $0x28] sm:$0xff]
      %v234 = vld [vmem:[%s227 + $0x30] sm:$0xff]
      %v235 = vld [vmem:[%s227 + $0x38] sm:$0xff]
      %v236 = vld [vmem:[%s227 + $0x40] sm:$0xff]
      %v237 = vld [vmem:[%s227 + $0x48] sm:$0xff]
      %v238 = vld [vmem:[%s227 + $0x50] sm:$0xff]
      %v239 = vld [vmem:[%s227 + $0x58] sm:$0xff]
      %v240 = vld [vmem:[%s227 + $0x60] sm:$0xff]
      %v241 = vld [vmem:[%s227 + $0x68] sm:$0xff]
      %v242 = vld [vmem:[%s227 + $0x70] sm:$0xff]
      %v243 = vld [vmem:[%s227 + $0x78] sm:$0xff]
      %v244 = vld [vmem:[%s227 + $0x80] sm:$0xf]
      %v245 = vld [vmem:[%s209 + $0x80] sm:$0xff]
      %v246 = vld [vmem:[%s227 + $0x80] sm:$0xff]
      %v264 = vunpack.c.l.b16 %v172
      %v265 = vunpack.c.h.b16 %v172
      %v266 = vunpack.c.l.b16 %v173
      %v267 = vunpack.c.h.b16 %v173
      %v268 = vunpack.c.l.b16 %v174
      %v269 = vunpack.c.h.b16 %v174
      %v270 = vunpack.c.l.b16 %v175
      %v271 = vunpack.c.h.b16 %v175
      %v272 = vunpack.c.l.b16 %v176
      %v273 = vunpack.c.h.b16 %v176
      %v274 = vunpack.c.l.b16 %v177
      %v275 = vunpack.c.h.b16 %v177
      %v276 = vunpack.c.l.b16 %v178
      %v277 = vunpack.c.h.b16 %v178
      %v278 = vunpack.c.l.b16 %v179
      %v279 = vunpack.c.h.b16 %v179
      %v280 = vunpack.c.l.b16 %v180
      %v281 = vunpack.c.h.b16 %v180
      %v282 = vunpack.c.l.b16 %v181
      %v283 = vunpack.c.h.b16 %v181
      %v284 = vunpack.c.l.b16 %v182
      %v285 = vunpack.c.h.b16 %v182
      %v286 = vunpack.c.l.b16 %v183
      %v287 = vunpack.c.h.b16 %v183
      %v288 = vunpack.c.l.b16 %v184
      %v289 = vunpack.c.h.b16 %v184
      %v290 = vunpack.c.l.b16 %v185
      %v291 = vunpack.c.h.b16 %v185
      %v292 = vunpack.c.l.b16 %v186
      %v293 = vunpack.c.h.b16 %v186
      %v294 = vunpack.c.l.b16 %v187
      %v295 = vunpack.c.h.b16 %v187
      %v296 = vunpack.c.l.b16 %v188
      %v297 = vpack.c.b16 %v264, %v264
      %v298 = vpack.c.b16 %v265, %v265
      %v299 = vpack.c.b16 %v266, %v266
      %v300 = vpack.c.b16 %v267, %v267
      %v301 = vpack.c.b16 %v268, %v268
      %v302 = vpack.c.b16 %v269, %v269
      %v303 = vpack.c.b16 %v270, %v270
      %v304 = vpack.c.b16 %v271, %v271
      %v305 = vpack.c.b16 %v272, %v272
      %v306 = vpack.c.b16 %v273, %v273
      %v307 = vpack.c.b16 %v274, %v274
      %v308 = vpack.c.b16 %v275, %v275
      %v309 = vpack.c.b16 %v276, %v276
      %v310 = vpack.c.b16 %v277, %v277
      %v311 = vpack.c.b16 %v278, %v278
      %v312 = vpack.c.b16 %v279, %v279
      %v313 = vpack.c.b16 %v280, %v280
      %v314 = vpack.c.b16 %v281, %v281
      %v315 = vpack.c.b16 %v282, %v282
      %v316 = vpack.c.b16 %v283, %v283
      %v317 = vpack.c.b16 %v284, %v284
      %v318 = vpack.c.b16 %v285, %v285
      %v319 = vpack.c.b16 %v286, %v286
      %v320 = vpack.c.b16 %v287, %v287
      %v321 = vpack.c.b16 %v288, %v288
      %v322 = vpack.c.b16 %v289, %v289
      %v323 = vpack.c.b16 %v290, %v290
      %v324 = vpack.c.b16 %v291, %v291
      %v325 = vpack.c.b16 %v292, %v292
      %v326 = vpack.c.b16 %v293, %v293
      %v327 = vpack.c.b16 %v294, %v294
      %v328 = vpack.c.b16 %v295, %v295
      %v329 = vpack.c.b16 %v296, %v296
      %v347 = vunpack.c.l.b16 %v190
      %v348 = vunpack.c.h.b16 %v190
      %v349 = vunpack.c.l.b16 %v191
      %v350 = vunpack.c.h.b16 %v191
      %v351 = vunpack.c.l.b16 %v192
      %v352 = vunpack.c.h.b16 %v192
      %v353 = vunpack.c.l.b16 %v193
      %v354 = vunpack.c.h.b16 %v193
      %v355 = vunpack.c.l.b16 %v194
      %v356 = vunpack.c.h.b16 %v194
      %v357 = vunpack.c.l.b16 %v195
      %v358 = vunpack.c.h.b16 %v195
      %v359 = vunpack.c.l.b16 %v196
      %v360 = vunpack.c.h.b16 %v196
      %v361 = vunpack.c.l.b16 %v197
      %v362 = vunpack.c.h.b16 %v197
      %v363 = vunpack.c.l.b16 %v198
      %v364 = vunpack.c.h.b16 %v198
      %v365 = vunpack.c.l.b16 %v199
      %v366 = vunpack.c.h.b16 %v199
      %v367 = vunpack.c.l.b16 %v200
      %v368 = vunpack.c.h.b16 %v200
      %v369 = vunpack.c.l.b16 %v201
      %v370 = vunpack.c.h.b16 %v201
      %v371 = vunpack.c.l.b16 %v202
      %v372 = vunpack.c.h.b16 %v202
      %v373 = vunpack.c.l.b16 %v203
      %v374 = vunpack.c.h.b16 %v203
      %v375 = vunpack.c.l.b16 %v204
      %v376 = vunpack.c.h.b16 %v204
      %v377 = vunpack.c.l.b16 %v205
      %v378 = vunpack.c.h.b16 %v205
      %v379 = vunpack.c.l.b16 %v206
      %v380 = vpack.c.b16 %v347, %v347
      %v381 = vpack.c.b16 %v348, %v348
      %v382 = vpack.c.b16 %v349, %v349
      %v383 = vpack.c.b16 %v350, %v350
      %v384 = vpack.c.b16 %v351, %v351
      %v385 = vpack.c.b16 %v352, %v352
      %v386 = vpack.c.b16 %v353, %v353
      %v387 = vpack.c.b16 %v354, %v354
      %v388 = vpack.c.b16 %v355, %v355
      %v389 = vpack.c.b16 %v356, %v356
      %v390 = vpack.c.b16 %v357, %v357
      %v391 = vpack.c.b16 %v358, %v358
      %v392 = vpack.c.b16 %v359, %v359
      %v393 = vpack.c.b16 %v360, %v360
      %v394 = vpack.c.b16 %v361, %v361
      %v395 = vpack.c.b16 %v362, %v362
      %v396 = vpack.c.b16 %v363, %v363
      %v397 = vpack.c.b16 %v364, %v364
      %v398 = vpack.c.b16 %v365, %v365
      %v399 = vpack.c.b16 %v366, %v366
      %v400 = vpack.c.b16 %v367, %v367
      %v401 = vpack.c.b16 %v368, %v368
      %v402 = vpack.c.b16 %v369, %v369
      %v403 = vpack.c.b16 %v370, %v370
      %v404 = vpack.c.b16 %v371, %v371
      %v405 = vpack.c.b16 %v372, %v372
      %v406 = vpack.c.b16 %v373, %v373
      %v407 = vpack.c.b16 %v374, %v374
      %v408 = vpack.c.b16 %v375, %v375
      %v409 = vpack.c.b16 %v376, %v376
      %v410 = vpack.c.b16 %v377, %v377
      %v411 = vpack.c.b16 %v378, %v378
      %v412 = vpack.c.b16 %v379, %v379
      %v414 = vunpack.c.l.b16 %v207
      %v415 = vunpack.c.h.b16 %v207
      %v416 = vpack.c.b16 %v414, %v414
      %v417 = vpack.c.b16 %v415, %v415
      %418 = vrot.lane.b32.xlu0 %v297, 127
      %v419 = vpop.permute.xlu0 %418
      %420 = vrot.lane.b32.xlu0 %v298, 127
      %v421 = vpop.permute.xlu0 %420
      %422 = vrot.lane.b32.xlu0 %v299, 127
      %v423 = vpop.permute.xlu0 %422
      %424 = vrot.lane.b32.xlu0 %v300, 127
      %v425 = vpop.permute.xlu0 %424
      %426 = vrot.lane.b32.xlu0 %v301, 127
      %v427 = vpop.permute.xlu0 %426
      %428 = vrot.lane.b32.xlu0 %v302, 127
      %v429 = vpop.permute.xlu0 %428
      %430 = vrot.lane.b32.xlu0 %v303, 127
      %v431 = vpop.permute.xlu0 %430
      %432 = vrot.lane.b32.xlu0 %v304, 127
      %v433 = vpop.permute.xlu0 %432
      %434 = vrot.lane.b32.xlu0 %v305, 127
      %v435 = vpop.permute.xlu0 %434
      %436 = vrot.lane.b32.xlu0 %v306, 127
      %v437 = vpop.permute.xlu0 %436
      %438 = vrot.lane.b32.xlu0 %v307, 127
      %v439 = vpop.permute.xlu0 %438
      %440 = vrot.lane.b32.xlu0 %v308, 127
      %v441 = vpop.permute.xlu0 %440
      %442 = vrot.lane.b32.xlu0 %v309, 127
      %v443 = vpop.permute.xlu0 %442
      %444 = vrot.lane.b32.xlu0 %v310, 127
      %v445 = vpop.permute.xlu0 %444
      %446 = vrot.lane.b32.xlu0 %v311, 127
      %v447 = vpop.permute.xlu0 %446
      %448 = vrot.lane.b32.xlu0 %v312, 127
      %v449 = vpop.permute.xlu0 %448
      %450 = vrot.lane.b32.xlu0 %v313, 127
      %v451 = vpop.permute.xlu0 %450
      %452 = vrot.lane.b32.xlu0 %v314, 127
      %v453 = vpop.permute.xlu0 %452
      %454 = vrot.lane.b32.xlu0 %v315, 127
      %v455 = vpop.permute.xlu0 %454
      %456 = vrot.lane.b32.xlu0 %v316, 127
      %v457 = vpop.permute.xlu0 %456
      %458 = vrot.lane.b32.xlu0 %v317, 127
      %v459 = vpop.permute.xlu0 %458
      %460 = vrot.lane.b32.xlu0 %v318, 127
      %v461 = vpop.permute.xlu0 %460
      %462 = vrot.lane.b32.xlu0 %v319, 127
      %v463 = vpop.permute.xlu0 %462
      %464 = vrot.lane.b32.xlu0 %v320, 127
      %v465 = vpop.permute.xlu0 %464
      %466 = vrot.lane.b32.xlu0 %v321, 127
      %v467 = vpop.permute.xlu0 %466
      %468 = vrot.lane.b32.xlu0 %v322, 127
      %v469 = vpop.permute.xlu0 %468
      %470 = vrot.lane.b32.xlu0 %v323, 127
      %v471 = vpop.permute.xlu0 %470
      %472 = vrot.lane.b32.xlu0 %v324, 127
      %v473 = vpop.permute.xlu0 %472
      %474 = vrot.lane.b32.xlu0 %v325, 127
      %v475 = vpop.permute.xlu0 %474
      %476 = vrot.lane.b32.xlu0 %v326, 127
      %v477 = vpop.permute.xlu0 %476
      %478 = vrot.lane.b32.xlu0 %v327, 127
      %v479 = vpop.permute.xlu0 %478
      %480 = vrot.lane.b32.xlu0 %v328, 127
      %v481 = vpop.permute.xlu0 %480
      %482 = vrot.lane.b32.xlu0 %v416, 127
      %v483 = vpop.permute.xlu0 %482
      %484 = vrot.lane.b32.xlu0 %v417, 127
      %v485 = vpop.permute.xlu0 %484
      %vm486 = vcmask 1039360
      %v487 = vsel %vm486, %v419, %v421
      %v488 = vsel %vm486, %v421, %v423
      %v489 = vsel %vm486, %v423, %v425
      %v490 = vsel %vm486, %v425, %v427
      %v491 = vsel %vm486, %v427, %v429
      %v492 = vsel %vm486, %v429, %v431
      %v493 = vsel %vm486, %v431, %v433
      %v494 = vsel %vm486, %v433, %v435
      %v495 = vsel %vm486, %v435, %v437
      %v496 = vsel %vm486, %v437, %v439
      %v497 = vsel %vm486, %v439, %v441
      %v498 = vsel %vm486, %v441, %v443
      %v499 = vsel %vm486, %v443, %v445
      %v500 = vsel %vm486, %v445, %v447
      %v501 = vsel %vm486, %v447, %v449
      %v502 = vsel %vm486, %v449, %v451
      %v503 = vsel %vm486, %v451, %v453
      %v504 = vsel %vm486, %v453, %v455
      %v505 = vsel %vm486, %v455, %v457
      %v506 = vsel %vm486, %v457, %v459
      %v507 = vsel %vm486, %v459, %v461
      %v508 = vsel %vm486, %v461, %v463
      %v509 = vsel %vm486, %v463, %v465
      %v510 = vsel %vm486, %v465, %v467
      %v511 = vsel %vm486, %v467, %v469
      %v512 = vsel %vm486, %v469, %v471
      %v513 = vsel %vm486, %v471, %v473
      %v514 = vsel %vm486, %v473, %v475
      %v515 = vsel %vm486, %v475, %v477
      %v516 = vsel %vm486, %v477, %v479
      %v517 = vsel %vm486, %v479, %v481
      %v518 = vsel %vm486, %v481, %v483
      %v519 = vsel %vm486, %v483, %v485
      %v521 = vunpack.c.l.b16 %v208
      %v522 = vunpack.c.h.b16 %v208
      %v523 = vpack.c.b16 %v521, %v521
      %v524 = vpack.c.b16 %v522, %v522
      %525 = vrot.lane.b32.xlu0 %v380, 127
      %v526 = vpop.permute.xlu0 %525
      %527 = vrot.lane.b32.xlu0 %v381, 127
      %v528 = vpop.permute.xlu0 %527
      %529 = vrot.lane.b32.xlu0 %v382, 127
      %v530 = vpop.permute.xlu0 %529
      %531 = vrot.lane.b32.xlu0 %v383, 127
      %v532 = vpop.permute.xlu0 %531
      %533 = vrot.lane.b32.xlu0 %v384, 127
      %v534 = vpop.permute.xlu0 %533
      %535 = vrot.lane.b32.xlu0 %v385, 127
      %v536 = vpop.permute.xlu0 %535
      %537 = vrot.lane.b32.xlu0 %v386, 127
      %v538 = vpop.permute.xlu0 %537
      %539 = vrot.lane.b32.xlu0 %v387, 127
      %v540 = vpop.permute.xlu0 %539
      %541 = vrot.lane.b32.xlu0 %v388, 127
      %v542 = vpop.permute.xlu0 %541
      %543 = vrot.lane.b32.xlu0 %v389, 127
      %v544 = vpop.permute.xlu0 %543
      %545 = vrot.lane.b32.xlu0 %v390, 127
      %v546 = vpop.permute.xlu0 %545
      %547 = vrot.lane.b32.xlu0 %v391, 127
      %v548 = vpop.permute.xlu0 %547
      %549 = vrot.lane.b32.xlu0 %v392, 127
      %v550 = vpop.permute.xlu0 %549
      %551 = vrot.lane.b32.xlu0 %v393, 127
      %v552 = vpop.permute.xlu0 %551
      %553 = vrot.lane.b32.xlu0 %v394, 127
      %v554 = vpop.permute.xlu0 %553
      %555 = vrot.lane.b32.xlu0 %v395, 127
      %v556 = vpop.permute.xlu0 %555
      %557 = vrot.lane.b32.xlu0 %v396, 127
      %v558 = vpop.permute.xlu0 %557
      %559 = vrot.lane.b32.xlu0 %v397, 127
      %v560 = vpop.permute.xlu0 %559
      %561 = vrot.lane.b32.xlu0 %v398, 127
      %v562 = vpop.permute.xlu0 %561
      %563 = vrot.lane.b32.xlu0 %v399, 127
      %v564 = vpop.permute.xlu0 %563
      %565 = vrot.lane.b32.xlu0 %v400, 127
      %v566 = vpop.permute.xlu0 %565
      %567 = vrot.lane.b32.xlu0 %v401, 127
      %v568 = vpop.permute.xlu0 %567
      %569 = vrot.lane.b32.xlu0 %v402, 127
      %v570 = vpop.permute.xlu0 %569
      %571 = vrot.lane.b32.xlu0 %v403, 127
      %v572 = vpop.permute.xlu0 %571
      %573 = vrot.lane.b32.xlu0 %v404, 127
      %v574 = vpop.permute.xlu0 %573
      %575 = vrot.lane.b32.xlu0 %v405, 127
      %v576 = vpop.permute.xlu0 %575
      %577 = vrot.lane.b32.xlu0 %v406, 127
      %v578 = vpop.permute.xlu0 %577
      %579 = vrot.lane.b32.xlu0 %v407, 127
      %v580 = vpop.permute.xlu0 %579
      %581 = vrot.lane.b32.xlu0 %v408, 127
      %v582 = vpop.permute.xlu0 %581
      %583 = vrot.lane.b32.xlu0 %v409, 127
      %v584 = vpop.permute.xlu0 %583
      %585 = vrot.lane.b32.xlu0 %v410, 127
      %v586 = vpop.permute.xlu0 %585
      %587 = vrot.lane.b32.xlu0 %v411, 127
      %v588 = vpop.permute.xlu0 %587
      %589 = vrot.lane.b32.xlu0 %v523, 127
      %v590 = vpop.permute.xlu0 %589
      %591 = vrot.lane.b32.xlu0 %v524, 127
      %v592 = vpop.permute.xlu0 %591
      %v593 = vsel %vm486, %v526, %v528
      %v594 = vsel %vm486, %v528, %v530
      %v595 = vsel %vm486, %v530, %v532
      %v596 = vsel %vm486, %v532, %v534
      %v597 = vsel %vm486, %v534, %v536
      %v598 = vsel %vm486, %v536, %v538
      %v599 = vsel %vm486, %v538, %v540
      %v600 = vsel %vm486, %v540, %v542
      %v601 = vsel %vm486, %v542, %v544
      %v602 = vsel %vm486, %v544, %v546
      %v603 = vsel %vm486, %v546, %v548
      %v604 = vsel %vm486, %v548, %v550
      %v605 = vsel %vm486, %v550, %v552
      %v606 = vsel %vm486, %v552, %v554
      %v607 = vsel %vm486, %v554, %v556
      %v608 = vsel %vm486, %v556, %v558
      %v609 = vsel %vm486, %v558, %v560
      %v610 = vsel %vm486, %v560, %v562
      %v611 = vsel %vm486, %v562, %v564
      %v612 = vsel %vm486, %v564, %v566
      %v613 = vsel %vm486, %v566, %v568
      %v614 = vsel %vm486, %v568, %v570
      %v615 = vsel %vm486, %v570, %v572
      %v616 = vsel %vm486, %v572, %v574
      %v617 = vsel %vm486, %v574, %v576
      %v618 = vsel %vm486, %v576, %v578
      %v619 = vsel %vm486, %v578, %v580
      %v620 = vsel %vm486, %v580, %v582
      %v621 = vsel %vm486, %v582, %v584
      %v622 = vsel %vm486, %v584, %v586
      %v623 = vsel %vm486, %v586, %v588
      %v624 = vsel %vm486, %v588, %v590
      %v625 = vsel %vm486, %v590, %v592
      %v643 = vunpack.c.l.b16 %v210
      %v644 = vunpack.c.h.b16 %v210
      %v645 = vunpack.c.l.b16 %v211
      %v646 = vunpack.c.h.b16 %v211
      %v647 = vunpack.c.l.b16 %v212
      %v648 = vunpack.c.h.b16 %v212
      %v649 = vunpack.c.l.b16 %v213
      %v650 = vunpack.c.h.b16 %v213
      %v651 = vunpack.c.l.b16 %v214
      %v652 = vunpack.c.h.b16 %v214
      %v653 = vunpack.c.l.b16 %v215
      %v654 = vunpack.c.h.b16 %v215
      %v655 = vunpack.c.l.b16 %v216
      %v656 = vunpack.c.h.b16 %v216
      %v657 = vunpack.c.l.b16 %v217
      %v658 = vunpack.c.h.b16 %v217
      %v659 = vunpack.c.l.b16 %v218
      %v660 = vunpack.c.h.b16 %v218
      %v661 = vunpack.c.l.b16 %v219
      %v662 = vunpack.c.h.b16 %v219
      %v663 = vunpack.c.l.b16 %v220
      %v664 = vunpack.c.h.b16 %v220
      %v665 = vunpack.c.l.b16 %v221
      %v666 = vunpack.c.h.b16 %v221
      %v667 = vunpack.c.l.b16 %v222
      %v668 = vunpack.c.h.b16 %v222
      %v669 = vunpack.c.l.b16 %v223
      %v670 = vunpack.c.h.b16 %v223
      %v671 = vunpack.c.l.b16 %v224
      %v672 = vunpack.c.h.b16 %v224
      %v673 = vunpack.c.l.b16 %v225
      %v674 = vunpack.c.h.b16 %v225
      %v675 = vunpack.c.l.b16 %v226
      %v676 = vpack.c.b16 %v643, %v643
      %v677 = vpack.c.b16 %v644, %v644
      %v678 = vpack.c.b16 %v645, %v645
      %v679 = vpack.c.b16 %v646, %v646
      %v680 = vpack.c.b16 %v647, %v647
      %v681 = vpack.c.b16 %v648, %v648
      %v682 = vpack.c.b16 %v649, %v649
      %v683 = vpack.c.b16 %v650, %v650
      %v684 = vpack.c.b16 %v651, %v651
      %v685 = vpack.c.b16 %v652, %v652
      %v686 = vpack.c.b16 %v653, %v653
      %v687 = vpack.c.b16 %v654, %v654
      %v688 = vpack.c.b16 %v655, %v655
      %v689 = vpack.c.b16 %v656, %v656
      %v690 = vpack.c.b16 %v657, %v657
      %v691 = vpack.c.b16 %v658, %v658
      %v692 = vpack.c.b16 %v659, %v659
      %v693 = vpack.c.b16 %v660, %v660
      %v694 = vpack.c.b16 %v661, %v661
      %v695 = vpack.c.b16 %v662, %v662
      %v696 = vpack.c.b16 %v663, %v663
      %v697 = vpack.c.b16 %v664, %v664
      %v698 = vpack.c.b16 %v665, %v665
      %v699 = vpack.c.b16 %v666, %v666
      %v700 = vpack.c.b16 %v667, %v667
      %v701 = vpack.c.b16 %v668, %v668
      %v702 = vpack.c.b16 %v669, %v669
      %v703 = vpack.c.b16 %v670, %v670
      %v704 = vpack.c.b16 %v671, %v671
      %v705 = vpack.c.b16 %v672, %v672
      %v706 = vpack.c.b16 %v673, %v673
      %v707 = vpack.c.b16 %v674, %v674
      %v708 = vpack.c.b16 %v675, %v675
      %v726 = vunpack.c.l.b16 %v228
      %v727 = vunpack.c.h.b16 %v228
      %v728 = vunpack.c.l.b16 %v229
      %v729 = vunpack.c.h.b16 %v229
      %v730 = vunpack.c.l.b16 %v230
      %v731 = vunpack.c.h.b16 %v230
      %v732 = vunpack.c.l.b16 %v231
      %v733 = vunpack.c.h.b16 %v231
      %v734 = vunpack.c.l.b16 %v232
      %v735 = vunpack.c.h.b16 %v232
      %v736 = vunpack.c.l.b16 %v233
      %v737 = vunpack.c.h.b16 %v233
      %v738 = vunpack.c.l.b16 %v234
      %v739 = vunpack.c.h.b16 %v234
      %v740 = vunpack.c.l.b16 %v235
      %v741 = vunpack.c.h.b16 %v235
      %v742 = vunpack.c.l.b16 %v236
      %v743 = vunpack.c.h.b16 %v236
      %v744 = vunpack.c.l.b16 %v237
      %v745 = vunpack.c.h.b16 %v237
      %v746 = vunpack.c.l.b16 %v238
      %v747 = vunpack.c.h.b16 %v238
      %v748 = vunpack.c.l.b16 %v239
      %v749 = vunpack.c.h.b16 %v239
      %v750 = vunpack.c.l.b16 %v240
      %v751 = vunpack.c.h.b16 %v240
      %v752 = vunpack.c.l.b16 %v241
      %v753 = vunpack.c.h.b16 %v241
      %v754 = vunpack.c.l.b16 %v242
      %v755 = vunpack.c.h.b16 %v242
      %v756 = vunpack.c.l.b16 %v243
      %v757 = vunpack.c.h.b16 %v243
      %v758 = vunpack.c.l.b16 %v244
      %v759 = vpack.c.b16 %v726, %v726
      %v760 = vpack.c.b16 %v727, %v727
      %v761 = vpack.c.b16 %v728, %v728
      %v762 = vpack.c.b16 %v729, %v729
      %v763 = vpack.c.b16 %v730, %v730
      %v764 = vpack.c.b16 %v731, %v731
      %v765 = vpack.c.b16 %v732, %v732
      %v766 = vpack.c.b16 %v733, %v733
      %v767 = vpack.c.b16 %v734, %v734
      %v768 = vpack.c.b16 %v735, %v735
      %v769 = vpack.c.b16 %v736, %v736
      %v770 = vpack.c.b16 %v737, %v737
      %v771 = vpack.c.b16 %v738, %v738
      %v772 = vpack.c.b16 %v739, %v739
      %v773 = vpack.c.b16 %v740, %v740
      %v774 = vpack.c.b16 %v741, %v741
      %v775 = vpack.c.b16 %v742, %v742
      %v776 = vpack.c.b16 %v743, %v743
      %v777 = vpack.c.b16 %v744, %v744
      %v778 = vpack.c.b16 %v745, %v745
      %v779 = vpack.c.b16 %v746, %v746
      %v780 = vpack.c.b16 %v747, %v747
      %v781 = vpack.c.b16 %v748, %v748
      %v782 = vpack.c.b16 %v749, %v749
      %v783 = vpack.c.b16 %v750, %v750
      %v784 = vpack.c.b16 %v751, %v751
      %v785 = vpack.c.b16 %v752, %v752
      %v786 = vpack.c.b16 %v753, %v753
      %v787 = vpack.c.b16 %v754, %v754
      %v788 = vpack.c.b16 %v755, %v755
      %v789 = vpack.c.b16 %v756, %v756
      %v790 = vpack.c.b16 %v757, %v757
      %v791 = vpack.c.b16 %v758, %v758
      %v793 = vunpack.c.l.b16 %v245
      %v794 = vunpack.c.h.b16 %v245
      %v795 = vpack.c.b16 %v793, %v793
      %v796 = vpack.c.b16 %v794, %v794
      %797 = vrot.lane.b32.xlu0 %v676, 127
      %v798 = vpop.permute.xlu0 %797
      %799 = vrot.lane.b32.xlu0 %v677, 127
      %v800 = vpop.permute.xlu0 %799
      %801 = vrot.lane.b32.xlu0 %v678, 127
      %v802 = vpop.permute.xlu0 %801
      %803 = vrot.lane.b32.xlu0 %v679, 127
      %v804 = vpop.permute.xlu0 %803
      %805 = vrot.lane.b32.xlu0 %v680, 127
      %v806 = vpop.permute.xlu0 %805
      %807 = vrot.lane.b32.xlu0 %v681, 127
      %v808 = vpop.permute.xlu0 %807
      %809 = vrot.lane.b32.xlu0 %v682, 127
      %v810 = vpop.permute.xlu0 %809
      %811 = vrot.lane.b32.xlu0 %v683, 127
      %v812 = vpop.permute.xlu0 %811
      %813 = vrot.lane.b32.xlu0 %v684, 127
      %v814 = vpop.permute.xlu0 %813
      %815 = vrot.lane.b32.xlu0 %v685, 127
      %v816 = vpop.permute.xlu0 %815
      %817 = vrot.lane.b32.xlu0 %v686, 127
      %v818 = vpop.permute.xlu0 %817
      %819 = vrot.lane.b32.xlu0 %v687, 127
      %v820 = vpop.permute.xlu0 %819
      %821 = vrot.lane.b32.xlu0 %v688, 127
      %v822 = vpop.permute.xlu0 %821
      %823 = vrot.lane.b32.xlu0 %v689, 127
      %v824 = vpop.permute.xlu0 %823
      %825 = vrot.lane.b32.xlu0 %v690, 127
      %v826 = vpop.permute.xlu0 %825
      %827 = vrot.lane.b32.xlu0 %v691, 127
      %v828 = vpop.permute.xlu0 %827
      %829 = vrot.lane.b32.xlu0 %v692, 127
      %v830 = vpop.permute.xlu0 %829
      %831 = vrot.lane.b32.xlu0 %v693, 127
      %v832 = vpop.permute.xlu0 %831
      %833 = vrot.lane.b32.xlu0 %v694, 127
      %v834 = vpop.permute.xlu0 %833
      %835 = vrot.lane.b32.xlu0 %v695, 127
      %v836 = vpop.permute.xlu0 %835
      %837 = vrot.lane.b32.xlu0 %v696, 127
      %v838 = vpop.permute.xlu0 %837
      %839 = vrot.lane.b32.xlu0 %v697, 127
      %v840 = vpop.permute.xlu0 %839
      %841 = vrot.lane.b32.xlu0 %v698, 127
      %v842 = vpop.permute.xlu0 %841
      %843 = vrot.lane.b32.xlu0 %v699, 127
      %v844 = vpop.permute.xlu0 %843
      %845 = vrot.lane.b32.xlu0 %v700, 127
      %v846 = vpop.permute.xlu0 %845
      %847 = vrot.lane.b32.xlu0 %v701, 127
      %v848 = vpop.permute.xlu0 %847
      %849 = vrot.lane.b32.xlu0 %v702, 127
      %v850 = vpop.permute.xlu0 %849
      %851 = vrot.lane.b32.xlu0 %v703, 127
      %v852 = vpop.permute.xlu0 %851
      %853 = vrot.lane.b32.xlu0 %v704, 127
      %v854 = vpop.permute.xlu0 %853
      %855 = vrot.lane.b32.xlu0 %v705, 127
      %v856 = vpop.permute.xlu0 %855
      %857 = vrot.lane.b32.xlu0 %v706, 127
      %v858 = vpop.permute.xlu0 %857
      %859 = vrot.lane.b32.xlu0 %v707, 127
      %v860 = vpop.permute.xlu0 %859
      %861 = vrot.lane.b32.xlu0 %v795, 127
      %v862 = vpop.permute.xlu0 %861
      %863 = vrot.lane.b32.xlu0 %v796, 127
      %v864 = vpop.permute.xlu0 %863
      %v865 = vsel %vm486, %v798, %v800
      %v866 = vsel %vm486, %v800, %v802
      %v867 = vsel %vm486, %v802, %v804
      %v868 = vsel %vm486, %v804, %v806
      %v869 = vsel %vm486, %v806, %v808
      %v870 = vsel %vm486, %v808, %v810
      %v871 = vsel %vm486, %v810, %v812
      %v872 = vsel %vm486, %v812, %v814
      %v873 = vsel %vm486, %v814, %v816
      %v874 = vsel %vm486, %v816, %v818
      %v875 = vsel %vm486, %v818, %v820
      %v876 = vsel %vm486, %v820, %v822
      %v877 = vsel %vm486, %v822, %v824
      %v878 = vsel %vm486, %v824, %v826
      %v879 = vsel %vm486, %v826, %v828
      %v880 = vsel %vm486, %v828, %v830
      %v881 = vsel %vm486, %v830, %v832
      %v882 = vsel %vm486, %v832, %v834
      %v883 = vsel %vm486, %v834, %v836
      %v884 = vsel %vm486, %v836, %v838
      %v885 = vsel %vm486, %v838, %v840
      %v886 = vsel %vm486, %v840, %v842
      %v887 = vsel %vm486, %v842, %v844
      %v888 = vsel %vm486, %v844, %v846
      %v889 = vsel %vm486, %v846, %v848
      %v890 = vsel %vm486, %v848, %v850
      %v891 = vsel %vm486, %v850, %v852
      %v892 = vsel %vm486, %v852, %v854
      %v893 = vsel %vm486, %v854, %v856
      %v894 = vsel %vm486, %v856, %v858
      %v895 = vsel %vm486, %v858, %v860
      %v896 = vsel %vm486, %v860, %v862
      %v897 = vsel %vm486, %v862, %v864
      %v899 = vunpack.c.l.b16 %v246
      %v900 = vunpack.c.h.b16 %v246
      %v901 = vpack.c.b16 %v899, %v899
      %v902 = vpack.c.b16 %v900, %v900
      %903 = vrot.lane.b32.xlu0 %v759, 127
      %v904 = vpop.permute.xlu0 %903
      %905 = vrot.lane.b32.xlu0 %v760, 127
      %v906 = vpop.permute.xlu0 %905
      %907 = vrot.lane.b32.xlu0 %v761, 127
      %v908 = vpop.permute.xlu0 %907
      %909 = vrot.lane.b32.xlu0 %v762, 127
      %v910 = vpop.permute.xlu0 %909
      %911 = vrot.lane.b32.xlu0 %v763, 127
      %v912 = vpop.permute.xlu0 %911
      %913 = vrot.lane.b32.xlu0 %v764, 127
      %v914 = vpop.permute.xlu0 %913
      %915 = vrot.lane.b32.xlu0 %v765, 127
      %v916 = vpop.permute.xlu0 %915
      %917 = vrot.lane.b32.xlu0 %v766, 127
      %v918 = vpop.permute.xlu0 %917
      %919 = vrot.lane.b32.xlu0 %v767, 127
      %v920 = vpop.permute.xlu0 %919
      %921 = vrot.lane.b32.xlu0 %v768, 127
      %v922 = vpop.permute.xlu0 %921
      %923 = vrot.lane.b32.xlu0 %v769, 127
      %v924 = vpop.permute.xlu0 %923
      %925 = vrot.lane.b32.xlu0 %v770, 127
      %v926 = vpop.permute.xlu0 %925
      %927 = vrot.lane.b32.xlu0 %v771, 127
      %v928 = vpop.permute.xlu0 %927
      %929 = vrot.lane.b32.xlu0 %v772, 127
      %v930 = vpop.permute.xlu0 %929
      %931 = vrot.lane.b32.xlu0 %v773, 127
      %v932 = vpop.permute.xlu0 %931
      %933 = vrot.lane.b32.xlu0 %v774, 127
      %v934 = vpop.permute.xlu0 %933
      %935 = vrot.lane.b32.xlu0 %v775, 127
      %v936 = vpop.permute.xlu0 %935
      %937 = vrot.lane.b32.xlu0 %v776, 127
      %v938 = vpop.permute.xlu0 %937
      %939 = vrot.lane.b32.xlu0 %v777, 127
      %v940 = vpop.permute.xlu0 %939
      %941 = vrot.lane.b32.xlu0 %v778, 127
      %v942 = vpop.permute.xlu0 %941
      %943 = vrot.lane.b32.xlu0 %v779, 127
      %v944 = vpop.permute.xlu0 %943
      %945 = vrot.lane.b32.xlu0 %v780, 127
      %v946 = vpop.permute.xlu0 %945
      %947 = vrot.lane.b32.xlu0 %v781, 127
      %v948 = vpop.permute.xlu0 %947
      %949 = vrot.lane.b32.xlu0 %v782, 127
      %v950 = vpop.permute.xlu0 %949
      %951 = vrot.lane.b32.xlu0 %v783, 127
      %v952 = vpop.permute.xlu0 %951
      %953 = vrot.lane.b32.xlu0 %v784, 127
      %v954 = vpop.permute.xlu0 %953
      %955 = vrot.lane.b32.xlu0 %v785, 127
      %v956 = vpop.permute.xlu0 %955
      %957 = vrot.lane.b32.xlu0 %v786, 127
      %v958 = vpop.permute.xlu0 %957
      %959 = vrot.lane.b32.xlu0 %v787, 127
      %v960 = vpop.permute.xlu0 %959
      %961 = vrot.lane.b32.xlu0 %v788, 127
      %v962 = vpop.permute.xlu0 %961
      %963 = vrot.lane.b32.xlu0 %v789, 127
      %v964 = vpop.permute.xlu0 %963
      %965 = vrot.lane.b32.xlu0 %v790, 127
      %v966 = vpop.permute.xlu0 %965
      %967 = vrot.lane.b32.xlu0 %v901, 127
      %v968 = vpop.permute.xlu0 %967
      %969 = vrot.lane.b32.xlu0 %v902, 127
      %v970 = vpop.permute.xlu0 %969
      %v971 = vsel %vm486, %v904, %v906
      %v972 = vsel %vm486, %v906, %v908
      %v973 = vsel %vm486, %v908, %v910
      %v974 = vsel %vm486, %v910, %v912
      %v975 = vsel %vm486, %v912, %v914
      %v976 = vsel %vm486, %v914, %v916
      %v977 = vsel %vm486, %v916, %v918
      %v978 = vsel %vm486, %v918, %v920
      %v979 = vsel %vm486, %v920, %v922
      %v980 = vsel %vm486, %v922, %v924
      %v981 = vsel %vm486, %v924, %v926
      %v982 = vsel %vm486, %v926, %v928
      %v983 = vsel %vm486, %v928, %v930
      %v984 = vsel %vm486, %v930, %v932
      %v985 = vsel %vm486, %v932, %v934
      %v986 = vsel %vm486, %v934, %v936
      %v987 = vsel %vm486, %v936, %v938
      %v988 = vsel %vm486, %v938, %v940
      %v989 = vsel %vm486, %v940, %v942
      %v990 = vsel %vm486, %v942, %v944
      %v991 = vsel %vm486, %v944, %v946
      %v992 = vsel %vm486, %v946, %v948
      %v993 = vsel %vm486, %v948, %v950
      %v994 = vsel %vm486, %v950, %v952
      %v995 = vsel %vm486, %v952, %v954
      %v996 = vsel %vm486, %v954, %v956
      %v997 = vsel %vm486, %v956, %v958
      %v998 = vsel %vm486, %v958, %v960
      %v999 = vsel %vm486, %v960, %v962
      %v1000 = vsel %vm486, %v962, %v964
      %v1001 = vsel %vm486, %v964, %v966
      %v1002 = vsel %vm486, %v966, %v968
      %v1003 = vsel %vm486, %v968, %v970
      %1004 = vrot.lane.b32.xlu0 %v297, 62
      %v1005 = vpop.permute.xlu0 %1004
      %1006 = vrot.lane.b32.xlu0 %v298, 62
      %v1007 = vpop.permute.xlu0 %1006
      %1008 = vrot.lane.b32.xlu0 %v299, 62
      %v1009 = vpop.permute.xlu0 %1008
      %1010 = vrot.lane.b32.xlu0 %v300, 62
      %v1011 = vpop.permute.xlu0 %1010
      %1012 = vrot.lane.b32.xlu0 %v301, 62
      %v1013 = vpop.permute.xlu0 %1012
      %1014 = vrot.lane.b32.xlu0 %v302, 62
      %v1015 = vpop.permute.xlu0 %1014
      %1016 = vrot.lane.b32.xlu0 %v303, 62
      %v1017 = vpop.permute.xlu0 %1016
      %1018 = vrot.lane.b32.xlu0 %v304, 62
      %v1019 = vpop.permute.xlu0 %1018
      %1020 = vrot.lane.b32.xlu0 %v305, 62
      %v1021 = vpop.permute.xlu0 %1020
      %1022 = vrot.lane.b32.xlu0 %v306, 62
      %v1023 = vpop.permute.xlu0 %1022
      %1024 = vrot.lane.b32.xlu0 %v307, 62
      %v1025 = vpop.permute.xlu0 %1024
      %1026 = vrot.lane.b32.xlu0 %v308, 62
      %v1027 = vpop.permute.xlu0 %1026
      %1028 = vrot.lane.b32.xlu0 %v309, 62
      %v1029 = vpop.permute.xlu0 %1028
      %1030 = vrot.lane.b32.xlu0 %v310, 62
      %v1031 = vpop.permute.xlu0 %1030
      %1032 = vrot.lane.b32.xlu0 %v311, 62
      %v1033 = vpop.permute.xlu0 %1032
      %1034 = vrot.lane.b32.xlu0 %v312, 62
      %v1035 = vpop.permute.xlu0 %1034
      %1036 = vrot.lane.b32.xlu0 %v313, 62
      %v1037 = vpop.permute.xlu0 %1036
      %1038 = vrot.lane.b32.xlu0 %v314, 62
      %v1039 = vpop.permute.xlu0 %1038
      %1040 = vrot.lane.b32.xlu0 %v315, 62
      %v1041 = vpop.permute.xlu0 %1040
      %1042 = vrot.lane.b32.xlu0 %v316, 62
      %v1043 = vpop.permute.xlu0 %1042
      %1044 = vrot.lane.b32.xlu0 %v317, 62
      %v1045 = vpop.permute.xlu0 %1044
      %1046 = vrot.lane.b32.xlu0 %v318, 62
      %v1047 = vpop.permute.xlu0 %1046
      %1048 = vrot.lane.b32.xlu0 %v319, 62
      %v1049 = vpop.permute.xlu0 %1048
      %1050 = vrot.lane.b32.xlu0 %v320, 62
      %v1051 = vpop.permute.xlu0 %1050
      %1052 = vrot.lane.b32.xlu0 %v321, 62
      %v1053 = vpop.permute.xlu0 %1052
      %1054 = vrot.lane.b32.xlu0 %v322, 62
      %v1055 = vpop.permute.xlu0 %1054
      %1056 = vrot.lane.b32.xlu0 %v323, 62
      %v1057 = vpop.permute.xlu0 %1056
      %1058 = vrot.lane.b32.xlu0 %v324, 62
      %v1059 = vpop.permute.xlu0 %1058
      %1060 = vrot.lane.b32.xlu0 %v325, 62
      %v1061 = vpop.permute.xlu0 %1060
      %1062 = vrot.lane.b32.xlu0 %v326, 62
      %v1063 = vpop.permute.xlu0 %1062
      %1064 = vrot.lane.b32.xlu0 %v327, 62
      %v1065 = vpop.permute.xlu0 %1064
      %1066 = vrot.lane.b32.xlu0 %v328, 62
      %v1067 = vpop.permute.xlu0 %1066
      %1068 = vrot.lane.b32.xlu0 %v416, 62
      %v1069 = vpop.permute.xlu0 %1068
      %1070 = vrot.lane.b32.xlu0 %v417, 62
      %v1071 = vpop.permute.xlu0 %1070
      %vm1072 = vcmask 506880
      %v1073 = vsel %vm1072, %v1005, %v1007
      %v1074 = vsel %vm1072, %v1007, %v1009
      %v1075 = vsel %vm1072, %v1009, %v1011
      %v1076 = vsel %vm1072, %v1011, %v1013
      %v1077 = vsel %vm1072, %v1013, %v1015
      %v1078 = vsel %vm1072, %v1015, %v1017
      %v1079 = vsel %vm1072, %v1017, %v1019
      %v1080 = vsel %vm1072, %v1019, %v1021
      %v1081 = vsel %vm1072, %v1021, %v1023
      %v1082 = vsel %vm1072, %v1023, %v1025
      %v1083 = vsel %vm1072, %v1025, %v1027
      %v1084 = vsel %vm1072, %v1027, %v1029
      %v1085 = vsel %vm1072, %v1029, %v1031
      %v1086 = vsel %vm1072, %v1031, %v1033
      %v1087 = vsel %vm1072, %v1033, %v1035
      %v1088 = vsel %vm1072, %v1035, %v1037
      %v1089 = vsel %vm1072, %v1037, %v1039
      %v1090 = vsel %vm1072, %v1039, %v1041
      %v1091 = vsel %vm1072, %v1041, %v1043
      %v1092 = vsel %vm1072, %v1043, %v1045
      %v1093 = vsel %vm1072, %v1045, %v1047
      %v1094 = vsel %vm1072, %v1047, %v1049
      %v1095 = vsel %vm1072, %v1049, %v1051
      %v1096 = vsel %vm1072, %v1051, %v1053
      %v1097 = vsel %vm1072, %v1053, %v1055
      %v1098 = vsel %vm1072, %v1055, %v1057
      %v1099 = vsel %vm1072, %v1057, %v1059
      %v1100 = vsel %vm1072, %v1059, %v1061
      %v1101 = vsel %vm1072, %v1061, %v1063
      %v1102 = vsel %vm1072, %v1063, %v1065
      %v1103 = vsel %vm1072, %v1065, %v1067
      %v1104 = vsel %vm1072, %v1067, %v1069
      %v1105 = vsel %vm1072, %v1069, %v1071
      %1106 = vrot.lane.b32.xlu0 %v380, 62
      %v1107 = vpop.permute.xlu0 %1106
      %1108 = vrot.lane.b32.xlu0 %v381, 62
      %v1109 = vpop.permute.xlu0 %1108
      %1110 = vrot.lane.b32.xlu0 %v382, 62
      %v1111 = vpop.permute.xlu0 %1110
      %1112 = vrot.lane.b32.xlu0 %v383, 62
      %v1113 = vpop.permute.xlu0 %1112
      %1114 = vrot.lane.b32.xlu0 %v384, 62
      %v1115 = vpop.permute.xlu0 %1114
      %1116 = vrot.lane.b32.xlu0 %v385, 62
      %v1117 = vpop.permute.xlu0 %1116
      %1118 = vrot.lane.b32.xlu0 %v386, 62
      %v1119 = vpop.permute.xlu0 %1118
      %1120 = vrot.lane.b32.xlu0 %v387, 62
      %v1121 = vpop.permute.xlu0 %1120
      %1122 = vrot.lane.b32.xlu0 %v388, 62
      %v1123 = vpop.permute.xlu0 %1122
      %1124 = vrot.lane.b32.xlu0 %v389, 62
      %v1125 = vpop.permute.xlu0 %1124
      %1126 = vrot.lane.b32.xlu0 %v390, 62
      %v1127 = vpop.permute.xlu0 %1126
      %1128 = vrot.lane.b32.xlu0 %v391, 62
      %v1129 = vpop.permute.xlu0 %1128
      %1130 = vrot.lane.b32.xlu0 %v392, 62
      %v1131 = vpop.permute.xlu0 %1130
      %1132 = vrot.lane.b32.xlu0 %v393, 62
      %v1133 = vpop.permute.xlu0 %1132
      %1134 = vrot.lane.b32.xlu0 %v394, 62
      %v1135 = vpop.permute.xlu0 %1134
      %1136 = vrot.lane.b32.xlu0 %v395, 62
      %v1137 = vpop.permute.xlu0 %1136
      %1138 = vrot.lane.b32.xlu0 %v396, 62
      %v1139 = vpop.permute.xlu0 %1138
      %1140 = vrot.lane.b32.xlu0 %v397, 62
      %v1141 = vpop.permute.xlu0 %1140
      %1142 = vrot.lane.b32.xlu0 %v398, 62
      %v1143 = vpop.permute.xlu0 %1142
      %1144 = vrot.lane.b32.xlu0 %v399, 62
      %v1145 = vpop.permute.xlu0 %1144
      %1146 = vrot.lane.b32.xlu0 %v400, 62
      %v1147 = vpop.permute.xlu0 %1146
      %1148 = vrot.lane.b32.xlu0 %v401, 62
      %v1149 = vpop.permute.xlu0 %1148
      %1150 = vrot.lane.b32.xlu0 %v402, 62
      %v1151 = vpop.permute.xlu0 %1150
      %1152 = vrot.lane.b32.xlu0 %v403, 62
      %v1153 = vpop.permute.xlu0 %1152
      %1154 = vrot.lane.b32.xlu0 %v404, 62
      %v1155 = vpop.permute.xlu0 %1154
      %1156 = vrot.lane.b32.xlu0 %v405, 62
      %v1157 = vpop.permute.xlu0 %1156
      %1158 = vrot.lane.b32.xlu0 %v406, 62
      %v1159 = vpop.permute.xlu0 %1158
      %1160 = vrot.lane.b32.xlu0 %v407, 62
      %v1161 = vpop.permute.xlu0 %1160
      %1162 = vrot.lane.b32.xlu0 %v408, 62
      %v1163 = vpop.permute.xlu0 %1162
      %1164 = vrot.lane.b32.xlu0 %v409, 62
      %v1165 = vpop.permute.xlu0 %1164
      %1166 = vrot.lane.b32.xlu0 %v410, 62
      %v1167 = vpop.permute.xlu0 %1166
      %1168 = vrot.lane.b32.xlu0 %v411, 62
      %v1169 = vpop.permute.xlu0 %1168
      %1170 = vrot.lane.b32.xlu0 %v523, 62
      %v1171 = vpop.permute.xlu0 %1170
      %1172 = vrot.lane.b32.xlu0 %v524, 62
      %v1173 = vpop.permute.xlu0 %1172
      %v1174 = vsel %vm1072, %v1107, %v1109
      %v1175 = vsel %vm1072, %v1109, %v1111
      %v1176 = vsel %vm1072, %v1111, %v1113
      %v1177 = vsel %vm1072, %v1113, %v1115
      %v1178 = vsel %vm1072, %v1115, %v1117
      %v1179 = vsel %vm1072, %v1117, %v1119
      %v1180 = vsel %vm1072, %v1119, %v1121
      %v1181 = vsel %vm1072, %v1121, %v1123
      %v1182 = vsel %vm1072, %v1123, %v1125
      %v1183 = vsel %vm1072, %v1125, %v1127
      %v1184 = vsel %vm1072, %v1127, %v1129
      %v1185 = vsel %vm1072, %v1129, %v1131
      %v1186 = vsel %vm1072, %v1131, %v1133
      %v1187 = vsel %vm1072, %v1133, %v1135
      %v1188 = vsel %vm1072, %v1135, %v1137
      %v1189 = vsel %vm1072, %v1137, %v1139
      %v1190 = vsel %vm1072, %v1139, %v1141
      %v1191 = vsel %vm1072, %v1141, %v1143
      %v1192 = vsel %vm1072, %v1143, %v1145
      %v1193 = vsel %vm1072, %v1145, %v1147
      %v1194 = vsel %vm1072, %v1147, %v1149
      %v1195 = vsel %vm1072, %v1149, %v1151
      %v1196 = vsel %vm1072, %v1151, %v1153
      %v1197 = vsel %vm1072, %v1153, %v1155
      %v1198 = vsel %vm1072, %v1155, %v1157
      %v1199 = vsel %vm1072, %v1157, %v1159
      %v1200 = vsel %vm1072, %v1159, %v1161
      %v1201 = vsel %vm1072, %v1161, %v1163
      %v1202 = vsel %vm1072, %v1163, %v1165
      %v1203 = vsel %vm1072, %v1165, %v1167
      %v1204 = vsel %vm1072, %v1167, %v1169
      %v1205 = vsel %vm1072, %v1169, %v1171
      %v1206 = vsel %vm1072, %v1171, %v1173
      %1207 = vrot.lane.b32.xlu0 %v297, 61
      %v1208 = vpop.permute.xlu0 %1207
      %1209 = vrot.lane.b32.xlu0 %v298, 61
      %v1210 = vpop.permute.xlu0 %1209
      %1211 = vrot.lane.b32.xlu0 %v299, 61
      %v1212 = vpop.permute.xlu0 %1211
      %1213 = vrot.lane.b32.xlu0 %v300, 61
      %v1214 = vpop.permute.xlu0 %1213
      %1215 = vrot.lane.b32.xlu0 %v301, 61
      %v1216 = vpop.permute.xlu0 %1215
      %1217 = vrot.lane.b32.xlu0 %v302, 61
      %v1218 = vpop.permute.xlu0 %1217
      %1219 = vrot.lane.b32.xlu0 %v303, 61
      %v1220 = vpop.permute.xlu0 %1219
      %1221 = vrot.lane.b32.xlu0 %v304, 61
      %v1222 = vpop.permute.xlu0 %1221
      %1223 = vrot.lane.b32.xlu0 %v305, 61
      %v1224 = vpop.permute.xlu0 %1223
      %1225 = vrot.lane.b32.xlu0 %v306, 61
      %v1226 = vpop.permute.xlu0 %1225
      %1227 = vrot.lane.b32.xlu0 %v307, 61
      %v1228 = vpop.permute.xlu0 %1227
      %1229 = vrot.lane.b32.xlu0 %v308, 61
      %v1230 = vpop.permute.xlu0 %1229
      %1231 = vrot.lane.b32.xlu0 %v309, 61
      %v1232 = vpop.permute.xlu0 %1231
      %1233 = vrot.lane.b32.xlu0 %v310, 61
      %v1234 = vpop.permute.xlu0 %1233
      %1235 = vrot.lane.b32.xlu0 %v311, 61
      %v1236 = vpop.permute.xlu0 %1235
      %1237 = vrot.lane.b32.xlu0 %v312, 61
      %v1238 = vpop.permute.xlu0 %1237
      %1239 = vrot.lane.b32.xlu0 %v313, 61
      %v1240 = vpop.permute.xlu0 %1239
      %1241 = vrot.lane.b32.xlu0 %v314, 61
      %v1242 = vpop.permute.xlu0 %1241
      %1243 = vrot.lane.b32.xlu0 %v315, 61
      %v1244 = vpop.permute.xlu0 %1243
      %1245 = vrot.lane.b32.xlu0 %v316, 61
      %v1246 = vpop.permute.xlu0 %1245
      %1247 = vrot.lane.b32.xlu0 %v317, 61
      %v1248 = vpop.permute.xlu0 %1247
      %1249 = vrot.lane.b32.xlu0 %v318, 61
      %v1250 = vpop.permute.xlu0 %1249
      %1251 = vrot.lane.b32.xlu0 %v319, 61
      %v1252 = vpop.permute.xlu0 %1251
      %1253 = vrot.lane.b32.xlu0 %v320, 61
      %v1254 = vpop.permute.xlu0 %1253
      %1255 = vrot.lane.b32.xlu0 %v321, 61
      %v1256 = vpop.permute.xlu0 %1255
      %1257 = vrot.lane.b32.xlu0 %v322, 61
      %v1258 = vpop.permute.xlu0 %1257
      %1259 = vrot.lane.b32.xlu0 %v323, 61
      %v1260 = vpop.permute.xlu0 %1259
      %1261 = vrot.lane.b32.xlu0 %v324, 61
      %v1262 = vpop.permute.xlu0 %1261
      %1263 = vrot.lane.b32.xlu0 %v325, 61
      %v1264 = vpop.permute.xlu0 %1263
      %1265 = vrot.lane.b32.xlu0 %v326, 61
      %v1266 = vpop.permute.xlu0 %1265
      %1267 = vrot.lane.b32.xlu0 %v327, 61
      %v1268 = vpop.permute.xlu0 %1267
      %1269 = vrot.lane.b32.xlu0 %v328, 61
      %v1270 = vpop.permute.xlu0 %1269
      %1271 = vrot.lane.b32.xlu0 %v416, 61
      %v1272 = vpop.permute.xlu0 %1271
      %1273 = vrot.lane.b32.xlu0 %v417, 61
      %v1274 = vpop.permute.xlu0 %1273
      %vm1275 = vcmask 498688
      %v1276 = vsel %vm1275, %v1208, %v1210
      %v1277 = vsel %vm1275, %v1210, %v1212
      %v1278 = vsel %vm1275, %v1212, %v1214
      %v1279 = vsel %vm1275, %v1214, %v1216
      %v1280 = vsel %vm1275, %v1216, %v1218
      %v1281 = vsel %vm1275, %v1218, %v1220
      %v1282 = vsel %vm1275, %v1220, %v1222
      %v1283 = vsel %vm1275, %v1222, %v1224
      %v1284 = vsel %vm1275, %v1224, %v1226
      %v1285 = vsel %vm1275, %v1226, %v1228
      %v1286 = vsel %vm1275, %v1228, %v1230
      %v1287 = vsel %vm1275, %v1230, %v1232
      %v1288 = vsel %vm1275, %v1232, %v1234
      %v1289 = vsel %vm1275, %v1234, %v1236
      %v1290 = vsel %vm1275, %v1236, %v1238
      %v1291 = vsel %vm1275, %v1238, %v1240
      %v1292 = vsel %vm1275, %v1240, %v1242
      %v1293 = vsel %vm1275, %v1242, %v1244
      %v1294 = vsel %vm1275, %v1244, %v1246
      %v1295 = vsel %vm1275, %v1246, %v1248
      %v1296 = vsel %vm1275, %v1248, %v1250
      %v1297 = vsel %vm1275, %v1250, %v1252
      %v1298 = vsel %vm1275, %v1252, %v1254
      %v1299 = vsel %vm1275, %v1254, %v1256
      %v1300 = vsel %vm1275, %v1256, %v1258
      %v1301 = vsel %vm1275, %v1258, %v1260
      %v1302 = vsel %vm1275, %v1260, %v1262
      %v1303 = vsel %vm1275, %v1262, %v1264
      %v1304 = vsel %vm1275, %v1264, %v1266
      %v1305 = vsel %vm1275, %v1266, %v1268
      %v1306 = vsel %vm1275, %v1268, %v1270
      %v1307 = vsel %vm1275, %v1270, %v1272
      %v1308 = vsel %vm1275, %v1272, %v1274
      %1309 = vrot.lane.b32.xlu0 %v380, 61
      %v1310 = vpop.permute.xlu0 %1309
      %1311 = vrot.lane.b32.xlu0 %v381, 61
      %v1312 = vpop.permute.xlu0 %1311
      %1313 = vrot.lane.b32.xlu0 %v382, 61
      %v1314 = vpop.permute.xlu0 %1313
      %1315 = vrot.lane.b32.xlu0 %v383, 61
      %v1316 = vpop.permute.xlu0 %1315
      %1317 = vrot.lane.b32.xlu0 %v384, 61
      %v1318 = vpop.permute.xlu0 %1317
      %1319 = vrot.lane.b32.xlu0 %v385, 61
      %v1320 = vpop.permute.xlu0 %1319
      %1321 = vrot.lane.b32.xlu0 %v386, 61
      %v1322 = vpop.permute.xlu0 %1321
      %1323 = vrot.lane.b32.xlu0 %v387, 61
      %v1324 = vpop.permute.xlu0 %1323
      %1325 = vrot.lane.b32.xlu0 %v388, 61
      %v1326 = vpop.permute.xlu0 %1325
      %1327 = vrot.lane.b32.xlu0 %v389, 61
      %v1328 = vpop.permute.xlu0 %1327
      %1329 = vrot.lane.b32.xlu0 %v390, 61
      %v1330 = vpop.permute.xlu0 %1329
      %1331 = vrot.lane.b32.xlu0 %v391, 61
      %v1332 = vpop.permute.xlu0 %1331
      %1333 = vrot.lane.b32.xlu0 %v392, 61
      %v1334 = vpop.permute.xlu0 %1333
      %1335 = vrot.lane.b32.xlu0 %v393, 61
      %v1336 = vpop.permute.xlu0 %1335
      %1337 = vrot.lane.b32.xlu0 %v394, 61
      %v1338 = vpop.permute.xlu0 %1337
      %1339 = vrot.lane.b32.xlu0 %v395, 61
      %v1340 = vpop.permute.xlu0 %1339
      %1341 = vrot.lane.b32.xlu0 %v396, 61
      %v1342 = vpop.permute.xlu0 %1341
      %1343 = vrot.lane.b32.xlu0 %v397, 61
      %v1344 = vpop.permute.xlu0 %1343
      %1345 = vrot.lane.b32.xlu0 %v398, 61
      %v1346 = vpop.permute.xlu0 %1345
      %1347 = vrot.lane.b32.xlu0 %v399, 61
      %v1348 = vpop.permute.xlu0 %1347
      %1349 = vrot.lane.b32.xlu0 %v400, 61
      %v1350 = vpop.permute.xlu0 %1349
      %1351 = vrot.lane.b32.xlu0 %v401, 61
      %v1352 = vpop.permute.xlu0 %1351
      %1353 = vrot.lane.b32.xlu0 %v402, 61
      %v1354 = vpop.permute.xlu0 %1353
      %1355 = vrot.lane.b32.xlu0 %v403, 61
      %v1356 = vpop.permute.xlu0 %1355
      %1357 = vrot.lane.b32.xlu0 %v404, 61
      %v1358 = vpop.permute.xlu0 %1357
      %1359 = vrot.lane.b32.xlu0 %v405, 61
      %v1360 = vpop.permute.xlu0 %1359
      %1361 = vrot.lane.b32.xlu0 %v406, 61
      %v1362 = vpop.permute.xlu0 %1361
      %1363 = vrot.lane.b32.xlu0 %v407, 61
      %v1364 = vpop.permute.xlu0 %1363
      %1365 = vrot.lane.b32.xlu0 %v408, 61
      %v1366 = vpop.permute.xlu0 %1365
      %1367 = vrot.lane.b32.xlu0 %v409, 61
      %v1368 = vpop.permute.xlu0 %1367
      %1369 = vrot.lane.b32.xlu0 %v410, 61
      %v1370 = vpop.permute.xlu0 %1369
      %1371 = vrot.lane.b32.xlu0 %v411, 61
      %v1372 = vpop.permute.xlu0 %1371
      %1373 = vrot.lane.b32.xlu0 %v523, 61
      %v1374 = vpop.permute.xlu0 %1373
      %1375 = vrot.lane.b32.xlu0 %v524, 61
      %v1376 = vpop.permute.xlu0 %1375
      %v1377 = vsel %vm1275, %v1310, %v1312
      %v1378 = vsel %vm1275, %v1312, %v1314
      %v1379 = vsel %vm1275, %v1314, %v1316
      %v1380 = vsel %vm1275, %v1316, %v1318
      %v1381 = vsel %vm1275, %v1318, %v1320
      %v1382 = vsel %vm1275, %v1320, %v1322
      %v1383 = vsel %vm1275, %v1322, %v1324
      %v1384 = vsel %vm1275, %v1324, %v1326
      %v1385 = vsel %vm1275, %v1326, %v1328
      %v1386 = vsel %vm1275, %v1328, %v1330
      %v1387 = vsel %vm1275, %v1330, %v1332
      %v1388 = vsel %vm1275, %v1332, %v1334
      %v1389 = vsel %vm1275, %v1334, %v1336
      %v1390 = vsel %vm1275, %v1336, %v1338
      %v1391 = vsel %vm1275, %v1338, %v1340
      %v1392 = vsel %vm1275, %v1340, %v1342
      %v1393 = vsel %vm1275, %v1342, %v1344
      %v1394 = vsel %vm1275, %v1344, %v1346
      %v1395 = vsel %vm1275, %v1346, %v1348
      %v1396 = vsel %vm1275, %v1348, %v1350
      %v1397 = vsel %vm1275, %v1350, %v1352
      %v1398 = vsel %vm1275, %v1352, %v1354
      %v1399 = vsel %vm1275, %v1354, %v1356
      %v1400 = vsel %vm1275, %v1356, %v1358
      %v1401 = vsel %vm1275, %v1358, %v1360
      %v1402 = vsel %vm1275, %v1360, %v1362
      %v1403 = vsel %vm1275, %v1362, %v1364
      %v1404 = vsel %vm1275, %v1364, %v1366
      %v1405 = vsel %vm1275, %v1366, %v1368
      %v1406 = vsel %vm1275, %v1368, %v1370
      %v1407 = vsel %vm1275, %v1370, %v1372
      %v1408 = vsel %vm1275, %v1372, %v1374
      %v1409 = vsel %vm1275, %v1374, %v1376
      %1410 = vrot.lane.b32.xlu0 %v676, 62
      %v1411 = vpop.permute.xlu0 %1410
      %1412 = vrot.lane.b32.xlu0 %v677, 62
      %v1413 = vpop.permute.xlu0 %1412
      %1414 = vrot.lane.b32.xlu0 %v678, 62
      %v1415 = vpop.permute.xlu0 %1414
      %1416 = vrot.lane.b32.xlu0 %v679, 62
      %v1417 = vpop.permute.xlu0 %1416
      %1418 = vrot.lane.b32.xlu0 %v680, 62
      %v1419 = vpop.permute.xlu0 %1418
      %1420 = vrot.lane.b32.xlu0 %v681, 62
      %v1421 = vpop.permute.xlu0 %1420
      %1422 = vrot.lane.b32.xlu0 %v682, 62
      %v1423 = vpop.permute.xlu0 %1422
      %1424 = vrot.lane.b32.xlu0 %v683, 62
      %v1425 = vpop.permute.xlu0 %1424
      %1426 = vrot.lane.b32.xlu0 %v684, 62
      %v1427 = vpop.permute.xlu0 %1426
      %1428 = vrot.lane.b32.xlu0 %v685, 62
      %v1429 = vpop.permute.xlu0 %1428
      %1430 = vrot.lane.b32.xlu0 %v686, 62
      %v1431 = vpop.permute.xlu0 %1430
      %1432 = vrot.lane.b32.xlu0 %v687, 62
      %v1433 = vpop.permute.xlu0 %1432
      %1434 = vrot.lane.b32.xlu0 %v688, 62
      %v1435 = vpop.permute.xlu0 %1434
      %1436 = vrot.lane.b32.xlu0 %v689, 62
      %v1437 = vpop.permute.xlu0 %1436
      %1438 = vrot.lane.b32.xlu0 %v690, 62
      %v1439 = vpop.permute.xlu0 %1438
      %1440 = vrot.lane.b32.xlu0 %v691, 62
      %v1441 = vpop.permute.xlu0 %1440
      %1442 = vrot.lane.b32.xlu0 %v692, 62
      %v1443 = vpop.permute.xlu0 %1442
      %1444 = vrot.lane.b32.xlu0 %v693, 62
      %v1445 = vpop.permute.xlu0 %1444
      %1446 = vrot.lane.b32.xlu0 %v694, 62
      %v1447 = vpop.permute.xlu0 %1446
      %1448 = vrot.lane.b32.xlu0 %v695, 62
      %v1449 = vpop.permute.xlu0 %1448
      %1450 = vrot.lane.b32.xlu0 %v696, 62
      %v1451 = vpop.permute.xlu0 %1450
      %1452 = vrot.lane.b32.xlu0 %v697, 62
      %v1453 = vpop.permute.xlu0 %1452
      %1454 = vrot.lane.b32.xlu0 %v698, 62
      %v1455 = vpop.permute.xlu0 %1454
      %1456 = vrot.lane.b32.xlu0 %v699, 62
      %v1457 = vpop.permute.xlu0 %1456
      %1458 = vrot.lane.b32.xlu0 %v700, 62
      %v1459 = vpop.permute.xlu0 %1458
      %1460 = vrot.lane.b32.xlu0 %v701, 62
      %v1461 = vpop.permute.xlu0 %1460
      %1462 = vrot.lane.b32.xlu0 %v702, 62
      %v1463 = vpop.permute.xlu0 %1462
      %1464 = vrot.lane.b32.xlu0 %v703, 62
      %v1465 = vpop.permute.xlu0 %1464
      %1466 = vrot.lane.b32.xlu0 %v704, 62
      %v1467 = vpop.permute.xlu0 %1466
      %1468 = vrot.lane.b32.xlu0 %v705, 62
      %v1469 = vpop.permute.xlu0 %1468
      %1470 = vrot.lane.b32.xlu0 %v706, 62
      %v1471 = vpop.permute.xlu0 %1470
      %1472 = vrot.lane.b32.xlu0 %v707, 62
      %v1473 = vpop.permute.xlu0 %1472
      %1474 = vrot.lane.b32.xlu0 %v795, 62
      %v1475 = vpop.permute.xlu0 %1474
      %1476 = vrot.lane.b32.xlu0 %v796, 62
      %v1477 = vpop.permute.xlu0 %1476
      %v1478 = vsel %vm1072, %v1411, %v1413
      %v1479 = vsel %vm1072, %v1413, %v1415
      %v1480 = vsel %vm1072, %v1415, %v1417
      %v1481 = vsel %vm1072, %v1417, %v1419
      %v1482 = vsel %vm1072, %v1419, %v1421
      %v1483 = vsel %vm1072, %v1421, %v1423
      %v1484 = vsel %vm1072, %v1423, %v1425
      %v1485 = vsel %vm1072, %v1425, %v1427
      %v1486 = vsel %vm1072, %v1427, %v1429
      %v1487 = vsel %vm1072, %v1429, %v1431
      %v1488 = vsel %vm1072, %v1431, %v1433
      %v1489 = vsel %vm1072, %v1433, %v1435
      %v1490 = vsel %vm1072, %v1435, %v1437
      %v1491 = vsel %vm1072, %v1437, %v1439
      %v1492 = vsel %vm1072, %v1439, %v1441
      %v1493 = vsel %vm1072, %v1441, %v1443
      %v1494 = vsel %vm1072, %v1443, %v1445
      %v1495 = vsel %vm1072, %v1445, %v1447
      %v1496 = vsel %vm1072, %v1447, %v1449
      %v1497 = vsel %vm1072, %v1449, %v1451
      %v1498 = vsel %vm1072, %v1451, %v1453
      %v1499 = vsel %vm1072, %v1453, %v1455
      %v1500 = vsel %vm1072, %v1455, %v1457
      %v1501 = vsel %vm1072, %v1457, %v1459
      %v1502 = vsel %vm1072, %v1459, %v1461
      %v1503 = vsel %vm1072, %v1461, %v1463
      %v1504 = vsel %vm1072, %v1463, %v1465
      %v1505 = vsel %vm1072, %v1465, %v1467
      %v1506 = vsel %vm1072, %v1467, %v1469
      %v1507 = vsel %vm1072, %v1469, %v1471
      %v1508 = vsel %vm1072, %v1471, %v1473
      %v1509 = vsel %vm1072, %v1473, %v1475
      %v1510 = vsel %vm1072, %v1475, %v1477
      %1511 = vrot.lane.b32.xlu0 %v759, 62
      %v1512 = vpop.permute.xlu0 %1511
      %1513 = vrot.lane.b32.xlu0 %v760, 62
      %v1514 = vpop.permute.xlu0 %1513
      %1515 = vrot.lane.b32.xlu0 %v761, 62
      %v1516 = vpop.permute.xlu0 %1515
      %1517 = vrot.lane.b32.xlu0 %v762, 62
      %v1518 = vpop.permute.xlu0 %1517
      %1519 = vrot.lane.b32.xlu0 %v763, 62
      %v1520 = vpop.permute.xlu0 %1519
      %1521 = vrot.lane.b32.xlu0 %v764, 62
      %v1522 = vpop.permute.xlu0 %1521
      %1523 = vrot.lane.b32.xlu0 %v765, 62
      %v1524 = vpop.permute.xlu0 %1523
      %1525 = vrot.lane.b32.xlu0 %v766, 62
      %v1526 = vpop.permute.xlu0 %1525
      %1527 = vrot.lane.b32.xlu0 %v767, 62
      %v1528 = vpop.permute.xlu0 %1527
      %1529 = vrot.lane.b32.xlu0 %v768, 62
      %v1530 = vpop.permute.xlu0 %1529
      %1531 = vrot.lane.b32.xlu0 %v769, 62
      %v1532 = vpop.permute.xlu0 %1531
      %1533 = vrot.lane.b32.xlu0 %v770, 62
      %v1534 = vpop.permute.xlu0 %1533
      %1535 = vrot.lane.b32.xlu0 %v771, 62
      %v1536 = vpop.permute.xlu0 %1535
      %1537 = vrot.lane.b32.xlu0 %v772, 62
      %v1538 = vpop.permute.xlu0 %1537
      %1539 = vrot.lane.b32.xlu0 %v773, 62
      %v1540 = vpop.permute.xlu0 %1539
      %1541 = vrot.lane.b32.xlu0 %v774, 62
      %v1542 = vpop.permute.xlu0 %1541
      %1543 = vrot.lane.b32.xlu0 %v775, 62
      %v1544 = vpop.permute.xlu0 %1543
      %1545 = vrot.lane.b32.xlu0 %v776, 62
      %v1546 = vpop.permute.xlu0 %1545
      %1547 = vrot.lane.b32.xlu0 %v777, 62
      %v1548 = vpop.permute.xlu0 %1547
      %1549 = vrot.lane.b32.xlu0 %v778, 62
      %v1550 = vpop.permute.xlu0 %1549
      %1551 = vrot.lane.b32.xlu0 %v779, 62
      %v1552 = vpop.permute.xlu0 %1551
      %1553 = vrot.lane.b32.xlu0 %v780, 62
      %v1554 = vpop.permute.xlu0 %1553
      %1555 = vrot.lane.b32.xlu0 %v781, 62
      %v1556 = vpop.permute.xlu0 %1555
      %1557 = vrot.lane.b32.xlu0 %v782, 62
      %v1558 = vpop.permute.xlu0 %1557
      %1559 = vrot.lane.b32.xlu0 %v783, 62
      %v1560 = vpop.permute.xlu0 %1559
      %1561 = vrot.lane.b32.xlu0 %v784, 62
      %v1562 = vpop.permute.xlu0 %1561
      %1563 = vrot.lane.b32.xlu0 %v785, 62
      %v1564 = vpop.permute.xlu0 %1563
      %1565 = vrot.lane.b32.xlu0 %v786, 62
      %v1566 = vpop.permute.xlu0 %1565
      %1567 = vrot.lane.b32.xlu0 %v787, 62
      %v1568 = vpop.permute.xlu0 %1567
      %1569 = vrot.lane.b32.xlu0 %v788, 62
      %v1570 = vpop.permute.xlu0 %1569
      %1571 = vrot.lane.b32.xlu0 %v789, 62
      %v1572 = vpop.permute.xlu0 %1571
      %1573 = vrot.lane.b32.xlu0 %v790, 62
      %v1574 = vpop.permute.xlu0 %1573
      %1575 = vrot.lane.b32.xlu0 %v901, 62
      %v1576 = vpop.permute.xlu0 %1575
      %1577 = vrot.lane.b32.xlu0 %v902, 62
      %v1578 = vpop.permute.xlu0 %1577
      %v1579 = vsel %vm1072, %v1512, %v1514
      %v1580 = vsel %vm1072, %v1514, %v1516
      %v1581 = vsel %vm1072, %v1516, %v1518
      %v1582 = vsel %vm1072, %v1518, %v1520
      %v1583 = vsel %vm1072, %v1520, %v1522
      %v1584 = vsel %vm1072, %v1522, %v1524
      %v1585 = vsel %vm1072, %v1524, %v1526
      %v1586 = vsel %vm1072, %v1526, %v1528
      %v1587 = vsel %vm1072, %v1528, %v1530
      %v1588 = vsel %vm1072, %v1530, %v1532
      %v1589 = vsel %vm1072, %v1532, %v1534
      %v1590 = vsel %vm1072, %v1534, %v1536
      %v1591 = vsel %vm1072, %v1536, %v1538
      %v1592 = vsel %vm1072, %v1538, %v1540
      %v1593 = vsel %vm1072, %v1540, %v1542
      %v1594 = vsel %vm1072, %v1542, %v1544
      %v1595 = vsel %vm1072, %v1544, %v1546
      %v1596 = vsel %vm1072, %v1546, %v1548
      %v1597 = vsel %vm1072, %v1548, %v1550
      %v1598 = vsel %vm1072, %v1550, %v1552
      %v1599 = vsel %vm1072, %v1552, %v1554
      %v1600 = vsel %vm1072, %v1554, %v1556
      %v1601 = vsel %vm1072, %v1556, %v1558
      %v1602 = vsel %vm1072, %v1558, %v1560
      %v1603 = vsel %vm1072, %v1560, %v1562
      %v1604 = vsel %vm1072, %v1562, %v1564
      %v1605 = vsel %vm1072, %v1564, %v1566
      %v1606 = vsel %vm1072, %v1566, %v1568
      %v1607 = vsel %vm1072, %v1568, %v1570
      %v1608 = vsel %vm1072, %v1570, %v1572
      %v1609 = vsel %vm1072, %v1572, %v1574
      %v1610 = vsel %vm1072, %v1574, %v1576
      %v1611 = vsel %vm1072, %v1576, %v1578
      %1612 = vrot.lane.b32.xlu0 %v676, 61
      %v1613 = vpop.permute.xlu0 %1612
      %1614 = vrot.lane.b32.xlu0 %v677, 61
      %v1615 = vpop.permute.xlu0 %1614
      %1616 = vrot.lane.b32.xlu0 %v678, 61
      %v1617 = vpop.permute.xlu0 %1616
      %1618 = vrot.lane.b32.xlu0 %v679, 61
      %v1619 = vpop.permute.xlu0 %1618
      %1620 = vrot.lane.b32.xlu0 %v680, 61
      %v1621 = vpop.permute.xlu0 %1620
      %1622 = vrot.lane.b32.xlu0 %v681, 61
      %v1623 = vpop.permute.xlu0 %1622
      %1624 = vrot.lane.b32.xlu0 %v682, 61
      %v1625 = vpop.permute.xlu0 %1624
      %1626 = vrot.lane.b32.xlu0 %v683, 61
      %v1627 = vpop.permute.xlu0 %1626
      %1628 = vrot.lane.b32.xlu0 %v684, 61
      %v1629 = vpop.permute.xlu0 %1628
      %1630 = vrot.lane.b32.xlu0 %v685, 61
      %v1631 = vpop.permute.xlu0 %1630
      %1632 = vrot.lane.b32.xlu0 %v686, 61
      %v1633 = vpop.permute.xlu0 %1632
      %1634 = vrot.lane.b32.xlu0 %v687, 61
      %v1635 = vpop.permute.xlu0 %1634
      %1636 = vrot.lane.b32.xlu0 %v688, 61
      %v1637 = vpop.permute.xlu0 %1636
      %1638 = vrot.lane.b32.xlu0 %v689, 61
      %v1639 = vpop.permute.xlu0 %1638
      %1640 = vrot.lane.b32.xlu0 %v690, 61
      %v1641 = vpop.permute.xlu0 %1640
      %1642 = vrot.lane.b32.xlu0 %v691, 61
      %v1643 = vpop.permute.xlu0 %1642
      %1644 = vrot.lane.b32.xlu0 %v692, 61
      %v1645 = vpop.permute.xlu0 %1644
      %1646 = vrot.lane.b32.xlu0 %v693, 61
      %v1647 = vpop.permute.xlu0 %1646
      %1648 = vrot.lane.b32.xlu0 %v694, 61
      %v1649 = vpop.permute.xlu0 %1648
      %1650 = vrot.lane.b32.xlu0 %v695, 61
      %v1651 = vpop.permute.xlu0 %1650
      %1652 = vrot.lane.b32.xlu0 %v696, 61
      %v1653 = vpop.permute.xlu0 %1652
      %1654 = vrot.lane.b32.xlu0 %v697, 61
      %v1655 = vpop.permute.xlu0 %1654
      %1656 = vrot.lane.b32.xlu0 %v698, 61
      %v1657 = vpop.permute.xlu0 %1656
      %1658 = vrot.lane.b32.xlu0 %v699, 61
      %v1659 = vpop.permute.xlu0 %1658
      %1660 = vrot.lane.b32.xlu0 %v700, 61
      %v1661 = vpop.permute.xlu0 %1660
      %1662 = vrot.lane.b32.xlu0 %v701, 61
      %v1663 = vpop.permute.xlu0 %1662
      %1664 = vrot.lane.b32.xlu0 %v702, 61
      %v1665 = vpop.permute.xlu0 %1664
      %1666 = vrot.lane.b32.xlu0 %v703, 61
      %v1667 = vpop.permute.xlu0 %1666
      %1668 = vrot.lane.b32.xlu0 %v704, 61
      %v1669 = vpop.permute.xlu0 %1668
      %1670 = vrot.lane.b32.xlu0 %v705, 61
      %v1671 = vpop.permute.xlu0 %1670
      %1672 = vrot.lane.b32.xlu0 %v706, 61
      %v1673 = vpop.permute.xlu0 %1672
      %1674 = vrot.lane.b32.xlu0 %v707, 61
      %v1675 = vpop.permute.xlu0 %1674
      %1676 = vrot.lane.b32.xlu0 %v795, 61
      %v1677 = vpop.permute.xlu0 %1676
      %1678 = vrot.lane.b32.xlu0 %v796, 61
      %v1679 = vpop.permute.xlu0 %1678
      %v1680 = vsel %vm1275, %v1613, %v1615
      %v1681 = vsel %vm1275, %v1615, %v1617
      %v1682 = vsel %vm1275, %v1617, %v1619
      %v1683 = vsel %vm1275, %v1619, %v1621
      %v1684 = vsel %vm1275, %v1621, %v1623
      %v1685 = vsel %vm1275, %v1623, %v1625
      %v1686 = vsel %vm1275, %v1625, %v1627
      %v1687 = vsel %vm1275, %v1627, %v1629
      %v1688 = vsel %vm1275, %v1629, %v1631
      %v1689 = vsel %vm1275, %v1631, %v1633
      %v1690 = vsel %vm1275, %v1633, %v1635
      %v1691 = vsel %vm1275, %v1635, %v1637
      %v1692 = vsel %vm1275, %v1637, %v1639
      %v1693 = vsel %vm1275, %v1639, %v1641
      %v1694 = vsel %vm1275, %v1641, %v1643
      %v1695 = vsel %vm1275, %v1643, %v1645
      %v1696 = vsel %vm1275, %v1645, %v1647
      %v1697 = vsel %vm1275, %v1647, %v1649
      %v1698 = vsel %vm1275, %v1649, %v1651
      %v1699 = vsel %vm1275, %v1651, %v1653
      %v1700 = vsel %vm1275, %v1653, %v1655
      %v1701 = vsel %vm1275, %v1655, %v1657
      %v1702 = vsel %vm1275, %v1657, %v1659
      %v1703 = vsel %vm1275, %v1659, %v1661
      %v1704 = vsel %vm1275, %v1661, %v1663
      %v1705 = vsel %vm1275, %v1663, %v1665
      %v1706 = vsel %vm1275, %v1665, %v1667
      %v1707 = vsel %vm1275, %v1667, %v1669
      %v1708 = vsel %vm1275, %v1669, %v1671
      %v1709 = vsel %vm1275, %v1671, %v1673
      %v1710 = vsel %vm1275, %v1673, %v1675
      %v1711 = vsel %vm1275, %v1675, %v1677
      %v1712 = vsel %vm1275, %v1677, %v1679
      %1713 = vrot.lane.b32.xlu0 %v759, 61
      %v1714 = vpop.permute.xlu0 %1713
      %1715 = vrot.lane.b32.xlu0 %v760, 61
      %v1716 = vpop.permute.xlu0 %1715
      %1717 = vrot.lane.b32.xlu0 %v761, 61
      %v1718 = vpop.permute.xlu0 %1717
      %1719 = vrot.lane.b32.xlu0 %v762, 61
      %v1720 = vpop.permute.xlu0 %1719
      %1721 = vrot.lane.b32.xlu0 %v763, 61
      %v1722 = vpop.permute.xlu0 %1721
      %1723 = vrot.lane.b32.xlu0 %v764, 61
      %v1724 = vpop.permute.xlu0 %1723
      %1725 = vrot.lane.b32.xlu0 %v765, 61
      %v1726 = vpop.permute.xlu0 %1725
      %1727 = vrot.lane.b32.xlu0 %v766, 61
      %v1728 = vpop.permute.xlu0 %1727
      %1729 = vrot.lane.b32.xlu0 %v767, 61
      %v1730 = vpop.permute.xlu0 %1729
      %1731 = vrot.lane.b32.xlu0 %v768, 61
      %v1732 = vpop.permute.xlu0 %1731
      %1733 = vrot.lane.b32.xlu0 %v769, 61
      %v1734 = vpop.permute.xlu0 %1733
      %1735 = vrot.lane.b32.xlu0 %v770, 61
      %v1736 = vpop.permute.xlu0 %1735
      %1737 = vrot.lane.b32.xlu0 %v771, 61
      %v1738 = vpop.permute.xlu0 %1737
      %1739 = vrot.lane.b32.xlu0 %v772, 61
      %v1740 = vpop.permute.xlu0 %1739
      %1741 = vrot.lane.b32.xlu0 %v773, 61
      %v1742 = vpop.permute.xlu0 %1741
      %1743 = vrot.lane.b32.xlu0 %v774, 61
      %v1744 = vpop.permute.xlu0 %1743
      %1745 = vrot.lane.b32.xlu0 %v775, 61
      %v1746 = vpop.permute.xlu0 %1745
      %1747 = vrot.lane.b32.xlu0 %v776, 61
      %v1748 = vpop.permute.xlu0 %1747
      %1749 = vrot.lane.b32.xlu0 %v777, 61
      %v1750 = vpop.permute.xlu0 %1749
      %1751 = vrot.lane.b32.xlu0 %v778, 61
      %v1752 = vpop.permute.xlu0 %1751
      %1753 = vrot.lane.b32.xlu0 %v779, 61
      %v1754 = vpop.permute.xlu0 %1753
      %1755 = vrot.lane.b32.xlu0 %v780, 61
      %v1756 = vpop.permute.xlu0 %1755
      %1757 = vrot.lane.b32.xlu0 %v781, 61
      %v1758 = vpop.permute.xlu0 %1757
      %1759 = vrot.lane.b32.xlu0 %v782, 61
      %v1760 = vpop.permute.xlu0 %1759
      %1761 = vrot.lane.b32.xlu0 %v783, 61
      %v1762 = vpop.permute.xlu0 %1761
      %1763 = vrot.lane.b32.xlu0 %v784, 61
      %v1764 = vpop.permute.xlu0 %1763
      %1765 = vrot.lane.b32.xlu0 %v785, 61
      %v1766 = vpop.permute.xlu0 %1765
      %1767 = vrot.lane.b32.xlu0 %v786, 61
      %v1768 = vpop.permute.xlu0 %1767
      %1769 = vrot.lane.b32.xlu0 %v787, 61
      %v1770 = vpop.permute.xlu0 %1769
      %1771 = vrot.lane.b32.xlu0 %v788, 61
      %v1772 = vpop.permute.xlu0 %1771
      %1773 = vrot.lane.b32.xlu0 %v789, 61
      %v1774 = vpop.permute.xlu0 %1773
      %1775 = vrot.lane.b32.xlu0 %v790, 61
      %v1776 = vpop.permute.xlu0 %1775
      %1777 = vrot.lane.b32.xlu0 %v901, 61
      %v1778 = vpop.permute.xlu0 %1777
      %1779 = vrot.lane.b32.xlu0 %v902, 61
      %v1780 = vpop.permute.xlu0 %1779
      %v1781 = vsel %vm1275, %v1714, %v1716
      %v1782 = vsel %vm1275, %v1716, %v1718
      %v1783 = vsel %vm1275, %v1718, %v1720
      %v1784 = vsel %vm1275, %v1720, %v1722
      %v1785 = vsel %vm1275, %v1722, %v1724
      %v1786 = vsel %vm1275, %v1724, %v1726
      %v1787 = vsel %vm1275, %v1726, %v1728
      %v1788 = vsel %vm1275, %v1728, %v1730
      %v1789 = vsel %vm1275, %v1730, %v1732
      %v1790 = vsel %vm1275, %v1732, %v1734
      %v1791 = vsel %vm1275, %v1734, %v1736
      %v1792 = vsel %vm1275, %v1736, %v1738
      %v1793 = vsel %vm1275, %v1738, %v1740
      %v1794 = vsel %vm1275, %v1740, %v1742
      %v1795 = vsel %vm1275, %v1742, %v1744
      %v1796 = vsel %vm1275, %v1744, %v1746
      %v1797 = vsel %vm1275, %v1746, %v1748
      %v1798 = vsel %vm1275, %v1748, %v1750
      %v1799 = vsel %vm1275, %v1750, %v1752
      %v1800 = vsel %vm1275, %v1752, %v1754
      %v1801 = vsel %vm1275, %v1754, %v1756
      %v1802 = vsel %vm1275, %v1756, %v1758
      %v1803 = vsel %vm1275, %v1758, %v1760
      %v1804 = vsel %vm1275, %v1760, %v1762
      %v1805 = vsel %vm1275, %v1762, %v1764
      %v1806 = vsel %vm1275, %v1764, %v1766
      %v1807 = vsel %vm1275, %v1766, %v1768
      %v1808 = vsel %vm1275, %v1768, %v1770
      %v1809 = vsel %vm1275, %v1770, %v1772
      %v1810 = vsel %vm1275, %v1772, %v1774
      %v1811 = vsel %vm1275, %v1774, %v1776
      %v1812 = vsel %vm1275, %v1776, %v1778
      %v1813 = vsel %vm1275, %v1778, %v1780
      %vm1814 = vcmask 1043456
      %v1817 = vsel %vm1814, %v297, %v380
      %v1821 = vsel %vm1814, %v298, %v381
      %v1825 = vsel %vm1814, %v299, %v382
      %v1829 = vsel %vm1814, %v300, %v383
      %v1833 = vsel %vm1814, %v301, %v384
      %v1837 = vsel %vm1814, %v302, %v385
      %v1841 = vsel %vm1814, %v303, %v386
      %v1845 = vsel %vm1814, %v304, %v387
      %v1849 = vsel %vm1814, %v305, %v388
      %v1853 = vsel %vm1814, %v306, %v389
      %v1857 = vsel %vm1814, %v307, %v390
      %v1861 = vsel %vm1814, %v308, %v391
      %v1865 = vsel %vm1814, %v309, %v392
      %v1869 = vsel %vm1814, %v310, %v393
      %v1873 = vsel %vm1814, %v311, %v394
      %v1877 = vsel %vm1814, %v312, %v395
      %v1881 = vsel %vm1814, %v313, %v396
      %v1885 = vsel %vm1814, %v314, %v397
      %v1889 = vsel %vm1814, %v315, %v398
      %v1893 = vsel %vm1814, %v316, %v399
      %v1897 = vsel %vm1814, %v317, %v400
      %v1901 = vsel %vm1814, %v318, %v401
      %v1905 = vsel %vm1814, %v319, %v402
      %v1909 = vsel %vm1814, %v320, %v403
      %v1913 = vsel %vm1814, %v321, %v404
      %v1917 = vsel %vm1814, %v322, %v405
      %v1921 = vsel %vm1814, %v323, %v406
      %v1925 = vsel %vm1814, %v324, %v407
      %v1929 = vsel %vm1814, %v325, %v408
      %v1933 = vsel %vm1814, %v326, %v409
      %v1937 = vsel %vm1814, %v327, %v410
      %v1941 = vsel %vm1814, %v328, %v411
      %v1945 = vsel %vm1814, %v329, %v412
      %v1949 = vsel %vm1814, %v487, %v593
      %v1953 = vsel %vm1814, %v488, %v594
      %v1957 = vsel %vm1814, %v489, %v595
      %v1961 = vsel %vm1814, %v490, %v596
      %v1965 = vsel %vm1814, %v491, %v597
      %v1969 = vsel %vm1814, %v492, %v598
      %v1973 = vsel %vm1814, %v493, %v599
      %v1977 = vsel %vm1814, %v494, %v600
      %v1981 = vsel %vm1814, %v495, %v601
      %v1985 = vsel %vm1814, %v496, %v602
      %v1989 = vsel %vm1814, %v497, %v603
      %v1993 = vsel %vm1814, %v498, %v604
      %v1997 = vsel %vm1814, %v499, %v605
      %v2001 = vsel %vm1814, %v500, %v606
      %v2005 = vsel %vm1814, %v501, %v607
      %v2009 = vsel %vm1814, %v502, %v608
      %v2013 = vsel %vm1814, %v503, %v609
      %v2017 = vsel %vm1814, %v504, %v610
      %v2021 = vsel %vm1814, %v505, %v611
      %v2025 = vsel %vm1814, %v506, %v612
      %v2029 = vsel %vm1814, %v507, %v613
      %v2033 = vsel %vm1814, %v508, %v614
      %v2037 = vsel %vm1814, %v509, %v615
      %v2041 = vsel %vm1814, %v510, %v616
      %v2045 = vsel %vm1814, %v511, %v617
      %v2049 = vsel %vm1814, %v512, %v618
      %v2053 = vsel %vm1814, %v513, %v619
      %v2057 = vsel %vm1814, %v514, %v620
      %v2061 = vsel %vm1814, %v515, %v621
      %v2065 = vsel %vm1814, %v516, %v622
      %v2069 = vsel %vm1814, %v517, %v623
      %v2073 = vsel %vm1814, %v518, %v624
      %v2077 = vsel %vm1814, %v519, %v625
      %v2081 = vsel %vm1814, %v676, %v759
      %v2085 = vsel %vm1814, %v677, %v760
      %v2089 = vsel %vm1814, %v678, %v761
      %v2093 = vsel %vm1814, %v679, %v762
      %v2097 = vsel %vm1814, %v680, %v763
      %v2101 = vsel %vm1814, %v681, %v764
      %v2105 = vsel %vm1814, %v682, %v765
      %v2109 = vsel %vm1814, %v683, %v766
      %v2113 = vsel %vm1814, %v684, %v767
      %v2117 = vsel %vm1814, %v685, %v768
      %v2121 = vsel %vm1814, %v686, %v769
      %v2125 = vsel %vm1814, %v687, %v770
      %v2129 = vsel %vm1814, %v688, %v771
      %v2133 = vsel %vm1814, %v689, %v772
      %v2137 = vsel %vm1814, %v690, %v773
      %v2141 = vsel %vm1814, %v691, %v774
      %v2145 = vsel %vm1814, %v692, %v775
      %v2149 = vsel %vm1814, %v693, %v776
      %v2153 = vsel %vm1814, %v694, %v777
      %v2157 = vsel %vm1814, %v695, %v778
      %v2161 = vsel %vm1814, %v696, %v779
      %v2165 = vsel %vm1814, %v697, %v780
      %v2169 = vsel %vm1814, %v698, %v781
      %v2173 = vsel %vm1814, %v699, %v782
      %v2177 = vsel %vm1814, %v700, %v783
      %v2181 = vsel %vm1814, %v701, %v784
      %v2185 = vsel %vm1814, %v702, %v785
      %v2189 = vsel %vm1814, %v703, %v786
      %v2193 = vsel %vm1814, %v704, %v787
      %v2197 = vsel %vm1814, %v705, %v788
      %v2201 = vsel %vm1814, %v706, %v789
      %v2205 = vsel %vm1814, %v707, %v790
      %v2209 = vsel %vm1814, %v708, %v791
      %v2213 = vsel %vm1814, %v865, %v971
      %v2217 = vsel %vm1814, %v866, %v972
      %v2221 = vsel %vm1814, %v867, %v973
      %v2225 = vsel %vm1814, %v868, %v974
      %v2229 = vsel %vm1814, %v869, %v975
      %v2233 = vsel %vm1814, %v870, %v976
      %v2237 = vsel %vm1814, %v871, %v977
      %v2241 = vsel %vm1814, %v872, %v978
      %v2245 = vsel %vm1814, %v873, %v979
      %v2249 = vsel %vm1814, %v874, %v980
      %v2253 = vsel %vm1814, %v875, %v981
      %v2257 = vsel %vm1814, %v876, %v982
      %v2261 = vsel %vm1814, %v877, %v983
      %v2265 = vsel %vm1814, %v878, %v984
      %v2269 = vsel %vm1814, %v879, %v985
      %v2273 = vsel %vm1814, %v880, %v986
      %v2277 = vsel %vm1814, %v881, %v987
      %v2281 = vsel %vm1814, %v882, %v988
      %v2285 = vsel %vm1814, %v883, %v989
      %v2289 = vsel %vm1814, %v884, %v990
      %v2293 = vsel %vm1814, %v885, %v991
      %v2297 = vsel %vm1814, %v886, %v992
      %v2301 = vsel %vm1814, %v887, %v993
      %v2305 = vsel %vm1814, %v888, %v994
      %v2309 = vsel %vm1814, %v889, %v995
      %v2313 = vsel %vm1814, %v890, %v996
      %v2317 = vsel %vm1814, %v891, %v997
      %v2321 = vsel %vm1814, %v892, %v998
      %v2325 = vsel %vm1814, %v893, %v999
      %v2329 = vsel %vm1814, %v894, %v1000
      %v2333 = vsel %vm1814, %v895, %v1001
      %v2337 = vsel %vm1814, %v896, %v1002
      %v2341 = vsel %vm1814, %v897, %v1003
      %v2345 = vsel %vm1814, %v1073, %v1174
      %v2349 = vsel %vm1814, %v1074, %v1175
      %v2353 = vsel %vm1814, %v1075, %v1176
      %v2357 = vsel %vm1814, %v1076, %v1177
      %v2361 = vsel %vm1814, %v1077, %v1178
      %v2365 = vsel %vm1814, %v1078, %v1179
      %v2369 = vsel %vm1814, %v1079, %v1180
      %v2373 = vsel %vm1814, %v1080, %v1181
      %v2377 = vsel %vm1814, %v1081, %v1182
      %v2381 = vsel %vm1814, %v1082, %v1183
      %v2385 = vsel %vm1814, %v1083, %v1184
      %v2389 = vsel %vm1814, %v1084, %v1185
      %v2393 = vsel %vm1814, %v1085, %v1186
      %v2397 = vsel %vm1814, %v1086, %v1187
      %v2401 = vsel %vm1814, %v1087, %v1188
      %v2405 = vsel %vm1814, %v1088, %v1189
      %v2409 = vsel %vm1814, %v1089, %v1190
      %v2413 = vsel %vm1814, %v1090, %v1191
      %v2417 = vsel %vm1814, %v1091, %v1192
      %v2421 = vsel %vm1814, %v1092, %v1193
      %v2425 = vsel %vm1814, %v1093, %v1194
      %v2429 = vsel %vm1814, %v1094, %v1195
      %v2433 = vsel %vm1814, %v1095, %v1196
      %v2437 = vsel %vm1814, %v1096, %v1197
      %v2441 = vsel %vm1814, %v1097, %v1198
      %v2445 = vsel %vm1814, %v1098, %v1199
      %v2449 = vsel %vm1814, %v1099, %v1200
      %v2453 = vsel %vm1814, %v1100, %v1201
      %v2457 = vsel %vm1814, %v1101, %v1202
      %v2461 = vsel %vm1814, %v1102, %v1203
      %v2465 = vsel %vm1814, %v1103, %v1204
      %v2469 = vsel %vm1814, %v1104, %v1205
      %v2473 = vsel %vm1814, %v1105, %v1206
      %v2477 = vsel %vm1814, %v1276, %v1377
      %v2481 = vsel %vm1814, %v1277, %v1378
      %v2485 = vsel %vm1814, %v1278, %v1379
      %v2489 = vsel %vm1814, %v1279, %v1380
      %v2493 = vsel %vm1814, %v1280, %v1381
      %v2497 = vsel %vm1814, %v1281, %v1382
      %v2501 = vsel %vm1814, %v1282, %v1383
      %v2505 = vsel %vm1814, %v1283, %v1384
      %v2509 = vsel %vm1814, %v1284, %v1385
      %v2513 = vsel %vm1814, %v1285, %v1386
      %v2517 = vsel %vm1814, %v1286, %v1387
      %v2521 = vsel %vm1814, %v1287, %v1388
      %v2525 = vsel %vm1814, %v1288, %v1389
      %v2529 = vsel %vm1814, %v1289, %v1390
      %v2533 = vsel %vm1814, %v1290, %v1391
      %v2537 = vsel %vm1814, %v1291, %v1392
      %v2541 = vsel %vm1814, %v1292, %v1393
      %v2545 = vsel %vm1814, %v1293, %v1394
      %v2549 = vsel %vm1814, %v1294, %v1395
      %v2553 = vsel %vm1814, %v1295, %v1396
      %v2557 = vsel %vm1814, %v1296, %v1397
      %v2561 = vsel %vm1814, %v1297, %v1398
      %v2565 = vsel %vm1814, %v1298, %v1399
      %v2569 = vsel %vm1814, %v1299, %v1400
      %v2573 = vsel %vm1814, %v1300, %v1401
      %v2577 = vsel %vm1814, %v1301, %v1402
      %v2581 = vsel %vm1814, %v1302, %v1403
      %v2585 = vsel %vm1814, %v1303, %v1404
      %v2589 = vsel %vm1814, %v1304, %v1405
      %v2593 = vsel %vm1814, %v1305, %v1406
      %v2597 = vsel %vm1814, %v1306, %v1407
      %v2601 = vsel %vm1814, %v1307, %v1408
      %v2605 = vsel %vm1814, %v1308, %v1409
      %v2609 = vsel %vm1814, %v1478, %v1579
      %v2613 = vsel %vm1814, %v1479, %v1580
      %v2617 = vsel %vm1814, %v1480, %v1581
      %v2621 = vsel %vm1814, %v1481, %v1582
      %v2625 = vsel %vm1814, %v1482, %v1583
      %v2629 = vsel %vm1814, %v1483, %v1584
      %v2633 = vsel %vm1814, %v1484, %v1585
      %v2637 = vsel %vm1814, %v1485, %v1586
      %v2641 = vsel %vm1814, %v1486, %v1587
      %v2645 = vsel %vm1814, %v1487, %v1588
      %v2649 = vsel %vm1814, %v1488, %v1589
      %v2653 = vsel %vm1814, %v1489, %v1590
      %v2657 = vsel %vm1814, %v1490, %v1591
      %v2661 = vsel %vm1814, %v1491, %v1592
      %v2665 = vsel %vm1814, %v1492, %v1593
      %v2669 = vsel %vm1814, %v1493, %v1594
      %v2673 = vsel %vm1814, %v1494, %v1595
      %v2677 = vsel %vm1814, %v1495, %v1596
      %v2681 = vsel %vm1814, %v1496, %v1597
      %v2685 = vsel %vm1814, %v1497, %v1598
      %v2689 = vsel %vm1814, %v1498, %v1599
      %v2693 = vsel %vm1814, %v1499, %v1600
      %v2697 = vsel %vm1814, %v1500, %v1601
      %v2701 = vsel %vm1814, %v1501, %v1602
      %v2705 = vsel %vm1814, %v1502, %v1603
      %v2709 = vsel %vm1814, %v1503, %v1604
      %v2713 = vsel %vm1814, %v1504, %v1605
      %v2717 = vsel %vm1814, %v1505, %v1606
      %v2721 = vsel %vm1814, %v1506, %v1607
      %v2725 = vsel %vm1814, %v1507, %v1608
      %v2729 = vsel %vm1814, %v1508, %v1609
      %v2733 = vsel %vm1814, %v1509, %v1610
      %v2737 = vsel %vm1814, %v1510, %v1611
      %v2741 = vsel %vm1814, %v1680, %v1781
      %v2745 = vsel %vm1814, %v1681, %v1782
      %v2749 = vsel %vm1814, %v1682, %v1783
      %v2753 = vsel %vm1814, %v1683, %v1784
      %v2757 = vsel %vm1814, %v1684, %v1785
      %v2761 = vsel %vm1814, %v1685, %v1786
      %v2765 = vsel %vm1814, %v1686, %v1787
      %v2769 = vsel %vm1814, %v1687, %v1788
      %v2773 = vsel %vm1814, %v1688, %v1789
      %v2777 = vsel %vm1814, %v1689, %v1790
      %v2781 = vsel %vm1814, %v1690, %v1791
      %v2785 = vsel %vm1814, %v1691, %v1792
      %v2789 = vsel %vm1814, %v1692, %v1793
      %v2793 = vsel %vm1814, %v1693, %v1794
      %v2797 = vsel %vm1814, %v1694, %v1795
      %v2801 = vsel %vm1814, %v1695, %v1796
      %v2805 = vsel %vm1814, %v1696, %v1797
      %v2809 = vsel %vm1814, %v1697, %v1798
      %v2813 = vsel %vm1814, %v1698, %v1799
      %v2817 = vsel %vm1814, %v1699, %v1800
      %v2821 = vsel %vm1814, %v1700, %v1801
      %v2825 = vsel %vm1814, %v1701, %v1802
      %v2829 = vsel %vm1814, %v1702, %v1803
      %v2833 = vsel %vm1814, %v1703, %v1804
      %v2837 = vsel %vm1814, %v1704, %v1805
      %v2841 = vsel %vm1814, %v1705, %v1806
      %v2845 = vsel %vm1814, %v1706, %v1807
      %v2849 = vsel %vm1814, %v1707, %v1808
      %v2853 = vsel %vm1814, %v1708, %v1809
      %v2857 = vsel %vm1814, %v1709, %v1810
      %v2861 = vsel %vm1814, %v1710, %v1811
      %v2865 = vsel %vm1814, %v1711, %v1812
      %v2869 = vsel %vm1814, %v1712, %v1813
      %v2871 = vld [vmem:[%s1] sm:$0xf]
      %v2872 = vld [vmem:[%s1 + $0x4] sm:$0xf]
      %v2873 = vld [vmem:[%s1 + $0x8] sm:$0xf]
      %v2874 = vld [vmem:[%s1 + $0xc] sm:$0xf]
      %v2875 = vld [vmem:[%s1 + $0x10] sm:$0xf]
      %v2876 = vld [vmem:[%s1 + $0x14] sm:$0xf]
      %v2877 = vld [vmem:[%s1 + $0x18] sm:$0xf]
      %v2878 = vld [vmem:[%s1 + $0x1c] sm:$0xf]
      %v2887 = vunpack.c.l.b16 %v2871
      %v2888 = vunpack.c.l.b16 %v2872
      %v2889 = vunpack.c.l.b16 %v2873
      %v2890 = vunpack.c.l.b16 %v2874
      %v2891 = vunpack.c.l.b16 %v2875
      %v2892 = vunpack.c.l.b16 %v2876
      %v2893 = vunpack.c.l.b16 %v2877
      %v2894 = vunpack.c.l.b16 %v2878
      %v2895 = vpack.c.b16 %v2888, %v2887
      %v2896 = vpack.c.b16 %v2890, %v2889
      %v2897 = vpack.c.b16 %v2892, %v2891
      %v2898 = vpack.c.b16 %v2894, %v2893
      %2903 = vmatprep.subr.bf16.mxu0 %v1821
      %2904 = vmatpush1.bf16.msra.mxu0 %v1817
      %2905 = vmatprep.subr.bf16.mxu0 %v1953
      %2906 = vmatpush1.bf16.msra.mxu0 %v1949
      %2907 = vmatprep.subr.bf16.mxu0 %v2085
      %2908 = vmatpush1.bf16.msra.mxu0 %v2081
      %2909 = vmatprep.subr.bf16.mxu0 %v2217
      %2910 = vmatpush1.bf16.msra.mxu0 %v2213
      %2911 = vmatprep.subr.bf16.mxu0 %v2349
      %2912 = vmatpush1.bf16.msra.mxu0 %v2345
      %2913 = vmatprep.subr.bf16.mxu0 %v2481
      %2914 = vmatpush1.bf16.msra.mxu0 %v2477
      %2915 = vmatprep.subr.bf16.mxu0 %v2613
      %2916 = vmatpush1.bf16.msra.mxu0 %v2609
      %2917 = vmatprep.subr.bf16.mxu0 %v2745
      %2918 = vmatpush1.bf16.msra.mxu0 %v2741
      %2919 = vmatprep.subr.bf16.mxu0 0
      %2920 = vmatpush1.bf16.msra.mxu0 0
      %2921 = vmatprep.subr.bf16.mxu0 0
      %2922 = vmatpush1.bf16.msra.mxu0 0
      %2923 = vmatprep.subr.bf16.mxu0 0
      %2924 = vmatpush1.bf16.msra.mxu0 0
      %2925 = vmatprep.subr.bf16.mxu0 0
      %2926 = vmatpush1.bf16.msra.mxu0 0
      %2927 = vmatprep.subr.bf16.mxu0 0
      %2928 = vmatpush1.bf16.msra.mxu0 0
      %2929 = vmatprep.subr.bf16.mxu0 0
      %2930 = vmatpush1.bf16.msra.mxu0 0
      %2931 = vmatprep.subr.bf16.mxu0 0
      %2932 = vmatpush1.bf16.msra.mxu0 0
      %2933 = vmatprep.subr.bf16.mxu0 0
      %2934 = vmatpush1.bf16.msra.mxu0 0
      %2935 = vmatprep.mubr.bf16.mxu0 0
      %2936 = vmatmul.mubr.bf16.gmra.mrb[0].mxu0 %v2895
      %v2937 = vpop.f32.mrb[0].mxu0
      %v2938 = vadd.f32 0.0, %v2937
      %v2939 = vpop.f32.mrb[0].mxu0
      %v2940 = vadd.f32 0.0, %v2939
      %v2941 = vpop.f32.mrb[0].mxu0
      %v2942 = vadd.f32 0.0, %v2941
      %v2943 = vpop.f32.mrb[0].mxu0
      %v2944 = vadd.f32 0.0, %v2943
      %2945 = vmatprep.mubr.bf16.mxu0 0
      %2946 = vmatmul.mubr.bf16.gmra.mrb[0].mxu0 %v2896
      %v2947 = vpop.f32.mrb[0].mxu0
      %v2948 = vadd.f32 0.0, %v2947
      %v2949 = vpop.f32.mrb[0].mxu0
      %v2950 = vadd.f32 0.0, %v2949
      %v2951 = vpop.f32.mrb[0].mxu0
      %v2952 = vadd.f32 0.0, %v2951
      %v2953 = vpop.f32.mrb[0].mxu0
      %v2954 = vadd.f32 0.0, %v2953
      %2955 = vmatprep.mubr.bf16.mxu0 0
      %2956 = vmatmul.mubr.bf16.gmra.mrb[0].mxu0 %v2897
      %v2957 = vpop.f32.mrb[0].mxu0
      %v2958 = vadd.f32 0.0, %v2957
      %v2959 = vpop.f32.mrb[0].mxu0
      %v2960 = vadd.f32 0.0, %v2959
      %v2961 = vpop.f32.mrb[0].mxu0
      %v2962 = vadd.f32 0.0, %v2961
      %v2963 = vpop.f32.mrb[0].mxu0
      %v2964 = vadd.f32 0.0, %v2963
      %2965 = vmatprep.mubr.bf16.mxu0 0
      %2966 = vmatmul.mubr.bf16.gmra.mrb[0].mxu0 %v2898
      %v2967 = vpop.f32.mrb[0].mxu0
      %v2968 = vadd.f32 0.0, %v2967
      %v2969 = vpop.f32.mrb[0].mxu0
      %v2970 = vadd.f32 0.0, %v2969
      %v2971 = vpop.f32.mrb[0].mxu0
      %v2972 = vadd.f32 0.0, %v2971
      %v2973 = vpop.f32.mrb[0].mxu0
      %v2974 = vadd.f32 0.0, %v2973
      %2975 = vdwg.mxu0
      %2976 = vmatprep.subr.bf16.mxu0 %v1829
      %2977 = vmatpush1.bf16.msra.mxu0 %v1825
      %2978 = vmatprep.subr.bf16.mxu0 %v1961
      %2979 = vmatpush1.bf16.msra.mxu0 %v1957
      %2980 = vmatprep.subr.bf16.mxu0 %v2093
      %2981 = vmatpush1.bf16.msra.mxu0 %v2089
      %2982 = vmatprep.subr.bf16.mxu0 %v2225
      %2983 = vmatpush1.bf16.msra.mxu0 %v2221
      %2984 = vmatprep.subr.bf16.mxu0 %v2357
      %2985 = vmatpush1.bf16.msra.mxu0 %v2353
      %2986 = vmatprep.subr.bf16.mxu0 %v2489
      %2987 = vmatpush1.bf16.msra.mxu0 %v2485
      %2988 = vmatprep.subr.bf16.mxu0 %v2621
      %2989 = vmatpush1.bf16.msra.mxu0 %v2617
      %2990 = vmatprep.subr.bf16.mxu0 %v2753
      %2991 = vmatpush1.bf16.msra.mxu0 %v2749
      %2992 = vmatprep.subr.bf16.mxu0 0
      %2993 = vmatpush1.bf16.msra.mxu0 0
      %2994 = vmatprep.subr.bf16.mxu0 0
      %2995 = vmatpush1.bf16.msra.mxu0 0
      %2996 = vmatprep.subr.bf16.mxu0 0
      %2997 = vmatpush1.bf16.msra.mxu0 0
      %2998 = vmatprep.subr.bf16.mxu0 0
      %2999 = vmatpush1.bf16.msra.mxu0 0
      %3000 = vmatprep.subr.bf16.mxu0 0
      %3001 = vmatpush1.bf16.msra.mxu0 0
      %3002 = vmatprep.subr.bf16.mxu0 0
      %3003 = vmatpush1.bf16.msra.mxu0 0
      %3004 = vmatprep.subr.bf16.mxu0 0
      %3005 = vmatpush1.bf16.msra.mxu0 0
      %3006 = vmatprep.subr.bf16.mxu0 0
      %3007 = vmatpush1.bf16.msra.mxu0 0
      %3008 = vmatprep.mubr.bf16.mxu0 0
      %3009 = vmatmul.mubr.bf16.gmra.mrb[0].mxu0 %v2895
      %v3010 = vpop.f32.mrb[0].mxu0
      %v3011 = vadd.f32 0.0, %v3010
      %v3012 = vpop.f32.mrb[0].mxu0
      %v3013 = vadd.f32 0.0, %v3012
      %v3014 = vpop.f32.mrb[0].mxu0
      %v3015 = vadd.f32 0.0, %v3014
      %v3016 = vpop.f32.mrb[0].mxu0
      %v3017 = vadd.f32 0.0, %v3016
      %3018 = vmatprep.mubr.bf16.mxu0 0
      %3019 = vmatmul.mubr.bf16.gmra.mrb[0].mxu0 %v2896
      %v3020 = vpop.f32.mrb[0].mxu0
      %v3021 = vadd.f32 0.0, %v3020
      %v3022 = vpop.f32.mrb[0].mxu0
      %v3023 = vadd.f32 0.0, %v3022
      %v3024 = vpop.f32.mrb[0].mxu0
      %v3025 = vadd.f32 0.0, %v3024
      %v3026 = vpop.f32.mrb[0].mxu0
      %v3027 = vadd.f32 0.0, %v3026
      %3028 = vmatprep.mubr.bf16.mxu0 0
      %3029 = vmatmul.mubr.bf16.gmra.mrb[0].mxu0 %v2897
      %v3030 = vpop.f32.mrb[0].mxu0
      %v3031 = vadd.f32 0.0, %v3030
      %v3032 = vpop.f32.mrb[0].mxu0
      %v3033 = vadd.f32 0.0, %v3032
      %v3034 = vpop.f32.mrb[0].mxu0
      %v3035 = vadd.f32 0.0, %v3034
      %v3036 = vpop.f32.mrb[0].mxu0
      %v3037 = vadd.f32 0.0, %v3036
      %3038 = vmatprep.mubr.bf16.mxu0 0
      %3039 = vmatmul.mubr.bf16.gmra.mrb[0].mxu0 %v2898
      %v3040 = vpop.f32.mrb[0].mxu0
      %v3041 = vadd.f32 0.0, %v3040
      %v3042 = vpop.f32.mrb[0].mxu0
      %v3043 = vadd.f32 0.0, %v3042
      %v3044 = vpop.f32.mrb[0].mxu0
      %v3045 = vadd.f32 0.0, %v3044
      %v3046 = vpop.f32.mrb[0].mxu0
      %v3047 = vadd.f32 0.0, %v3046
      %3048 = vdwg.mxu0
      %3049 = vmatprep.subr.bf16.mxu0 %v1837
      %3050 = vmatpush1.bf16.msra.mxu0 %v1833
      %3051 = vmatprep.subr.bf16.mxu0 %v1969
      %3052 = vmatpush1.bf16.msra.mxu0 %v1965
      %3053 = vmatprep.subr.bf16.mxu0 %v2101
      %3054 = vmatpush1.bf16.msra.mxu0 %v2097
      %3055 = vmatprep.subr.bf16.mxu0 %v2233
      %3056 = vmatpush1.bf16.msra.mxu0 %v2229
      %3057 = vmatprep.subr.bf16.mxu0 %v2365
      %3058 = vmatpush1.bf16.msra.mxu0 %v2361
      %3059 = vmatprep.subr.bf16.mxu0 %v2497
      %3060 = vmatpush1.bf16.msra.mxu0 %v2493
      %3061 = vmatprep.subr.bf16.mxu0 %v2629
      %3062 = vmatpush1.bf16.msra.mxu0 %v2625
      %3063 = vmatprep.subr.bf16.mxu0 %v2761
      %3064 = vmatpush1.bf16.msra.mxu0 %v2757
      %3065 = vmatprep.subr.bf16.mxu0 0
      %3066 = vmatpush1.bf16.msra.mxu0 0
      %3067 = vmatprep.subr.bf16.mxu0 0
      %3068 = vmatpush1.bf16.msra.mxu0 0
      %3069 = vmatprep.subr.bf16.mxu0 0
      %3070 = vmatpush1.bf16.msra.mxu0 0
      %3071 = vmatprep.subr.bf16.mxu0 0
      %3072 = vmatpush1.bf16.msra.mxu0 0
      %3073 = vmatprep.subr.bf16.mxu0 0
      %3074 = vmatpush1.bf16.msra.mxu0 0
      %3075 = vmatprep.subr.bf16.mxu0 0
      %3076 = vmatpush1.bf16.msra.mxu0 0
      %3077 = vmatprep.subr.bf16.mxu0 0
      %3078 = vmatpush1.bf16.msra.mxu0 0
      %3079 = vmatprep.subr.bf16.mxu0 0
      %3080 = vmatpush1.bf16.msra.mxu0 0
      %3081 = vmatprep.mubr.bf16.mxu0 0
      %3082 = vmatmul.mubr.bf16.gmra.mrb[0].mxu0 %v2895
      %v3083 = vpop.f32.mrb[0].mxu0
      %v3084 = vadd.f32 0.0, %v3083
      %v3085 = vpop.f32.mrb[0].mxu0
      %v3086 = vadd.f32 0.0, %v3085
      %v3087 = vpop.f32.mrb[0].mxu0
      %v3088 = vadd.f32 0.0, %v3087
      %v3089 = vpop.f32.mrb[0].mxu0
      %v3090 = vadd.f32 0.0, %v3089
      %3091 = vmatprep.mubr.bf16.mxu0 0
      %3092 = vmatmul.mubr.bf16.gmra.mrb[0].mxu0 %v2896
      %v3093 = vpop.f32.mrb[0].mxu0
      %v3094 = vadd.f32 0.0, %v3093
      %v3095 = vpop.f32.mrb[0].mxu0
      %v3096 = vadd.f32 0.0, %v3095
      %v3097 = vpop.f32.mrb[0].mxu0
      %v3098 = vadd.f32 0.0, %v3097
      %v3099 = vpop.f32.mrb[0].mxu0
      %v3100 = vadd.f32 0.0, %v3099
      %3101 = vmatprep.mubr.bf16.mxu0 0
      %3102 = vmatmul.mubr.bf16.gmra.mrb[0].mxu0 %v2897
      %v3103 = vpop.f32.mrb[0].mxu0
      %v3104 = vadd.f32 0.0, %v3103
      %v3105 = vpop.f32.mrb[0].mxu0
      %v3106 = vadd.f32 0.0, %v3105
      %v3107 = vpop.f32.mrb[0].mxu0
      %v3108 = vadd.f32 0.0, %v3107
      %v3109 = vpop.f32.mrb[0].mxu0
      %v3110 = vadd.f32 0.0, %v3109
      %3111 = vmatprep.mubr.bf16.mxu0 0
      %3112 = vmatmul.mubr.bf16.gmra.mrb[0].mxu0 %v2898
      %v3113 = vpop.f32.mrb[0].mxu0
      %v3114 = vadd.f32 0.0, %v3113
      %v3115 = vpop.f32.mrb[0].mxu0
      %v3116 = vadd.f32 0.0, %v3115
      %v3117 = vpop.f32.mrb[0].mxu0
      %v3118 = vadd.f32 0.0, %v3117
      %v3119 = vpop.f32.mrb[0].mxu0
      %v3120 = vadd.f32 0.0, %v3119
      %3121 = vdwg.mxu0
      %3122 = vmatprep.subr.bf16.mxu0 %v1845
      %3123 = vmatpush1.bf16.msra.mxu0 %v1841
      %3124 = vmatprep.subr.bf16.mxu0 %v1977
      %3125 = vmatpush1.bf16.msra.mxu0 %v1973
      %3126 = vmatprep.subr.bf16.mxu0 %v2109
      %3127 = vmatpush1.bf16.msra.mxu0 %v2105
      %3128 = vmatprep.subr.bf16.mxu0 %v2241
      %3129 = vmatpush1.bf16.msra.mxu0 %v2237
      %3130 = vmatprep.subr.bf16.mxu0 %v2373
      %3131 = vmatpush1.bf16.msra.mxu0 %v2369
      %3132 = vmatprep.subr.bf16.mxu0 %v2505
      %3133 = vmatpush1.bf16.msra.mxu0 %v2501
      %3134 = vmatprep.subr.bf16.mxu0 %v2637
      %3135 = vmatpush1.bf16.msra.mxu0 %v2633
      %3136 = vmatprep.subr.bf16.mxu0 %v2769
      %3137 = vmatpush1.bf16.msra.mxu0 %v2765
      %3138 = vmatprep.subr.bf16.mxu0 0
      %3139 = vmatpush1.bf16.msra.mxu0 0
      %3140 = vmatprep.subr.bf16.mxu0 0
      %3141 = vmatpush1.bf16.msra.mxu0 0
      %3142 = vmatprep.subr.bf16.mxu0 0
      %3143 = vmatpush1.bf16.msra.mxu0 0
      %3144 = vmatprep.subr.bf16.mxu0 0
      %3145 = vmatpush1.bf16.msra.mxu0 0
      %3146 = vmatprep.subr.bf16.mxu0 0
      %3147 = vmatpush1.bf16.msra.mxu0 0
      %3148 = vmatprep.subr.bf16.mxu0 0
      %3149 = vmatpush1.bf16.msra.mxu0 0
      %3150 = vmatprep.subr.bf16.mxu0 0
      %3151 = vmatpush1.bf16.msra.mxu0 0
      %3152 = vmatprep.subr.bf16.mxu0 0
      %3153 = vmatpush1.bf16.msra.mxu0 0
      %3154 = vmatprep.mubr.bf16.mxu0 0
      %3155 = vmatmul.mubr.bf16.gmra.mrb[0].mxu0 %v2895
      %v3156 = vpop.f32.mrb[0].mxu0
      %v3157 = vadd.f32 0.0, %v3156
      %v3158 = vpop.f32.mrb[0].mxu0
      %v3159 = vadd.f32 0.0, %v3158
      %v3160 = vpop.f32.mrb[0].mxu0
      %v3161 = vadd.f32 0.0, %v3160
      %v3162 = vpop.f32.mrb[0].mxu0
      %v3163 = vadd.f32 0.0, %v3162
      %3164 = vmatprep.mubr.bf16.mxu0 0
      %3165 = vmatmul.mubr.bf16.gmra.mrb[0].mxu0 %v2896
      %v3166 = vpop.f32.mrb[0].mxu0
      %v3167 = vadd.f32 0.0, %v3166
      %v3168 = vpop.f32.mrb[0].mxu0
      %v3169 = vadd.f32 0.0, %v3168
      %v3170 = vpop.f32.mrb[0].mxu0
      %v3171 = vadd.f32 0.0, %v3170
      %v3172 = vpop.f32.mrb[0].mxu0
      %v3173 = vadd.f32 0.0, %v3172
      %3174 = vmatprep.mubr.bf16.mxu0 0
      %3175 = vmatmul.mubr.bf16.gmra.mrb[0].mxu0 %v2897
      %v3176 = vpop.f32.mrb[0].mxu0
      %v3177 = vadd.f32 0.0, %v3176
      %v3178 = vpop.f32.mrb[0].mxu0
      %v3179 = vadd.f32 0.0, %v3178
      %v3180 = vpop.f32.mrb[0].mxu0
      %v3181 = vadd.f32 0.0, %v3180
      %v3182 = vpop.f32.mrb[0].mxu0
      %v3183 = vadd.f32 0.0, %v3182
      %3184 = vmatprep.mubr.bf16.mxu0 0
      %3185 = vmatmul.mubr.bf16.gmra.mrb[0].mxu0 %v2898
      %v3186 = vpop.f32.mrb[0].mxu0
      %v3187 = vadd.f32 0.0, %v3186
      %v3188 = vpop.f32.mrb[0].mxu0
      %v3189 = vadd.f32 0.0, %v3188
      %v3190 = vpop.f32.mrb[0].mxu0
      %v3191 = vadd.f32 0.0, %v3190
      %v3192 = vpop.f32.mrb[0].mxu0
      %v3193 = vadd.f32 0.0, %v3192
      %3194 = vdwg.mxu0
      %3195 = vmatprep.subr.bf16.mxu0 %v1853
      %3196 = vmatpush1.bf16.msra.mxu0 %v1849
      %3197 = vmatprep.subr.bf16.mxu0 %v1985
      %3198 = vmatpush1.bf16.msra.mxu0 %v1981
      %3199 = vmatprep.subr.bf16.mxu0 %v2117
      %3200 = vmatpush1.bf16.msra.mxu0 %v2113
      %3201 = vmatprep.subr.bf16.mxu0 %v2249
      %3202 = vmatpush1.bf16.msra.mxu0 %v2245
      %3203 = vmatprep.subr.bf16.mxu0 %v2381
      %3204 = vmatpush1.bf16.msra.mxu0 %v2377
      %3205 = vmatprep.subr.bf16.mxu0 %v2513
      %3206 = vmatpush1.bf16.msra.mxu0 %v2509
      %3207 = vmatprep.subr.bf16.mxu0 %v2645
      %3208 = vmatpush1.bf16.msra.mxu0 %v2641
      %3209 = vmatprep.subr.bf16.mxu0 %v2777
      %3210 = vmatpush1.bf16.msra.mxu0 %v2773
      %3211 = vmatprep.subr.bf16.mxu0 0
      %3212 = vmatpush1.bf16.msra.mxu0 0
      %3213 = vmatprep.subr.bf16.mxu0 0
      %3214 = vmatpush1.bf16.msra.mxu0 0
      %3215 = vmatprep.subr.bf16.mxu0 0
      %3216 = vmatpush1.bf16.msra.mxu0 0
      %3217 = vmatprep.subr.bf16.mxu0 0
      %3218 = vmatpush1.bf16.msra.mxu0 0
      %3219 = vmatprep.subr.bf16.mxu0 0
      %3220 = vmatpush1.bf16.msra.mxu0 0
      %3221 = vmatprep.subr.bf16.mxu0 0
      %3222 = vmatpush1.bf16.msra.mxu0 0
      %3223 = vmatprep.subr.bf16.mxu0 0
      %3224 = vmatpush1.bf16.msra.mxu0 0
      %3225 = vmatprep.subr.bf16.mxu0 0
      %3226 = vmatpush1.bf16.msra.mxu0 0
      %3227 = vmatprep.mubr.bf16.mxu0 0
      %3228 = vmatmul.mubr.bf16.gmra.mrb[0].mxu0 %v2895
      %v3229 = vpop.f32.mrb[0].mxu0
      %v3230 = vadd.f32 0.0, %v3229
      %v3231 = vpop.f32.mrb[0].mxu0
      %v3232 = vadd.f32 0.0, %v3231
      %v3233 = vpop.f32.mrb[0].mxu0
      %v3234 = vadd.f32 0.0, %v3233
      %v3235 = vpop.f32.mrb[0].mxu0
      %v3236 = vadd.f32 0.0, %v3235
      %3237 = vmatprep.mubr.bf16.mxu0 0
      %3238 = vmatmul.mubr.bf16.gmra.mrb[0].mxu0 %v2896
      %v3239 = vpop.f32.mrb[0].mxu0
      %v3240 = vadd.f32 0.0, %v3239
      %v3241 = vpop.f32.mrb[0].mxu0
      %v3242 = vadd.f32 0.0, %v3241
      %v3243 = vpop.f32.mrb[0].mxu0
      %v3244 = vadd.f32 0.0, %v3243
      %v3245 = vpop.f32.mrb[0].mxu0
      %v3246 = vadd.f32 0.0, %v3245
      %3247 = vmatprep.mubr.bf16.mxu0 0
      %3248 = vmatmul.mubr.bf16.gmra.mrb[0].mxu0 %v2897
      %v3249 = vpop.f32.mrb[0].mxu0
      %v3250 = vadd.f32 0.0, %v3249
      %v3251 = vpop.f32.mrb[0].mxu0
      %v3252 = vadd.f32 0.0, %v3251
      %v3253 = vpop.f32.mrb[0].mxu0
      %v3254 = vadd.f32 0.0, %v3253
      %v3255 = vpop.f32.mrb[0].mxu0
      %v3256 = vadd.f32 0.0, %v3255
      %3257 = vmatprep.mubr.bf16.mxu0 0
      %3258 = vmatmul.mubr.bf16.gmra.mrb[0].mxu0 %v2898
      %v3259 = vpop.f32.mrb[0].mxu0
      %v3260 = vadd.f32 0.0, %v3259
      %v3261 = vpop.f32.mrb[0].mxu0
      %v3262 = vadd.f32 0.0, %v3261
      %v3263 = vpop.f32.mrb[0].mxu0
      %v3264 = vadd.f32 0.0, %v3263
      %v3265 = vpop.f32.mrb[0].mxu0
      %v3266 = vadd.f32 0.0, %v3265
      %3267 = vdwg.mxu0
      %3268 = vmatprep.subr.bf16.mxu0 %v1861
      %3269 = vmatpush1.bf16.msra.mxu0 %v1857
      %3270 = vmatprep.subr.bf16.mxu0 %v1993
      %3271 = vmatpush1.bf16.msra.mxu0 %v1989
      %3272 = vmatprep.subr.bf16.mxu0 %v2125
      %3273 = vmatpush1.bf16.msra.mxu0 %v2121
      %3274 = vmatprep.subr.bf16.mxu0 %v2257
      %3275 = vmatpush1.bf16.msra.mxu0 %v2253
      %3276 = vmatprep.subr.bf16.mxu0 %v2389
      %3277 = vmatpush1.bf16.msra.mxu0 %v2385
      %3278 = vmatprep.subr.bf16.mxu0 %v2521
      %3279 = vmatpush1.bf16.msra.mxu0 %v2517
      %3280 = vmatprep.subr.bf16.mxu0 %v2653
      %3281 = vmatpush1.bf16.msra.mxu0 %v2649
      %3282 = vmatprep.subr.bf16.mxu0 %v2785
      %3283 = vmatpush1.bf16.msra.mxu0 %v2781
      %3284 = vmatprep.subr.bf16.mxu0 0
      %3285 = vmatpush1.bf16.msra.mxu0 0
      %3286 = vmatprep.subr.bf16.mxu0 0
      %3287 = vmatpush1.bf16.msra.mxu0 0
      %3288 = vmatprep.subr.bf16.mxu0 0
      %3289 = vmatpush1.bf16.msra.mxu0 0
      %3290 = vmatprep.subr.bf16.mxu0 0
      %3291 = vmatpush1.bf16.msra.mxu0 0
      %3292 = vmatprep.subr.bf16.mxu0 0
      %3293 = vmatpush1.bf16.msra.mxu0 0
      %3294 = vmatprep.subr.bf16.mxu0 0
      %3295 = vmatpush1.bf16.msra.mxu0 0
      %3296 = vmatprep.subr.bf16.mxu0 0
      %3297 = vmatpush1.bf16.msra.mxu0 0
      %3298 = vmatprep.subr.bf16.mxu0 0
      %3299 = vmatpush1.bf16.msra.mxu0 0
      %3300 = vmatprep.mubr.bf16.mxu0 0
      %3301 = vmatmul.mubr.bf16.gmra.mrb[0].mxu0 %v2895
      %v3302 = vpop.f32.mrb[0].mxu0
      %v3303 = vadd.f32 0.0, %v3302
      %v3304 = vpop.f32.mrb[0].mxu0
      %v3305 = vadd.f32 0.0, %v3304
      %v3306 = vpop.f32.mrb[0].mxu0
      %v3307 = vadd.f32 0.0, %v3306
      %v3308 = vpop.f32.mrb[0].mxu0
      %v3309 = vadd.f32 0.0, %v3308
      %3310 = vmatprep.mubr.bf16.mxu0 0
      %3311 = vmatmul.mubr.bf16.gmra.mrb[0].mxu0 %v2896
      %v3312 = vpop.f32.mrb[0].mxu0
      %v3313 = vadd.f32 0.0, %v3312
      %v3314 = vpop.f32.mrb[0].mxu0
      %v3315 = vadd.f32 0.0, %v3314
      %v3316 = vpop.f32.mrb[0].mxu0
      %v3317 = vadd.f32 0.0, %v3316
      %v3318 = vpop.f32.mrb[0].mxu0
      %v3319 = vadd.f32 0.0, %v3318
      %3320 = vmatprep.mubr.bf16.mxu0 0
      %3321 = vmatmul.mubr.bf16.gmra.mrb[0].mxu0 %v2897
      %v3322 = vpop.f32.mrb[0].mxu0
      %v3323 = vadd.f32 0.0, %v3322
      %v3324 = vpop.f32.mrb[0].mxu0
      %v3325 = vadd.f32 0.0, %v3324
      %v3326 = vpop.f32.mrb[0].mxu0
      %v3327 = vadd.f32 0.0, %v3326
      %v3328 = vpop.f32.mrb[0].mxu0
      %v3329 = vadd.f32 0.0, %v3328
      %3330 = vmatprep.mubr.bf16.mxu0 0
      %3331 = vmatmul.mubr.bf16.gmra.mrb[0].mxu0 %v2898
      %v3332 = vpop.f32.mrb[0].mxu0
      %v3333 = vadd.f32 0.0, %v3332
      %v3334 = vpop.f32.mrb[0].mxu0
      %v3335 = vadd.f32 0.0, %v3334
      %v3336 = vpop.f32.mrb[0].mxu0
      %v3337 = vadd.f32 0.0, %v3336
      %v3338 = vpop.f32.mrb[0].mxu0
      %v3339 = vadd.f32 0.0, %v3338
      %3340 = vdwg.mxu0
      %3341 = vmatprep.subr.bf16.mxu0 %v1869
      %3342 = vmatpush1.bf16.msra.mxu0 %v1865
      %3343 = vmatprep.subr.bf16.mxu0 %v2001
      %3344 = vmatpush1.bf16.msra.mxu0 %v1997
      %3345 = vmatprep.subr.bf16.mxu0 %v2133
      %3346 = vmatpush1.bf16.msra.mxu0 %v2129
      %3347 = vmatprep.subr.bf16.mxu0 %v2265
      %3348 = vmatpush1.bf16.msra.mxu0 %v2261
      %3349 = vmatprep.subr.bf16.mxu0 %v2397
      %3350 = vmatpush1.bf16.msra.mxu0 %v2393
      %3351 = vmatprep.subr.bf16.mxu0 %v2529
      %3352 = vmatpush1.bf16.msra.mxu0 %v2525
      %3353 = vmatprep.subr.bf16.mxu0 %v2661
      %3354 = vmatpush1.bf16.msra.mxu0 %v2657
      %3355 = vmatprep.subr.bf16.mxu0 %v2793
      %3356 = vmatpush1.bf16.msra.mxu0 %v2789
      %3357 = vmatprep.subr.bf16.mxu0 0
      %3358 = vmatpush1.bf16.msra.mxu0 0
      %3359 = vmatprep.subr.bf16.mxu0 0
      %3360 = vmatpush1.bf16.msra.mxu0 0
      %3361 = vmatprep.subr.bf16.mxu0 0
      %3362 = vmatpush1.bf16.msra.mxu0 0
      %3363 = vmatprep.subr.bf16.mxu0 0
      %3364 = vmatpush1.bf16.msra.mxu0 0
      %3365 = vmatprep.subr.bf16.mxu0 0
      %3366 = vmatpush1.bf16.msra.mxu0 0
      %3367 = vmatprep.subr.bf16.mxu0 0
      %3368 = vmatpush1.bf16.msra.mxu0 0
      %3369 = vmatprep.subr.bf16.mxu0 0
      %3370 = vmatpush1.bf16.msra.mxu0 0
      %3371 = vmatprep.subr.bf16.mxu0 0
      %3372 = vmatpush1.bf16.msra.mxu0 0
      %3373 = vmatprep.mubr.bf16.mxu0 0
      %3374 = vmatmul.mubr.bf16.gmra.mrb[0].mxu0 %v2895
      %v3375 = vpop.f32.mrb[0].mxu0
      %v3376 = vadd.f32 0.0, %v3375
      %v3377 = vpop.f32.mrb[0].mxu0
      %v3378 = vadd.f32 0.0, %v3377
      %v3379 = vpop.f32.mrb[0].mxu0
      %v3380 = vadd.f32 0.0, %v3379
      %v3381 = vpop.f32.mrb[0].mxu0
      %v3382 = vadd.f32 0.0, %v3381
      %3383 = vmatprep.mubr.bf16.mxu0 0
      %3384 = vmatmul.mubr.bf16.gmra.mrb[0].mxu0 %v2896
      %v3385 = vpop.f32.mrb[0].mxu0
      %v3386 = vadd.f32 0.0, %v3385
      %v3387 = vpop.f32.mrb[0].mxu0
      %v3388 = vadd.f32 0.0, %v3387
      %v3389 = vpop.f32.mrb[0].mxu0
      %v3390 = vadd.f32 0.0, %v3389
      %v3391 = vpop.f32.mrb[0].mxu0
      %v3392 = vadd.f32 0.0, %v3391
      %3393 = vmatprep.mubr.bf16.mxu0 0
      %3394 = vmatmul.mubr.bf16.gmra.mrb[0].mxu0 %v2897
      %v3395 = vpop.f32.mrb[0].mxu0
      %v3396 = vadd.f32 0.0, %v3395
      %v3397 = vpop.f32.mrb[0].mxu0
      %v3398 = vadd.f32 0.0, %v3397
      %v3399 = vpop.f32.mrb[0].mxu0
      %v3400 = vadd.f32 0.0, %v3399
      %v3401 = vpop.f32.mrb[0].mxu0
      %v3402 = vadd.f32 0.0, %v3401
      %3403 = vmatprep.mubr.bf16.mxu0 0
      %3404 = vmatmul.mubr.bf16.gmra.mrb[0].mxu0 %v2898
      %v3405 = vpop.f32.mrb[0].mxu0
      %v3406 = vadd.f32 0.0, %v3405
      %v3407 = vpop.f32.mrb[0].mxu0
      %v3408 = vadd.f32 0.0, %v3407
      %v3409 = vpop.f32.mrb[0].mxu0
      %v3410 = vadd.f32 0.0, %v3409
      %v3411 = vpop.f32.mrb[0].mxu0
      %v3412 = vadd.f32 0.0, %v3411
      %3413 = vdwg.mxu0
      %3414 = vmatprep.subr.bf16.mxu0 %v1877
      %3415 = vmatpush1.bf16.msra.mxu0 %v1873
      %3416 = vmatprep.subr.bf16.mxu0 %v2009
      %3417 = vmatpush1.bf16.msra.mxu0 %v2005
      %3418 = vmatprep.subr.bf16.mxu0 %v2141
      %3419 = vmatpush1.bf16.msra.mxu0 %v2137
      %3420 = vmatprep.subr.bf16.mxu0 %v2273
      %3421 = vmatpush1.bf16.msra.mxu0 %v2269
      %3422 = vmatprep.subr.bf16.mxu0 %v2405
      %3423 = vmatpush1.bf16.msra.mxu0 %v2401
      %3424 = vmatprep.subr.bf16.mxu0 %v2537
      %3425 = vmatpush1.bf16.msra.mxu0 %v2533
      %3426 = vmatprep.subr.bf16.mxu0 %v2669
      %3427 = vmatpush1.bf16.msra.mxu0 %v2665
      %3428 = vmatprep.subr.bf16.mxu0 %v2801
      %3429 = vmatpush1.bf16.msra.mxu0 %v2797
      %3430 = vmatprep.subr.bf16.mxu0 0
      %3431 = vmatpush1.bf16.msra.mxu0 0
      %3432 = vmatprep.subr.bf16.mxu0 0
      %3433 = vmatpush1.bf16.msra.mxu0 0
      %3434 = vmatprep.subr.bf16.mxu0 0
      %3435 = vmatpush1.bf16.msra.mxu0 0
      %3436 = vmatprep.subr.bf16.mxu0 0
      %3437 = vmatpush1.bf16.msra.mxu0 0
      %3438 = vmatprep.subr.bf16.mxu0 0
      %3439 = vmatpush1.bf16.msra.mxu0 0
      %3440 = vmatprep.subr.bf16.mxu0 0
      %3441 = vmatpush1.bf16.msra.mxu0 0
      %3442 = vmatprep.subr.bf16.mxu0 0
      %3443 = vmatpush1.bf16.msra.mxu0 0
      %3444 = vmatprep.subr.bf16.mxu0 0
      %3445 = vmatpush1.bf16.msra.mxu0 0
      %3446 = vmatprep.mubr.bf16.mxu0 0
      %3447 = vmatmul.mubr.bf16.gmra.mrb[0].mxu0 %v2895
      %v3448 = vpop.f32.mrb[0].mxu0
      %v3449 = vadd.f32 0.0, %v3448
      %v3450 = vpop.f32.mrb[0].mxu0
      %v3451 = vadd.f32 0.0, %v3450
      %v3452 = vpop.f32.mrb[0].mxu0
      %v3453 = vadd.f32 0.0, %v3452
      %v3454 = vpop.f32.mrb[0].mxu0
      %v3455 = vadd.f32 0.0, %v3454
      %3456 = vmatprep.mubr.bf16.mxu0 0
      %3457 = vmatmul.mubr.bf16.gmra.mrb[0].mxu0 %v2896
      %v3458 = vpop.f32.mrb[0].mxu0
      %v3459 = vadd.f32 0.0, %v3458
      %v3460 = vpop.f32.mrb[0].mxu0
      %v3461 = vadd.f32 0.0, %v3460
      %v3462 = vpop.f32.mrb[0].mxu0
      %v3463 = vadd.f32 0.0, %v3462
      %v3464 = vpop.f32.mrb[0].mxu0
      %v3465 = vadd.f32 0.0, %v3464
      %3466 = vmatprep.mubr.bf16.mxu0 0
      %3467 = vmatmul.mubr.bf16.gmra.mrb[0].mxu0 %v2897
      %v3468 = vpop.f32.mrb[0].mxu0
      %v3469 = vadd.f32 0.0, %v3468
      %v3470 = vpop.f32.mrb[0].mxu0
      %v3471 = vadd.f32 0.0, %v3470
      %v3472 = vpop.f32.mrb[0].mxu0
      %v3473 = vadd.f32 0.0, %v3472
      %v3474 = vpop.f32.mrb[0].mxu0
      %v3475 = vadd.f32 0.0, %v3474
      %3476 = vmatprep.mubr.bf16.mxu0 0
      %3477 = vmatmul.mubr.bf16.gmra.mrb[0].mxu0 %v2898
      %v3478 = vpop.f32.mrb[0].mxu0
      %v3479 = vadd.f32 0.0, %v3478
      %v3480 = vpop.f32.mrb[0].mxu0
      %v3481 = vadd.f32 0.0, %v3480
      %v3482 = vpop.f32.mrb[0].mxu0
      %v3483 = vadd.f32 0.0, %v3482
      %v3484 = vpop.f32.mrb[0].mxu0
      %v3485 = vadd.f32 0.0, %v3484
      %3486 = vdwg.mxu0
      %3487 = vmatprep.subr.bf16.mxu0 %v1885
      %3488 = vmatpush1.bf16.msra.mxu0 %v1881
      %3489 = vmatprep.subr.bf16.mxu0 %v2017
      %3490 = vmatpush1.bf16.msra.mxu0 %v2013
      %3491 = vmatprep.subr.bf16.mxu0 %v2149
      %3492 = vmatpush1.bf16.msra.mxu0 %v2145
      %3493 = vmatprep.subr.bf16.mxu0 %v2281
      %3494 = vmatpush1.bf16.msra.mxu0 %v2277
      %3495 = vmatprep.subr.bf16.mxu0 %v2413
      %3496 = vmatpush1.bf16.msra.mxu0 %v2409
      %3497 = vmatprep.subr.bf16.mxu0 %v2545
      %3498 = vmatpush1.bf16.msra.mxu0 %v2541
      %3499 = vmatprep.subr.bf16.mxu0 %v2677
      %3500 = vmatpush1.bf16.msra.mxu0 %v2673
      %3501 = vmatprep.subr.bf16.mxu0 %v2809
      %3502 = vmatpush1.bf16.msra.mxu0 %v2805
      %3503 = vmatprep.subr.bf16.mxu0 0
      %3504 = vmatpush1.bf16.msra.mxu0 0
      %3505 = vmatprep.subr.bf16.mxu0 0
      %3506 = vmatpush1.bf16.msra.mxu0 0
      %3507 = vmatprep.subr.bf16.mxu0 0
      %3508 = vmatpush1.bf16.msra.mxu0 0
      %3509 = vmatprep.subr.bf16.mxu0 0
      %3510 = vmatpush1.bf16.msra.mxu0 0
      %3511 = vmatprep.subr.bf16.mxu0 0
      %3512 = vmatpush1.bf16.msra.mxu0 0
      %3513 = vmatprep.subr.bf16.mxu0 0
      %3514 = vmatpush1.bf16.msra.mxu0 0
      %3515 = vmatprep.subr.bf16.mxu0 0
      %3516 = vmatpush1.bf16.msra.mxu0 0
      %3517 = vmatprep.subr.bf16.mxu0 0
      %3518 = vmatpush1.bf16.msra.mxu0 0
      %3519 = vmatprep.mubr.bf16.mxu0 0
      %3520 = vmatmul.mubr.bf16.gmra.mrb[0].mxu0 %v2895
      %v3521 = vpop.f32.mrb[0].mxu0
      %v3522 = vadd.f32 0.0, %v3521
      %v3523 = vpop.f32.mrb[0].mxu0
      %v3524 = vadd.f32 0.0, %v3523
      %v3525 = vpop.f32.mrb[0].mxu0
      %v3526 = vadd.f32 0.0, %v3525
      %v3527 = vpop.f32.mrb[0].mxu0
      %v3528 = vadd.f32 0.0, %v3527
      %3529 = vmatprep.mubr.bf16.mxu0 0
      %3530 = vmatmul.mubr.bf16.gmra.mrb[0].mxu0 %v2896
      %v3531 = vpop.f32.mrb[0].mxu0
      %v3532 = vadd.f32 0.0, %v3531
      %v3533 = vpop.f32.mrb[0].mxu0
      %v3534 = vadd.f32 0.0, %v3533
      %v3535 = vpop.f32.mrb[0].mxu0
      %v3536 = vadd.f32 0.0, %v3535
      %v3537 = vpop.f32.mrb[0].mxu0
      %v3538 = vadd.f32 0.0, %v3537
      %3539 = vmatprep.mubr.bf16.mxu0 0
      %3540 = vmatmul.mubr.bf16.gmra.mrb[0].mxu0 %v2897
      %v3541 = vpop.f32.mrb[0].mxu0
      %v3542 = vadd.f32 0.0, %v3541
      %v3543 = vpop.f32.mrb[0].mxu0
      %v3544 = vadd.f32 0.0, %v3543
      %v3545 = vpop.f32.mrb[0].mxu0
      %v3546 = vadd.f32 0.0, %v3545
      %v3547 = vpop.f32.mrb[0].mxu0
      %v3548 = vadd.f32 0.0, %v3547
      %3549 = vmatprep.mubr.bf16.mxu0 0
      %3550 = vmatmul.mubr.bf16.gmra.mrb[0].mxu0 %v2898
      %v3551 = vpop.f32.mrb[0].mxu0
      %v3552 = vadd.f32 0.0, %v3551
      %v3553 = vpop.f32.mrb[0].mxu0
      %v3554 = vadd.f32 0.0, %v3553
      %v3555 = vpop.f32.mrb[0].mxu0
      %v3556 = vadd.f32 0.0, %v3555
      %v3557 = vpop.f32.mrb[0].mxu0
      %v3558 = vadd.f32 0.0, %v3557
      %3559 = vdwg.mxu0
      %3560 = vmatprep.subr.bf16.mxu0 %v1893
      %3561 = vmatpush1.bf16.msra.mxu0 %v1889
      %3562 = vmatprep.subr.bf16.mxu0 %v2025
      %3563 = vmatpush1.bf16.msra.mxu0 %v2021
      %3564 = vmatprep.subr.bf16.mxu0 %v2157
      %3565 = vmatpush1.bf16.msra.mxu0 %v2153
      %3566 = vmatprep.subr.bf16.mxu0 %v2289
      %3567 = vmatpush1.bf16.msra.mxu0 %v2285
      %3568 = vmatprep.subr.bf16.mxu0 %v2421
      %3569 = vmatpush1.bf16.msra.mxu0 %v2417
      %3570 = vmatprep.subr.bf16.mxu0 %v2553
      %3571 = vmatpush1.bf16.msra.mxu0 %v2549
      %3572 = vmatprep.subr.bf16.mxu0 %v2685
      %3573 = vmatpush1.bf16.msra.mxu0 %v2681
      %3574 = vmatprep.subr.bf16.mxu0 %v2817
      %3575 = vmatpush1.bf16.msra.mxu0 %v2813
      %3576 = vmatprep.subr.bf16.mxu0 0
      %3577 = vmatpush1.bf16.msra.mxu0 0
      %3578 = vmatprep.subr.bf16.mxu0 0
      %3579 = vmatpush1.bf16.msra.mxu0 0
      %3580 = vmatprep.subr.bf16.mxu0 0
      %3581 = vmatpush1.bf16.msra.mxu0 0
      %3582 = vmatprep.subr.bf16.mxu0 0
      %3583 = vmatpush1.bf16.msra.mxu0 0
      %3584 = vmatprep.subr.bf16.mxu0 0
      %3585 = vmatpush1.bf16.msra.mxu0 0
      %3586 = vmatprep.subr.bf16.mxu0 0
      %3587 = vmatpush1.bf16.msra.mxu0 0
      %3588 = vmatprep.subr.bf16.mxu0 0
      %3589 = vmatpush1.bf16.msra.mxu0 0
      %3590 = vmatprep.subr.bf16.mxu0 0
      %3591 = vmatpush1.bf16.msra.mxu0 0
      %3592 = vmatprep.mubr.bf16.mxu0 0
      %3593 = vmatmul.mubr.bf16.gmra.mrb[0].mxu0 %v2895
      %v3594 = vpop.f32.mrb[0].mxu0
      %v3595 = vadd.f32 0.0, %v3594
      %v3596 = vpop.f32.mrb[0].mxu0
      %v3597 = vadd.f32 0.0, %v3596
      %v3598 = vpop.f32.mrb[0].mxu0
      %v3599 = vadd.f32 0.0, %v3598
      %v3600 = vpop.f32.mrb[0].mxu0
      %v3601 = vadd.f32 0.0, %v3600
      %3602 = vmatprep.mubr.bf16.mxu0 0
      %3603 = vmatmul.mubr.bf16.gmra.mrb[0].mxu0 %v2896
      %v3604 = vpop.f32.mrb[0].mxu0
      %v3605 = vadd.f32 0.0, %v3604
      %v3606 = vpop.f32.mrb[0].mxu0
      %v3607 = vadd.f32 0.0, %v3606
      %v3608 = vpop.f32.mrb[0].mxu0
      %v3609 = vadd.f32 0.0, %v3608
      %v3610 = vpop.f32.mrb[0].mxu0
      %v3611 = vadd.f32 0.0, %v3610
      %3612 = vmatprep.mubr.bf16.mxu0 0
      %3613 = vmatmul.mubr.bf16.gmra.mrb[0].mxu0 %v2897
      %v3614 = vpop.f32.mrb[0].mxu0
      %v3615 = vadd.f32 0.0, %v3614
      %v3616 = vpop.f32.mrb[0].mxu0
      %v3617 = vadd.f32 0.0, %v3616
      %v3618 = vpop.f32.mrb[0].mxu0
      %v3619 = vadd.f32 0.0, %v3618
      %v3620 = vpop.f32.mrb[0].mxu0
      %v3621 = vadd.f32 0.0, %v3620
      %3622 = vmatprep.mubr.bf16.mxu0 0
      %3623 = vmatmul.mubr.bf16.gmra.mrb[0].mxu0 %v2898
      %v3624 = vpop.f32.mrb[0].mxu0
      %v3625 = vadd.f32 0.0, %v3624
      %v3626 = vpop.f32.mrb[0].mxu0
      %v3627 = vadd.f32 0.0, %v3626
      %v3628 = vpop.f32.mrb[0].mxu0
      %v3629 = vadd.f32 0.0, %v3628
      %v3630 = vpop.f32.mrb[0].mxu0
      %v3631 = vadd.f32 0.0, %v3630
      %3632 = vdwg.mxu0
      %3633 = vmatprep.subr.bf16.mxu0 %v1901
      %3634 = vmatpush1.bf16.msra.mxu0 %v1897
      %3635 = vmatprep.subr.bf16.mxu0 %v2033
      %3636 = vmatpush1.bf16.msra.mxu0 %v2029
      %3637 = vmatprep.subr.bf16.mxu0 %v2165
      %3638 = vmatpush1.bf16.msra.mxu0 %v2161
      %3639 = vmatprep.subr.bf16.mxu0 %v2297
      %3640 = vmatpush1.bf16.msra.mxu0 %v2293
      %3641 = vmatprep.subr.bf16.mxu0 %v2429
      %3642 = vmatpush1.bf16.msra.mxu0 %v2425
      %3643 = vmatprep.subr.bf16.mxu0 %v2561
      %3644 = vmatpush1.bf16.msra.mxu0 %v2557
      %3645 = vmatprep.subr.bf16.mxu0 %v2693
      %3646 = vmatpush1.bf16.msra.mxu0 %v2689
      %3647 = vmatprep.subr.bf16.mxu0 %v2825
      %3648 = vmatpush1.bf16.msra.mxu0 %v2821
      %3649 = vmatprep.subr.bf16.mxu0 0
      %3650 = vmatpush1.bf16.msra.mxu0 0
      %3651 = vmatprep.subr.bf16.mxu0 0
      %3652 = vmatpush1.bf16.msra.mxu0 0
      %3653 = vmatprep.subr.bf16.mxu0 0
      %3654 = vmatpush1.bf16.msra.mxu0 0
      %3655 = vmatprep.subr.bf16.mxu0 0
      %3656 = vmatpush1.bf16.msra.mxu0 0
      %3657 = vmatprep.subr.bf16.mxu0 0
      %3658 = vmatpush1.bf16.msra.mxu0 0
      %3659 = vmatprep.subr.bf16.mxu0 0
      %3660 = vmatpush1.bf16.msra.mxu0 0
      %3661 = vmatprep.subr.bf16.mxu0 0
      %3662 = vmatpush1.bf16.msra.mxu0 0
      %3663 = vmatprep.subr.bf16.mxu0 0
      %3664 = vmatpush1.bf16.msra.mxu0 0
      %3665 = vmatprep.mubr.bf16.mxu0 0
      %3666 = vmatmul.mubr.bf16.gmra.mrb[0].mxu0 %v2895
      %v3667 = vpop.f32.mrb[0].mxu0
      %v3668 = vadd.f32 0.0, %v3667
      %v3669 = vpop.f32.mrb[0].mxu0
      %v3670 = vadd.f32 0.0, %v3669
      %v3671 = vpop.f32.mrb[0].mxu0
      %v3672 = vadd.f32 0.0, %v3671
      %v3673 = vpop.f32.mrb[0].mxu0
      %v3674 = vadd.f32 0.0, %v3673
      %3675 = vmatprep.mubr.bf16.mxu0 0
      %3676 = vmatmul.mubr.bf16.gmra.mrb[0].mxu0 %v2896
      %v3677 = vpop.f32.mrb[0].mxu0
      %v3678 = vadd.f32 0.0, %v3677
      %v3679 = vpop.f32.mrb[0].mxu0
      %v3680 = vadd.f32 0.0, %v3679
      %v3681 = vpop.f32.mrb[0].mxu0
      %v3682 = vadd.f32 0.0, %v3681
      %v3683 = vpop.f32.mrb[0].mxu0
      %v3684 = vadd.f32 0.0, %v3683
      %3685 = vmatprep.mubr.bf16.mxu0 0
      %3686 = vmatmul.mubr.bf16.gmra.mrb[0].mxu0 %v2897
      %v3687 = vpop.f32.mrb[0].mxu0
      %v3688 = vadd.f32 0.0, %v3687
      %v3689 = vpop.f32.mrb[0].mxu0
      %v3690 = vadd.f32 0.0, %v3689
      %v3691 = vpop.f32.mrb[0].mxu0
      %v3692 = vadd.f32 0.0, %v3691
      %v3693 = vpop.f32.mrb[0].mxu0
      %v3694 = vadd.f32 0.0, %v3693
      %3695 = vmatprep.mubr.bf16.mxu0 0
      %3696 = vmatmul.mubr.bf16.gmra.mrb[0].mxu0 %v2898
      %v3697 = vpop.f32.mrb[0].mxu0
      %v3698 = vadd.f32 0.0, %v3697
      %v3699 = vpop.f32.mrb[0].mxu0
      %v3700 = vadd.f32 0.0, %v3699
      %v3701 = vpop.f32.mrb[0].mxu0
      %v3702 = vadd.f32 0.0, %v3701
      %v3703 = vpop.f32.mrb[0].mxu0
      %v3704 = vadd.f32 0.0, %v3703
      %3705 = vdwg.mxu0
      %3706 = vmatprep.subr.bf16.mxu0 %v1909
      %3707 = vmatpush1.bf16.msra.mxu0 %v1905
      %3708 = vmatprep.subr.bf16.mxu0 %v2041
      %3709 = vmatpush1.bf16.msra.mxu0 %v2037
      %3710 = vmatprep.subr.bf16.mxu0 %v2173
      %3711 = vmatpush1.bf16.msra.mxu0 %v2169
      %3712 = vmatprep.subr.bf16.mxu0 %v2305
      %3713 = vmatpush1.bf16.msra.mxu0 %v2301
      %3714 = vmatprep.subr.bf16.mxu0 %v2437
      %3715 = vmatpush1.bf16.msra.mxu0 %v2433
      %3716 = vmatprep.subr.bf16.mxu0 %v2569
      %3717 = vmatpush1.bf16.msra.mxu0 %v2565
      %3718 = vmatprep.subr.bf16.mxu0 %v2701
      %3719 = vmatpush1.bf16.msra.mxu0 %v2697
      %3720 = vmatprep.subr.bf16.mxu0 %v2833
      %3721 = vmatpush1.bf16.msra.mxu0 %v2829
      %3722 = vmatprep.subr.bf16.mxu0 0
      %3723 = vmatpush1.bf16.msra.mxu0 0
      %3724 = vmatprep.subr.bf16.mxu0 0
      %3725 = vmatpush1.bf16.msra.mxu0 0
      %3726 = vmatprep.subr.bf16.mxu0 0
      %3727 = vmatpush1.bf16.msra.mxu0 0
      %3728 = vmatprep.subr.bf16.mxu0 0
      %3729 = vmatpush1.bf16.msra.mxu0 0
      %3730 = vmatprep.subr.bf16.mxu0 0
      %3731 = vmatpush1.bf16.msra.mxu0 0
      %3732 = vmatprep.subr.bf16.mxu0 0
      %3733 = vmatpush1.bf16.msra.mxu0 0
      %3734 = vmatprep.subr.bf16.mxu0 0
      %3735 = vmatpush1.bf16.msra.mxu0 0
      %3736 = vmatprep.subr.bf16.mxu0 0
      %3737 = vmatpush1.bf16.msra.mxu0 0
      %3738 = vmatprep.mubr.bf16.mxu0 0
      %3739 = vmatmul.mubr.bf16.gmra.mrb[0].mxu0 %v2895
      %v3740 = vpop.f32.mrb[0].mxu0
      %v3741 = vadd.f32 0.0, %v3740
      %v3742 = vpop.f32.mrb[0].mxu0
      %v3743 = vadd.f32 0.0, %v3742
      %v3744 = vpop.f32.mrb[0].mxu0
      %v3745 = vadd.f32 0.0, %v3744
      %v3746 = vpop.f32.mrb[0].mxu0
      %v3747 = vadd.f32 0.0, %v3746
      %3748 = vmatprep.mubr.bf16.mxu0 0
      %3749 = vmatmul.mubr.bf16.gmra.mrb[0].mxu0 %v2896
      %v3750 = vpop.f32.mrb[0].mxu0
      %v3751 = vadd.f32 0.0, %v3750
      %v3752 = vpop.f32.mrb[0].mxu0
      %v3753 = vadd.f32 0.0, %v3752
      %v3754 = vpop.f32.mrb[0].mxu0
      %v3755 = vadd.f32 0.0, %v3754
      %v3756 = vpop.f32.mrb[0].mxu0
      %v3757 = vadd.f32 0.0, %v3756
      %3758 = vmatprep.mubr.bf16.mxu0 0
      %3759 = vmatmul.mubr.bf16.gmra.mrb[0].mxu0 %v2897
      %v3760 = vpop.f32.mrb[0].mxu0
      %v3761 = vadd.f32 0.0, %v3760
      %v3762 = vpop.f32.mrb[0].mxu0
      %v3763 = vadd.f32 0.0, %v3762
      %v3764 = vpop.f32.mrb[0].mxu0
      %v3765 = vadd.f32 0.0, %v3764
      %v3766 = vpop.f32.mrb[0].mxu0
      %v3767 = vadd.f32 0.0, %v3766
      %3768 = vmatprep.mubr.bf16.mxu0 0
      %3769 = vmatmul.mubr.bf16.gmra.mrb[0].mxu0 %v2898
      %v3770 = vpop.f32.mrb[0].mxu0
      %v3771 = vadd.f32 0.0, %v3770
      %v3772 = vpop.f32.mrb[0].mxu0
      %v3773 = vadd.f32 0.0, %v3772
      %v3774 = vpop.f32.mrb[0].mxu0
      %v3775 = vadd.f32 0.0, %v3774
      %v3776 = vpop.f32.mrb[0].mxu0
      %v3777 = vadd.f32 0.0, %v3776
      %3778 = vdwg.mxu0
      %3779 = vmatprep.subr.bf16.mxu0 %v1917
      %3780 = vmatpush1.bf16.msra.mxu0 %v1913
      %3781 = vmatprep.subr.bf16.mxu0 %v2049
      %3782 = vmatpush1.bf16.msra.mxu0 %v2045
      %3783 = vmatprep.subr.bf16.mxu0 %v2181
      %3784 = vmatpush1.bf16.msra.mxu0 %v2177
      %3785 = vmatprep.subr.bf16.mxu0 %v2313
      %3786 = vmatpush1.bf16.msra.mxu0 %v2309
      %3787 = vmatprep.subr.bf16.mxu0 %v2445
      %3788 = vmatpush1.bf16.msra.mxu0 %v2441
      %3789 = vmatprep.subr.bf16.mxu0 %v2577
      %3790 = vmatpush1.bf16.msra.mxu0 %v2573
      %3791 = vmatprep.subr.bf16.mxu0 %v2709
      %3792 = vmatpush1.bf16.msra.mxu0 %v2705
      %3793 = vmatprep.subr.bf16.mxu0 %v2841
      %3794 = vmatpush1.bf16.msra.mxu0 %v2837
      %3795 = vmatprep.subr.bf16.mxu0 0
      %3796 = vmatpush1.bf16.msra.mxu0 0
      %3797 = vmatprep.subr.bf16.mxu0 0
      %3798 = vmatpush1.bf16.msra.mxu0 0
      %3799 = vmatprep.subr.bf16.mxu0 0
      %3800 = vmatpush1.bf16.msra.mxu0 0
      %3801 = vmatprep.subr.bf16.mxu0 0
      %3802 = vmatpush1.bf16.msra.mxu0 0
      %3803 = vmatprep.subr.bf16.mxu0 0
      %3804 = vmatpush1.bf16.msra.mxu0 0
      %3805 = vmatprep.subr.bf16.mxu0 0
      %3806 = vmatpush1.bf16.msra.mxu0 0
      %3807 = vmatprep.subr.bf16.mxu0 0
      %3808 = vmatpush1.bf16.msra.mxu0 0
      %3809 = vmatprep.subr.bf16.mxu0 0
      %3810 = vmatpush1.bf16.msra.mxu0 0
      %3811 = vmatprep.mubr.bf16.mxu0 0
      %3812 = vmatmul.mubr.bf16.gmra.mrb[0].mxu0 %v2895
      %v3813 = vpop.f32.mrb[0].mxu0
      %v3814 = vadd.f32 0.0, %v3813
      %v3815 = vpop.f32.mrb[0].mxu0
      %v3816 = vadd.f32 0.0, %v3815
      %v3817 = vpop.f32.mrb[0].mxu0
      %v3818 = vadd.f32 0.0, %v3817
      %v3819 = vpop.f32.mrb[0].mxu0
      %v3820 = vadd.f32 0.0, %v3819
      %3821 = vmatprep.mubr.bf16.mxu0 0
      %3822 = vmatmul.mubr.bf16.gmra.mrb[0].mxu0 %v2896
      %v3823 = vpop.f32.mrb[0].mxu0
      %v3824 = vadd.f32 0.0, %v3823
      %v3825 = vpop.f32.mrb[0].mxu0
      %v3826 = vadd.f32 0.0, %v3825
      %v3827 = vpop.f32.mrb[0].mxu0
      %v3828 = vadd.f32 0.0, %v3827
      %v3829 = vpop.f32.mrb[0].mxu0
      %v3830 = vadd.f32 0.0, %v3829
      %3831 = vmatprep.mubr.bf16.mxu0 0
      %3832 = vmatmul.mubr.bf16.gmra.mrb[0].mxu0 %v2897
      %v3833 = vpop.f32.mrb[0].mxu0
      %v3834 = vadd.f32 0.0, %v3833
      %v3835 = vpop.f32.mrb[0].mxu0
      %v3836 = vadd.f32 0.0, %v3835
      %v3837 = vpop.f32.mrb[0].mxu0
      %v3838 = vadd.f32 0.0, %v3837
      %v3839 = vpop.f32.mrb[0].mxu0
      %v3840 = vadd.f32 0.0, %v3839
      %3841 = vmatprep.mubr.bf16.mxu0 0
      %3842 = vmatmul.mubr.bf16.gmra.mrb[0].mxu0 %v2898
      %v3843 = vpop.f32.mrb[0].mxu0
      %v3844 = vadd.f32 0.0, %v3843
      %v3845 = vpop.f32.mrb[0].mxu0
      %v3846 = vadd.f32 0.0, %v3845
      %v3847 = vpop.f32.mrb[0].mxu0
      %v3848 = vadd.f32 0.0, %v3847
      %v3849 = vpop.f32.mrb[0].mxu0
      %v3850 = vadd.f32 0.0, %v3849
      %3851 = vdwg.mxu0
      %3852 = vmatprep.subr.bf16.mxu0 %v1925
      %3853 = vmatpush1.bf16.msra.mxu0 %v1921
      %3854 = vmatprep.subr.bf16.mxu0 %v2057
      %3855 = vmatpush1.bf16.msra.mxu0 %v2053
      %3856 = vmatprep.subr.bf16.mxu0 %v2189
      %3857 = vmatpush1.bf16.msra.mxu0 %v2185
      %3858 = vmatprep.subr.bf16.mxu0 %v2321
      %3859 = vmatpush1.bf16.msra.mxu0 %v2317
      %3860 = vmatprep.subr.bf16.mxu0 %v2453
      %3861 = vmatpush1.bf16.msra.mxu0 %v2449
      %3862 = vmatprep.subr.bf16.mxu0 %v2585
      %3863 = vmatpush1.bf16.msra.mxu0 %v2581
      %3864 = vmatprep.subr.bf16.mxu0 %v2717
      %3865 = vmatpush1.bf16.msra.mxu0 %v2713
      %3866 = vmatprep.subr.bf16.mxu0 %v2849
      %3867 = vmatpush1.bf16.msra.mxu0 %v2845
      %3868 = vmatprep.subr.bf16.mxu0 0
      %3869 = vmatpush1.bf16.msra.mxu0 0
      %3870 = vmatprep.subr.bf16.mxu0 0
      %3871 = vmatpush1.bf16.msra.mxu0 0
      %3872 = vmatprep.subr.bf16.mxu0 0
      %3873 = vmatpush1.bf16.msra.mxu0 0
      %3874 = vmatprep.subr.bf16.mxu0 0
      %3875 = vmatpush1.bf16.msra.mxu0 0
      %3876 = vmatprep.subr.bf16.mxu0 0
      %3877 = vmatpush1.bf16.msra.mxu0 0
      %3878 = vmatprep.subr.bf16.mxu0 0
      %3879 = vmatpush1.bf16.msra.mxu0 0
      %3880 = vmatprep.subr.bf16.mxu0 0
      %3881 = vmatpush1.bf16.msra.mxu0 0
      %3882 = vmatprep.subr.bf16.mxu0 0
      %3883 = vmatpush1.bf16.msra.mxu0 0
      %3884 = vmatprep.mubr.bf16.mxu0 0
      %3885 = vmatmul.mubr.bf16.gmra.mrb[0].mxu0 %v2895
      %v3886 = vpop.f32.mrb[0].mxu0
      %v3887 = vadd.f32 0.0, %v3886
      %v3888 = vpop.f32.mrb[0].mxu0
      %v3889 = vadd.f32 0.0, %v3888
      %v3890 = vpop.f32.mrb[0].mxu0
      %v3891 = vadd.f32 0.0, %v3890
      %v3892 = vpop.f32.mrb[0].mxu0
      %v3893 = vadd.f32 0.0, %v3892
      %3894 = vmatprep.mubr.bf16.mxu0 0
      %3895 = vmatmul.mubr.bf16.gmra.mrb[0].mxu0 %v2896
      %v3896 = vpop.f32.mrb[0].mxu0
      %v3897 = vadd.f32 0.0, %v3896
      %v3898 = vpop.f32.mrb[0].mxu0
      %v3899 = vadd.f32 0.0, %v3898
      %v3900 = vpop.f32.mrb[0].mxu0
      %v3901 = vadd.f32 0.0, %v3900
      %v3902 = vpop.f32.mrb[0].mxu0
      %v3903 = vadd.f32 0.0, %v3902
      %3904 = vmatprep.mubr.bf16.mxu0 0
      %3905 = vmatmul.mubr.bf16.gmra.mrb[0].mxu0 %v2897
      %v3906 = vpop.f32.mrb[0].mxu0
      %v3907 = vadd.f32 0.0, %v3906
      %v3908 = vpop.f32.mrb[0].mxu0
      %v3909 = vadd.f32 0.0, %v3908
      %v3910 = vpop.f32.mrb[0].mxu0
      %v3911 = vadd.f32 0.0, %v3910
      %v3912 = vpop.f32.mrb[0].mxu0
      %v3913 = vadd.f32 0.0, %v3912
      %3914 = vmatprep.mubr.bf16.mxu0 0
      %3915 = vmatmul.mubr.bf16.gmra.mrb[0].mxu0 %v2898
      %v3916 = vpop.f32.mrb[0].mxu0
      %v3917 = vadd.f32 0.0, %v3916
      %v3918 = vpop.f32.mrb[0].mxu0
      %v3919 = vadd.f32 0.0, %v3918
      %v3920 = vpop.f32.mrb[0].mxu0
      %v3921 = vadd.f32 0.0, %v3920
      %v3922 = vpop.f32.mrb[0].mxu0
      %v3923 = vadd.f32 0.0, %v3922
      %3924 = vdwg.mxu0
      %3925 = vmatprep.subr.bf16.mxu0 %v1933
      %3926 = vmatpush1.bf16.msra.mxu0 %v1929
      %3927 = vmatprep.subr.bf16.mxu0 %v2065
      %3928 = vmatpush1.bf16.msra.mxu0 %v2061
      %3929 = vmatprep.subr.bf16.mxu0 %v2197
      %3930 = vmatpush1.bf16.msra.mxu0 %v2193
      %3931 = vmatprep.subr.bf16.mxu0 %v2329
      %3932 = vmatpush1.bf16.msra.mxu0 %v2325
      %3933 = vmatprep.subr.bf16.mxu0 %v2461
      %3934 = vmatpush1.bf16.msra.mxu0 %v2457
      %3935 = vmatprep.subr.bf16.mxu0 %v2593
      %3936 = vmatpush1.bf16.msra.mxu0 %v2589
      %3937 = vmatprep.subr.bf16.mxu0 %v2725
      %3938 = vmatpush1.bf16.msra.mxu0 %v2721
      %3939 = vmatprep.subr.bf16.mxu0 %v2857
      %3940 = vmatpush1.bf16.msra.mxu0 %v2853
      %3941 = vmatprep.subr.bf16.mxu0 0
      %3942 = vmatpush1.bf16.msra.mxu0 0
      %3943 = vmatprep.subr.bf16.mxu0 0
      %3944 = vmatpush1.bf16.msra.mxu0 0
      %3945 = vmatprep.subr.bf16.mxu0 0
      %3946 = vmatpush1.bf16.msra.mxu0 0
      %3947 = vmatprep.subr.bf16.mxu0 0
      %3948 = vmatpush1.bf16.msra.mxu0 0
      %3949 = vmatprep.subr.bf16.mxu0 0
      %3950 = vmatpush1.bf16.msra.mxu0 0
      %3951 = vmatprep.subr.bf16.mxu0 0
      %3952 = vmatpush1.bf16.msra.mxu0 0
      %3953 = vmatprep.subr.bf16.mxu0 0
      %3954 = vmatpush1.bf16.msra.mxu0 0
      %3955 = vmatprep.subr.bf16.mxu0 0
      %3956 = vmatpush1.bf16.msra.mxu0 0
      %3957 = vmatprep.mubr.bf16.mxu0 0
      %3958 = vmatmul.mubr.bf16.gmra.mrb[0].mxu0 %v2895
      %v3959 = vpop.f32.mrb[0].mxu0
      %v3960 = vadd.f32 0.0, %v3959
      %v3961 = vpop.f32.mrb[0].mxu0
      %v3962 = vadd.f32 0.0, %v3961
      %v3963 = vpop.f32.mrb[0].mxu0
      %v3964 = vadd.f32 0.0, %v3963
      %v3965 = vpop.f32.mrb[0].mxu0
      %v3966 = vadd.f32 0.0, %v3965
      %3967 = vmatprep.mubr.bf16.mxu0 0
      %3968 = vmatmul.mubr.bf16.gmra.mrb[0].mxu0 %v2896
      %v3969 = vpop.f32.mrb[0].mxu0
      %v3970 = vadd.f32 0.0, %v3969
      %v3971 = vpop.f32.mrb[0].mxu0
      %v3972 = vadd.f32 0.0, %v3971
      %v3973 = vpop.f32.mrb[0].mxu0
      %v3974 = vadd.f32 0.0, %v3973
      %v3975 = vpop.f32.mrb[0].mxu0
      %v3976 = vadd.f32 0.0, %v3975
      %3977 = vmatprep.mubr.bf16.mxu0 0
      %3978 = vmatmul.mubr.bf16.gmra.mrb[0].mxu0 %v2897
      %v3979 = vpop.f32.mrb[0].mxu0
      %v3980 = vadd.f32 0.0, %v3979
      %v3981 = vpop.f32.mrb[0].mxu0
      %v3982 = vadd.f32 0.0, %v3981
      %v3983 = vpop.f32.mrb[0].mxu0
      %v3984 = vadd.f32 0.0, %v3983
      %v3985 = vpop.f32.mrb[0].mxu0
      %v3986 = vadd.f32 0.0, %v3985
      %3987 = vmatprep.mubr.bf16.mxu0 0
      %3988 = vmatmul.mubr.bf16.gmra.mrb[0].mxu0 %v2898
      %v3989 = vpop.f32.mrb[0].mxu0
      %v3990 = vadd.f32 0.0, %v3989
      %v3991 = vpop.f32.mrb[0].mxu0
      %v3992 = vadd.f32 0.0, %v3991
      %v3993 = vpop.f32.mrb[0].mxu0
      %v3994 = vadd.f32 0.0, %v3993
      %v3995 = vpop.f32.mrb[0].mxu0
      %v3996 = vadd.f32 0.0, %v3995
      %3997 = vdwg.mxu0
      %3998 = vmatprep.subr.bf16.mxu0 %v1941
      %3999 = vmatpush1.bf16.msra.mxu0 %v1937
      %4000 = vmatprep.subr.bf16.mxu0 %v2073
      %4001 = vmatpush1.bf16.msra.mxu0 %v2069
      %4002 = vmatprep.subr.bf16.mxu0 %v2205
      %4003 = vmatpush1.bf16.msra.mxu0 %v2201
      %4004 = vmatprep.subr.bf16.mxu0 %v2337
      %4005 = vmatpush1.bf16.msra.mxu0 %v2333
      %4006 = vmatprep.subr.bf16.mxu0 %v2469
      %4007 = vmatpush1.bf16.msra.mxu0 %v2465
      %4008 = vmatprep.subr.bf16.mxu0 %v2601
      %4009 = vmatpush1.bf16.msra.mxu0 %v2597
      %4010 = vmatprep.subr.bf16.mxu0 %v2733
      %4011 = vmatpush1.bf16.msra.mxu0 %v2729
      %4012 = vmatprep.subr.bf16.mxu0 %v2865
      %4013 = vmatpush1.bf16.msra.mxu0 %v2861
      %4014 = vmatprep.subr.bf16.mxu0 0
      %4015 = vmatpush1.bf16.msra.mxu0 0
      %4016 = vmatprep.subr.bf16.mxu0 0
      %4017 = vmatpush1.bf16.msra.mxu0 0
      %4018 = vmatprep.subr.bf16.mxu0 0
      %4019 = vmatpush1.bf16.msra.mxu0 0
      %4020 = vmatprep.subr.bf16.mxu0 0
      %4021 = vmatpush1.bf16.msra.mxu0 0
      %4022 = vmatprep.subr.bf16.mxu0 0
      %4023 = vmatpush1.bf16.msra.mxu0 0
      %4024 = vmatprep.subr.bf16.mxu0 0
      %4025 = vmatpush1.bf16.msra.mxu0 0
      %4026 = vmatprep.subr.bf16.mxu0 0
      %4027 = vmatpush1.bf16.msra.mxu0 0
      %4028 = vmatprep.subr.bf16.mxu0 0
      %4029 = vmatpush1.bf16.msra.mxu0 0
      %4030 = vmatprep.mubr.bf16.mxu0 0
      %4031 = vmatmul.mubr.bf16.gmra.mrb[0].mxu0 %v2895
      %v4032 = vpop.f32.mrb[0].mxu0
      %v4033 = vadd.f32 0.0, %v4032
      %v4034 = vpop.f32.mrb[0].mxu0
      %v4035 = vadd.f32 0.0, %v4034
      %v4036 = vpop.f32.mrb[0].mxu0
      %v4037 = vadd.f32 0.0, %v4036
      %v4038 = vpop.f32.mrb[0].mxu0
      %v4039 = vadd.f32 0.0, %v4038
      %4040 = vmatprep.mubr.bf16.mxu0 0
      %4041 = vmatmul.mubr.bf16.gmra.mrb[0].mxu0 %v2896
      %v4042 = vpop.f32.mrb[0].mxu0
      %v4043 = vadd.f32 0.0, %v4042
      %v4044 = vpop.f32.mrb[0].mxu0
      %v4045 = vadd.f32 0.0, %v4044
      %v4046 = vpop.f32.mrb[0].mxu0
      %v4047 = vadd.f32 0.0, %v4046
      %v4048 = vpop.f32.mrb[0].mxu0
      %v4049 = vadd.f32 0.0, %v4048
      %4050 = vmatprep.mubr.bf16.mxu0 0
      %4051 = vmatmul.mubr.bf16.gmra.mrb[0].mxu0 %v2897
      %v4052 = vpop.f32.mrb[0].mxu0
      %v4053 = vadd.f32 0.0, %v4052
      %v4054 = vpop.f32.mrb[0].mxu0
      %v4055 = vadd.f32 0.0, %v4054
      %v4056 = vpop.f32.mrb[0].mxu0
      %v4057 = vadd.f32 0.0, %v4056
      %v4058 = vpop.f32.mrb[0].mxu0
      %v4059 = vadd.f32 0.0, %v4058
      %4060 = vmatprep.mubr.bf16.mxu0 0
      %4061 = vmatmul.mubr.bf16.gmra.mrb[0].mxu0 %v2898
      %v4062 = vpop.f32.mrb[0].mxu0
      %v4063 = vadd.f32 0.0, %v4062
      %v4064 = vpop.f32.mrb[0].mxu0
      %v4065 = vadd.f32 0.0, %v4064
      %v4066 = vpop.f32.mrb[0].mxu0
      %v4067 = vadd.f32 0.0, %v4066
      %v4068 = vpop.f32.mrb[0].mxu0
      %v4069 = vadd.f32 0.0, %v4068
      %4070 = vdwg.mxu0
      %4071 = vmatprep.subr.bf16.mxu0 0
      %4072 = vmatpush1.bf16.msra.mxu0 %v1945
      %4073 = vmatprep.subr.bf16.mxu0 0
      %4074 = vmatpush1.bf16.msra.mxu0 %v2077
      %4075 = vmatprep.subr.bf16.mxu0 0
      %4076 = vmatpush1.bf16.msra.mxu0 %v2209
      %4077 = vmatprep.subr.bf16.mxu0 0
      %4078 = vmatpush1.bf16.msra.mxu0 %v2341
      %4079 = vmatprep.subr.bf16.mxu0 0
      %4080 = vmatpush1.bf16.msra.mxu0 %v2473
      %4081 = vmatprep.subr.bf16.mxu0 0
      %4082 = vmatpush1.bf16.msra.mxu0 %v2605
      %4083 = vmatprep.subr.bf16.mxu0 0
      %4084 = vmatpush1.bf16.msra.mxu0 %v2737
      %4085 = vmatprep.subr.bf16.mxu0 0
      %4086 = vmatpush1.bf16.msra.mxu0 %v2869
      %4087 = vmatprep.subr.bf16.mxu0 0
      %4088 = vmatpush1.bf16.msra.mxu0 0
      %4089 = vmatprep.subr.bf16.mxu0 0
      %4090 = vmatpush1.bf16.msra.mxu0 0
      %4091 = vmatprep.subr.bf16.mxu0 0
      %4092 = vmatpush1.bf16.msra.mxu0 0
      %4093 = vmatprep.subr.bf16.mxu0 0
      %4094 = vmatpush1.bf16.msra.mxu0 0
      %4095 = vmatprep.subr.bf16.mxu0 0
      %4096 = vmatpush1.bf16.msra.mxu0 0
      %4097 = vmatprep.subr.bf16.mxu0 0
      %4098 = vmatpush1.bf16.msra.mxu0 0
      %4099 = vmatprep.subr.bf16.mxu0 0
      %4100 = vmatpush1.bf16.msra.mxu0 0
      %4101 = vmatprep.subr.bf16.mxu0 0
      %4102 = vmatpush1.bf16.msra.mxu0 0
      %4103 = vmatprep.mubr.bf16.mxu0 0
      %4104 = vmatmul.mubr.bf16.gmra.mrb[0].mxu0 %v2895
      %v4105 = vpop.f32.mrb[0].mxu0
      %v4106 = vadd.f32 0.0, %v4105
      %v4107 = vpop.f32.mrb[0].mxu0
      %v4108 = vpop.f32.mrb[0].mxu0
      %v4109 = vadd.f32 0.0, %v4108
      %v4110 = vpop.f32.mrb[0].mxu0
      %4111 = vmatprep.mubr.bf16.mxu0 0
      %4112 = vmatmul.mubr.bf16.gmra.mrb[0].mxu0 %v2896
      %v4113 = vpop.f32.mrb[0].mxu0
      %v4114 = vadd.f32 0.0, %v4113
      %v4115 = vpop.f32.mrb[0].mxu0
      %v4116 = vpop.f32.mrb[0].mxu0
      %v4117 = vadd.f32 0.0, %v4116
      %v4118 = vpop.f32.mrb[0].mxu0
      %4119 = vmatprep.mubr.bf16.mxu0 0
      %4120 = vmatmul.mubr.bf16.gmra.mrb[0].mxu0 %v2897
      %v4121 = vpop.f32.mrb[0].mxu0
      %v4122 = vadd.f32 0.0, %v4121
      %v4123 = vpop.f32.mrb[0].mxu0
      %v4124 = vpop.f32.mrb[0].mxu0
      %v4125 = vadd.f32 0.0, %v4124
      %v4126 = vpop.f32.mrb[0].mxu0
      %4127 = vmatprep.mubr.bf16.mxu0 0
      %4128 = vmatmul.mubr.bf16.gmra.mrb[0].mxu0 %v2898
      %v4129 = vpop.f32.mrb[0].mxu0
      %v4130 = vadd.f32 0.0, %v4129
      %v4131 = vpop.f32.mrb[0].mxu0
      %v4132 = vpop.f32.mrb[0].mxu0
      %v4133 = vadd.f32 0.0, %v4132
      %v4134 = vpop.f32.mrb[0].mxu0
      %4135 = vdwg.mxu0
      %v4136 = vmax.f32 %v2938, %v2948
      %v4137 = vmax.f32 %v2940, %v2950
      %v4138 = vmax.f32 %v3011, %v3021
      %v4139 = vmax.f32 %v3013, %v3023
      %v4140 = vmax.f32 %v3084, %v3094
      %v4141 = vmax.f32 %v3086, %v3096
      %v4142 = vmax.f32 %v3157, %v3167
      %v4143 = vmax.f32 %v3159, %v3169
      %v4144 = vmax.f32 %v3230, %v3240
      %v4145 = vmax.f32 %v3232, %v3242
      %v4146 = vmax.f32 %v3303, %v3313
      %v4147 = vmax.f32 %v3305, %v3315
      %v4148 = vmax.f32 %v3376, %v3386
      %v4149 = vmax.f32 %v3378, %v3388
      %v4150 = vmax.f32 %v3449, %v3459
      %v4151 = vmax.f32 %v3451, %v3461
      %v4152 = vmax.f32 %v3522, %v3532
      %v4153 = vmax.f32 %v3524, %v3534
      %v4154 = vmax.f32 %v3595, %v3605
      %v4155 = vmax.f32 %v3597, %v3607
      %v4156 = vmax.f32 %v3668, %v3678
      %v4157 = vmax.f32 %v3670, %v3680
      %v4158 = vmax.f32 %v3741, %v3751
      %v4159 = vmax.f32 %v3743, %v3753
      %v4160 = vmax.f32 %v3814, %v3824
      %v4161 = vmax.f32 %v3816, %v3826
      %v4162 = vmax.f32 %v3887, %v3897
      %v4163 = vmax.f32 %v3889, %v3899
      %v4164 = vmax.f32 %v3960, %v3970
      %v4165 = vmax.f32 %v3962, %v3972
      %v4166 = vmax.f32 %v4033, %v4043
      %v4167 = vmax.f32 %v4035, %v4045
      %v4168 = vmax.f32 %v4106, %v4114
      %v4169 = vmax.f32 %v2942, %v2952
      %v4170 = vmax.f32 %v2944, %v2954
      %v4171 = vmax.f32 %v3015, %v3025
      %v4172 = vmax.f32 %v3017, %v3027
      %v4173 = vmax.f32 %v3088, %v3098
      %v4174 = vmax.f32 %v3090, %v3100
      %v4175 = vmax.f32 %v3161, %v3171
      %v4176 = vmax.f32 %v3163, %v3173
      %v4177 = vmax.f32 %v3234, %v3244
      %v4178 = vmax.f32 %v3236, %v3246
      %v4179 = vmax.f32 %v3307, %v3317
      %v4180 = vmax.f32 %v3309, %v3319
      %v4181 = vmax.f32 %v3380, %v3390
      %v4182 = vmax.f32 %v3382, %v3392
      %v4183 = vmax.f32 %v3453, %v3463
      %v4184 = vmax.f32 %v3455, %v3465
      %v4185 = vmax.f32 %v3526, %v3536
      %v4186 = vmax.f32 %v3528, %v3538
      %v4187 = vmax.f32 %v3599, %v3609
      %v4188 = vmax.f32 %v3601, %v3611
      %v4189 = vmax.f32 %v3672, %v3682
      %v4190 = vmax.f32 %v3674, %v3684
      %v4191 = vmax.f32 %v3745, %v3755
      %v4192 = vmax.f32 %v3747, %v3757
      %v4193 = vmax.f32 %v3818, %v3828
      %v4194 = vmax.f32 %v3820, %v3830
      %v4195 = vmax.f32 %v3891, %v3901
      %v4196 = vmax.f32 %v3893, %v3903
      %v4197 = vmax.f32 %v3964, %v3974
      %v4198 = vmax.f32 %v3966, %v3976
      %v4199 = vmax.f32 %v4037, %v4047
      %v4200 = vmax.f32 %v4039, %v4049
      %v4201 = vmax.f32 %v4109, %v4117
      %v4202 = vmax.f32 %v2958, %v2968
      %v4203 = vmax.f32 %v2960, %v2970
      %v4204 = vmax.f32 %v3031, %v3041
      %v4205 = vmax.f32 %v3033, %v3043
      %v4206 = vmax.f32 %v3104, %v3114
      %v4207 = vmax.f32 %v3106, %v3116
      %v4208 = vmax.f32 %v3177, %v3187
      %v4209 = vmax.f32 %v3179, %v3189
      %v4210 = vmax.f32 %v3250, %v3260
      %v4211 = vmax.f32 %v3252, %v3262
      %v4212 = vmax.f32 %v3323, %v3333
      %v4213 = vmax.f32 %v3325, %v3335
      %v4214 = vmax.f32 %v3396, %v3406
      %v4215 = vmax.f32 %v3398, %v3408
      %v4216 = vmax.f32 %v3469, %v3479
      %v4217 = vmax.f32 %v3471, %v3481
      %v4218 = vmax.f32 %v3542, %v3552
      %v4219 = vmax.f32 %v3544, %v3554
      %v4220 = vmax.f32 %v3615, %v3625
      %v4221 = vmax.f32 %v3617, %v3627
      %v4222 = vmax.f32 %v3688, %v3698
      %v4223 = vmax.f32 %v3690, %v3700
      %v4224 = vmax.f32 %v3761, %v3771
      %v4225 = vmax.f32 %v3763, %v3773
      %v4226 = vmax.f32 %v3834, %v3844
      %v4227 = vmax.f32 %v3836, %v3846
      %v4228 = vmax.f32 %v3907, %v3917
      %v4229 = vmax.f32 %v3909, %v3919
      %v4230 = vmax.f32 %v3980, %v3990
      %v4231 = vmax.f32 %v3982, %v3992
      %v4232 = vmax.f32 %v4053, %v4063
      %v4233 = vmax.f32 %v4055, %v4065
      %v4234 = vmax.f32 %v4122, %v4130
      %v4235 = vmax.f32 %v2962, %v2972
      %v4236 = vmax.f32 %v2964, %v2974
      %v4237 = vmax.f32 %v3035, %v3045
      %v4238 = vmax.f32 %v3037, %v3047
      %v4239 = vmax.f32 %v3108, %v3118
      %v4240 = vmax.f32 %v3110, %v3120
      %v4241 = vmax.f32 %v3181, %v3191
      %v4242 = vmax.f32 %v3183, %v3193
      %v4243 = vmax.f32 %v3254, %v3264
      %v4244 = vmax.f32 %v3256, %v3266
      %v4245 = vmax.f32 %v3327, %v3337
      %v4246 = vmax.f32 %v3329, %v3339
      %v4247 = vmax.f32 %v3400, %v3410
      %v4248 = vmax.f32 %v3402, %v3412
      %v4249 = vmax.f32 %v3473, %v3483
      %v4250 = vmax.f32 %v3475, %v3485
      %v4251 = vmax.f32 %v3546, %v3556
      %v4252 = vmax.f32 %v3548, %v3558
      %v4253 = vmax.f32 %v3619, %v3629
      %v4254 = vmax.f32 %v3621, %v3631
      %v4255 = vmax.f32 %v3692, %v3702
      %v4256 = vmax.f32 %v3694, %v3704
      %v4257 = vmax.f32 %v3765, %v3775
      %v4258 = vmax.f32 %v3767, %v3777
      %v4259 = vmax.f32 %v3838, %v3848
      %v4260 = vmax.f32 %v3840, %v3850
      %v4261 = vmax.f32 %v3911, %v3921
      %v4262 = vmax.f32 %v3913, %v3923
      %v4263 = vmax.f32 %v3984, %v3994
      %v4264 = vmax.f32 %v3986, %v3996
      %v4265 = vmax.f32 %v4057, %v4067
      %v4266 = vmax.f32 %v4059, %v4069
      %v4267 = vmax.f32 %v4125, %v4133
      %v4268 = vmax.f32 %v4136, %v4202
      %v4269 = vmax.f32 %v4137, %v4203
      %v4270 = vmax.f32 %v4138, %v4204
      %v4271 = vmax.f32 %v4139, %v4205
      %v4272 = vmax.f32 %v4140, %v4206
      %v4273 = vmax.f32 %v4141, %v4207
      %v4274 = vmax.f32 %v4142, %v4208
      %v4275 = vmax.f32 %v4143, %v4209
      %v4276 = vmax.f32 %v4144, %v4210
      %v4277 = vmax.f32 %v4145, %v4211
      %v4278 = vmax.f32 %v4146, %v4212
      %v4279 = vmax.f32 %v4147, %v4213
      %v4280 = vmax.f32 %v4148, %v4214
      %v4281 = vmax.f32 %v4149, %v4215
      %v4282 = vmax.f32 %v4150, %v4216
      %v4283 = vmax.f32 %v4151, %v4217
      %v4284 = vmax.f32 %v4152, %v4218
      %v4285 = vmax.f32 %v4153, %v4219
      %v4286 = vmax.f32 %v4154, %v4220
      %v4287 = vmax.f32 %v4155, %v4221
      %v4288 = vmax.f32 %v4156, %v4222
      %v4289 = vmax.f32 %v4157, %v4223
      %v4290 = vmax.f32 %v4158, %v4224
      %v4291 = vmax.f32 %v4159, %v4225
      %v4292 = vmax.f32 %v4160, %v4226
      %v4293 = vmax.f32 %v4161, %v4227
      %v4294 = vmax.f32 %v4162, %v4228
      %v4295 = vmax.f32 %v4163, %v4229
      %v4296 = vmax.f32 %v4164, %v4230
      %v4297 = vmax.f32 %v4165, %v4231
      %v4298 = vmax.f32 %v4166, %v4232
      %v4299 = vmax.f32 %v4167, %v4233
      %v4300 = vmax.f32 %v4168, %v4234
      %v4301 = vmax.f32 %v4169, %v4235
      %v4302 = vmax.f32 %v4170, %v4236
      %v4303 = vmax.f32 %v4171, %v4237
      %v4304 = vmax.f32 %v4172, %v4238
      %v4305 = vmax.f32 %v4173, %v4239
      %v4306 = vmax.f32 %v4174, %v4240
      %v4307 = vmax.f32 %v4175, %v4241
      %v4308 = vmax.f32 %v4176, %v4242
      %v4309 = vmax.f32 %v4177, %v4243
      %v4310 = vmax.f32 %v4178, %v4244
      %v4311 = vmax.f32 %v4179, %v4245
      %v4312 = vmax.f32 %v4180, %v4246
      %v4313 = vmax.f32 %v4181, %v4247
      %v4314 = vmax.f32 %v4182, %v4248
      %v4315 = vmax.f32 %v4183, %v4249
      %v4316 = vmax.f32 %v4184, %v4250
      %v4317 = vmax.f32 %v4185, %v4251
      %v4318 = vmax.f32 %v4186, %v4252
      %v4319 = vmax.f32 %v4187, %v4253
      %v4320 = vmax.f32 %v4188, %v4254
      %v4321 = vmax.f32 %v4189, %v4255
      %v4322 = vmax.f32 %v4190, %v4256
      %v4323 = vmax.f32 %v4191, %v4257
      %v4324 = vmax.f32 %v4192, %v4258
      %v4325 = vmax.f32 %v4193, %v4259
      %v4326 = vmax.f32 %v4194, %v4260
      %v4327 = vmax.f32 %v4195, %v4261
      %v4328 = vmax.f32 %v4196, %v4262
      %v4329 = vmax.f32 %v4197, %v4263
      %v4330 = vmax.f32 %v4198, %v4264
      %v4331 = vmax.f32 %v4199, %v4265
      %v4332 = vmax.f32 %v4200, %v4266
      %v4333 = vmax.f32 %v4201, %v4267
      %v4334 = vld [vmem:[%s2] sm:$0xff]
      %v4335 = vld [vmem:[%s2 + $0x8] sm:$0xff]
      %4337 = vset.pattern.permute.xlu0 0
      %4338 = vperm.xlu0 %4337, %v4334
      %v4339 = vpop.permute.xlu0 %4338
      %4342 = vset.pattern.permute.xlu0 0
      %4343 = vperm.xlu0 %4342, %v4335
      %v4344 = vpop.permute.xlu0 %4343
      %v4346 = vadd.f32 %v4268, %v4339
      %v4347 = vadd.f32 %v4269, %v4339
      %v4348 = vadd.f32 %v4270, %v4339
      %v4349 = vadd.f32 %v4271, %v4339
      %v4350 = vadd.f32 %v4272, %v4339
      %v4351 = vadd.f32 %v4273, %v4339
      %v4352 = vadd.f32 %v4274, %v4339
      %v4353 = vadd.f32 %v4275, %v4339
      %v4354 = vadd.f32 %v4276, %v4339
      %v4355 = vadd.f32 %v4277, %v4339
      %v4356 = vadd.f32 %v4278, %v4339
      %v4357 = vadd.f32 %v4279, %v4339
      %v4358 = vadd.f32 %v4280, %v4339
      %v4359 = vadd.f32 %v4281, %v4339
      %v4360 = vadd.f32 %v4282, %v4339
      %v4361 = vadd.f32 %v4283, %v4339
      %v4362 = vadd.f32 %v4284, %v4339
      %v4363 = vadd.f32 %v4285, %v4339
      %v4364 = vadd.f32 %v4286, %v4339
      %v4365 = vadd.f32 %v4287, %v4339
      %v4366 = vadd.f32 %v4288, %v4339
      %v4367 = vadd.f32 %v4289, %v4339
      %v4368 = vadd.f32 %v4290, %v4339
      %v4369 = vadd.f32 %v4291, %v4339
      %v4370 = vadd.f32 %v4292, %v4339
      %v4371 = vadd.f32 %v4293, %v4339
      %v4372 = vadd.f32 %v4294, %v4339
      %v4373 = vadd.f32 %v4295, %v4339
      %v4374 = vadd.f32 %v4296, %v4339
      %v4375 = vadd.f32 %v4297, %v4339
      %v4376 = vadd.f32 %v4298, %v4339
      %v4377 = vadd.f32 %v4299, %v4339
      %v4378 = vadd.f32 %v4300, %v4339
      %v4379 = vadd.f32 %v4301, %v4344
      %v4380 = vadd.f32 %v4302, %v4344
      %v4381 = vadd.f32 %v4303, %v4344
      %v4382 = vadd.f32 %v4304, %v4344
      %v4383 = vadd.f32 %v4305, %v4344
      %v4384 = vadd.f32 %v4306, %v4344
      %v4385 = vadd.f32 %v4307, %v4344
      %v4386 = vadd.f32 %v4308, %v4344
      %v4387 = vadd.f32 %v4309, %v4344
      %v4388 = vadd.f32 %v4310, %v4344
      %v4389 = vadd.f32 %v4311, %v4344
      %v4390 = vadd.f32 %v4312, %v4344
      %v4391 = vadd.f32 %v4313, %v4344
      %v4392 = vadd.f32 %v4314, %v4344
      %v4393 = vadd.f32 %v4315, %v4344
      %v4394 = vadd.f32 %v4316, %v4344
      %v4395 = vadd.f32 %v4317, %v4344
      %v4396 = vadd.f32 %v4318, %v4344
      %v4397 = vadd.f32 %v4319, %v4344
      %v4398 = vadd.f32 %v4320, %v4344
      %v4399 = vadd.f32 %v4321, %v4344
      %v4400 = vadd.f32 %v4322, %v4344
      %v4401 = vadd.f32 %v4323, %v4344
      %v4402 = vadd.f32 %v4324, %v4344
      %v4403 = vadd.f32 %v4325, %v4344
      %v4404 = vadd.f32 %v4326, %v4344
      %v4405 = vadd.f32 %v4327, %v4344
      %v4406 = vadd.f32 %v4328, %v4344
      %v4407 = vadd.f32 %v4329, %v4344
      %v4408 = vadd.f32 %v4330, %v4344
      %v4409 = vadd.f32 %v4331, %v4344
      %v4410 = vadd.f32 %v4332, %v4344
      %v4411 = vadd.f32 %v4333, %v4344
      %v4412 = vmax.f32 %v4346, 0.0
      %v4413 = vmax.f32 %v4347, 0.0
      %v4414 = vmax.f32 %v4348, 0.0
      %v4415 = vmax.f32 %v4349, 0.0
      %v4416 = vmax.f32 %v4350, 0.0
      %v4417 = vmax.f32 %v4351, 0.0
      %v4418 = vmax.f32 %v4352, 0.0
      %v4419 = vmax.f32 %v4353, 0.0
      %v4420 = vmax.f32 %v4354, 0.0
      %v4421 = vmax.f32 %v4355, 0.0
      %v4422 = vmax.f32 %v4356, 0.0
      %v4423 = vmax.f32 %v4357, 0.0
      %v4424 = vmax.f32 %v4358, 0.0
      %v4425 = vmax.f32 %v4359, 0.0
      %v4426 = vmax.f32 %v4360, 0.0
      %v4427 = vmax.f32 %v4361, 0.0
      %v4428 = vmax.f32 %v4362, 0.0
      %v4429 = vmax.f32 %v4363, 0.0
      %v4430 = vmax.f32 %v4364, 0.0
      %v4431 = vmax.f32 %v4365, 0.0
      %v4432 = vmax.f32 %v4366, 0.0
      %v4433 = vmax.f32 %v4367, 0.0
      %v4434 = vmax.f32 %v4368, 0.0
      %v4435 = vmax.f32 %v4369, 0.0
      %v4436 = vmax.f32 %v4370, 0.0
      %v4437 = vmax.f32 %v4371, 0.0
      %v4438 = vmax.f32 %v4372, 0.0
      %v4439 = vmax.f32 %v4373, 0.0
      %v4440 = vmax.f32 %v4374, 0.0
      %v4441 = vmax.f32 %v4375, 0.0
      %v4442 = vmax.f32 %v4376, 0.0
      %v4443 = vmax.f32 %v4377, 0.0
      %v4444 = vmax.f32 %v4378, 0.0
      %v4445 = vmax.f32 %v4379, 0.0
      %v4446 = vmax.f32 %v4380, 0.0
      %v4447 = vmax.f32 %v4381, 0.0
      %v4448 = vmax.f32 %v4382, 0.0
      %v4449 = vmax.f32 %v4383, 0.0
      %v4450 = vmax.f32 %v4384, 0.0
      %v4451 = vmax.f32 %v4385, 0.0
      %v4452 = vmax.f32 %v4386, 0.0
      %v4453 = vmax.f32 %v4387, 0.0
      %v4454 = vmax.f32 %v4388, 0.0
      %v4455 = vmax.f32 %v4389, 0.0
      %v4456 = vmax.f32 %v4390, 0.0
      %v4457 = vmax.f32 %v4391, 0.0
      %v4458 = vmax.f32 %v4392, 0.0
      %v4459 = vmax.f32 %v4393, 0.0
      %v4460 = vmax.f32 %v4394, 0.0
      %v4461 = vmax.f32 %v4395, 0.0
      %v4462 = vmax.f32 %v4396, 0.0
      %v4463 = vmax.f32 %v4397, 0.0
      %v4464 = vmax.f32 %v4398, 0.0
      %v4465 = vmax.f32 %v4399, 0.0
      %v4466 = vmax.f32 %v4400, 0.0
      %v4467 = vmax.f32 %v4401, 0.0
      %v4468 = vmax.f32 %v4402, 0.0
      %v4469 = vmax.f32 %v4403, 0.0
      %v4470 = vmax.f32 %v4404, 0.0
      %v4471 = vmax.f32 %v4405, 0.0
      %v4472 = vmax.f32 %v4406, 0.0
      %v4473 = vmax.f32 %v4407, 0.0
      %v4474 = vmax.f32 %v4408, 0.0
      %v4475 = vmax.f32 %v4409, 0.0
      %v4476 = vmax.f32 %v4410, 0.0
      %v4477 = vmax.f32 %v4411, 0.0
      %v4478 = vpack.c.bf16 %v4445, %v4412
      %v4479 = vpack.c.bf16 %v4446, %v4413
      %v4480 = vpack.c.bf16 %v4447, %v4414
      %v4481 = vpack.c.bf16 %v4448, %v4415
      %v4482 = vpack.c.bf16 %v4449, %v4416
      %v4483 = vpack.c.bf16 %v4450, %v4417
      %v4484 = vpack.c.bf16 %v4451, %v4418
      %v4485 = vpack.c.bf16 %v4452, %v4419
      %v4486 = vpack.c.bf16 %v4453, %v4420
      %v4487 = vpack.c.bf16 %v4454, %v4421
      %v4488 = vpack.c.bf16 %v4455, %v4422
      %v4489 = vpack.c.bf16 %v4456, %v4423
      %v4490 = vpack.c.bf16 %v4457, %v4424
      %v4491 = vpack.c.bf16 %v4458, %v4425
      %v4492 = vpack.c.bf16 %v4459, %v4426
      %v4493 = vpack.c.bf16 %v4460, %v4427
      %v4494 = vpack.c.bf16 %v4461, %v4428
      %v4495 = vpack.c.bf16 %v4462, %v4429
      %v4496 = vpack.c.bf16 %v4463, %v4430
      %v4497 = vpack.c.bf16 %v4464, %v4431
      %v4498 = vpack.c.bf16 %v4465, %v4432
      %v4499 = vpack.c.bf16 %v4466, %v4433
      %v4500 = vpack.c.bf16 %v4467, %v4434
      %v4501 = vpack.c.bf16 %v4468, %v4435
      %v4502 = vpack.c.bf16 %v4469, %v4436
      %v4503 = vpack.c.bf16 %v4470, %v4437
      %v4504 = vpack.c.bf16 %v4471, %v4438
      %v4505 = vpack.c.bf16 %v4472, %v4439
      %v4506 = vpack.c.bf16 %v4473, %v4440
      %v4507 = vpack.c.bf16 %v4474, %v4441
      %v4508 = vpack.c.bf16 %v4475, %v4442
      %v4509 = vpack.c.bf16 %v4476, %v4443
      %v4510 = vpack.c.bf16 %v4477, %v4444
      %v4544 = vunpack.c.l.b16 %v4478
      %v4545 = vunpack.c.l.b16 %v4479
      %v4546 = vunpack.c.l.b16 %v4480
      %v4547 = vunpack.c.l.b16 %v4481
      %v4548 = vunpack.c.l.b16 %v4482
      %v4549 = vunpack.c.l.b16 %v4483
      %v4550 = vunpack.c.l.b16 %v4484
      %v4551 = vunpack.c.l.b16 %v4485
      %v4552 = vunpack.c.l.b16 %v4486
      %v4553 = vunpack.c.l.b16 %v4487
      %v4554 = vunpack.c.l.b16 %v4488
      %v4555 = vunpack.c.l.b16 %v4489
      %v4556 = vunpack.c.l.b16 %v4490
      %v4557 = vunpack.c.l.b16 %v4491
      %v4558 = vunpack.c.l.b16 %v4492
      %v4559 = vunpack.c.l.b16 %v4493
      %v4560 = vunpack.c.l.b16 %v4494
      %v4561 = vunpack.c.l.b16 %v4495
      %v4562 = vunpack.c.l.b16 %v4496
      %v4563 = vunpack.c.l.b16 %v4497
      %v4564 = vunpack.c.l.b16 %v4498
      %v4565 = vunpack.c.l.b16 %v4499
      %v4566 = vunpack.c.l.b16 %v4500
      %v4567 = vunpack.c.l.b16 %v4501
      %v4568 = vunpack.c.l.b16 %v4502
      %v4569 = vunpack.c.l.b16 %v4503
      %v4570 = vunpack.c.l.b16 %v4504
      %v4571 = vunpack.c.l.b16 %v4505
      %v4572 = vunpack.c.l.b16 %v4506
      %v4573 = vunpack.c.l.b16 %v4507
      %v4574 = vunpack.c.l.b16 %v4508
      %v4575 = vunpack.c.l.b16 %v4509
      %v4576 = vunpack.c.l.b16 %v4510
      %v4577 = vunpack.c.h.b16 %v4478
      %v4578 = vunpack.c.h.b16 %v4479
      %v4579 = vunpack.c.h.b16 %v4480
      %v4580 = vunpack.c.h.b16 %v4481
      %v4581 = vunpack.c.h.b16 %v4482
      %v4582 = vunpack.c.h.b16 %v4483
      %v4583 = vunpack.c.h.b16 %v4484
      %v4584 = vunpack.c.h.b16 %v4485
      %v4585 = vunpack.c.h.b16 %v4486
      %v4586 = vunpack.c.h.b16 %v4487
      %v4587 = vunpack.c.h.b16 %v4488
      %v4588 = vunpack.c.h.b16 %v4489
      %v4589 = vunpack.c.h.b16 %v4490
      %v4590 = vunpack.c.h.b16 %v4491
      %v4591 = vunpack.c.h.b16 %v4492
      %v4592 = vunpack.c.h.b16 %v4493
      %v4593 = vunpack.c.h.b16 %v4494
      %v4594 = vunpack.c.h.b16 %v4495
      %v4595 = vunpack.c.h.b16 %v4496
      %v4596 = vunpack.c.h.b16 %v4497
      %v4597 = vunpack.c.h.b16 %v4498
      %v4598 = vunpack.c.h.b16 %v4499
      %v4599 = vunpack.c.h.b16 %v4500
      %v4600 = vunpack.c.h.b16 %v4501
      %v4601 = vunpack.c.h.b16 %v4502
      %v4602 = vunpack.c.h.b16 %v4503
      %v4603 = vunpack.c.h.b16 %v4504
      %v4604 = vunpack.c.h.b16 %v4505
      %v4605 = vunpack.c.h.b16 %v4506
      %v4606 = vunpack.c.h.b16 %v4507
      %v4607 = vunpack.c.h.b16 %v4508
      %v4608 = vunpack.c.h.b16 %v4509
      %v4609 = vunpack.c.h.b16 %v4510
      %v4610 = vpack.c.b16 %v4545, %v4544
      %v4611 = vpack.c.b16 %v4547, %v4546
      %v4612 = vpack.c.b16 %v4549, %v4548
      %v4613 = vpack.c.b16 %v4551, %v4550
      %v4614 = vpack.c.b16 %v4553, %v4552
      %v4615 = vpack.c.b16 %v4555, %v4554
      %v4616 = vpack.c.b16 %v4557, %v4556
      %v4617 = vpack.c.b16 %v4559, %v4558
      %v4618 = vpack.c.b16 %v4561, %v4560
      %v4619 = vpack.c.b16 %v4563, %v4562
      %v4620 = vpack.c.b16 %v4565, %v4564
      %v4621 = vpack.c.b16 %v4567, %v4566
      %v4622 = vpack.c.b16 %v4569, %v4568
      %v4623 = vpack.c.b16 %v4571, %v4570
      %v4624 = vpack.c.b16 %v4573, %v4572
      %v4625 = vpack.c.b16 %v4575, %v4574
      %v4626 = vpack.c.b16 %v4576, %v4576
      %v4627 = vpack.c.b16 %v4578, %v4577
      %v4628 = vpack.c.b16 %v4580, %v4579
      %v4629 = vpack.c.b16 %v4582, %v4581
      %v4630 = vpack.c.b16 %v4584, %v4583
      %v4631 = vpack.c.b16 %v4586, %v4585
      %v4632 = vpack.c.b16 %v4588, %v4587
      %v4633 = vpack.c.b16 %v4590, %v4589
      %v4634 = vpack.c.b16 %v4592, %v4591
      %v4635 = vpack.c.b16 %v4594, %v4593
      %v4636 = vpack.c.b16 %v4596, %v4595
      %v4637 = vpack.c.b16 %v4598, %v4597
      %v4638 = vpack.c.b16 %v4600, %v4599
      %v4639 = vpack.c.b16 %v4602, %v4601
      %v4640 = vpack.c.b16 %v4604, %v4603
      %v4641 = vpack.c.b16 %v4606, %v4605
      %v4642 = vpack.c.b16 %v4608, %v4607
      %v4643 = vpack.c.b16 %v4609, %v4609
      %4678 = vst [vmem:[%s170] sm:$0xff] %v4610
      %4679 = vst [vmem:[%s170 + $0x8] sm:$0xff] %v4611
      %4680 = vst [vmem:[%s170 + $0x10] sm:$0xff] %v4612
      %4681 = vst [vmem:[%s170 + $0x18] sm:$0xff] %v4613
      %4682 = vst [vmem:[%s170 + $0x20] sm:$0xff] %v4614
      %4683 = vst [vmem:[%s170 + $0x28] sm:$0xff] %v4615
      %4684 = vst [vmem:[%s170 + $0x30] sm:$0xff] %v4616
      %4685 = vst [vmem:[%s170 + $0x38] sm:$0xff] %v4617
      %4686 = vst [vmem:[%s170 + $0x40] sm:$0xff] %v4618
      %4687 = vst [vmem:[%s170 + $0x48] sm:$0xff] %v4619
      %4688 = vst [vmem:[%s170 + $0x50] sm:$0xff] %v4620
      %4689 = vst [vmem:[%s170 + $0x58] sm:$0xff] %v4621
      %4690 = vst [vmem:[%s170 + $0x60] sm:$0xff] %v4622
      %4691 = vst [vmem:[%s170 + $0x68] sm:$0xff] %v4623
      %4692 = vst [vmem:[%s170 + $0x70] sm:$0xff] %v4624
      %4693 = vst [vmem:[%s170 + $0x78] sm:$0xff] %v4625
      %4694 = vst [vmem:[%s170 + $0x80] sm:$0xf] %v4626
      %4695 = vst [vmem:[%s170 + $0x84] sm:$0xff] %v4627
      %4696 = vst [vmem:[%s170 + $0x8c] sm:$0xff] %v4628
      %4697 = vst [vmem:[%s170 + $0x94] sm:$0xff] %v4629
      %4698 = vst [vmem:[%s170 + $0x9c] sm:$0xff] %v4630
      %4699 = vst [vmem:[%s170 + $0xa4] sm:$0xff] %v4631
      %4700 = vst [vmem:[%s170 + $0xac] sm:$0xff] %v4632
      %4701 = vst [vmem:[%s170 + $0xb4] sm:$0xff] %v4633
      %4702 = vst [vmem:[%s170 + $0xbc] sm:$0xff] %v4634
      %4703 = vst [vmem:[%s170 + $0xc4] sm:$0xff] %v4635
      %4704 = vst [vmem:[%s170 + $0xcc] sm:$0xff] %v4636
      %4705 = vst [vmem:[%s170 + $0xd4] sm:$0xff] %v4637
      %4706 = vst [vmem:[%s170 + $0xdc] sm:$0xff] %v4638
      %4707 = vst [vmem:[%s170 + $0xe4] sm:$0xff] %v4639
      %4708 = vst [vmem:[%s170 + $0xec] sm:$0xff] %v4640
      %4709 = vst [vmem:[%s170 + $0xf4] sm:$0xff] %v4641
      %4710 = vst [vmem:[%s170 + $0xfc] sm:$0xff] %v4642
      %4711 = vst [vmem:[%s170 + $0x104] sm:$0xf] %v4643
      %p4712 = scmp.lt.s32.totalorder %s14, 1
      %s4713 = scalar_select %p4712, %s14, 1
      %s4714 = smul.addr %s4713, 66
      %s4715 = smul.addr %s4714, 4
      %s4716 = scalar_lea.vmem %s3, %s4715
      // Predicated region
      $region33: #{simple_cnn_forward.3} parent=31 // pred_check
        %p4717 = pneg %p100
      $region34: #{simple_cnn_forward.3} parent=31 // pred_check_branch
        %4719 = sbr.rel (%p4717) target = $region36
      $region35: #{simple_cnn_forward.3} parent=31 // pred_region
        _
      $region36: #{simple_cnn_forward.3} parent=31 // pred_fallthru
        _
    $region32: #{simple_cnn_forward.3} parent=5 // pred_fallthru
      _
    %p4720 = scmp.le.s32.totalorder 2, %s9
    // Predicated region
    $region37: #{simple_cnn_forward.3} parent=5 // pred_check
      %p4721 = pneg %p4720
    $region38: #{simple_cnn_forward.3} parent=5 // pred_check_branch
      %4723 = sbr.rel (%p4721) target = $region40
    $region39: #{simple_cnn_forward.3} parent=5 // pred_region
      %s4724 = ssub.s32 %s9, 2
      // Predicated region
      $region41: #{simple_cnn_forward.3} parent=39 // pred_check
        %p4725 = pneg %p106
      $region42: #{simple_cnn_forward.3} parent=39 // pred_check_branch
        %4727 = sbr.rel (%p4725) target = $region44
      $region43: #{simple_cnn_forward.3} parent=39 // pred_region
        %p4728 = scmp.lt.s32.totalorder %s15, 1
        %s4729 = scalar_select %p4728, %s15, 1
        %s4730 = smul.addr %s4729, 66
        %s4731 = smul.addr %s4730, 4
        %s4732 = scalar_lea.vmem %s3, %s4731
      $region44: #{simple_cnn_forward.3} parent=39 // pred_fallthru
        _
    $region40: #{simple_cnn_forward.3} parent=5 // pred_fallthru
      _
  $region6: #{simple_cnn_forward.3} parent=0 // loop_footer
    %s13 = sadd.s32 1, %s9
  $region7: #{simple_cnn_forward.3} parent=0 // loop_footer_branch
    %8 = sbr.rel target = $region3
  $region8: #{simple_cnn_forward.3} parent=0 // loop_exit
    _

// kernel: simple_cnn_forward.4
$region0: #{simple_cnn_forward.4}
  #allocation0 [shape = 'u32[]', space=smem, size = 0x4, offset = 0x4, fixed_abs, tag = 'smem constant byte address 0x4 - core index']
  #allocation1 [shape = 'u32[144,128]{1,0:T(1,128)}', space=vmem, size = 0x12000, scoped, tag = 'internal scratch']
  %s0 = inlined_call_operand.vmem [shape: bf16[2,4,16,1224], index: 0, kind: input, shape index: {}]
  %s1 = inlined_call_operand.vmem [shape: bf16[128,256], index: 1, kind: input, shape index: {}]
  %s2 = inlined_call_operand.vmem [shape: f32[32,1], index: 2, kind: input, shape index: {}]
  %s3 = inlined_call_operand.vmem [shape: bf16[2,32,1152], index: 3, kind: output, shape index: {}]
  %s4 = sld [smem:[#allocation0]]
  $region45: #{simple_cnn_forward.4} parent=0
    _
  %s6 = ssub.s32 1, %s4
  %s7 = scalar_select 0, %s6, %s4
  loop: start=0, step=1, limit=4
  $region2: #{simple_cnn_forward.4} parent=0 // loop_pre_header
    _
  $region3: #{simple_cnn_forward.4} parent=0 // loop_header
    %s9 = sphi 0, %s13
    %p10 = scmp.ge.s32.totalorder %s9, 4
    %s19 = sphi 0, %s21
    %s22 = sphi 0, %s19
    %s23 = sphi 0, %s22
    %s39 = sphi 0, %s23
    %s43 = sphi 0, %s43
    %s45 = sphi 0, %s43
    %s46 = sphi 0, %s45
    %s60 = sphi 0, %s46
    %s64 = sphi 0, %s64
    %s66 = sphi 0, %s64
    %s67 = sphi 0, %s66
    %s81 = sphi 0, %s67
    %s87 = sphi 0, %s89
    %s90 = sphi 0, %s87
    %s91 = sphi 0, %s90
    %s107 = sphi 0, %s91
  $region4: #{simple_cnn_forward.4} parent=0 // loop_header_branch
    %12 = sbr.rel (%p10) target = $region8
  $region5: #{simple_cnn_forward.4} parent=0 // loop_body
    %s14 = ssub.s32 %s9, 1
    %s15 = ssub.s32 %s9, 2
    %s16 = sadd.s32 %s9, 1
    %s17 = ssub.s32 %s9, %s16
    %p18 = scmp.eq.s32.totalorder %s17, 0
    %s20 = sadd.s32 %s19, 1
    %s21 = scalar_select %p18, %s19, %s20
    %p24 = pneg %p18
    %p25 = scmp.eq.s32.totalorder %s9, 1
    %p26 = por %p24, %p25
    %p27 = scmp.ne.s32.totalorder %s19, %s22
    %p28 = scmp.eq.s32.totalorder %s9, 0
    %p29 = por %p27, %p28
    %p30 = scmp.ne.s32.totalorder %s19, %s22
    %p31 = scmp.eq.s32.totalorder %s14, 1
    %p32 = por %p30, %p31
    %p33 = scmp.ne.s32.totalorder %s22, %s23
    %p34 = scmp.eq.s32.totalorder %s14, 0
    %p35 = por %p33, %p34
    %p36 = scmp.ne.s32.totalorder %s22, %s23
    %p37 = scmp.eq.s32.totalorder %s15, 1
    %p38 = por %p36, %p37
    %p40 = scmp.ne.s32.totalorder %s23, %s39
    %p41 = scmp.eq.s32.totalorder %s15, 0
    %p42 = por %p40, %p41
    %s44 = sadd.s32 %s43, 1
    %p47 = scmp.eq.s32.totalorder %s9, 1
    %p48 = scmp.ne.s32.totalorder %s43, %s45
    %p49 = scmp.eq.s32.totalorder %s9, 0
    %p50 = por %p48, %p49
    %p51 = scmp.ne.s32.totalorder %s43, %s45
    %p52 = scmp.eq.s32.totalorder %s14, 1
    %p53 = por %p51, %p52
    %p54 = scmp.ne.s32.totalorder %s45, %s46
    %p55 = scmp.eq.s32.totalorder %s14, 0
    %p56 = por %p54, %p55
    %p57 = scmp.ne.s32.totalorder %s45, %s46
    %p58 = scmp.eq.s32.totalorder %s15, 1
    %p59 = por %p57, %p58
    %p61 = scmp.ne.s32.totalorder %s46, %s60
    %p62 = scmp.eq.s32.totalorder %s15, 0
    %p63 = por %p61, %p62
    %s65 = sadd.s32 %s64, 1
    %p68 = scmp.eq.s32.totalorder %s9, 1
    %p69 = scmp.ne.s32.totalorder %s64, %s66
    %p70 = scmp.eq.s32.totalorder %s9, 0
    %p71 = por %p69, %p70
    %p72 = scmp.ne.s32.totalorder %s64, %s66
    %p73 = scmp.eq.s32.totalorder %s14, 1
    %p74 = por %p72, %p73
    %p75 = scmp.ne.s32.totalorder %s66, %s67
    %p76 = scmp.eq.s32.totalorder %s14, 0
    %p77 = por %p75, %p76
    %p78 = scmp.ne.s32.totalorder %s66, %s67
    %p79 = scmp.eq.s32.totalorder %s15, 1
    %p80 = por %p78, %p79
    %p82 = scmp.ne.s32.totalorder %s67, %s81
    %p83 = scmp.eq.s32.totalorder %s15, 0
    %p84 = por %p82, %p83
    %s85 = ssub.s32 %s9, %s16
    %p86 = scmp.eq.s32.totalorder %s85, 0
    %s88 = sadd.s32 %s87, 1
    %s89 = scalar_select %p86, %s87, %s88
    %p92 = pneg %p86
    %p93 = scmp.eq.s32.totalorder %s9, 1
    %p94 = por %p92, %p93
    %p95 = scmp.ne.s32.totalorder %s87, %s90
    %p96 = scmp.eq.s32.totalorder %s9, 0
    %p97 = por %p95, %p96
    %p98 = scmp.ne.s32.totalorder %s87, %s90
    %p99 = scmp.eq.s32.totalorder %s14, 1
    %p100 = por %p98, %p99
    %p101 = scmp.ne.s32.totalorder %s90, %s91
    %p102 = scmp.eq.s32.totalorder %s14, 0
    %p103 = por %p101, %p102
    %p104 = scmp.ne.s32.totalorder %s90, %s91
    %p105 = scmp.eq.s32.totalorder %s15, 1
    %p106 = por %p104, %p105
    %p108 = scmp.ne.s32.totalorder %s91, %s107
    %p109 = scmp.eq.s32.totalorder %s15, 0
    %p110 = por %p108, %p109
    %p111 = scmp.le.s32.totalorder 1, %s9
    %p112 = scmp.lt.s32.totalorder %s9, 3
    %p113 = pnand %p111, %p112
    %p114 = pneg %p113
    // Predicated region
    $region9: #{simple_cnn_forward.4} parent=5 // pred_check
      _
    $region10: #{simple_cnn_forward.4} parent=5 // pred_check_branch
      %116 = sbr.rel (%p113) target = $region12
    $region11: #{simple_cnn_forward.4} parent=5 // pred_region
      %s117 = ssub.s32 %s9, 1
      // Predicated region
      $region13: #{simple_cnn_forward.4} parent=11 // pred_check
        %p118 = pneg %p56
      $region14: #{simple_cnn_forward.4} parent=11 // pred_check_branch
        %120 = sbr.rel (%p118) target = $region16
      $region15: #{simple_cnn_forward.4} parent=11 // pred_region
        _
      $region16: #{simple_cnn_forward.4} parent=11 // pred_fallthru
        _
      // Predicated region
      $region17: #{simple_cnn_forward.4} parent=11 // pred_check
        %p121 = pneg %p77
      $region18: #{simple_cnn_forward.4} parent=11 // pred_check_branch
        %123 = sbr.rel (%p121) target = $region20
      $region19: #{simple_cnn_forward.4} parent=11 // pred_region
        _
      $region20: #{simple_cnn_forward.4} parent=11 // pred_fallthru
        _
    $region12: #{simple_cnn_forward.4} parent=5 // pred_fallthru
      _
    %p124 = scmp.lt.s32.totalorder %s9, 2
    // Predicated region
    $region21: #{simple_cnn_forward.4} parent=5 // pred_check
      %p125 = pneg %p124
    $region22: #{simple_cnn_forward.4} parent=5 // pred_check_branch
      %127 = sbr.rel (%p125) target = $region24
    $region23: #{simple_cnn_forward.4} parent=5 // pred_region
      // Predicated region
      $region25: #{simple_cnn_forward.4} parent=23 // pred_check
        %p128 = pneg %p29
      $region26: #{simple_cnn_forward.4} parent=23 // pred_check_branch
        %130 = sbr.rel (%p128) target = $region28
      $region27: #{simple_cnn_forward.4} parent=23 // pred_region
        %p131 = scmp.lt.s32.totalorder %s9, 1
        %s132 = scalar_select %p131, %s9, 1
        %s133 = smul.addr %s132, 80
        %s134 = smul.addr %s133, 4
        %s135 = scalar_lea.vmem %s0, %s134
      $region28: #{simple_cnn_forward.4} parent=23 // pred_fallthru
        _
    $region24: #{simple_cnn_forward.4} parent=5 // pred_fallthru
      _
    %p136 = scmp.le.s32.totalorder 1, %s9
    %p137 = scmp.lt.s32.totalorder %s9, 3
    %p138 = pnand %p136, %p137
    %p139 = pneg %p138
    // Predicated region
    $region29: #{simple_cnn_forward.4} parent=5 // pred_check
      _
    $region30: #{simple_cnn_forward.4} parent=5 // pred_check_branch
      %141 = sbr.rel (%p138) target = $region32
    $region31: #{simple_cnn_forward.4} parent=5 // pred_region
      %s142 = ssub.s32 %s9, 1
      %p143 = scmp.lt.s32.totalorder %s14, 1
      %s144 = scalar_select %p143, %s14, 1
      %s145 = smul.addr %s144, 80
      %s146 = smul.addr %s145, 4
      %s147 = scalar_lea.vmem %s0, %s146
      %p148 = pneg %p35
      %p149 = pneg %p32
      %p150 = pneg %p56
      %p151 = pneg %p53
      %p152 = pneg %p77
      %p153 = pneg %p74
      %p154 = pneg %p103
      %p155 = pneg %p100
      %p156 = scmp.lt.s32.totalorder %s14, 1
      %s157 = scalar_select %p156, %s14, 1
      %s158 = smul.addr %s157, 36
      %s159 = smul.addr %s158, 4
      %s160 = scalar_lea.vmem %s3, %s159
      %p161 = scmp.lt.s32.totalorder %s14, 1
      %s162 = scalar_select %p161, %s14, 1
      %s163 = smul.addr %s162, 80
      %s164 = smul.addr %s163, 4
      %s165 = scalar_lea.vmem %s0, %s164
      %p166 = scmp.lt.s32.totalorder %s14, 1
      %s167 = scalar_select %p166, %s14, 1
      %s168 = smul.addr %s167, 36
      %s169 = smul.addr %s168, 4
      %s170 = scalar_lea.vmem %s3, %s169
      %v172 = vld [vmem:[%s165] sm:$0xff]
      %v173 = vld [vmem:[%s165 + $0x8] sm:$0xff]
      %v174 = vld [vmem:[%s165 + $0x10] sm:$0xff]
      %v175 = vld [vmem:[%s165 + $0x18] sm:$0xff]
      %v176 = vld [vmem:[%s165 + $0x20] sm:$0xf]
      %v177 = vld [vmem:[%s165 + $0x28] sm:$0xff]
      %v178 = vld [vmem:[%s165 + $0x30] sm:$0xff]
      %v179 = vld [vmem:[%s165 + $0x38] sm:$0xff]
      %v180 = vld [vmem:[%s165 + $0x40] sm:$0xff]
      %v181 = vld [vmem:[%s165 + $0x48] sm:$0xf]
      %s182 = scalar_lea.vmem %s165, 80
      %v183 = vld [vmem:[%s182] sm:$0xff]
      %v184 = vld [vmem:[%s182 + $0x8] sm:$0xff]
      %v185 = vld [vmem:[%s182 + $0x10] sm:$0xff]
      %v186 = vld [vmem:[%s182 + $0x18] sm:$0xff]
      %v187 = vld [vmem:[%s182 + $0x20] sm:$0xf]
      %v188 = vld [vmem:[%s182 + $0x28] sm:$0xff]
      %v189 = vld [vmem:[%s182 + $0x30] sm:$0xff]
      %v190 = vld [vmem:[%s182 + $0x38] sm:$0xff]
      %v191 = vld [vmem:[%s182 + $0x40] sm:$0xff]
      %v192 = vld [vmem:[%s182 + $0x48] sm:$0xf]
      %v193 = vld [vmem:[%s165 + $0x20] sm:$0xff]
      %v194 = vld [vmem:[%s165 + $0x48] sm:$0xff]
      %v195 = vld [vmem:[%s182 + $0x20] sm:$0xff]
      %v196 = vld [vmem:[%s182 + $0x48] sm:$0xff]
      %s197 = scalar_lea.vmem %s165, 160
      %v198 = vld [vmem:[%s197] sm:$0xff]
      %v199 = vld [vmem:[%s197 + $0x8] sm:$0xff]
      %v200 = vld [vmem:[%s197 + $0x10] sm:$0xff]
      %v201 = vld [vmem:[%s197 + $0x18] sm:$0xff]
      %v202 = vld [vmem:[%s197 + $0x20] sm:$0xf]
      %v203 = vld [vmem:[%s197 + $0x28] sm:$0xff]
      %v204 = vld [vmem:[%s197 + $0x30] sm:$0xff]
      %v205 = vld [vmem:[%s197 + $0x38] sm:$0xff]
      %v206 = vld [vmem:[%s197 + $0x40] sm:$0xff]
      %v207 = vld [vmem:[%s197 + $0x48] sm:$0xf]
      %s208 = scalar_lea.vmem %s165, 240
      %v209 = vld [vmem:[%s208] sm:$0xff]
      %v210 = vld [vmem:[%s208 + $0x8] sm:$0xff]
      %v211 = vld [vmem:[%s208 + $0x10] sm:$0xff]
      %v212 = vld [vmem:[%s208 + $0x18] sm:$0xff]
      %v213 = vld [vmem:[%s208 + $0x20] sm:$0xf]
      %v214 = vld [vmem:[%s208 + $0x28] sm:$0xff]
      %v215 = vld [vmem:[%s208 + $0x30] sm:$0xff]
      %v216 = vld [vmem:[%s208 + $0x38] sm:$0xff]
      %v217 = vld [vmem:[%s208 + $0x40] sm:$0xff]
      %v218 = vld [vmem:[%s208 + $0x48] sm:$0xf]
      %v219 = vld [vmem:[%s197 + $0x20] sm:$0xff]
      %v220 = vld [vmem:[%s197 + $0x48] sm:$0xff]
      %v221 = vld [vmem:[%s208 + $0x20] sm:$0xff]
      %v222 = vld [vmem:[%s208 + $0x48] sm:$0xff]
      %v233 = vunpack.c.l.b16 %v172
      %v234 = vunpack.c.h.b16 %v172
      %v235 = vunpack.c.l.b16 %v173
      %v236 = vunpack.c.h.b16 %v173
      %v237 = vunpack.c.l.b16 %v174
      %v238 = vunpack.c.h.b16 %v174
      %v239 = vunpack.c.l.b16 %v175
      %v240 = vunpack.c.h.b16 %v175
      %v241 = vunpack.c.l.b16 %v176
      %v242 = vunpack.c.l.b16 %v177
      %v243 = vunpack.c.h.b16 %v177
      %v244 = vunpack.c.l.b16 %v178
      %v245 = vunpack.c.h.b16 %v178
      %v246 = vunpack.c.l.b16 %v179
      %v247 = vunpack.c.h.b16 %v179
      %v248 = vunpack.c.l.b16 %v180
      %v249 = vunpack.c.h.b16 %v180
      %v250 = vunpack.c.l.b16 %v181
      %v251 = vpack.c.b16 %v242, %v233
      %v252 = vpack.c.b16 %v243, %v234
      %v253 = vpack.c.b16 %v244, %v235
      %v254 = vpack.c.b16 %v245, %v236
      %v255 = vpack.c.b16 %v246, %v237
      %v256 = vpack.c.b16 %v247, %v238
      %v257 = vpack.c.b16 %v248, %v239
      %v258 = vpack.c.b16 %v249, %v240
      %v259 = vpack.c.b16 %v250, %v241
      %v279 = vunpack.c.l.b16 %v183
      %v280 = vunpack.c.h.b16 %v183
      %v281 = vunpack.c.l.b16 %v184
      %v282 = vunpack.c.h.b16 %v184
      %v283 = vunpack.c.l.b16 %v185
      %v284 = vunpack.c.h.b16 %v185
      %v285 = vunpack.c.l.b16 %v186
      %v286 = vunpack.c.h.b16 %v186
      %v287 = vunpack.c.l.b16 %v187
      %v288 = vunpack.c.l.b16 %v188
      %v289 = vunpack.c.h.b16 %v188
      %v290 = vunpack.c.l.b16 %v189
      %v291 = vunpack.c.h.b16 %v189
      %v292 = vunpack.c.l.b16 %v190
      %v293 = vunpack.c.h.b16 %v190
      %v294 = vunpack.c.l.b16 %v191
      %v295 = vunpack.c.h.b16 %v191
      %v296 = vunpack.c.l.b16 %v192
      %v297 = vpack.c.b16 %v288, %v279
      %v298 = vpack.c.b16 %v289, %v280
      %v299 = vpack.c.b16 %v290, %v281
      %v300 = vpack.c.b16 %v291, %v282
      %v301 = vpack.c.b16 %v292, %v283
      %v302 = vpack.c.b16 %v293, %v284
      %v303 = vpack.c.b16 %v294, %v285
      %v304 = vpack.c.b16 %v295, %v286
      %v305 = vpack.c.b16 %v296, %v287
      %v317 = vunpack.c.l.b16 %v193
      %v318 = vunpack.c.h.b16 %v193
      %v319 = vunpack.c.l.b16 %v194
      %v320 = vunpack.c.h.b16 %v194
      %v321 = vpack.c.b16 %v319, %v317
      %v322 = vpack.c.b16 %v320, %v318
      %323 = vrot.lane.b32.xlu0 %v251, 127
      %v324 = vpop.permute.xlu0 %323
      %325 = vrot.lane.b32.xlu0 %v252, 127
      %v326 = vpop.permute.xlu0 %325
      %327 = vrot.lane.b32.xlu0 %v253, 127
      %v328 = vpop.permute.xlu0 %327
      %329 = vrot.lane.b32.xlu0 %v254, 127
      %v330 = vpop.permute.xlu0 %329
      %331 = vrot.lane.b32.xlu0 %v255, 127
      %v332 = vpop.permute.xlu0 %331
      %333 = vrot.lane.b32.xlu0 %v256, 127
      %v334 = vpop.permute.xlu0 %333
      %335 = vrot.lane.b32.xlu0 %v257, 127
      %v336 = vpop.permute.xlu0 %335
      %337 = vrot.lane.b32.xlu0 %v258, 127
      %v338 = vpop.permute.xlu0 %337
      %339 = vrot.lane.b32.xlu0 %v321, 127
      %v340 = vpop.permute.xlu0 %339
      %341 = vrot.lane.b32.xlu0 %v322, 127
      %v342 = vpop.permute.xlu0 %341
      %vm343 = vcmask 1039360
      %v344 = vsel %vm343, %v324, %v326
      %v345 = vsel %vm343, %v326, %v328
      %v346 = vsel %vm343, %v328, %v330
      %v347 = vsel %vm343, %v330, %v332
      %v348 = vsel %vm343, %v332, %v334
      %v349 = vsel %vm343, %v334, %v336
      %v350 = vsel %vm343, %v336, %v338
      %v351 = vsel %vm343, %v338, %v340
      %v352 = vsel %vm343, %v340, %v342
      %v364 = vunpack.c.l.b16 %v195
      %v365 = vunpack.c.h.b16 %v195
      %v366 = vunpack.c.l.b16 %v196
      %v367 = vunpack.c.h.b16 %v196
      %v368 = vpack.c.b16 %v366, %v364
      %v369 = vpack.c.b16 %v367, %v365
      %370 = vrot.lane.b32.xlu0 %v297, 127
      %v371 = vpop.permute.xlu0 %370
      %372 = vrot.lane.b32.xlu0 %v298, 127
      %v373 = vpop.permute.xlu0 %372
      %374 = vrot.lane.b32.xlu0 %v299, 127
      %v375 = vpop.permute.xlu0 %374
      %376 = vrot.lane.b32.xlu0 %v300, 127
      %v377 = vpop.permute.xlu0 %376
      %378 = vrot.lane.b32.xlu0 %v301, 127
      %v379 = vpop.permute.xlu0 %378
      %380 = vrot.lane.b32.xlu0 %v302, 127
      %v381 = vpop.permute.xlu0 %380
      %382 = vrot.lane.b32.xlu0 %v303, 127
      %v383 = vpop.permute.xlu0 %382
      %384 = vrot.lane.b32.xlu0 %v304, 127
      %v385 = vpop.permute.xlu0 %384
      %386 = vrot.lane.b32.xlu0 %v368, 127
      %v387 = vpop.permute.xlu0 %386
      %388 = vrot.lane.b32.xlu0 %v369, 127
      %v389 = vpop.permute.xlu0 %388
      %v390 = vsel %vm343, %v371, %v373
      %v391 = vsel %vm343, %v373, %v375
      %v392 = vsel %vm343, %v375, %v377
      %v393 = vsel %vm343, %v377, %v379
      %v394 = vsel %vm343, %v379, %v381
      %v395 = vsel %vm343, %v381, %v383
      %v396 = vsel %vm343, %v383, %v385
      %v397 = vsel %vm343, %v385, %v387
      %v398 = vsel %vm343, %v387, %v389
      %v418 = vunpack.c.l.b16 %v198
      %v419 = vunpack.c.h.b16 %v198
      %v420 = vunpack.c.l.b16 %v199
      %v421 = vunpack.c.h.b16 %v199
      %v422 = vunpack.c.l.b16 %v200
      %v423 = vunpack.c.h.b16 %v200
      %v424 = vunpack.c.l.b16 %v201
      %v425 = vunpack.c.h.b16 %v201
      %v426 = vunpack.c.l.b16 %v202
      %v427 = vunpack.c.l.b16 %v203
      %v428 = vunpack.c.h.b16 %v203
      %v429 = vunpack.c.l.b16 %v204
      %v430 = vunpack.c.h.b16 %v204
      %v431 = vunpack.c.l.b16 %v205
      %v432 = vunpack.c.h.b16 %v205
      %v433 = vunpack.c.l.b16 %v206
      %v434 = vunpack.c.h.b16 %v206
      %v435 = vunpack.c.l.b16 %v207
      %v436 = vpack.c.b16 %v427, %v418
      %v437 = vpack.c.b16 %v428, %v419
      %v438 = vpack.c.b16 %v429, %v420
      %v439 = vpack.c.b16 %v430, %v421
      %v440 = vpack.c.b16 %v431, %v422
      %v441 = vpack.c.b16 %v432, %v423
      %v442 = vpack.c.b16 %v433, %v424
      %v443 = vpack.c.b16 %v434, %v425
      %v444 = vpack.c.b16 %v435, %v426
      %v464 = vunpack.c.l.b16 %v209
      %v465 = vunpack.c.h.b16 %v209
      %v466 = vunpack.c.l.b16 %v210
      %v467 = vunpack.c.h.b16 %v210
      %v468 = vunpack.c.l.b16 %v211
      %v469 = vunpack.c.h.b16 %v211
      %v470 = vunpack.c.l.b16 %v212
      %v471 = vunpack.c.h.b16 %v212
      %v472 = vunpack.c.l.b16 %v213
      %v473 = vunpack.c.l.b16 %v214
      %v474 = vunpack.c.h.b16 %v214
      %v475 = vunpack.c.l.b16 %v215
      %v476 = vunpack.c.h.b16 %v215
      %v477 = vunpack.c.l.b16 %v216
      %v478 = vunpack.c.h.b16 %v216
      %v479 = vunpack.c.l.b16 %v217
      %v480 = vunpack.c.h.b16 %v217
      %v481 = vunpack.c.l.b16 %v218
      %v482 = vpack.c.b16 %v473, %v464
      %v483 = vpack.c.b16 %v474, %v465
      %v484 = vpack.c.b16 %v475, %v466
      %v485 = vpack.c.b16 %v476, %v467
      %v486 = vpack.c.b16 %v477, %v468
      %v487 = vpack.c.b16 %v478, %v469
      %v488 = vpack.c.b16 %v479, %v470
      %v489 = vpack.c.b16 %v480, %v471
      %v490 = vpack.c.b16 %v481, %v472
      %v502 = vunpack.c.l.b16 %v219
      %v503 = vunpack.c.h.b16 %v219
      %v504 = vunpack.c.l.b16 %v220
      %v505 = vunpack.c.h.b16 %v220
      %v506 = vpack.c.b16 %v504, %v502
      %v507 = vpack.c.b16 %v505, %v503
      %508 = vrot.lane.b32.xlu0 %v436, 127
      %v509 = vpop.permute.xlu0 %508
      %510 = vrot.lane.b32.xlu0 %v437, 127
      %v511 = vpop.permute.xlu0 %510
      %512 = vrot.lane.b32.xlu0 %v438, 127
      %v513 = vpop.permute.xlu0 %512
      %514 = vrot.lane.b32.xlu0 %v439, 127
      %v515 = vpop.permute.xlu0 %514
      %516 = vrot.lane.b32.xlu0 %v440, 127
      %v517 = vpop.permute.xlu0 %516
      %518 = vrot.lane.b32.xlu0 %v441, 127
      %v519 = vpop.permute.xlu0 %518
      %520 = vrot.lane.b32.xlu0 %v442, 127
      %v521 = vpop.permute.xlu0 %520
      %522 = vrot.lane.b32.xlu0 %v443, 127
      %v523 = vpop.permute.xlu0 %522
      %524 = vrot.lane.b32.xlu0 %v506, 127
      %v525 = vpop.permute.xlu0 %524
      %526 = vrot.lane.b32.xlu0 %v507, 127
      %v527 = vpop.permute.xlu0 %526
      %v528 = vsel %vm343, %v509, %v511
      %v529 = vsel %vm343, %v511, %v513
      %v530 = vsel %vm343, %v513, %v515
      %v531 = vsel %vm343, %v515, %v517
      %v532 = vsel %vm343, %v517, %v519
      %v533 = vsel %vm343, %v519, %v521
      %v534 = vsel %vm343, %v521, %v523
      %v535 = vsel %vm343, %v523, %v525
      %v536 = vsel %vm343, %v525, %v527
      %v548 = vunpack.c.l.b16 %v221
      %v549 = vunpack.c.h.b16 %v221
      %v550 = vunpack.c.l.b16 %v222
      %v551 = vunpack.c.h.b16 %v222
      %v552 = vpack.c.b16 %v550, %v548
      %v553 = vpack.c.b16 %v551, %v549
      %554 = vrot.lane.b32.xlu0 %v482, 127
      %v555 = vpop.permute.xlu0 %554
      %556 = vrot.lane.b32.xlu0 %v483, 127
      %v557 = vpop.permute.xlu0 %556
      %558 = vrot.lane.b32.xlu0 %v484, 127
      %v559 = vpop.permute.xlu0 %558
      %560 = vrot.lane.b32.xlu0 %v485, 127
      %v561 = vpop.permute.xlu0 %560
      %562 = vrot.lane.b32.xlu0 %v486, 127
      %v563 = vpop.permute.xlu0 %562
      %564 = vrot.lane.b32.xlu0 %v487, 127
      %v565 = vpop.permute.xlu0 %564
      %566 = vrot.lane.b32.xlu0 %v488, 127
      %v567 = vpop.permute.xlu0 %566
      %568 = vrot.lane.b32.xlu0 %v489, 127
      %v569 = vpop.permute.xlu0 %568
      %570 = vrot.lane.b32.xlu0 %v552, 127
      %v571 = vpop.permute.xlu0 %570
      %572 = vrot.lane.b32.xlu0 %v553, 127
      %v573 = vpop.permute.xlu0 %572
      %v574 = vsel %vm343, %v555, %v557
      %v575 = vsel %vm343, %v557, %v559
      %v576 = vsel %vm343, %v559, %v561
      %v577 = vsel %vm343, %v561, %v563
      %v578 = vsel %vm343, %v563, %v565
      %v579 = vsel %vm343, %v565, %v567
      %v580 = vsel %vm343, %v567, %v569
      %v581 = vsel %vm343, %v569, %v571
      %v582 = vsel %vm343, %v571, %v573
      %592 = vrot.lane.b32.xlu0 %v251, 92
      %v593 = vpop.permute.xlu0 %592
      %594 = vrot.lane.b32.xlu0 %v252, 92
      %v595 = vpop.permute.xlu0 %594
      %596 = vrot.lane.b32.xlu0 %v253, 92
      %v597 = vpop.permute.xlu0 %596
      %598 = vrot.lane.b32.xlu0 %v254, 92
      %v599 = vpop.permute.xlu0 %598
      %600 = vrot.lane.b32.xlu0 %v255, 92
      %v601 = vpop.permute.xlu0 %600
      %602 = vrot.lane.b32.xlu0 %v256, 92
      %v603 = vpop.permute.xlu0 %602
      %604 = vrot.lane.b32.xlu0 %v257, 92
      %v605 = vpop.permute.xlu0 %604
      %606 = vrot.lane.b32.xlu0 %v258, 92
      %v607 = vpop.permute.xlu0 %606
      %608 = vrot.lane.b32.xlu0 %v321, 92
      %v609 = vpop.permute.xlu0 %608
      %610 = vrot.lane.b32.xlu0 %v322, 92
      %v611 = vpop.permute.xlu0 %610
      %vm612 = vcmask 752640
      %v613 = vsel %vm612, %v593, %v595
      %v614 = vsel %vm612, %v595, %v597
      %v615 = vsel %vm612, %v597, %v599
      %v616 = vsel %vm612, %v599, %v601
      %v617 = vsel %vm612, %v601, %v603
      %v618 = vsel %vm612, %v603, %v605
      %v619 = vsel %vm612, %v605, %v607
      %v620 = vsel %vm612, %v607, %v609
      %v621 = vsel %vm612, %v609, %v611
      %631 = vrot.lane.b32.xlu0 %v297, 92
      %v632 = vpop.permute.xlu0 %631
      %633 = vrot.lane.b32.xlu0 %v298, 92
      %v634 = vpop.permute.xlu0 %633
      %635 = vrot.lane.b32.xlu0 %v299, 92
      %v636 = vpop.permute.xlu0 %635
      %637 = vrot.lane.b32.xlu0 %v300, 92
      %v638 = vpop.permute.xlu0 %637
      %639 = vrot.lane.b32.xlu0 %v301, 92
      %v640 = vpop.permute.xlu0 %639
      %641 = vrot.lane.b32.xlu0 %v302, 92
      %v642 = vpop.permute.xlu0 %641
      %643 = vrot.lane.b32.xlu0 %v303, 92
      %v644 = vpop.permute.xlu0 %643
      %645 = vrot.lane.b32.xlu0 %v304, 92
      %v646 = vpop.permute.xlu0 %645
      %647 = vrot.lane.b32.xlu0 %v368, 92
      %v648 = vpop.permute.xlu0 %647
      %649 = vrot.lane.b32.xlu0 %v369, 92
      %v650 = vpop.permute.xlu0 %649
      %v651 = vsel %vm612, %v632, %v634
      %v652 = vsel %vm612, %v634, %v636
      %v653 = vsel %vm612, %v636, %v638
      %v654 = vsel %vm612, %v638, %v640
      %v655 = vsel %vm612, %v640, %v642
      %v656 = vsel %vm612, %v642, %v644
      %v657 = vsel %vm612, %v644, %v646
      %v658 = vsel %vm612, %v646, %v648
      %v659 = vsel %vm612, %v648, %v650
      %669 = vrot.lane.b32.xlu0 %v251, 91
      %v670 = vpop.permute.xlu0 %669
      %671 = vrot.lane.b32.xlu0 %v252, 91
      %v672 = vpop.permute.xlu0 %671
      %673 = vrot.lane.b32.xlu0 %v253, 91
      %v674 = vpop.permute.xlu0 %673
      %675 = vrot.lane.b32.xlu0 %v254, 91
      %v676 = vpop.permute.xlu0 %675
      %677 = vrot.lane.b32.xlu0 %v255, 91
      %v678 = vpop.permute.xlu0 %677
      %679 = vrot.lane.b32.xlu0 %v256, 91
      %v680 = vpop.permute.xlu0 %679
      %681 = vrot.lane.b32.xlu0 %v257, 91
      %v682 = vpop.permute.xlu0 %681
      %683 = vrot.lane.b32.xlu0 %v258, 91
      %v684 = vpop.permute.xlu0 %683
      %685 = vrot.lane.b32.xlu0 %v321, 91
      %v686 = vpop.permute.xlu0 %685
      %687 = vrot.lane.b32.xlu0 %v322, 91
      %v688 = vpop.permute.xlu0 %687
      %vm689 = vcmask 744448
      %v690 = vsel %vm689, %v670, %v672
      %v691 = vsel %vm689, %v672, %v674
      %v692 = vsel %vm689, %v674, %v676
      %v693 = vsel %vm689, %v676, %v678
      %v694 = vsel %vm689, %v678, %v680
      %v695 = vsel %vm689, %v680, %v682
      %v696 = vsel %vm689, %v682, %v684
      %v697 = vsel %vm689, %v684, %v686
      %v698 = vsel %vm689, %v686, %v688
      %708 = vrot.lane.b32.xlu0 %v297, 91
      %v709 = vpop.permute.xlu0 %708
      %710 = vrot.lane.b32.xlu0 %v298, 91
      %v711 = vpop.permute.xlu0 %710
      %712 = vrot.lane.b32.xlu0 %v299, 91
      %v713 = vpop.permute.xlu0 %712
      %714 = vrot.lane.b32.xlu0 %v300, 91
      %v715 = vpop.permute.xlu0 %714
      %716 = vrot.lane.b32.xlu0 %v301, 91
      %v717 = vpop.permute.xlu0 %716
      %718 = vrot.lane.b32.xlu0 %v302, 91
      %v719 = vpop.permute.xlu0 %718
      %720 = vrot.lane.b32.xlu0 %v303, 91
      %v721 = vpop.permute.xlu0 %720
      %722 = vrot.lane.b32.xlu0 %v304, 91
      %v723 = vpop.permute.xlu0 %722
      %724 = vrot.lane.b32.xlu0 %v368, 91
      %v725 = vpop.permute.xlu0 %724
      %726 = vrot.lane.b32.xlu0 %v369, 91
      %v727 = vpop.permute.xlu0 %726
      %v728 = vsel %vm689, %v709, %v711
      %v729 = vsel %vm689, %v711, %v713
      %v730 = vsel %vm689, %v713, %v715
      %v731 = vsel %vm689, %v715, %v717
      %v732 = vsel %vm689, %v717, %v719
      %v733 = vsel %vm689, %v719, %v721
      %v734 = vsel %vm689, %v721, %v723
      %v735 = vsel %vm689, %v723, %v725
      %v736 = vsel %vm689, %v725, %v727
      %746 = vrot.lane.b32.xlu0 %v436, 92
      %v747 = vpop.permute.xlu0 %746
      %748 = vrot.lane.b32.xlu0 %v437, 92
      %v749 = vpop.permute.xlu0 %748
      %750 = vrot.lane.b32.xlu0 %v438, 92
      %v751 = vpop.permute.xlu0 %750
      %752 = vrot.lane.b32.xlu0 %v439, 92
      %v753 = vpop.permute.xlu0 %752
      %754 = vrot.lane.b32.xlu0 %v440, 92
      %v755 = vpop.permute.xlu0 %754
      %756 = vrot.lane.b32.xlu0 %v441, 92
      %v757 = vpop.permute.xlu0 %756
      %758 = vrot.lane.b32.xlu0 %v442, 92
      %v759 = vpop.permute.xlu0 %758
      %760 = vrot.lane.b32.xlu0 %v443, 92
      %v761 = vpop.permute.xlu0 %760
      %762 = vrot.lane.b32.xlu0 %v506, 92
      %v763 = vpop.permute.xlu0 %762
      %764 = vrot.lane.b32.xlu0 %v507, 92
      %v765 = vpop.permute.xlu0 %764
      %v766 = vsel %vm612, %v747, %v749
      %v767 = vsel %vm612, %v749, %v751
      %v768 = vsel %vm612, %v751, %v753
      %v769 = vsel %vm612, %v753, %v755
      %v770 = vsel %vm612, %v755, %v757
      %v771 = vsel %vm612, %v757, %v759
      %v772 = vsel %vm612, %v759, %v761
      %v773 = vsel %vm612, %v761, %v763
      %v774 = vsel %vm612, %v763, %v765
      %784 = vrot.lane.b32.xlu0 %v482, 92
      %v785 = vpop.permute.xlu0 %784
      %786 = vrot.lane.b32.xlu0 %v483, 92
      %v787 = vpop.permute.xlu0 %786
      %788 = vrot.lane.b32.xlu0 %v484, 92
      %v789 = vpop.permute.xlu0 %788
      %790 = vrot.lane.b32.xlu0 %v485, 92
      %v791 = vpop.permute.xlu0 %790
      %792 = vrot.lane.b32.xlu0 %v486, 92
      %v793 = vpop.permute.xlu0 %792
      %794 = vrot.lane.b32.xlu0 %v487, 92
      %v795 = vpop.permute.xlu0 %794
      %796 = vrot.lane.b32.xlu0 %v488, 92
      %v797 = vpop.permute.xlu0 %796
      %798 = vrot.lane.b32.xlu0 %v489, 92
      %v799 = vpop.permute.xlu0 %798
      %800 = vrot.lane.b32.xlu0 %v552, 92
      %v801 = vpop.permute.xlu0 %800
      %802 = vrot.lane.b32.xlu0 %v553, 92
      %v803 = vpop.permute.xlu0 %802
      %v804 = vsel %vm612, %v785, %v787
      %v805 = vsel %vm612, %v787, %v789
      %v806 = vsel %vm612, %v789, %v791
      %v807 = vsel %vm612, %v791, %v793
      %v808 = vsel %vm612, %v793, %v795
      %v809 = vsel %vm612, %v795, %v797
      %v810 = vsel %vm612, %v797, %v799
      %v811 = vsel %vm612, %v799, %v801
      %v812 = vsel %vm612, %v801, %v803
      %822 = vrot.lane.b32.xlu0 %v436, 91
      %v823 = vpop.permute.xlu0 %822
      %824 = vrot.lane.b32.xlu0 %v437, 91
      %v825 = vpop.permute.xlu0 %824
      %826 = vrot.lane.b32.xlu0 %v438, 91
      %v827 = vpop.permute.xlu0 %826
      %828 = vrot.lane.b32.xlu0 %v439, 91
      %v829 = vpop.permute.xlu0 %828
      %830 = vrot.lane.b32.xlu0 %v440, 91
      %v831 = vpop.permute.xlu0 %830
      %832 = vrot.lane.b32.xlu0 %v441, 91
      %v833 = vpop.permute.xlu0 %832
      %834 = vrot.lane.b32.xlu0 %v442, 91
      %v835 = vpop.permute.xlu0 %834
      %836 = vrot.lane.b32.xlu0 %v443, 91
      %v837 = vpop.permute.xlu0 %836
      %838 = vrot.lane.b32.xlu0 %v506, 91
      %v839 = vpop.permute.xlu0 %838
      %840 = vrot.lane.b32.xlu0 %v507, 91
      %v841 = vpop.permute.xlu0 %840
      %v842 = vsel %vm689, %v823, %v825
      %v843 = vsel %vm689, %v825, %v827
      %v844 = vsel %vm689, %v827, %v829
      %v845 = vsel %vm689, %v829, %v831
      %v846 = vsel %vm689, %v831, %v833
      %v847 = vsel %vm689, %v833, %v835
      %v848 = vsel %vm689, %v835, %v837
      %v849 = vsel %vm689, %v837, %v839
      %v850 = vsel %vm689, %v839, %v841
      %860 = vrot.lane.b32.xlu0 %v482, 91
      %v861 = vpop.permute.xlu0 %860
      %862 = vrot.lane.b32.xlu0 %v483, 91
      %v863 = vpop.permute.xlu0 %862
      %864 = vrot.lane.b32.xlu0 %v484, 91
      %v865 = vpop.permute.xlu0 %864
      %866 = vrot.lane.b32.xlu0 %v485, 91
      %v867 = vpop.permute.xlu0 %866
      %868 = vrot.lane.b32.xlu0 %v486, 91
      %v869 = vpop.permute.xlu0 %868
      %870 = vrot.lane.b32.xlu0 %v487, 91
      %v871 = vpop.permute.xlu0 %870
      %872 = vrot.lane.b32.xlu0 %v488, 91
      %v873 = vpop.permute.xlu0 %872
      %874 = vrot.lane.b32.xlu0 %v489, 91
      %v875 = vpop.permute.xlu0 %874
      %876 = vrot.lane.b32.xlu0 %v552, 91
      %v877 = vpop.permute.xlu0 %876
      %878 = vrot.lane.b32.xlu0 %v553, 91
      %v879 = vpop.permute.xlu0 %878
      %v880 = vsel %vm689, %v861, %v863
      %v881 = vsel %vm689, %v863, %v865
      %v882 = vsel %vm689, %v865, %v867
      %v883 = vsel %vm689, %v867, %v869
      %v884 = vsel %vm689, %v869, %v871
      %v885 = vsel %vm689, %v871, %v873
      %v886 = vsel %vm689, %v873, %v875
      %v887 = vsel %vm689, %v875, %v877
      %v888 = vsel %vm689, %v877, %v879
      %v898 = vld [vmem:[%s1] sm:$0xff]
      %v899 = vld [vmem:[%s1 + $0x8] sm:$0xff]
      %v900 = vld [vmem:[%s1 + $0x10] sm:$0xff]
      %v901 = vld [vmem:[%s1 + $0x18] sm:$0xff]
      %v902 = vld [vmem:[%s1 + $0x20] sm:$0xff]
      %v903 = vld [vmem:[%s1 + $0x28] sm:$0xff]
      %v904 = vld [vmem:[%s1 + $0x30] sm:$0xff]
      %v905 = vld [vmem:[%s1 + $0x38] sm:$0xff]
      %v906 = vld [vmem:[%s1 + $0x40] sm:$0xff]
      %v907 = vld [vmem:[%s1 + $0x48] sm:$0xff]
      %v908 = vld [vmem:[%s1 + $0x50] sm:$0xff]
      %v909 = vld [vmem:[%s1 + $0x58] sm:$0xff]
      %v910 = vld [vmem:[%s1 + $0x60] sm:$0xff]
      %v911 = vld [vmem:[%s1 + $0x68] sm:$0xff]
      %v912 = vld [vmem:[%s1 + $0x70] sm:$0xff]
      %v913 = vld [vmem:[%s1 + $0x78] sm:$0xff]
      %v930 = vunpack.c.l.b16 %v898
      %v931 = vunpack.c.h.b16 %v898
      %v932 = vunpack.c.l.b16 %v899
      %v933 = vunpack.c.h.b16 %v899
      %v934 = vunpack.c.l.b16 %v900
      %v935 = vunpack.c.h.b16 %v900
      %v936 = vunpack.c.l.b16 %v901
      %v937 = vunpack.c.h.b16 %v901
      %v938 = vunpack.c.l.b16 %v902
      %v939 = vunpack.c.h.b16 %v902
      %v940 = vunpack.c.l.b16 %v903
      %v941 = vunpack.c.h.b16 %v903
      %v942 = vunpack.c.l.b16 %v904
      %v943 = vunpack.c.h.b16 %v904
      %v944 = vunpack.c.l.b16 %v905
      %v945 = vunpack.c.h.b16 %v905
      %v946 = vunpack.c.l.b16 %v906
      %v947 = vunpack.c.h.b16 %v906
      %v948 = vunpack.c.l.b16 %v907
      %v949 = vunpack.c.h.b16 %v907
      %v950 = vunpack.c.l.b16 %v908
      %v951 = vunpack.c.h.b16 %v908
      %v952 = vunpack.c.l.b16 %v909
      %v953 = vunpack.c.h.b16 %v909
      %v954 = vunpack.c.l.b16 %v910
      %v955 = vunpack.c.h.b16 %v910
      %v956 = vunpack.c.l.b16 %v911
      %v957 = vunpack.c.h.b16 %v911
      %v958 = vunpack.c.l.b16 %v912
      %v959 = vunpack.c.h.b16 %v912
      %v960 = vunpack.c.l.b16 %v913
      %v961 = vunpack.c.h.b16 %v913
      %v962 = vpack.c.b16 %v932, %v930
      %v963 = vpack.c.b16 %v933, %v931
      %v964 = vpack.c.b16 %v936, %v934
      %v965 = vpack.c.b16 %v937, %v935
      %v966 = vpack.c.b16 %v940, %v938
      %v967 = vpack.c.b16 %v941, %v939
      %v968 = vpack.c.b16 %v944, %v942
      %v969 = vpack.c.b16 %v945, %v943
      %v970 = vpack.c.b16 %v948, %v946
      %v971 = vpack.c.b16 %v949, %v947
      %v972 = vpack.c.b16 %v952, %v950
      %v973 = vpack.c.b16 %v953, %v951
      %v974 = vpack.c.b16 %v956, %v954
      %v975 = vpack.c.b16 %v957, %v955
      %v976 = vpack.c.b16 %v960, %v958
      %v977 = vpack.c.b16 %v961, %v959
      %994 = vmatprep.subr.bf16.mxu0 %v252
      %995 = vmatpush1.bf16.msra.mxu0 %v251
      %996 = vmatprep.subr.bf16.mxu0 %v298
      %997 = vmatpush1.bf16.msra.mxu0 %v297
      %998 = vmatprep.subr.bf16.mxu0 %v345
      %999 = vmatpush1.bf16.msra.mxu0 %v344
      %1000 = vmatprep.subr.bf16.mxu0 %v391
      %1001 = vmatpush1.bf16.msra.mxu0 %v390
      %1002 = vmatprep.subr.bf16.mxu0 %v437
      %1003 = vmatpush1.bf16.msra.mxu0 %v436
      %1004 = vmatprep.subr.bf16.mxu0 %v483
      %1005 = vmatpush1.bf16.msra.mxu0 %v482
      %1006 = vmatprep.subr.bf16.mxu0 %v529
      %1007 = vmatpush1.bf16.msra.mxu0 %v528
      %1008 = vmatprep.subr.bf16.mxu0 %v575
      %1009 = vmatpush1.bf16.msra.mxu0 %v574
      %1010 = vmatprep.subr.bf16.mxu0 %v614
      %1011 = vmatpush1.bf16.msra.mxu0 %v613
      %1012 = vmatprep.subr.bf16.mxu0 %v652
      %1013 = vmatpush1.bf16.msra.mxu0 %v651
      %1014 = vmatprep.subr.bf16.mxu0 %v691
      %1015 = vmatpush1.bf16.msra.mxu0 %v690
      %1016 = vmatprep.subr.bf16.mxu0 %v729
      %1017 = vmatpush1.bf16.msra.mxu0 %v728
      %1018 = vmatprep.subr.bf16.mxu0 %v767
      %1019 = vmatpush1.bf16.msra.mxu0 %v766
      %1020 = vmatprep.subr.bf16.mxu0 %v805
      %1021 = vmatpush1.bf16.msra.mxu0 %v804
      %1022 = vmatprep.subr.bf16.mxu0 %v843
      %1023 = vmatpush1.bf16.msra.mxu0 %v842
      %1024 = vmatprep.subr.bf16.mxu0 %v881
      %1025 = vmatpush1.bf16.msra.mxu0 %v880
      %1026 = vmatprep.mubr.bf16.mxu0 %v963
      %1027 = vmatmul.mubr.bf16.gmra.mrb[0].mxu0 %v962
      %v1028 = vpop.f32.mrb[0].mxu0
      %v1029 = vadd.f32 0.0, %v1028
      %v1030 = vpop.f32.mrb[0].mxu0
      %v1031 = vadd.f32 0.0, %v1030
      %v1032 = vpop.f32.mrb[0].mxu0
      %v1033 = vadd.f32 0.0, %v1032
      %v1034 = vpop.f32.mrb[0].mxu0
      %v1035 = vadd.f32 0.0, %v1034
      %1036 = vmatprep.mubr.bf16.mxu0 %v965
      %1037 = vmatmul.mubr.bf16.gmra.mrb[0].mxu0 %v964
      %v1038 = vpop.f32.mrb[0].mxu0
      %v1039 = vadd.f32 0.0, %v1038
      %v1040 = vpop.f32.mrb[0].mxu0
      %v1041 = vadd.f32 0.0, %v1040
      %v1042 = vpop.f32.mrb[0].mxu0
      %v1043 = vadd.f32 0.0, %v1042
      %v1044 = vpop.f32.mrb[0].mxu0
      %v1045 = vadd.f32 0.0, %v1044
      %1046 = vmatprep.mubr.bf16.mxu0 %v967
      %1047 = vmatmul.mubr.bf16.gmra.mrb[0].mxu0 %v966
      %v1048 = vpop.f32.mrb[0].mxu0
      %v1049 = vadd.f32 0.0, %v1048
      %v1050 = vpop.f32.mrb[0].mxu0
      %v1051 = vadd.f32 0.0, %v1050
      %v1052 = vpop.f32.mrb[0].mxu0
      %v1053 = vadd.f32 0.0, %v1052
      %v1054 = vpop.f32.mrb[0].mxu0
      %v1055 = vadd.f32 0.0, %v1054
      %1056 = vmatprep.mubr.bf16.mxu0 %v969
      %1057 = vmatmul.mubr.bf16.gmra.mrb[0].mxu0 %v968
      %v1058 = vpop.f32.mrb[0].mxu0
      %v1059 = vadd.f32 0.0, %v1058
      %v1060 = vpop.f32.mrb[0].mxu0
      %v1061 = vadd.f32 0.0, %v1060
      %v1062 = vpop.f32.mrb[0].mxu0
      %v1063 = vadd.f32 0.0, %v1062
      %v1064 = vpop.f32.mrb[0].mxu0
      %v1065 = vadd.f32 0.0, %v1064
      %1066 = vmatprep.mubr.bf16.mxu0 %v971
      %1067 = vmatmul.mubr.bf16.gmra.mrb[0].mxu0 %v970
      %v1068 = vpop.f32.mrb[0].mxu0
      %v1069 = vadd.f32 0.0, %v1068
      %v1070 = vpop.f32.mrb[0].mxu0
      %v1071 = vadd.f32 0.0, %v1070
      %v1072 = vpop.f32.mrb[0].mxu0
      %v1073 = vadd.f32 0.0, %v1072
      %v1074 = vpop.f32.mrb[0].mxu0
      %v1075 = vadd.f32 0.0, %v1074
      %1076 = vmatprep.mubr.bf16.mxu0 %v973
      %1077 = vmatmul.mubr.bf16.gmra.mrb[0].mxu0 %v972
      %v1078 = vpop.f32.mrb[0].mxu0
      %v1079 = vadd.f32 0.0, %v1078
      %v1080 = vpop.f32.mrb[0].mxu0
      %v1081 = vadd.f32 0.0, %v1080
      %v1082 = vpop.f32.mrb[0].mxu0
      %v1083 = vadd.f32 0.0, %v1082
      %v1084 = vpop.f32.mrb[0].mxu0
      %v1085 = vadd.f32 0.0, %v1084
      %1086 = vmatprep.mubr.bf16.mxu0 %v975
      %1087 = vmatmul.mubr.bf16.gmra.mrb[0].mxu0 %v974
      %v1088 = vpop.f32.mrb[0].mxu0
      %v1089 = vadd.f32 0.0, %v1088
      %v1090 = vpop.f32.mrb[0].mxu0
      %v1091 = vadd.f32 0.0, %v1090
      %v1092 = vpop.f32.mrb[0].mxu0
      %v1093 = vadd.f32 0.0, %v1092
      %v1094 = vpop.f32.mrb[0].mxu0
      %v1095 = vadd.f32 0.0, %v1094
      %1096 = vmatprep.mubr.bf16.mxu0 %v977
      %1097 = vmatmul.mubr.bf16.gmra.mrb[0].mxu0 %v976
      %v1098 = vpop.f32.mrb[0].mxu0
      %v1099 = vadd.f32 0.0, %v1098
      %v1100 = vpop.f32.mrb[0].mxu0
      %v1101 = vadd.f32 0.0, %v1100
      %v1102 = vpop.f32.mrb[0].mxu0
      %v1103 = vadd.f32 0.0, %v1102
      %v1104 = vpop.f32.mrb[0].mxu0
      %v1105 = vadd.f32 0.0, %v1104
      %1106 = vdwg.mxu0
      %1107 = vmatprep.subr.bf16.mxu0 %v254
      %1108 = vmatpush1.bf16.msra.mxu0 %v253
      %1109 = vmatprep.subr.bf16.mxu0 %v300
      %1110 = vmatpush1.bf16.msra.mxu0 %v299
      %1111 = vmatprep.subr.bf16.mxu0 %v347
      %1112 = vmatpush1.bf16.msra.mxu0 %v346
      %1113 = vmatprep.subr.bf16.mxu0 %v393
      %1114 = vmatpush1.bf16.msra.mxu0 %v392
      %1115 = vmatprep.subr.bf16.mxu0 %v439
      %1116 = vmatpush1.bf16.msra.mxu0 %v438
      %1117 = vmatprep.subr.bf16.mxu0 %v485
      %1118 = vmatpush1.bf16.msra.mxu0 %v484
      %1119 = vmatprep.subr.bf16.mxu0 %v531
      %1120 = vmatpush1.bf16.msra.mxu0 %v530
      %1121 = vmatprep.subr.bf16.mxu0 %v577
      %1122 = vmatpush1.bf16.msra.mxu0 %v576
      %1123 = vmatprep.subr.bf16.mxu0 %v616
      %1124 = vmatpush1.bf16.msra.mxu0 %v615
      %1125 = vmatprep.subr.bf16.mxu0 %v654
      %1126 = vmatpush1.bf16.msra.mxu0 %v653
      %1127 = vmatprep.subr.bf16.mxu0 %v693
      %1128 = vmatpush1.bf16.msra.mxu0 %v692
      %1129 = vmatprep.subr.bf16.mxu0 %v731
      %1130 = vmatpush1.bf16.msra.mxu0 %v730
      %1131 = vmatprep.subr.bf16.mxu0 %v769
      %1132 = vmatpush1.bf16.msra.mxu0 %v768
      %1133 = vmatprep.subr.bf16.mxu0 %v807
      %1134 = vmatpush1.bf16.msra.mxu0 %v806
      %1135 = vmatprep.subr.bf16.mxu0 %v845
      %1136 = vmatpush1.bf16.msra.mxu0 %v844
      %1137 = vmatprep.subr.bf16.mxu0 %v883
      %1138 = vmatpush1.bf16.msra.mxu0 %v882
      %1139 = vmatprep.mubr.bf16.mxu0 %v963
      %1140 = vmatmul.mubr.bf16.gmra.mrb[0].mxu0 %v962
      %v1141 = vpop.f32.mrb[0].mxu0
      %v1142 = vadd.f32 0.0, %v1141
      %v1143 = vpop.f32.mrb[0].mxu0
      %v1144 = vadd.f32 0.0, %v1143
      %v1145 = vpop.f32.mrb[0].mxu0
      %v1146 = vadd.f32 0.0, %v1145
      %v1147 = vpop.f32.mrb[0].mxu0
      %v1148 = vadd.f32 0.0, %v1147
      %1149 = vmatprep.mubr.bf16.mxu0 %v965
      %1150 = vmatmul.mubr.bf16.gmra.mrb[0].mxu0 %v964
      %v1151 = vpop.f32.mrb[0].mxu0
      %v1152 = vadd.f32 0.0, %v1151
      %v1153 = vpop.f32.mrb[0].mxu0
      %v1154 = vadd.f32 0.0, %v1153
      %v1155 = vpop.f32.mrb[0].mxu0
      %v1156 = vadd.f32 0.0, %v1155
      %v1157 = vpop.f32.mrb[0].mxu0
      %v1158 = vadd.f32 0.0, %v1157
      %1159 = vmatprep.mubr.bf16.mxu0 %v967
      %1160 = vmatmul.mubr.bf16.gmra.mrb[0].mxu0 %v966
      %v1161 = vpop.f32.mrb[0].mxu0
      %v1162 = vadd.f32 0.0, %v1161
      %v1163 = vpop.f32.mrb[0].mxu0
      %v1164 = vadd.f32 0.0, %v1163
      %v1165 = vpop.f32.mrb[0].mxu0
      %v1166 = vadd.f32 0.0, %v1165
      %v1167 = vpop.f32.mrb[0].mxu0
      %v1168 = vadd.f32 0.0, %v1167
      %1169 = vmatprep.mubr.bf16.mxu0 %v969
      %1170 = vmatmul.mubr.bf16.gmra.mrb[0].mxu0 %v968
      %v1171 = vpop.f32.mrb[0].mxu0
      %v1172 = vadd.f32 0.0, %v1171
      %v1173 = vpop.f32.mrb[0].mxu0
      %v1174 = vadd.f32 0.0, %v1173
      %v1175 = vpop.f32.mrb[0].mxu0
      %v1176 = vadd.f32 0.0, %v1175
      %v1177 = vpop.f32.mrb[0].mxu0
      %v1178 = vadd.f32 0.0, %v1177
      %1179 = vmatprep.mubr.bf16.mxu0 %v971
      %1180 = vmatmul.mubr.bf16.gmra.mrb[0].mxu0 %v970
      %v1181 = vpop.f32.mrb[0].mxu0
      %v1182 = vadd.f32 0.0, %v1181
      %v1183 = vpop.f32.mrb[0].mxu0
      %v1184 = vadd.f32 0.0, %v1183
      %v1185 = vpop.f32.mrb[0].mxu0
      %v1186 = vadd.f32 0.0, %v1185
      %v1187 = vpop.f32.mrb[0].mxu0
      %v1188 = vadd.f32 0.0, %v1187
      %1189 = vmatprep.mubr.bf16.mxu0 %v973
      %1190 = vmatmul.mubr.bf16.gmra.mrb[0].mxu0 %v972
      %v1191 = vpop.f32.mrb[0].mxu0
      %v1192 = vadd.f32 0.0, %v1191
      %v1193 = vpop.f32.mrb[0].mxu0
      %v1194 = vadd.f32 0.0, %v1193
      %v1195 = vpop.f32.mrb[0].mxu0
      %v1196 = vadd.f32 0.0, %v1195
      %v1197 = vpop.f32.mrb[0].mxu0
      %v1198 = vadd.f32 0.0, %v1197
      %1199 = vmatprep.mubr.bf16.mxu0 %v975
      %1200 = vmatmul.mubr.bf16.gmra.mrb[0].mxu0 %v974
      %v1201 = vpop.f32.mrb[0].mxu0
      %v1202 = vadd.f32 0.0, %v1201
      %v1203 = vpop.f32.mrb[0].mxu0
      %v1204 = vadd.f32 0.0, %v1203
      %v1205 = vpop.f32.mrb[0].mxu0
      %v1206 = vadd.f32 0.0, %v1205
      %v1207 = vpop.f32.mrb[0].mxu0
      %v1208 = vadd.f32 0.0, %v1207
      %1209 = vmatprep.mubr.bf16.mxu0 %v977
      %1210 = vmatmul.mubr.bf16.gmra.mrb[0].mxu0 %v976
      %v1211 = vpop.f32.mrb[0].mxu0
      %v1212 = vadd.f32 0.0, %v1211
      %v1213 = vpop.f32.mrb[0].mxu0
      %v1214 = vadd.f32 0.0, %v1213
      %v1215 = vpop.f32.mrb[0].mxu0
      %v1216 = vadd.f32 0.0, %v1215
      %v1217 = vpop.f32.mrb[0].mxu0
      %v1218 = vadd.f32 0.0, %v1217
      %1219 = vdwg.mxu0
      %1220 = vmatprep.subr.bf16.mxu0 %v256
      %1221 = vmatpush1.bf16.msra.mxu0 %v255
      %1222 = vmatprep.subr.bf16.mxu0 %v302
      %1223 = vmatpush1.bf16.msra.mxu0 %v301
      %1224 = vmatprep.subr.bf16.mxu0 %v349
      %1225 = vmatpush1.bf16.msra.mxu0 %v348
      %1226 = vmatprep.subr.bf16.mxu0 %v395
      %1227 = vmatpush1.bf16.msra.mxu0 %v394
      %1228 = vmatprep.subr.bf16.mxu0 %v441
      %1229 = vmatpush1.bf16.msra.mxu0 %v440
      %1230 = vmatprep.subr.bf16.mxu0 %v487
      %1231 = vmatpush1.bf16.msra.mxu0 %v486
      %1232 = vmatprep.subr.bf16.mxu0 %v533
      %1233 = vmatpush1.bf16.msra.mxu0 %v532
      %1234 = vmatprep.subr.bf16.mxu0 %v579
      %1235 = vmatpush1.bf16.msra.mxu0 %v578
      %1236 = vmatprep.subr.bf16.mxu0 %v618
      %1237 = vmatpush1.bf16.msra.mxu0 %v617
      %1238 = vmatprep.subr.bf16.mxu0 %v656
      %1239 = vmatpush1.bf16.msra.mxu0 %v655
      %1240 = vmatprep.subr.bf16.mxu0 %v695
      %1241 = vmatpush1.bf16.msra.mxu0 %v694
      %1242 = vmatprep.subr.bf16.mxu0 %v733
      %1243 = vmatpush1.bf16.msra.mxu0 %v732
      %1244 = vmatprep.subr.bf16.mxu0 %v771
      %1245 = vmatpush1.bf16.msra.mxu0 %v770
      %1246 = vmatprep.subr.bf16.mxu0 %v809
      %1247 = vmatpush1.bf16.msra.mxu0 %v808
      %1248 = vmatprep.subr.bf16.mxu0 %v847
      %1249 = vmatpush1.bf16.msra.mxu0 %v846
      %1250 = vmatprep.subr.bf16.mxu0 %v885
      %1251 = vmatpush1.bf16.msra.mxu0 %v884
      %1252 = vmatprep.mubr.bf16.mxu0 %v963
      %1253 = vmatmul.mubr.bf16.gmra.mrb[0].mxu0 %v962
      %v1254 = vpop.f32.mrb[0].mxu0
      %v1255 = vadd.f32 0.0, %v1254
      %v1256 = vpop.f32.mrb[0].mxu0
      %v1257 = vadd.f32 0.0, %v1256
      %v1258 = vpop.f32.mrb[0].mxu0
      %v1259 = vadd.f32 0.0, %v1258
      %v1260 = vpop.f32.mrb[0].mxu0
      %v1261 = vadd.f32 0.0, %v1260
      %1262 = vmatprep.mubr.bf16.mxu0 %v965
      %1263 = vmatmul.mubr.bf16.gmra.mrb[0].mxu0 %v964
      %v1264 = vpop.f32.mrb[0].mxu0
      %v1265 = vadd.f32 0.0, %v1264
      %v1266 = vpop.f32.mrb[0].mxu0
      %v1267 = vadd.f32 0.0, %v1266
      %v1268 = vpop.f32.mrb[0].mxu0
      %v1269 = vadd.f32 0.0, %v1268
      %v1270 = vpop.f32.mrb[0].mxu0
      %v1271 = vadd.f32 0.0, %v1270
      %1272 = vmatprep.mubr.bf16.mxu0 %v967
      %1273 = vmatmul.mubr.bf16.gmra.mrb[0].mxu0 %v966
      %v1274 = vpop.f32.mrb[0].mxu0
      %v1275 = vadd.f32 0.0, %v1274
      %v1276 = vpop.f32.mrb[0].mxu0
      %v1277 = vadd.f32 0.0, %v1276
      %v1278 = vpop.f32.mrb[0].mxu0
      %v1279 = vadd.f32 0.0, %v1278
      %v1280 = vpop.f32.mrb[0].mxu0
      %v1281 = vadd.f32 0.0, %v1280
      %1282 = vmatprep.mubr.bf16.mxu0 %v969
      %1283 = vmatmul.mubr.bf16.gmra.mrb[0].mxu0 %v968
      %v1284 = vpop.f32.mrb[0].mxu0
      %v1285 = vadd.f32 0.0, %v1284
      %v1286 = vpop.f32.mrb[0].mxu0
      %v1287 = vadd.f32 0.0, %v1286
      %v1288 = vpop.f32.mrb[0].mxu0
      %v1289 = vadd.f32 0.0, %v1288
      %v1290 = vpop.f32.mrb[0].mxu0
      %v1291 = vadd.f32 0.0, %v1290
      %1292 = vmatprep.mubr.bf16.mxu0 %v971
      %1293 = vmatmul.mubr.bf16.gmra.mrb[0].mxu0 %v970
      %v1294 = vpop.f32.mrb[0].mxu0
      %v1295 = vadd.f32 0.0, %v1294
      %v1296 = vpop.f32.mrb[0].mxu0
      %v1297 = vadd.f32 0.0, %v1296
      %v1298 = vpop.f32.mrb[0].mxu0
      %v1299 = vadd.f32 0.0, %v1298
      %v1300 = vpop.f32.mrb[0].mxu0
      %v1301 = vadd.f32 0.0, %v1300
      %1302 = vmatprep.mubr.bf16.mxu0 %v973
      %1303 = vmatmul.mubr.bf16.gmra.mrb[0].mxu0 %v972
      %v1304 = vpop.f32.mrb[0].mxu0
      %v1305 = vadd.f32 0.0, %v1304
      %v1306 = vpop.f32.mrb[0].mxu0
      %v1307 = vadd.f32 0.0, %v1306
      %v1308 = vpop.f32.mrb[0].mxu0
      %v1309 = vadd.f32 0.0, %v1308
      %v1310 = vpop.f32.mrb[0].mxu0
      %v1311 = vadd.f32 0.0, %v1310
      %1312 = vmatprep.mubr.bf16.mxu0 %v975
      %1313 = vmatmul.mubr.bf16.gmra.mrb[0].mxu0 %v974
      %v1314 = vpop.f32.mrb[0].mxu0
      %v1315 = vadd.f32 0.0, %v1314
      %v1316 = vpop.f32.mrb[0].mxu0
      %v1317 = vadd.f32 0.0, %v1316
      %v1318 = vpop.f32.mrb[0].mxu0
      %v1319 = vadd.f32 0.0, %v1318
      %v1320 = vpop.f32.mrb[0].mxu0
      %v1321 = vadd.f32 0.0, %v1320
      %1322 = vmatprep.mubr.bf16.mxu0 %v977
      %1323 = vmatmul.mubr.bf16.gmra.mrb[0].mxu0 %v976
      %v1324 = vpop.f32.mrb[0].mxu0
      %v1325 = vadd.f32 0.0, %v1324
      %v1326 = vpop.f32.mrb[0].mxu0
      %v1327 = vadd.f32 0.0, %v1326
      %v1328 = vpop.f32.mrb[0].mxu0
      %v1329 = vadd.f32 0.0, %v1328
      %v1330 = vpop.f32.mrb[0].mxu0
      %v1331 = vadd.f32 0.0, %v1330
      %1332 = vdwg.mxu0
      %1333 = vmatprep.subr.bf16.mxu0 %v258
      %1334 = vmatpush1.bf16.msra.mxu0 %v257
      %1335 = vmatprep.subr.bf16.mxu0 %v304
      %1336 = vmatpush1.bf16.msra.mxu0 %v303
      %1337 = vmatprep.subr.bf16.mxu0 %v351
      %1338 = vmatpush1.bf16.msra.mxu0 %v350
      %1339 = vmatprep.subr.bf16.mxu0 %v397
      %1340 = vmatpush1.bf16.msra.mxu0 %v396
      %1341 = vmatprep.subr.bf16.mxu0 %v443
      %1342 = vmatpush1.bf16.msra.mxu0 %v442
      %1343 = vmatprep.subr.bf16.mxu0 %v489
      %1344 = vmatpush1.bf16.msra.mxu0 %v488
      %1345 = vmatprep.subr.bf16.mxu0 %v535
      %1346 = vmatpush1.bf16.msra.mxu0 %v534
      %1347 = vmatprep.subr.bf16.mxu0 %v581
      %1348 = vmatpush1.bf16.msra.mxu0 %v580
      %1349 = vmatprep.subr.bf16.mxu0 %v620
      %1350 = vmatpush1.bf16.msra.mxu0 %v619
      %1351 = vmatprep.subr.bf16.mxu0 %v658
      %1352 = vmatpush1.bf16.msra.mxu0 %v657
      %1353 = vmatprep.subr.bf16.mxu0 %v697
      %1354 = vmatpush1.bf16.msra.mxu0 %v696
      %1355 = vmatprep.subr.bf16.mxu0 %v735
      %1356 = vmatpush1.bf16.msra.mxu0 %v734
      %1357 = vmatprep.subr.bf16.mxu0 %v773
      %1358 = vmatpush1.bf16.msra.mxu0 %v772
      %1359 = vmatprep.subr.bf16.mxu0 %v811
      %1360 = vmatpush1.bf16.msra.mxu0 %v810
      %1361 = vmatprep.subr.bf16.mxu0 %v849
      %1362 = vmatpush1.bf16.msra.mxu0 %v848
      %1363 = vmatprep.subr.bf16.mxu0 %v887
      %1364 = vmatpush1.bf16.msra.mxu0 %v886
      %1365 = vmatprep.mubr.bf16.mxu0 %v963
      %1366 = vmatmul.mubr.bf16.gmra.mrb[0].mxu0 %v962
      %v1367 = vpop.f32.mrb[0].mxu0
      %v1368 = vadd.f32 0.0, %v1367
      %v1369 = vpop.f32.mrb[0].mxu0
      %v1370 = vadd.f32 0.0, %v1369
      %v1371 = vpop.f32.mrb[0].mxu0
      %v1372 = vadd.f32 0.0, %v1371
      %v1373 = vpop.f32.mrb[0].mxu0
      %v1374 = vadd.f32 0.0, %v1373
      %1375 = vmatprep.mubr.bf16.mxu0 %v965
      %1376 = vmatmul.mubr.bf16.gmra.mrb[0].mxu0 %v964
      %v1377 = vpop.f32.mrb[0].mxu0
      %v1378 = vadd.f32 0.0, %v1377
      %v1379 = vpop.f32.mrb[0].mxu0
      %v1380 = vadd.f32 0.0, %v1379
      %v1381 = vpop.f32.mrb[0].mxu0
      %v1382 = vadd.f32 0.0, %v1381
      %v1383 = vpop.f32.mrb[0].mxu0
      %v1384 = vadd.f32 0.0, %v1383
      %1385 = vmatprep.mubr.bf16.mxu0 %v967
      %1386 = vmatmul.mubr.bf16.gmra.mrb[0].mxu0 %v966
      %v1387 = vpop.f32.mrb[0].mxu0
      %v1388 = vadd.f32 0.0, %v1387
      %v1389 = vpop.f32.mrb[0].mxu0
      %v1390 = vadd.f32 0.0, %v1389
      %v1391 = vpop.f32.mrb[0].mxu0
      %v1392 = vadd.f32 0.0, %v1391
      %v1393 = vpop.f32.mrb[0].mxu0
      %v1394 = vadd.f32 0.0, %v1393
      %1395 = vmatprep.mubr.bf16.mxu0 %v969
      %1396 = vmatmul.mubr.bf16.gmra.mrb[0].mxu0 %v968
      %v1397 = vpop.f32.mrb[0].mxu0
      %v1398 = vadd.f32 0.0, %v1397
      %v1399 = vpop.f32.mrb[0].mxu0
      %v1400 = vadd.f32 0.0, %v1399
      %v1401 = vpop.f32.mrb[0].mxu0
      %v1402 = vadd.f32 0.0, %v1401
      %v1403 = vpop.f32.mrb[0].mxu0
      %v1404 = vadd.f32 0.0, %v1403
      %1405 = vmatprep.mubr.bf16.mxu0 %v971
      %1406 = vmatmul.mubr.bf16.gmra.mrb[0].mxu0 %v970
      %v1407 = vpop.f32.mrb[0].mxu0
      %v1408 = vadd.f32 0.0, %v1407
      %v1409 = vpop.f32.mrb[0].mxu0
      %v1410 = vadd.f32 0.0, %v1409
      %v1411 = vpop.f32.mrb[0].mxu0
      %v1412 = vadd.f32 0.0, %v1411
      %v1413 = vpop.f32.mrb[0].mxu0
      %v1414 = vadd.f32 0.0, %v1413
      %1415 = vmatprep.mubr.bf16.mxu0 %v973
      %1416 = vmatmul.mubr.bf16.gmra.mrb[0].mxu0 %v972
      %v1417 = vpop.f32.mrb[0].mxu0
      %v1418 = vadd.f32 0.0, %v1417
      %v1419 = vpop.f32.mrb[0].mxu0
      %v1420 = vadd.f32 0.0, %v1419
      %v1421 = vpop.f32.mrb[0].mxu0
      %v1422 = vadd.f32 0.0, %v1421
      %v1423 = vpop.f32.mrb[0].mxu0
      %v1424 = vadd.f32 0.0, %v1423
      %1425 = vmatprep.mubr.bf16.mxu0 %v975
      %1426 = vmatmul.mubr.bf16.gmra.mrb[0].mxu0 %v974
      %v1427 = vpop.f32.mrb[0].mxu0
      %v1428 = vadd.f32 0.0, %v1427
      %v1429 = vpop.f32.mrb[0].mxu0
      %v1430 = vadd.f32 0.0, %v1429
      %v1431 = vpop.f32.mrb[0].mxu0
      %v1432 = vadd.f32 0.0, %v1431
      %v1433 = vpop.f32.mrb[0].mxu0
      %v1434 = vadd.f32 0.0, %v1433
      %1435 = vmatprep.mubr.bf16.mxu0 %v977
      %1436 = vmatmul.mubr.bf16.gmra.mrb[0].mxu0 %v976
      %v1437 = vpop.f32.mrb[0].mxu0
      %v1438 = vadd.f32 0.0, %v1437
      %v1439 = vpop.f32.mrb[0].mxu0
      %v1440 = vadd.f32 0.0, %v1439
      %v1441 = vpop.f32.mrb[0].mxu0
      %v1442 = vadd.f32 0.0, %v1441
      %v1443 = vpop.f32.mrb[0].mxu0
      %v1444 = vadd.f32 0.0, %v1443
      %1445 = vdwg.mxu0
      %1446 = vmatprep.subr.bf16.mxu0 0
      %1447 = vmatpush1.bf16.msra.mxu0 %v259
      %1448 = vmatprep.subr.bf16.mxu0 0
      %1449 = vmatpush1.bf16.msra.mxu0 %v305
      %1450 = vmatprep.subr.bf16.mxu0 0
      %1451 = vmatpush1.bf16.msra.mxu0 %v352
      %1452 = vmatprep.subr.bf16.mxu0 0
      %1453 = vmatpush1.bf16.msra.mxu0 %v398
      %1454 = vmatprep.subr.bf16.mxu0 0
      %1455 = vmatpush1.bf16.msra.mxu0 %v444
      %1456 = vmatprep.subr.bf16.mxu0 0
      %1457 = vmatpush1.bf16.msra.mxu0 %v490
      %1458 = vmatprep.subr.bf16.mxu0 0
      %1459 = vmatpush1.bf16.msra.mxu0 %v536
      %1460 = vmatprep.subr.bf16.mxu0 0
      %1461 = vmatpush1.bf16.msra.mxu0 %v582
      %1462 = vmatprep.subr.bf16.mxu0 0
      %1463 = vmatpush1.bf16.msra.mxu0 %v621
      %1464 = vmatprep.subr.bf16.mxu0 0
      %1465 = vmatpush1.bf16.msra.mxu0 %v659
      %1466 = vmatprep.subr.bf16.mxu0 0
      %1467 = vmatpush1.bf16.msra.mxu0 %v698
      %1468 = vmatprep.subr.bf16.mxu0 0
      %1469 = vmatpush1.bf16.msra.mxu0 %v736
      %1470 = vmatprep.subr.bf16.mxu0 0
      %1471 = vmatpush1.bf16.msra.mxu0 %v774
      %1472 = vmatprep.subr.bf16.mxu0 0
      %1473 = vmatpush1.bf16.msra.mxu0 %v812
      %1474 = vmatprep.subr.bf16.mxu0 0
      %1475 = vmatpush1.bf16.msra.mxu0 %v850
      %1476 = vmatprep.subr.bf16.mxu0 0
      %1477 = vmatpush1.bf16.msra.mxu0 %v888
      %1478 = vmatprep.mubr.bf16.mxu0 %v963
      %1479 = vmatmul.mubr.bf16.gmra.mrb[0].mxu0 %v962
      %v1480 = vpop.f32.mrb[0].mxu0
      %v1481 = vadd.f32 0.0, %v1480
      %v1482 = vpop.f32.mrb[0].mxu0
      %v1483 = vpop.f32.mrb[0].mxu0
      %v1484 = vadd.f32 0.0, %v1483
      %v1485 = vpop.f32.mrb[0].mxu0
      %1486 = vmatprep.mubr.bf16.mxu0 %v965
      %1487 = vmatmul.mubr.bf16.gmra.mrb[0].mxu0 %v964
      %v1488 = vpop.f32.mrb[0].mxu0
      %v1489 = vadd.f32 0.0, %v1488
      %v1490 = vpop.f32.mrb[0].mxu0
      %v1491 = vpop.f32.mrb[0].mxu0
      %v1492 = vadd.f32 0.0, %v1491
      %v1493 = vpop.f32.mrb[0].mxu0
      %1494 = vmatprep.mubr.bf16.mxu0 %v967
      %1495 = vmatmul.mubr.bf16.gmra.mrb[0].mxu0 %v966
      %v1496 = vpop.f32.mrb[0].mxu0
      %v1497 = vadd.f32 0.0, %v1496
      %v1498 = vpop.f32.mrb[0].mxu0
      %v1499 = vpop.f32.mrb[0].mxu0
      %v1500 = vadd.f32 0.0, %v1499
      %v1501 = vpop.f32.mrb[0].mxu0
      %1502 = vmatprep.mubr.bf16.mxu0 %v969
      %1503 = vmatmul.mubr.bf16.gmra.mrb[0].mxu0 %v968
      %v1504 = vpop.f32.mrb[0].mxu0
      %v1505 = vadd.f32 0.0, %v1504
      %v1506 = vpop.f32.mrb[0].mxu0
      %v1507 = vpop.f32.mrb[0].mxu0
      %v1508 = vadd.f32 0.0, %v1507
      %v1509 = vpop.f32.mrb[0].mxu0
      %1510 = vmatprep.mubr.bf16.mxu0 %v971
      %1511 = vmatmul.mubr.bf16.gmra.mrb[0].mxu0 %v970
      %v1512 = vpop.f32.mrb[0].mxu0
      %v1513 = vadd.f32 0.0, %v1512
      %v1514 = vpop.f32.mrb[0].mxu0
      %v1515 = vpop.f32.mrb[0].mxu0
      %v1516 = vadd.f32 0.0, %v1515
      %v1517 = vpop.f32.mrb[0].mxu0
      %1518 = vmatprep.mubr.bf16.mxu0 %v973
      %1519 = vmatmul.mubr.bf16.gmra.mrb[0].mxu0 %v972
      %v1520 = vpop.f32.mrb[0].mxu0
      %v1521 = vadd.f32 0.0, %v1520
      %v1522 = vpop.f32.mrb[0].mxu0
      %v1523 = vpop.f32.mrb[0].mxu0
      %v1524 = vadd.f32 0.0, %v1523
      %v1525 = vpop.f32.mrb[0].mxu0
      %1526 = vmatprep.mubr.bf16.mxu0 %v975
      %1527 = vmatmul.mubr.bf16.gmra.mrb[0].mxu0 %v974
      %v1528 = vpop.f32.mrb[0].mxu0
      %v1529 = vadd.f32 0.0, %v1528
      %v1530 = vpop.f32.mrb[0].mxu0
      %v1531 = vpop.f32.mrb[0].mxu0
      %v1532 = vadd.f32 0.0, %v1531
      %v1533 = vpop.f32.mrb[0].mxu0
      %1534 = vmatprep.mubr.bf16.mxu0 %v977
      %1535 = vmatmul.mubr.bf16.gmra.mrb[0].mxu0 %v976
      %v1536 = vpop.f32.mrb[0].mxu0
      %v1537 = vadd.f32 0.0, %v1536
      %v1538 = vpop.f32.mrb[0].mxu0
      %v1539 = vpop.f32.mrb[0].mxu0
      %v1540 = vadd.f32 0.0, %v1539
      %v1541 = vpop.f32.mrb[0].mxu0
      %1542 = vdwg.mxu0
      %v1543 = vmax.f32 %v1029, %v1049
      %v1544 = vmax.f32 %v1031, %v1051
      %v1545 = vmax.f32 %v1142, %v1162
      %v1546 = vmax.f32 %v1144, %v1164
      %v1547 = vmax.f32 %v1255, %v1275
      %v1548 = vmax.f32 %v1257, %v1277
      %v1549 = vmax.f32 %v1368, %v1388
      %v1550 = vmax.f32 %v1370, %v1390
      %v1551 = vmax.f32 %v1481, %v1497
      %v1552 = vmax.f32 %v1033, %v1053
      %v1553 = vmax.f32 %v1035, %v1055
      %v1554 = vmax.f32 %v1146, %v1166
      %v1555 = vmax.f32 %v1148, %v1168
      %v1556 = vmax.f32 %v1259, %v1279
      %v1557 = vmax.f32 %v1261, %v1281
      %v1558 = vmax.f32 %v1372, %v1392
      %v1559 = vmax.f32 %v1374, %v1394
      %v1560 = vmax.f32 %v1484, %v1500
      %v1561 = vmax.f32 %v1039, %v1059
      %v1562 = vmax.f32 %v1041, %v1061
      %v1563 = vmax.f32 %v1152, %v1172
      %v1564 = vmax.f32 %v1154, %v1174
      %v1565 = vmax.f32 %v1265, %v1285
      %v1566 = vmax.f32 %v1267, %v1287
      %v1567 = vmax.f32 %v1378, %v1398
      %v1568 = vmax.f32 %v1380, %v1400
      %v1569 = vmax.f32 %v1489, %v1505
      %v1570 = vmax.f32 %v1043, %v1063
      %v1571 = vmax.f32 %v1045, %v1065
      %v1572 = vmax.f32 %v1156, %v1176
      %v1573 = vmax.f32 %v1158, %v1178
      %v1574 = vmax.f32 %v1269, %v1289
      %v1575 = vmax.f32 %v1271, %v1291
      %v1576 = vmax.f32 %v1382, %v1402
      %v1577 = vmax.f32 %v1384, %v1404
      %v1578 = vmax.f32 %v1492, %v1508
      %v1579 = vmax.f32 %v1069, %v1089
      %v1580 = vmax.f32 %v1071, %v1091
      %v1581 = vmax.f32 %v1182, %v1202
      %v1582 = vmax.f32 %v1184, %v1204
      %v1583 = vmax.f32 %v1295, %v1315
      %v1584 = vmax.f32 %v1297, %v1317
      %v1585 = vmax.f32 %v1408, %v1428
      %v1586 = vmax.f32 %v1410, %v1430
      %v1587 = vmax.f32 %v1513, %v1529
      %v1588 = vmax.f32 %v1073, %v1093
      %v1589 = vmax.f32 %v1075, %v1095
      %v1590 = vmax.f32 %v1186, %v1206
      %v1591 = vmax.f32 %v1188, %v1208
      %v1592 = vmax.f32 %v1299, %v1319
      %v1593 = vmax.f32 %v1301, %v1321
      %v1594 = vmax.f32 %v1412, %v1432
      %v1595 = vmax.f32 %v1414, %v1434
      %v1596 = vmax.f32 %v1516, %v1532
      %v1597 = vmax.f32 %v1079, %v1099
      %v1598 = vmax.f32 %v1081, %v1101
      %v1599 = vmax.f32 %v1192, %v1212
      %v1600 = vmax.f32 %v1194, %v1214
      %v1601 = vmax.f32 %v1305, %v1325
      %v1602 = vmax.f32 %v1307, %v1327
      %v1603 = vmax.f32 %v1418, %v1438
      %v1604 = vmax.f32 %v1420, %v1440
      %v1605 = vmax.f32 %v1521, %v1537
      %v1606 = vmax.f32 %v1083, %v1103
      %v1607 = vmax.f32 %v1085, %v1105
      %v1608 = vmax.f32 %v1196, %v1216
      %v1609 = vmax.f32 %v1198, %v1218
      %v1610 = vmax.f32 %v1309, %v1329
      %v1611 = vmax.f32 %v1311, %v1331
      %v1612 = vmax.f32 %v1422, %v1442
      %v1613 = vmax.f32 %v1424, %v1444
      %v1614 = vmax.f32 %v1524, %v1540
      %v1615 = vmax.f32 %v1543, %v1579
      %v1616 = vmax.f32 %v1544, %v1580
      %v1617 = vmax.f32 %v1545, %v1581
      %v1618 = vmax.f32 %v1546, %v1582
      %v1619 = vmax.f32 %v1547, %v1583
      %v1620 = vmax.f32 %v1548, %v1584
      %v1621 = vmax.f32 %v1549, %v1585
      %v1622 = vmax.f32 %v1550, %v1586
      %v1623 = vmax.f32 %v1551, %v1587
      %v1624 = vmax.f32 %v1552, %v1588
      %v1625 = vmax.f32 %v1553, %v1589
      %v1626 = vmax.f32 %v1554, %v1590
      %v1627 = vmax.f32 %v1555, %v1591
      %v1628 = vmax.f32 %v1556, %v1592
      %v1629 = vmax.f32 %v1557, %v1593
      %v1630 = vmax.f32 %v1558, %v1594
      %v1631 = vmax.f32 %v1559, %v1595
      %v1632 = vmax.f32 %v1560, %v1596
      %v1633 = vmax.f32 %v1561, %v1597
      %v1634 = vmax.f32 %v1562, %v1598
      %v1635 = vmax.f32 %v1563, %v1599
      %v1636 = vmax.f32 %v1564, %v1600
      %v1637 = vmax.f32 %v1565, %v1601
      %v1638 = vmax.f32 %v1566, %v1602
      %v1639 = vmax.f32 %v1567, %v1603
      %v1640 = vmax.f32 %v1568, %v1604
      %v1641 = vmax.f32 %v1569, %v1605
      %v1642 = vmax.f32 %v1570, %v1606
      %v1643 = vmax.f32 %v1571, %v1607
      %v1644 = vmax.f32 %v1572, %v1608
      %v1645 = vmax.f32 %v1573, %v1609
      %v1646 = vmax.f32 %v1574, %v1610
      %v1647 = vmax.f32 %v1575, %v1611
      %v1648 = vmax.f32 %v1576, %v1612
      %v1649 = vmax.f32 %v1577, %v1613
      %v1650 = vmax.f32 %v1578, %v1614
      %v1651 = vld [vmem:[%s2] sm:$0xff]
      %v1652 = vld [vmem:[%s2 + $0x8] sm:$0xff]
      %v1653 = vld [vmem:[%s2 + $0x10] sm:$0xff]
      %v1654 = vld [vmem:[%s2 + $0x18] sm:$0xff]
      %1656 = vset.pattern.permute.xlu0 0
      %1657 = vperm.xlu0 %1656, %v1651
      %v1658 = vpop.permute.xlu0 %1657
      %1661 = vset.pattern.permute.xlu0 0
      %1662 = vperm.xlu0 %1661, %v1652
      %v1663 = vpop.permute.xlu0 %1662
      %1666 = vset.pattern.permute.xlu0 0
      %1667 = vperm.xlu0 %1666, %v1653
      %v1668 = vpop.permute.xlu0 %1667
      %1671 = vset.pattern.permute.xlu0 0
      %1672 = vperm.xlu0 %1671, %v1654
      %v1673 = vpop.permute.xlu0 %1672
      %v1675 = vadd.f32 %v1615, %v1658
      %v1676 = vadd.f32 %v1616, %v1658
      %v1677 = vadd.f32 %v1617, %v1658
      %v1678 = vadd.f32 %v1618, %v1658
      %v1679 = vadd.f32 %v1619, %v1658
      %v1680 = vadd.f32 %v1620, %v1658
      %v1681 = vadd.f32 %v1621, %v1658
      %v1682 = vadd.f32 %v1622, %v1658
      %v1683 = vadd.f32 %v1623, %v1658
      %v1684 = vadd.f32 %v1624, %v1663
      %v1685 = vadd.f32 %v1625, %v1663
      %v1686 = vadd.f32 %v1626, %v1663
      %v1687 = vadd.f32 %v1627, %v1663
      %v1688 = vadd.f32 %v1628, %v1663
      %v1689 = vadd.f32 %v1629, %v1663
      %v1690 = vadd.f32 %v1630, %v1663
      %v1691 = vadd.f32 %v1631, %v1663
      %v1692 = vadd.f32 %v1632, %v1663
      %v1693 = vadd.f32 %v1633, %v1668
      %v1694 = vadd.f32 %v1634, %v1668
      %v1695 = vadd.f32 %v1635, %v1668
      %v1696 = vadd.f32 %v1636, %v1668
      %v1697 = vadd.f32 %v1637, %v1668
      %v1698 = vadd.f32 %v1638, %v1668
      %v1699 = vadd.f32 %v1639, %v1668
      %v1700 = vadd.f32 %v1640, %v1668
      %v1701 = vadd.f32 %v1641, %v1668
      %v1702 = vadd.f32 %v1642, %v1673
      %v1703 = vadd.f32 %v1643, %v1673
      %v1704 = vadd.f32 %v1644, %v1673
      %v1705 = vadd.f32 %v1645, %v1673
      %v1706 = vadd.f32 %v1646, %v1673
      %v1707 = vadd.f32 %v1647, %v1673
      %v1708 = vadd.f32 %v1648, %v1673
      %v1709 = vadd.f32 %v1649, %v1673
      %v1710 = vadd.f32 %v1650, %v1673
      %v1711 = vmax.f32 %v1675, 0.0
      %v1712 = vmax.f32 %v1676, 0.0
      %v1713 = vmax.f32 %v1677, 0.0
      %v1714 = vmax.f32 %v1678, 0.0
      %v1715 = vmax.f32 %v1679, 0.0
      %v1716 = vmax.f32 %v1680, 0.0
      %v1717 = vmax.f32 %v1681, 0.0
      %v1718 = vmax.f32 %v1682, 0.0
      %v1719 = vmax.f32 %v1683, 0.0
      %v1720 = vmax.f32 %v1684, 0.0
      %v1721 = vmax.f32 %v1685, 0.0
      %v1722 = vmax.f32 %v1686, 0.0
      %v1723 = vmax.f32 %v1687, 0.0
      %v1724 = vmax.f32 %v1688, 0.0
      %v1725 = vmax.f32 %v1689, 0.0
      %v1726 = vmax.f32 %v1690, 0.0
      %v1727 = vmax.f32 %v1691, 0.0
      %v1728 = vmax.f32 %v1692, 0.0
      %v1729 = vmax.f32 %v1693, 0.0
      %v1730 = vmax.f32 %v1694, 0.0
      %v1731 = vmax.f32 %v1695, 0.0
      %v1732 = vmax.f32 %v1696, 0.0
      %v1733 = vmax.f32 %v1697, 0.0
      %v1734 = vmax.f32 %v1698, 0.0
      %v1735 = vmax.f32 %v1699, 0.0
      %v1736 = vmax.f32 %v1700, 0.0
      %v1737 = vmax.f32 %v1701, 0.0
      %v1738 = vmax.f32 %v1702, 0.0
      %v1739 = vmax.f32 %v1703, 0.0
      %v1740 = vmax.f32 %v1704, 0.0
      %v1741 = vmax.f32 %v1705, 0.0
      %v1742 = vmax.f32 %v1706, 0.0
      %v1743 = vmax.f32 %v1707, 0.0
      %v1744 = vmax.f32 %v1708, 0.0
      %v1745 = vmax.f32 %v1709, 0.0
      %v1746 = vmax.f32 %v1710, 0.0
      %v1747 = vpack.c.bf16 %v1720, %v1711
      %v1748 = vpack.c.bf16 %v1721, %v1712
      %v1749 = vpack.c.bf16 %v1722, %v1713
      %v1750 = vpack.c.bf16 %v1723, %v1714
      %v1751 = vpack.c.bf16 %v1724, %v1715
      %v1752 = vpack.c.bf16 %v1725, %v1716
      %v1753 = vpack.c.bf16 %v1726, %v1717
      %v1754 = vpack.c.bf16 %v1727, %v1718
      %v1755 = vpack.c.bf16 %v1728, %v1719
      %v1756 = vpack.c.bf16 %v1738, %v1729
      %v1757 = vpack.c.bf16 %v1739, %v1730
      %v1758 = vpack.c.bf16 %v1740, %v1731
      %v1759 = vpack.c.bf16 %v1741, %v1732
      %v1760 = vpack.c.bf16 %v1742, %v1733
      %v1761 = vpack.c.bf16 %v1743, %v1734
      %v1762 = vpack.c.bf16 %v1744, %v1735
      %v1763 = vpack.c.bf16 %v1745, %v1736
      %v1764 = vpack.c.bf16 %v1746, %v1737
      %v1783 = vunpack.c.l.b16 %v1747
      %v1784 = vunpack.c.l.b16 %v1748
      %v1785 = vunpack.c.l.b16 %v1749
      %v1786 = vunpack.c.l.b16 %v1750
      %v1787 = vunpack.c.l.b16 %v1751
      %v1788 = vunpack.c.l.b16 %v1752
      %v1789 = vunpack.c.l.b16 %v1753
      %v1790 = vunpack.c.l.b16 %v1754
      %v1791 = vunpack.c.l.b16 %v1755
      %v1792 = vunpack.c.h.b16 %v1747
      %v1793 = vunpack.c.h.b16 %v1748
      %v1794 = vunpack.c.h.b16 %v1749
      %v1795 = vunpack.c.h.b16 %v1750
      %v1796 = vunpack.c.h.b16 %v1751
      %v1797 = vunpack.c.h.b16 %v1752
      %v1798 = vunpack.c.h.b16 %v1753
      %v1799 = vunpack.c.h.b16 %v1754
      %v1800 = vunpack.c.h.b16 %v1755
      %v1801 = vunpack.c.l.b16 %v1756
      %v1802 = vunpack.c.l.b16 %v1757
      %v1803 = vunpack.c.l.b16 %v1758
      %v1804 = vunpack.c.l.b16 %v1759
      %v1805 = vunpack.c.l.b16 %v1760
      %v1806 = vunpack.c.l.b16 %v1761
      %v1807 = vunpack.c.l.b16 %v1762
      %v1808 = vunpack.c.l.b16 %v1763
      %v1809 = vunpack.c.l.b16 %v1764
      %v1810 = vunpack.c.h.b16 %v1756
      %v1811 = vunpack.c.h.b16 %v1757
      %v1812 = vunpack.c.h.b16 %v1758
      %v1813 = vunpack.c.h.b16 %v1759
      %v1814 = vunpack.c.h.b16 %v1760
      %v1815 = vunpack.c.h.b16 %v1761
      %v1816 = vunpack.c.h.b16 %v1762
      %v1817 = vunpack.c.h.b16 %v1763
      %v1818 = vunpack.c.h.b16 %v1764
      %v1819 = vpack.c.b16 %v1784, %v1783
      %v1820 = vpack.c.b16 %v1786, %v1785
      %v1821 = vpack.c.b16 %v1788, %v1787
      %v1822 = vpack.c.b16 %v1790, %v1789
      %v1823 = vpack.c.b16 %v1791, %v1791
      %v1824 = vpack.c.b16 %v1793, %v1792
      %v1825 = vpack.c.b16 %v1795, %v1794
      %v1826 = vpack.c.b16 %v1797, %v1796
      %v1827 = vpack.c.b16 %v1799, %v1798
      %v1828 = vpack.c.b16 %v1800, %v1800
      %v1829 = vpack.c.b16 %v1802, %v1801
      %v1830 = vpack.c.b16 %v1804, %v1803
      %v1831 = vpack.c.b16 %v1806, %v1805
      %v1832 = vpack.c.b16 %v1808, %v1807
      %v1833 = vpack.c.b16 %v1809, %v1809
      %v1834 = vpack.c.b16 %v1811, %v1810
      %v1835 = vpack.c.b16 %v1813, %v1812
      %v1836 = vpack.c.b16 %v1815, %v1814
      %v1837 = vpack.c.b16 %v1817, %v1816
      %v1838 = vpack.c.b16 %v1818, %v1818
      %1859 = vst [vmem:[%s170] sm:$0xff] %v1819
      %1860 = vst [vmem:[%s170 + $0x8] sm:$0xff] %v1820
      %1861 = vst [vmem:[%s170 + $0x10] sm:$0xff] %v1821
      %1862 = vst [vmem:[%s170 + $0x18] sm:$0xff] %v1822
      %1863 = vst [vmem:[%s170 + $0x20] sm:$0xf] %v1823
      %1864 = vst [vmem:[%s170 + $0x24] sm:$0xff] %v1824
      %1865 = vst [vmem:[%s170 + $0x2c] sm:$0xff] %v1825
      %1866 = vst [vmem:[%s170 + $0x34] sm:$0xff] %v1826
      %1867 = vst [vmem:[%s170 + $0x3c] sm:$0xff] %v1827
      %1868 = vst [vmem:[%s170 + $0x44] sm:$0xf] %v1828
      %1869 = vst [vmem:[%s170 + $0x48] sm:$0xff] %v1829
      %1870 = vst [vmem:[%s170 + $0x50] sm:$0xff] %v1830
      %1871 = vst [vmem:[%s170 + $0x58] sm:$0xff] %v1831
      %1872 = vst [vmem:[%s170 + $0x60] sm:$0xff] %v1832
      %1873 = vst [vmem:[%s170 + $0x68] sm:$0xf] %v1833
      %1874 = vst [vmem:[%s170 + $0x6c] sm:$0xff] %v1834
      %1875 = vst [vmem:[%s170 + $0x74] sm:$0xff] %v1835
      %1876 = vst [vmem:[%s170 + $0x7c] sm:$0xff] %v1836
      %1877 = vst [vmem:[%s170 + $0x84] sm:$0xff] %v1837
      %1878 = vst [vmem:[%s170 + $0x8c] sm:$0xf] %v1838
      %p1879 = scmp.lt.s32.totalorder %s14, 1
      %s1880 = scalar_select %p1879, %s14, 1
      %s1881 = smul.addr %s1880, 36
      %s1882 = smul.addr %s1881, 4
      %s1883 = scalar_lea.vmem %s3, %s1882
      // Predicated region
      $region33: #{simple_cnn_forward.4} parent=31 // pred_check
        %p1884 = pneg %p100
      $region34: #{simple_cnn_forward.4} parent=31 // pred_check_branch
        %1886 = sbr.rel (%p1884) target = $region36
      $region35: #{simple_cnn_forward.4} parent=31 // pred_region
        _
      $region36: #{simple_cnn_forward.4} parent=31 // pred_fallthru
        _
    $region32: #{simple_cnn_forward.4} parent=5 // pred_fallthru
      _
    %p1887 = scmp.le.s32.totalorder 2, %s9
    // Predicated region
    $region37: #{simple_cnn_forward.4} parent=5 // pred_check
      %p1888 = pneg %p1887
    $region38: #{simple_cnn_forward.4} parent=5 // pred_check_branch
      %1890 = sbr.rel (%p1888) target = $region40
    $region39: #{simple_cnn_forward.4} parent=5 // pred_region
      %s1891 = ssub.s32 %s9, 2
      // Predicated region
      $region41: #{simple_cnn_forward.4} parent=39 // pred_check
        %p1892 = pneg %p106
      $region42: #{simple_cnn_forward.4} parent=39 // pred_check_branch
        %1894 = sbr.rel (%p1892) target = $region44
      $region43: #{simple_cnn_forward.4} parent=39 // pred_region
        %p1895 = scmp.lt.s32.totalorder %s15, 1
        %s1896 = scalar_select %p1895, %s15, 1
        %s1897 = smul.addr %s1896, 36
        %s1898 = smul.addr %s1897, 4
        %s1899 = scalar_lea.vmem %s3, %s1898
      $region44: #{simple_cnn_forward.4} parent=39 // pred_fallthru
        _
    $region40: #{simple_cnn_forward.4} parent=5 // pred_fallthru
      _
  $region6: #{simple_cnn_forward.4} parent=0 // loop_footer
    %s13 = sadd.s32 1, %s9
  $region7: #{simple_cnn_forward.4} parent=0 // loop_footer_branch
    %8 = sbr.rel target = $region3
  $region8: #{simple_cnn_forward.4} parent=0 // loop_exit
    _

// kernel: simple_cnn_forward.5
$region0: #{simple_cnn_forward.5}
  #allocation0 [shape = 'u32[]', space=smem, size = 0x4, offset = 0x4, fixed_abs, tag = 'smem constant byte address 0x4 - core index']
  #allocation1 [shape = 'u32[144,128]{1,0:T(1,128)}', space=vmem, size = 0x12000, scoped, tag = 'internal scratch']
  #allocation2 [shape = 'f32[2,128]{1,0:T(2,128)}', space=vmem, size = 0x400, scoped, tag = 'scratch operand']
  %s0 = inlined_call_operand.vmem [shape: bf16[2,32768], index: 0, kind: input, shape index: {}]
  %s1 = inlined_call_operand.vmem [shape: s8[32768,128], index: 1, kind: input, shape index: {}]
  %s2 = inlined_call_operand.vmem [shape: f32[1,128], index: 2, kind: input, shape index: {}]
  %s3 = inlined_call_operand.vmem [shape: f32[1,128], index: 3, kind: input, shape index: {}]
  %s4 = inlined_call_operand.vmem [shape: f32[128,2], index: 4, kind: input, shape index: {}]
  %s5 = inlined_call_operand.vmem [shape: f32[1,2], index: 5, kind: input, shape index: {}]
  %s6 = inlined_call_operand.hbm [shape: f32[2,2], index: 6, kind: output, shape index: {}]
  %s7 = sld [smem:[#allocation0]]
  $region65: #{simple_cnn_forward.5} parent=0
    _
  %s9 = ssub.s32 1, %s7
  %s10 = scalar_select 0, %s9, %s7
  $region1: #{simple_cnn_forward.5} parent=0
    #allocation3 [shape = 'u8[1024]{0}', space=vmem, size = 0x400, scoped, tag = 'output window, operand 0, single buffered']
    #allocation4 [shape = 's32[2]{0}', space=sflag, size = 0x8, scoped, tag = 'scoped memory for simple_cnn_forward.5']
    %11 = vsyncpa [#allocation4], 0
    loop: start=0, step=1, limit=6
    $region2: #{simple_cnn_forward.5} parent=1 // loop_pre_header
      _
    $region3: #{simple_cnn_forward.5} parent=1 // loop_header
      %s13 = sphi 0, %s17
      %p14 = scmp.ge.s32.totalorder %s13, 6
      %s23 = sphi 0, %s25
      %s26 = sphi 0, %s23
      %s27 = sphi 0, %s26
      %s43 = sphi 0, %s27
      %s49 = sphi 0, %s51
      %s52 = sphi 0, %s49
      %s53 = sphi 0, %s52
      %s69 = sphi 0, %s53
      %s73 = sphi 0, %s73
      %s75 = sphi 0, %s73
      %s76 = sphi 0, %s75
      %s90 = sphi 0, %s76
      %s94 = sphi 0, %s94
      %s96 = sphi 0, %s94
      %s97 = sphi 0, %s96
      %s111 = sphi 0, %s97
      %s115 = sphi 0, %s115
      %s117 = sphi 0, %s115
      %s118 = sphi 0, %s117
      %s132 = sphi 0, %s118
      %s136 = sphi 0, %s136
      %s138 = sphi 0, %s136
      %s139 = sphi 0, %s138
      %s153 = sphi 0, %s139
      %s157 = sphi 0, %s157
      %s159 = sphi 0, %s157
      %s160 = sphi 0, %s159
      %s174 = sphi 0, %s160
    $region4: #{simple_cnn_forward.5} parent=1 // loop_header_branch
      %16 = sbr.rel (%p14) target = $region8
    $region5: #{simple_cnn_forward.5} parent=1 // loop_body
      %s18 = ssub.s32 %s13, 1
      %s19 = ssub.s32 %s13, 2
      %s20 = sadd.s32 %s13, 1
      %s21 = ssub.s32 %s13, %s20
      %p22 = scmp.eq.s32.totalorder %s21, 0
      %s24 = sadd.s32 %s23, 1
      %s25 = scalar_select %p22, %s23, %s24
      %p28 = pneg %p22
      %p29 = scmp.eq.s32.totalorder %s13, 3
      %p30 = por %p28, %p29
      %p31 = scmp.ne.s32.totalorder %s23, %s26
      %p32 = scmp.eq.s32.totalorder %s13, 0
      %p33 = por %p31, %p32
      %p34 = scmp.ne.s32.totalorder %s23, %s26
      %p35 = scmp.eq.s32.totalorder %s18, 3
      %p36 = por %p34, %p35
      %p37 = scmp.ne.s32.totalorder %s26, %s27
      %p38 = scmp.eq.s32.totalorder %s18, 0
      %p39 = por %p37, %p38
      %p40 = scmp.ne.s32.totalorder %s26, %s27
      %p41 = scmp.eq.s32.totalorder %s19, 3
      %p42 = por %p40, %p41
      %p44 = scmp.ne.s32.totalorder %s27, %s43
      %p45 = scmp.eq.s32.totalorder %s19, 0
      %p46 = por %p44, %p45
      %s47 = ssub.s32 %s13, %s20
      %p48 = scmp.eq.s32.totalorder %s47, 0
      %s50 = sadd.s32 %s49, 1
      %s51 = scalar_select %p48, %s49, %s50
      %p54 = pneg %p48
      %p55 = scmp.eq.s32.totalorder %s13, 3
      %p56 = por %p54, %p55
      %p57 = scmp.ne.s32.totalorder %s49, %s52
      %p58 = scmp.eq.s32.totalorder %s13, 0
      %p59 = por %p57, %p58
      %p60 = scmp.ne.s32.totalorder %s49, %s52
      %p61 = scmp.eq.s32.totalorder %s18, 3
      %p62 = por %p60, %p61
      %p63 = scmp.ne.s32.totalorder %s52, %s53
      %p64 = scmp.eq.s32.totalorder %s18, 0
      %p65 = por %p63, %p64
      %p66 = scmp.ne.s32.totalorder %s52, %s53
      %p67 = scmp.eq.s32.totalorder %s19, 3
      %p68 = por %p66, %p67
      %p70 = scmp.ne.s32.totalorder %s53, %s69
      %p71 = scmp.eq.s32.totalorder %s19, 0
      %p72 = por %p70, %p71
      %s74 = sadd.s32 %s73, 1
      %p77 = scmp.eq.s32.totalorder %s13, 3
      %p78 = scmp.ne.s32.totalorder %s73, %s75
      %p79 = scmp.eq.s32.totalorder %s13, 0
      %p80 = por %p78, %p79
      %p81 = scmp.ne.s32.totalorder %s73, %s75
      %p82 = scmp.eq.s32.totalorder %s18, 3
      %p83 = por %p81, %p82
      %p84 = scmp.ne.s32.totalorder %s75, %s76
      %p85 = scmp.eq.s32.totalorder %s18, 0
      %p86 = por %p84, %p85
      %p87 = scmp.ne.s32.totalorder %s75, %s76
      %p88 = scmp.eq.s32.totalorder %s19, 3
      %p89 = por %p87, %p88
      %p91 = scmp.ne.s32.totalorder %s76, %s90
      %p92 = scmp.eq.s32.totalorder %s19, 0
      %p93 = por %p91, %p92
      %s95 = sadd.s32 %s94, 1
      %p98 = scmp.eq.s32.totalorder %s13, 3
      %p99 = scmp.ne.s32.totalorder %s94, %s96
      %p100 = scmp.eq.s32.totalorder %s13, 0
      %p101 = por %p99, %p100
      %p102 = scmp.ne.s32.totalorder %s94, %s96
      %p103 = scmp.eq.s32.totalorder %s18, 3
      %p104 = por %p102, %p103
      %p105 = scmp.ne.s32.totalorder %s96, %s97
      %p106 = scmp.eq.s32.totalorder %s18, 0
      %p107 = por %p105, %p106
      %p108 = scmp.ne.s32.totalorder %s96, %s97
      %p109 = scmp.eq.s32.totalorder %s19, 3
      %p110 = por %p108, %p109
      %p112 = scmp.ne.s32.totalorder %s97, %s111
      %p113 = scmp.eq.s32.totalorder %s19, 0
      %p114 = por %p112, %p113
      %s116 = sadd.s32 %s115, 1
      %p119 = scmp.eq.s32.totalorder %s13, 3
      %p120 = scmp.ne.s32.totalorder %s115, %s117
      %p121 = scmp.eq.s32.totalorder %s13, 0
      %p122 = por %p120, %p121
      %p123 = scmp.ne.s32.totalorder %s115, %s117
      %p124 = scmp.eq.s32.totalorder %s18, 3
      %p125 = por %p123, %p124
      %p126 = scmp.ne.s32.totalorder %s117, %s118
      %p127 = scmp.eq.s32.totalorder %s18, 0
      %p128 = por %p126, %p127
      %p129 = scmp.ne.s32.totalorder %s117, %s118
      %p130 = scmp.eq.s32.totalorder %s19, 3
      %p131 = por %p129, %p130
      %p133 = scmp.ne.s32.totalorder %s118, %s132
      %p134 = scmp.eq.s32.totalorder %s19, 0
      %p135 = por %p133, %p134
      %s137 = sadd.s32 %s136, 1
      %p140 = scmp.eq.s32.totalorder %s13, 3
      %p141 = scmp.ne.s32.totalorder %s136, %s138
      %p142 = scmp.eq.s32.totalorder %s13, 0
      %p143 = por %p141, %p142
      %p144 = scmp.ne.s32.totalorder %s136, %s138
      %p145 = scmp.eq.s32.totalorder %s18, 3
      %p146 = por %p144, %p145
      %p147 = scmp.ne.s32.totalorder %s138, %s139
      %p148 = scmp.eq.s32.totalorder %s18, 0
      %p149 = por %p147, %p148
      %p150 = scmp.ne.s32.totalorder %s138, %s139
      %p151 = scmp.eq.s32.totalorder %s19, 3
      %p152 = por %p150, %p151
      %p154 = scmp.ne.s32.totalorder %s139, %s153
      %p155 = scmp.eq.s32.totalorder %s19, 0
      %p156 = por %p154, %p155
      %s158 = sadd.s32 %s157, 1
      %p161 = scmp.eq.s32.totalorder %s13, 3
      %p162 = scmp.ne.s32.totalorder %s157, %s159
      %p163 = scmp.eq.s32.totalorder %s13, 0
      %p164 = por %p162, %p163
      %p165 = scmp.ne.s32.totalorder %s157, %s159
      %p166 = scmp.eq.s32.totalorder %s18, 3
      %p167 = por %p165, %p166
      %p168 = scmp.ne.s32.totalorder %s159, %s160
      %p169 = scmp.eq.s32.totalorder %s18, 0
      %p170 = por %p168, %p169
      %p171 = scmp.ne.s32.totalorder %s159, %s160
      %p172 = scmp.eq.s32.totalorder %s19, 3
      %p173 = por %p171, %p172
      %p175 = scmp.ne.s32.totalorder %s160, %s174
      %p176 = scmp.eq.s32.totalorder %s19, 0
      %p177 = por %p175, %p176
      %p178 = scmp.le.s32.totalorder 1, %s13
      %p179 = scmp.lt.s32.totalorder %s13, 5
      %p180 = pnand %p178, %p179
      %p181 = pneg %p180
      // Predicated region
      $region9: #{simple_cnn_forward.5} parent=5 // pred_check
        _
      $region10: #{simple_cnn_forward.5} parent=5 // pred_check_branch
        %183 = sbr.rel (%p180) target = $region12
      $region11: #{simple_cnn_forward.5} parent=5 // pred_region
        %s184 = ssub.s32 %s13, 1
        // Predicated region
        $region13: #{simple_cnn_forward.5} parent=11 // pred_check
          %p185 = pneg %p86
        $region14: #{simple_cnn_forward.5} parent=11 // pred_check_branch
          %187 = sbr.rel (%p185) target = $region16
        $region15: #{simple_cnn_forward.5} parent=11 // pred_region
          _
        $region16: #{simple_cnn_forward.5} parent=11 // pred_fallthru
          _
        // Predicated region
        $region17: #{simple_cnn_forward.5} parent=11 // pred_check
          %p188 = pneg %p107
        $region18: #{simple_cnn_forward.5} parent=11 // pred_check_branch
          %190 = sbr.rel (%p188) target = $region20
        $region19: #{simple_cnn_forward.5} parent=11 // pred_region
          _
        $region20: #{simple_cnn_forward.5} parent=11 // pred_fallthru
          _
        // Predicated region
        $region21: #{simple_cnn_forward.5} parent=11 // pred_check
          %p191 = pneg %p128
        $region22: #{simple_cnn_forward.5} parent=11 // pred_check_branch
          %193 = sbr.rel (%p191) target = $region24
        $region23: #{simple_cnn_forward.5} parent=11 // pred_region
          _
        $region24: #{simple_cnn_forward.5} parent=11 // pred_fallthru
          _
        // Predicated region
        $region25: #{simple_cnn_forward.5} parent=11 // pred_check
          %p194 = pneg %p149
        $region26: #{simple_cnn_forward.5} parent=11 // pred_check_branch
          %196 = sbr.rel (%p194) target = $region28
        $region27: #{simple_cnn_forward.5} parent=11 // pred_region
          _
        $region28: #{simple_cnn_forward.5} parent=11 // pred_fallthru
          _
      $region12: #{simple_cnn_forward.5} parent=5 // pred_fallthru
        _
      %p197 = scmp.lt.s32.totalorder %s13, 4
      // Predicated region
      $region29: #{simple_cnn_forward.5} parent=5 // pred_check
        %p198 = pneg %p197
      $region30: #{simple_cnn_forward.5} parent=5 // pred_check_branch
        %200 = sbr.rel (%p198) target = $region32
      $region31: #{simple_cnn_forward.5} parent=5 // pred_region
        // Predicated region
        $region33: #{simple_cnn_forward.5} parent=31 // pred_check
          %p201 = pneg %p33
        $region34: #{simple_cnn_forward.5} parent=31 // pred_check_branch
          %203 = sbr.rel (%p201) target = $region36
        $region35: #{simple_cnn_forward.5} parent=31 // pred_region
          %s204 = smul.u32 64, %s13
          %p205 = scmp.lt.s32.totalorder %s204, 255
          %s206 = scalar_select %p205, %s204, 255
          %s207 = scalar_lea.vmem %s0, %s206
          %s208 = smul.u32 64, %s13
        $region36: #{simple_cnn_forward.5} parent=31 // pred_fallthru
          _
        // Predicated region
        $region37: #{simple_cnn_forward.5} parent=31 // pred_check
          %p209 = pneg %p59
        $region38: #{simple_cnn_forward.5} parent=31 // pred_check_branch
          %211 = sbr.rel (%p209) target = $region40
        $region39: #{simple_cnn_forward.5} parent=31 // pred_region
          %s212 = smul.u32 256, %s13
          %p213 = scmp.lt.s32.totalorder %s212, 1023
          %s214 = scalar_select %p213, %s212, 1023
          %s215 = smul.addr %s214, 8
          %s216 = scalar_lea.vmem %s1, %s215
          %s217 = smul.u32 256, %s13
        $region40: #{simple_cnn_forward.5} parent=31 // pred_fallthru
          _
      $region32: #{simple_cnn_forward.5} parent=5 // pred_fallthru
        _
      %p218 = scmp.le.s32.totalorder 1, %s13
      %p219 = scmp.lt.s32.totalorder %s13, 5
      %p220 = pnand %p218, %p219
      %p221 = pneg %p220
      // Predicated region
      $region41: #{simple_cnn_forward.5} parent=5 // pred_check
        _
      $region42: #{simple_cnn_forward.5} parent=5 // pred_check_branch
        %223 = sbr.rel (%p220) target = $region44
      $region43: #{simple_cnn_forward.5} parent=5 // pred_region
        %s224 = ssub.s32 %s13, 1
        %s225 = smul.u32 64, %s18
        %p226 = scmp.lt.s32.totalorder %s225, 255
        %s227 = scalar_select %p226, %s225, 255
        %s228 = scalar_lea.vmem %s0, %s227
        %p229 = pneg %p39
        %p230 = pneg %p36
        %s231 = smul.u32 256, %s18
        %p232 = scmp.lt.s32.totalorder %s231, 1023
        %s233 = scalar_select %p232, %s231, 1023
        %s234 = smul.addr %s233, 8
        %s235 = scalar_lea.vmem %s1, %s234
        %p236 = pneg %p65
        %p237 = pneg %p62
        %p238 = pneg %p86
        %p239 = pneg %p83
        %p240 = pneg %p107
        %p241 = pneg %p104
        %p242 = pneg %p128
        %p243 = pneg %p125
        %p244 = pneg %p149
        %p245 = pneg %p146
        %p246 = pneg %p170
        %p247 = pneg %p167
        %s248 = smul.u32 64, %s18
        %p249 = scmp.lt.s32.totalorder %s248, 255
        %s250 = scalar_select %p249, %s248, 255
        %s251 = scalar_lea.vmem %s0, %s250
        %s252 = smul.u32 64, %s18
        %s253 = smul.u32 256, %s18
        %p254 = scmp.lt.s32.totalorder %s253, 1023
        %s255 = scalar_select %p254, %s253, 1023
        %s256 = smul.addr %s255, 8
        %s257 = scalar_lea.vmem %s1, %s256
        %s258 = smul.u32 256, %s18
        %p260 = scmp.eq.s32.totalorder %s18, 0
        // Predicated region
        $region45: #{simple_cnn_forward.5} parent=43 // pred_check
          %p261 = pneg %p260
        $region46: #{simple_cnn_forward.5} parent=43 // pred_check_branch
          %263 = sbr.rel (%p261) target = $region48
        $region47: #{simple_cnn_forward.5} parent=43 // pred_region
          %264 = vst [vmem:[#allocation2] sm:$0x3] 0.0
        $region48: #{simple_cnn_forward.5} parent=43 // pred_fallthru
          _
        %v265 = vld [vmem:[%s257] sm:$0xff]
        %v266 = vld [vmem:[%s257 + $0x8] sm:$0xff]
        %v267 = vld [vmem:[%s257 + $0x10] sm:$0xff]
        %v268 = vld [vmem:[%s257 + $0x18] sm:$0xff]
        %v269 = vld [vmem:[%s257 + $0x20] sm:$0xff]
        %v270 = vld [vmem:[%s257 + $0x28] sm:$0xff]
        %v271 = vld [vmem:[%s257 + $0x30] sm:$0xff]
        %v272 = vld [vmem:[%s257 + $0x38] sm:$0xff]
        %v273 = vld [vmem:[%s257 + $0x40] sm:$0xff]
        %v274 = vld [vmem:[%s257 + $0x48] sm:$0xff]
        %v275 = vld [vmem:[%s257 + $0x50] sm:$0xff]
        %v276 = vld [vmem:[%s257 + $0x58] sm:$0xff]
        %v277 = vld [vmem:[%s257 + $0x60] sm:$0xff]
        %v278 = vld [vmem:[%s257 + $0x68] sm:$0xff]
        %v279 = vld [vmem:[%s257 + $0x70] sm:$0xff]
        %v280 = vld [vmem:[%s257 + $0x78] sm:$0xff]
        %v281 = vld [vmem:[%s257 + $0x80] sm:$0xff]
        %v282 = vld [vmem:[%s257 + $0x88] sm:$0xff]
        %v283 = vld [vmem:[%s257 + $0x90] sm:$0xff]
        %v284 = vld [vmem:[%s257 + $0x98] sm:$0xff]
        %v285 = vld [vmem:[%s257 + $0xa0] sm:$0xff]
        %v286 = vld [vmem:[%s257 + $0xa8] sm:$0xff]
        %v287 = vld [vmem:[%s257 + $0xb0] sm:$0xff]
        %v288 = vld [vmem:[%s257 + $0xb8] sm:$0xff]
        %v289 = vld [vmem:[%s257 + $0xc0] sm:$0xff]
        %v290 = vld [vmem:[%s257 + $0xc8] sm:$0xff]
        %v291 = vld [vmem:[%s257 + $0xd0] sm:$0xff]
        %v292 = vld [vmem:[%s257 + $0xd8] sm:$0xff]
        %v293 = vld [vmem:[%s257 + $0xe0] sm:$0xff]
        %v294 = vld [vmem:[%s257 + $0xe8] sm:$0xff]
        %v295 = vld [vmem:[%s257 + $0xf0] sm:$0xff]
        %v296 = vld [vmem:[%s257 + $0xf8] sm:$0xff]
        %v297 = vld [vmem:[%s257 + $0x100] sm:$0xff]
        %v298 = vld [vmem:[%s257 + $0x108] sm:$0xff]
        %v299 = vld [vmem:[%s257 + $0x110] sm:$0xff]
        %v300 = vld [vmem:[%s257 + $0x118] sm:$0xff]
        %v301 = vld [vmem:[%s257 + $0x120] sm:$0xff]
        %v302 = vld [vmem:[%s257 + $0x128] sm:$0xff]
        %v303 = vld [vmem:[%s257 + $0x130] sm:$0xff]
        %v304 = vld [vmem:[%s257 + $0x138] sm:$0xff]
        %v305 = vld [vmem:[%s257 + $0x140] sm:$0xff]
        %v306 = vld [vmem:[%s257 + $0x148] sm:$0xff]
        %v307 = vld [vmem:[%s257 + $0x150] sm:$0xff]
        %v308 = vld [vmem:[%s257 + $0x158] sm:$0xff]
        %v309 = vld [vmem:[%s257 + $0x160] sm:$0xff]
        %v310 = vld [vmem:[%s257 + $0x168] sm:$0xff]
        %v311 = vld [vmem:[%s257 + $0x170] sm:$0xff]
        %v312 = vld [vmem:[%s257 + $0x178] sm:$0xff]
        %v313 = vld [vmem:[%s257 + $0x180] sm:$0xff]
        %v314 = vld [vmem:[%s257 + $0x188] sm:$0xff]
        %v315 = vld [vmem:[%s257 + $0x190] sm:$0xff]
        %v316 = vld [vmem:[%s257 + $0x198] sm:$0xff]
        %v317 = vld [vmem:[%s257 + $0x1a0] sm:$0xff]
        %v318 = vld [vmem:[%s257 + $0x1a8] sm:$0xff]
        %v319 = vld [vmem:[%s257 + $0x1b0] sm:$0xff]
        %v320 = vld [vmem:[%s257 + $0x1b8] sm:$0xff]
        %v321 = vld [vmem:[%s257 + $0x1c0] sm:$0xff]
        %v322 = vld [vmem:[%s257 + $0x1c8] sm:$0xff]
        %v323 = vld [vmem:[%s257 + $0x1d0] sm:$0xff]
        %v324 = vld [vmem:[%s257 + $0x1d8] sm:$0xff]
        %v325 = vld [vmem:[%s257 + $0x1e0] sm:$0xff]
        %v326 = vld [vmem:[%s257 + $0x1e8] sm:$0xff]
        %v327 = vld [vmem:[%s257 + $0x1f0] sm:$0xff]
        %v328 = vld [vmem:[%s257 + $0x1f8] sm:$0xff]
        %v329 = vld [vmem:[%s257 + $0x200] sm:$0xff]
        %v330 = vld [vmem:[%s257 + $0x208] sm:$0xff]
        %v331 = vld [vmem:[%s257 + $0x210] sm:$0xff]
        %v332 = vld [vmem:[%s257 + $0x218] sm:$0xff]
        %v333 = vld [vmem:[%s257 + $0x220] sm:$0xff]
        %v334 = vld [vmem:[%s257 + $0x228] sm:$0xff]
        %v335 = vld [vmem:[%s257 + $0x230] sm:$0xff]
        %v336 = vld [vmem:[%s257 + $0x238] sm:$0xff]
        %v337 = vld [vmem:[%s257 + $0x240] sm:$0xff]
        %v338 = vld [vmem:[%s257 + $0x248] sm:$0xff]
        %v339 = vld [vmem:[%s257 + $0x250] sm:$0xff]
        %v340 = vld [vmem:[%s257 + $0x258] sm:$0xff]
        %v341 = vld [vmem:[%s257 + $0x260] sm:$0xff]
        %v342 = vld [vmem:[%s257 + $0x268] sm:$0xff]
        %v343 = vld [vmem:[%s257 + $0x270] sm:$0xff]
        %v344 = vld [vmem:[%s257 + $0x278] sm:$0xff]
        %v345 = vld [vmem:[%s257 + $0x280] sm:$0xff]
        %v346 = vld [vmem:[%s257 + $0x288] sm:$0xff]
        %v347 = vld [vmem:[%s257 + $0x290] sm:$0xff]
        %v348 = vld [vmem:[%s257 + $0x298] sm:$0xff]
        %v349 = vld [vmem:[%s257 + $0x2a0] sm:$0xff]
        %v350 = vld [vmem:[%s257 + $0x2a8] sm:$0xff]
        %v351 = vld [vmem:[%s257 + $0x2b0] sm:$0xff]
        %v352 = vld [vmem:[%s257 + $0x2b8] sm:$0xff]
        %v353 = vld [vmem:[%s257 + $0x2c0] sm:$0xff]
        %v354 = vld [vmem:[%s257 + $0x2c8] sm:$0xff]
        %v355 = vld [vmem:[%s257 + $0x2d0] sm:$0xff]
        %v356 = vld [vmem:[%s257 + $0x2d8] sm:$0xff]
        %v357 = vld [vmem:[%s257 + $0x2e0] sm:$0xff]
        %v358 = vld [vmem:[%s257 + $0x2e8] sm:$0xff]
        %v359 = vld [vmem:[%s257 + $0x2f0] sm:$0xff]
        %v360 = vld [vmem:[%s257 + $0x2f8] sm:$0xff]
        %v361 = vld [vmem:[%s257 + $0x300] sm:$0xff]
        %v362 = vld [vmem:[%s257 + $0x308] sm:$0xff]
        %v363 = vld [vmem:[%s257 + $0x310] sm:$0xff]
        %v364 = vld [vmem:[%s257 + $0x318] sm:$0xff]
        %v365 = vld [vmem:[%s257 + $0x320] sm:$0xff]
        %v366 = vld [vmem:[%s257 + $0x328] sm:$0xff]
        %v367 = vld [vmem:[%s257 + $0x330] sm:$0xff]
        %v368 = vld [vmem:[%s257 + $0x338] sm:$0xff]
        %v369 = vld [vmem:[%s257 + $0x340] sm:$0xff]
        %v370 = vld [vmem:[%s257 + $0x348] sm:$0xff]
        %v371 = vld [vmem:[%s257 + $0x350] sm:$0xff]
        %v372 = vld [vmem:[%s257 + $0x358] sm:$0xff]
        %v373 = vld [vmem:[%s257 + $0x360] sm:$0xff]
        %v374 = vld [vmem:[%s257 + $0x368] sm:$0xff]
        %v375 = vld [vmem:[%s257 + $0x370] sm:$0xff]
        %v376 = vld [vmem:[%s257 + $0x378] sm:$0xff]
        %v377 = vld [vmem:[%s257 + $0x380] sm:$0xff]
        %v378 = vld [vmem:[%s257 + $0x388] sm:$0xff]
        %v379 = vld [vmem:[%s257 + $0x390] sm:$0xff]
        %v380 = vld [vmem:[%s257 + $0x398] sm:$0xff]
        %v381 = vld [vmem:[%s257 + $0x3a0] sm:$0xff]
        %v382 = vld [vmem:[%s257 + $0x3a8] sm:$0xff]
        %v383 = vld [vmem:[%s257 + $0x3b0] sm:$0xff]
        %v384 = vld [vmem:[%s257 + $0x3b8] sm:$0xff]
        %v385 = vld [vmem:[%s257 + $0x3c0] sm:$0xff]
        %v386 = vld [vmem:[%s257 + $0x3c8] sm:$0xff]
        %v387 = vld [vmem:[%s257 + $0x3d0] sm:$0xff]
        %v388 = vld [vmem:[%s257 + $0x3d8] sm:$0xff]
        %v389 = vld [vmem:[%s257 + $0x3e0] sm:$0xff]
        %v390 = vld [vmem:[%s257 + $0x3e8] sm:$0xff]
        %v391 = vld [vmem:[%s257 + $0x3f0] sm:$0xff]
        %v392 = vld [vmem:[%s257 + $0x3f8] sm:$0xff]
        %v393 = vld [vmem:[%s257 + $0x400] sm:$0xff]
        %v394 = vld [vmem:[%s257 + $0x408] sm:$0xff]
        %v395 = vld [vmem:[%s257 + $0x410] sm:$0xff]
        %v396 = vld [vmem:[%s257 + $0x418] sm:$0xff]
        %v397 = vld [vmem:[%s257 + $0x420] sm:$0xff]
        %v398 = vld [vmem:[%s257 + $0x428] sm:$0xff]
        %v399 = vld [vmem:[%s257 + $0x430] sm:$0xff]
        %v400 = vld [vmem:[%s257 + $0x438] sm:$0xff]
        %v401 = vld [vmem:[%s257 + $0x440] sm:$0xff]
        %v402 = vld [vmem:[%s257 + $0x448] sm:$0xff]
        %v403 = vld [vmem:[%s257 + $0x450] sm:$0xff]
        %v404 = vld [vmem:[%s257 + $0x458] sm:$0xff]
        %v405 = vld [vmem:[%s257 + $0x460] sm:$0xff]
        %v406 = vld [vmem:[%s257 + $0x468] sm:$0xff]
        %v407 = vld [vmem:[%s257 + $0x470] sm:$0xff]
        %v408 = vld [vmem:[%s257 + $0x478] sm:$0xff]
        %v409 = vld [vmem:[%s257 + $0x480] sm:$0xff]
        %v410 = vld [vmem:[%s257 + $0x488] sm:$0xff]
        %v411 = vld [vmem:[%s257 + $0x490] sm:$0xff]
        %v412 = vld [vmem:[%s257 + $0x498] sm:$0xff]
        %v413 = vld [vmem:[%s257 + $0x4a0] sm:$0xff]
        %v414 = vld [vmem:[%s257 + $0x4a8] sm:$0xff]
        %v415 = vld [vmem:[%s257 + $0x4b0] sm:$0xff]
        %v416 = vld [vmem:[%s257 + $0x4b8] sm:$0xff]
        %v417 = vld [vmem:[%s257 + $0x4c0] sm:$0xff]
        %v418 = vld [vmem:[%s257 + $0x4c8] sm:$0xff]
        %v419 = vld [vmem:[%s257 + $0x4d0] sm:$0xff]
        %v420 = vld [vmem:[%s257 + $0x4d8] sm:$0xff]
        %v421 = vld [vmem:[%s257 + $0x4e0] sm:$0xff]
        %v422 = vld [vmem:[%s257 + $0x4e8] sm:$0xff]
        %v423 = vld [vmem:[%s257 + $0x4f0] sm:$0xff]
        %v424 = vld [vmem:[%s257 + $0x4f8] sm:$0xff]
        %v425 = vld [vmem:[%s257 + $0x500] sm:$0xff]
        %v426 = vld [vmem:[%s257 + $0x508] sm:$0xff]
        %v427 = vld [vmem:[%s257 + $0x510] sm:$0xff]
        %v428 = vld [vmem:[%s257 + $0x518] sm:$0xff]
        %v429 = vld [vmem:[%s257 + $0x520] sm:$0xff]
        %v430 = vld [vmem:[%s257 + $0x528] sm:$0xff]
        %v431 = vld [vmem:[%s257 + $0x530] sm:$0xff]
        %v432 = vld [vmem:[%s257 + $0x538] sm:$0xff]
        %v433 = vld [vmem:[%s257 + $0x540] sm:$0xff]
        %v434 = vld [vmem:[%s257 + $0x548] sm:$0xff]
        %v435 = vld [vmem:[%s257 + $0x550] sm:$0xff]
        %v436 = vld [vmem:[%s257 + $0x558] sm:$0xff]
        %v437 = vld [vmem:[%s257 + $0x560] sm:$0xff]
        %v438 = vld [vmem:[%s257 + $0x568] sm:$0xff]
        %v439 = vld [vmem:[%s257 + $0x570] sm:$0xff]
        %v440 = vld [vmem:[%s257 + $0x578] sm:$0xff]
        %v441 = vld [vmem:[%s257 + $0x580] sm:$0xff]
        %v442 = vld [vmem:[%s257 + $0x588] sm:$0xff]
        %v443 = vld [vmem:[%s257 + $0x590] sm:$0xff]
        %v444 = vld [vmem:[%s257 + $0x598] sm:$0xff]
        %v445 = vld [vmem:[%s257 + $0x5a0] sm:$0xff]
        %v446 = vld [vmem:[%s257 + $0x5a8] sm:$0xff]
        %v447 = vld [vmem:[%s257 + $0x5b0] sm:$0xff]
        %v448 = vld [vmem:[%s257 + $0x5b8] sm:$0xff]
        %v449 = vld [vmem:[%s257 + $0x5c0] sm:$0xff]
        %v450 = vld [vmem:[%s257 + $0x5c8] sm:$0xff]
        %v451 = vld [vmem:[%s257 + $0x5d0] sm:$0xff]
        %v452 = vld [vmem:[%s257 + $0x5d8] sm:$0xff]
        %v453 = vld [vmem:[%s257 + $0x5e0] sm:$0xff]
        %v454 = vld [vmem:[%s257 + $0x5e8] sm:$0xff]
        %v455 = vld [vmem:[%s257 + $0x5f0] sm:$0xff]
        %v456 = vld [vmem:[%s257 + $0x5f8] sm:$0xff]
        %v457 = vld [vmem:[%s257 + $0x600] sm:$0xff]
        %v458 = vld [vmem:[%s257 + $0x608] sm:$0xff]
        %v459 = vld [vmem:[%s257 + $0x610] sm:$0xff]
        %v460 = vld [vmem:[%s257 + $0x618] sm:$0xff]
        %v461 = vld [vmem:[%s257 + $0x620] sm:$0xff]
        %v462 = vld [vmem:[%s257 + $0x628] sm:$0xff]
        %v463 = vld [vmem:[%s257 + $0x630] sm:$0xff]
        %v464 = vld [vmem:[%s257 + $0x638] sm:$0xff]
        %v465 = vld [vmem:[%s257 + $0x640] sm:$0xff]
        %v466 = vld [vmem:[%s257 + $0x648] sm:$0xff]
        %v467 = vld [vmem:[%s257 + $0x650] sm:$0xff]
        %v468 = vld [vmem:[%s257 + $0x658] sm:$0xff]
        %v469 = vld [vmem:[%s257 + $0x660] sm:$0xff]
        %v470 = vld [vmem:[%s257 + $0x668] sm:$0xff]
        %v471 = vld [vmem:[%s257 + $0x670] sm:$0xff]
        %v472 = vld [vmem:[%s257 + $0x678] sm:$0xff]
        %v473 = vld [vmem:[%s257 + $0x680] sm:$0xff]
        %v474 = vld [vmem:[%s257 + $0x688] sm:$0xff]
        %v475 = vld [vmem:[%s257 + $0x690] sm:$0xff]
        %v476 = vld [vmem:[%s257 + $0x698] sm:$0xff]
        %v477 = vld [vmem:[%s257 + $0x6a0] sm:$0xff]
        %v478 = vld [vmem:[%s257 + $0x6a8] sm:$0xff]
        %v479 = vld [vmem:[%s257 + $0x6b0] sm:$0xff]
        %v480 = vld [vmem:[%s257 + $0x6b8] sm:$0xff]
        %v481 = vld [vmem:[%s257 + $0x6c0] sm:$0xff]
        %v482 = vld [vmem:[%s257 + $0x6c8] sm:$0xff]
        %v483 = vld [vmem:[%s257 + $0x6d0] sm:$0xff]
        %v484 = vld [vmem:[%s257 + $0x6d8] sm:$0xff]
        %v485 = vld [vmem:[%s257 + $0x6e0] sm:$0xff]
        %v486 = vld [vmem:[%s257 + $0x6e8] sm:$0xff]
        %v487 = vld [vmem:[%s257 + $0x6f0] sm:$0xff]
        %v488 = vld [vmem:[%s257 + $0x6f8] sm:$0xff]
        %v489 = vld [vmem:[%s257 + $0x700] sm:$0xff]
        %v490 = vld [vmem:[%s257 + $0x708] sm:$0xff]
        %v491 = vld [vmem:[%s257 + $0x710] sm:$0xff]
        %v492 = vld [vmem:[%s257 + $0x718] sm:$0xff]
        %v493 = vld [vmem:[%s257 + $0x720] sm:$0xff]
        %v494 = vld [vmem:[%s257 + $0x728] sm:$0xff]
        %v495 = vld [vmem:[%s257 + $0x730] sm:$0xff]
        %v496 = vld [vmem:[%s257 + $0x738] sm:$0xff]
        %v497 = vld [vmem:[%s257 + $0x740] sm:$0xff]
        %v498 = vld [vmem:[%s257 + $0x748] sm:$0xff]
        %v499 = vld [vmem:[%s257 + $0x750] sm:$0xff]
        %v500 = vld [vmem:[%s257 + $0x758] sm:$0xff]
        %v501 = vld [vmem:[%s257 + $0x760] sm:$0xff]
        %v502 = vld [vmem:[%s257 + $0x768] sm:$0xff]
        %v503 = vld [vmem:[%s257 + $0x770] sm:$0xff]
        %v504 = vld [vmem:[%s257 + $0x778] sm:$0xff]
        %v505 = vld [vmem:[%s257 + $0x780] sm:$0xff]
        %v506 = vld [vmem:[%s257 + $0x788] sm:$0xff]
        %v507 = vld [vmem:[%s257 + $0x790] sm:$0xff]
        %v508 = vld [vmem:[%s257 + $0x798] sm:$0xff]
        %v509 = vld [vmem:[%s257 + $0x7a0] sm:$0xff]
        %v510 = vld [vmem:[%s257 + $0x7a8] sm:$0xff]
        %v511 = vld [vmem:[%s257 + $0x7b0] sm:$0xff]
        %v512 = vld [vmem:[%s257 + $0x7b8] sm:$0xff]
        %v513 = vld [vmem:[%s257 + $0x7c0] sm:$0xff]
        %v514 = vld [vmem:[%s257 + $0x7c8] sm:$0xff]
        %v515 = vld [vmem:[%s257 + $0x7d0] sm:$0xff]
        %v516 = vld [vmem:[%s257 + $0x7d8] sm:$0xff]
        %v517 = vld [vmem:[%s257 + $0x7e0] sm:$0xff]
        %v518 = vld [vmem:[%s257 + $0x7e8] sm:$0xff]
        %v519 = vld [vmem:[%s257 + $0x7f0] sm:$0xff]
        %v520 = vld [vmem:[%s257 + $0x7f8] sm:$0xff]
        %v521 = vunpack.c.l.s8.bf16 %v265
        %v522 = vunpack.c.h.s8.bf16 %v265
        %v523 = vunpack.c.l.s8.bf16 %v266
        %v524 = vunpack.c.h.s8.bf16 %v266
        %v525 = vunpack.c.l.s8.bf16 %v267
        %v526 = vunpack.c.h.s8.bf16 %v267
        %v527 = vunpack.c.l.s8.bf16 %v268
        %v528 = vunpack.c.h.s8.bf16 %v268
        %v529 = vunpack.c.l.s8.bf16 %v269
        %v530 = vunpack.c.h.s8.bf16 %v269
        %v531 = vunpack.c.l.s8.bf16 %v270
        %v532 = vunpack.c.h.s8.bf16 %v270
        %v533 = vunpack.c.l.s8.bf16 %v271
        %v534 = vunpack.c.h.s8.bf16 %v271
        %v535 = vunpack.c.l.s8.bf16 %v272
        %v536 = vunpack.c.h.s8.bf16 %v272
        %v537 = vunpack.c.l.s8.bf16 %v273
        %v538 = vunpack.c.h.s8.bf16 %v273
        %v539 = vunpack.c.l.s8.bf16 %v274
        %v540 = vunpack.c.h.s8.bf16 %v274
        %v541 = vunpack.c.l.s8.bf16 %v275
        %v542 = vunpack.c.h.s8.bf16 %v275
        %v543 = vunpack.c.l.s8.bf16 %v276
        %v544 = vunpack.c.h.s8.bf16 %v276
        %v545 = vunpack.c.l.s8.bf16 %v277
        %v546 = vunpack.c.h.s8.bf16 %v277
        %v547 = vunpack.c.l.s8.bf16 %v278
        %v548 = vunpack.c.h.s8.bf16 %v278
        %v549 = vunpack.c.l.s8.bf16 %v279
        %v550 = vunpack.c.h.s8.bf16 %v279
        %v551 = vunpack.c.l.s8.bf16 %v280
        %v552 = vunpack.c.h.s8.bf16 %v280
        %v553 = vunpack.c.l.s8.bf16 %v281
        %v554 = vunpack.c.h.s8.bf16 %v281
        %v555 = vunpack.c.l.s8.bf16 %v282
        %v556 = vunpack.c.h.s8.bf16 %v282
        %v557 = vunpack.c.l.s8.bf16 %v283
        %v558 = vunpack.c.h.s8.bf16 %v283
        %v559 = vunpack.c.l.s8.bf16 %v284
        %v560 = vunpack.c.h.s8.bf16 %v284
        %v561 = vunpack.c.l.s8.bf16 %v285
        %v562 = vunpack.c.h.s8.bf16 %v285
        %v563 = vunpack.c.l.s8.bf16 %v286
        %v564 = vunpack.c.h.s8.bf16 %v286
        %v565 = vunpack.c.l.s8.bf16 %v287
        %v566 = vunpack.c.h.s8.bf16 %v287
        %v567 = vunpack.c.l.s8.bf16 %v288
        %v568 = vunpack.c.h.s8.bf16 %v288
        %v569 = vunpack.c.l.s8.bf16 %v289
        %v570 = vunpack.c.h.s8.bf16 %v289
        %v571 = vunpack.c.l.s8.bf16 %v290
        %v572 = vunpack.c.h.s8.bf16 %v290
        %v573 = vunpack.c.l.s8.bf16 %v291
        %v574 = vunpack.c.h.s8.bf16 %v291
        %v575 = vunpack.c.l.s8.bf16 %v292
        %v576 = vunpack.c.h.s8.bf16 %v292
        %v577 = vunpack.c.l.s8.bf16 %v293
        %v578 = vunpack.c.h.s8.bf16 %v293
        %v579 = vunpack.c.l.s8.bf16 %v294
        %v580 = vunpack.c.h.s8.bf16 %v294
        %v581 = vunpack.c.l.s8.bf16 %v295
        %v582 = vunpack.c.h.s8.bf16 %v295
        %v583 = vunpack.c.l.s8.bf16 %v296
        %v584 = vunpack.c.h.s8.bf16 %v296
        %v585 = vunpack.c.l.s8.bf16 %v297
        %v586 = vunpack.c.h.s8.bf16 %v297
        %v587 = vunpack.c.l.s8.bf16 %v298
        %v588 = vunpack.c.h.s8.bf16 %v298
        %v589 = vunpack.c.l.s8.bf16 %v299
        %v590 = vunpack.c.h.s8.bf16 %v299
        %v591 = vunpack.c.l.s8.bf16 %v300
        %v592 = vunpack.c.h.s8.bf16 %v300
        %v593 = vunpack.c.l.s8.bf16 %v301
        %v594 = vunpack.c.h.s8.bf16 %v301
        %v595 = vunpack.c.l.s8.bf16 %v302
        %v596 = vunpack.c.h.s8.bf16 %v302
        %v597 = vunpack.c.l.s8.bf16 %v303
        %v598 = vunpack.c.h.s8.bf16 %v303
        %v599 = vunpack.c.l.s8.bf16 %v304
        %v600 = vunpack.c.h.s8.bf16 %v304
        %v601 = vunpack.c.l.s8.bf16 %v305
        %v602 = vunpack.c.h.s8.bf16 %v305
        %v603 = vunpack.c.l.s8.bf16 %v306
        %v604 = vunpack.c.h.s8.bf16 %v306
        %v605 = vunpack.c.l.s8.bf16 %v307
        %v606 = vunpack.c.h.s8.bf16 %v307
        %v607 = vunpack.c.l.s8.bf16 %v308
        %v608 = vunpack.c.h.s8.bf16 %v308
        %v609 = vunpack.c.l.s8.bf16 %v309
        %v610 = vunpack.c.h.s8.bf16 %v309
        %v611 = vunpack.c.l.s8.bf16 %v310
        %v612 = vunpack.c.h.s8.bf16 %v310
        %v613 = vunpack.c.l.s8.bf16 %v311
        %v614 = vunpack.c.h.s8.bf16 %v311
        %v615 = vunpack.c.l.s8.bf16 %v312
        %v616 = vunpack.c.h.s8.bf16 %v312
        %v617 = vunpack.c.l.s8.bf16 %v313
        %v618 = vunpack.c.h.s8.bf16 %v313
        %v619 = vunpack.c.l.s8.bf16 %v314
        %v620 = vunpack.c.h.s8.bf16 %v314
        %v621 = vunpack.c.l.s8.bf16 %v315
        %v622 = vunpack.c.h.s8.bf16 %v315
        %v623 = vunpack.c.l.s8.bf16 %v316
        %v624 = vunpack.c.h.s8.bf16 %v316
        %v625 = vunpack.c.l.s8.bf16 %v317
        %v626 = vunpack.c.h.s8.bf16 %v317
        %v627 = vunpack.c.l.s8.bf16 %v318
        %v628 = vunpack.c.h.s8.bf16 %v318
        %v629 = vunpack.c.l.s8.bf16 %v319
        %v630 = vunpack.c.h.s8.bf16 %v319
        %v631 = vunpack.c.l.s8.bf16 %v320
        %v632 = vunpack.c.h.s8.bf16 %v320
        %v633 = vunpack.c.l.s8.bf16 %v321
        %v634 = vunpack.c.h.s8.bf16 %v321
        %v635 = vunpack.c.l.s8.bf16 %v322
        %v636 = vunpack.c.h.s8.bf16 %v322
        %v637 = vunpack.c.l.s8.bf16 %v323
        %v638 = vunpack.c.h.s8.bf16 %v323
        %v639 = vunpack.c.l.s8.bf16 %v324
        %v640 = vunpack.c.h.s8.bf16 %v324
        %v641 = vunpack.c.l.s8.bf16 %v325
        %v642 = vunpack.c.h.s8.bf16 %v325
        %v643 = vunpack.c.l.s8.bf16 %v326
        %v644 = vunpack.c.h.s8.bf16 %v326
        %v645 = vunpack.c.l.s8.bf16 %v327
        %v646 = vunpack.c.h.s8.bf16 %v327
        %v647 = vunpack.c.l.s8.bf16 %v328
        %v648 = vunpack.c.h.s8.bf16 %v328
        %v649 = vunpack.c.l.s8.bf16 %v329
        %v650 = vunpack.c.h.s8.bf16 %v329
        %v651 = vunpack.c.l.s8.bf16 %v330
        %v652 = vunpack.c.h.s8.bf16 %v330
        %v653 = vunpack.c.l.s8.bf16 %v331
        %v654 = vunpack.c.h.s8.bf16 %v331
        %v655 = vunpack.c.l.s8.bf16 %v332
        %v656 = vunpack.c.h.s8.bf16 %v332
        %v657 = vunpack.c.l.s8.bf16 %v333
        %v658 = vunpack.c.h.s8.bf16 %v333
        %v659 = vunpack.c.l.s8.bf16 %v334
        %v660 = vunpack.c.h.s8.bf16 %v334
        %v661 = vunpack.c.l.s8.bf16 %v335
        %v662 = vunpack.c.h.s8.bf16 %v335
        %v663 = vunpack.c.l.s8.bf16 %v336
        %v664 = vunpack.c.h.s8.bf16 %v336
        %v665 = vunpack.c.l.s8.bf16 %v337
        %v666 = vunpack.c.h.s8.bf16 %v337
        %v667 = vunpack.c.l.s8.bf16 %v338
        %v668 = vunpack.c.h.s8.bf16 %v338
        %v669 = vunpack.c.l.s8.bf16 %v339
        %v670 = vunpack.c.h.s8.bf16 %v339
        %v671 = vunpack.c.l.s8.bf16 %v340
        %v672 = vunpack.c.h.s8.bf16 %v340
        %v673 = vunpack.c.l.s8.bf16 %v341
        %v674 = vunpack.c.h.s8.bf16 %v341
        %v675 = vunpack.c.l.s8.bf16 %v342
        %v676 = vunpack.c.h.s8.bf16 %v342
        %v677 = vunpack.c.l.s8.bf16 %v343
        %v678 = vunpack.c.h.s8.bf16 %v343
        %v679 = vunpack.c.l.s8.bf16 %v344
        %v680 = vunpack.c.h.s8.bf16 %v344
        %v681 = vunpack.c.l.s8.bf16 %v345
        %v682 = vunpack.c.h.s8.bf16 %v345
        %v683 = vunpack.c.l.s8.bf16 %v346
        %v684 = vunpack.c.h.s8.bf16 %v346
        %v685 = vunpack.c.l.s8.bf16 %v347
        %v686 = vunpack.c.h.s8.bf16 %v347
        %v687 = vunpack.c.l.s8.bf16 %v348
        %v688 = vunpack.c.h.s8.bf16 %v348
        %v689 = vunpack.c.l.s8.bf16 %v349
        %v690 = vunpack.c.h.s8.bf16 %v349
        %v691 = vunpack.c.l.s8.bf16 %v350
        %v692 = vunpack.c.h.s8.bf16 %v350
        %v693 = vunpack.c.l.s8.bf16 %v351
        %v694 = vunpack.c.h.s8.bf16 %v351
        %v695 = vunpack.c.l.s8.bf16 %v352
        %v696 = vunpack.c.h.s8.bf16 %v352
        %v697 = vunpack.c.l.s8.bf16 %v353
        %v698 = vunpack.c.h.s8.bf16 %v353
        %v699 = vunpack.c.l.s8.bf16 %v354
        %v700 = vunpack.c.h.s8.bf16 %v354
        %v701 = vunpack.c.l.s8.bf16 %v355
        %v702 = vunpack.c.h.s8.bf16 %v355
        %v703 = vunpack.c.l.s8.bf16 %v356
        %v704 = vunpack.c.h.s8.bf16 %v356
        %v705 = vunpack.c.l.s8.bf16 %v357
        %v706 = vunpack.c.h.s8.bf16 %v357
        %v707 = vunpack.c.l.s8.bf16 %v358
        %v708 = vunpack.c.h.s8.bf16 %v358
        %v709 = vunpack.c.l.s8.bf16 %v359
        %v710 = vunpack.c.h.s8.bf16 %v359
        %v711 = vunpack.c.l.s8.bf16 %v360
        %v712 = vunpack.c.h.s8.bf16 %v360
        %v713 = vunpack.c.l.s8.bf16 %v361
        %v714 = vunpack.c.h.s8.bf16 %v361
        %v715 = vunpack.c.l.s8.bf16 %v362
        %v716 = vunpack.c.h.s8.bf16 %v362
        %v717 = vunpack.c.l.s8.bf16 %v363
        %v718 = vunpack.c.h.s8.bf16 %v363
        %v719 = vunpack.c.l.s8.bf16 %v364
        %v720 = vunpack.c.h.s8.bf16 %v364
        %v721 = vunpack.c.l.s8.bf16 %v365
        %v722 = vunpack.c.h.s8.bf16 %v365
        %v723 = vunpack.c.l.s8.bf16 %v366
        %v724 = vunpack.c.h.s8.bf16 %v366
        %v725 = vunpack.c.l.s8.bf16 %v367
        %v726 = vunpack.c.h.s8.bf16 %v367
        %v727 = vunpack.c.l.s8.bf16 %v368
        %v728 = vunpack.c.h.s8.bf16 %v368
        %v729 = vunpack.c.l.s8.bf16 %v369
        %v730 = vunpack.c.h.s8.bf16 %v369
        %v731 = vunpack.c.l.s8.bf16 %v370
        %v732 = vunpack.c.h.s8.bf16 %v370
        %v733 = vunpack.c.l.s8.bf16 %v371
        %v734 = vunpack.c.h.s8.bf16 %v371
        %v735 = vunpack.c.l.s8.bf16 %v372
        %v736 = vunpack.c.h.s8.bf16 %v372
        %v737 = vunpack.c.l.s8.bf16 %v373
        %v738 = vunpack.c.h.s8.bf16 %v373
        %v739 = vunpack.c.l.s8.bf16 %v374
        %v740 = vunpack.c.h.s8.bf16 %v374
        %v741 = vunpack.c.l.s8.bf16 %v375
        %v742 = vunpack.c.h.s8.bf16 %v375
        %v743 = vunpack.c.l.s8.bf16 %v376
        %v744 = vunpack.c.h.s8.bf16 %v376
        %v745 = vunpack.c.l.s8.bf16 %v377
        %v746 = vunpack.c.h.s8.bf16 %v377
        %v747 = vunpack.c.l.s8.bf16 %v378
        %v748 = vunpack.c.h.s8.bf16 %v378
        %v749 = vunpack.c.l.s8.bf16 %v379
        %v750 = vunpack.c.h.s8.bf16 %v379
        %v751 = vunpack.c.l.s8.bf16 %v380
        %v752 = vunpack.c.h.s8.bf16 %v380
        %v753 = vunpack.c.l.s8.bf16 %v381
        %v754 = vunpack.c.h.s8.bf16 %v381
        %v755 = vunpack.c.l.s8.bf16 %v382
        %v756 = vunpack.c.h.s8.bf16 %v382
        %v757 = vunpack.c.l.s8.bf16 %v383
        %v758 = vunpack.c.h.s8.bf16 %v383
        %v759 = vunpack.c.l.s8.bf16 %v384
        %v760 = vunpack.c.h.s8.bf16 %v384
        %v761 = vunpack.c.l.s8.bf16 %v385
        %v762 = vunpack.c.h.s8.bf16 %v385
        %v763 = vunpack.c.l.s8.bf16 %v386
        %v764 = vunpack.c.h.s8.bf16 %v386
        %v765 = vunpack.c.l.s8.bf16 %v387
        %v766 = vunpack.c.h.s8.bf16 %v387
        %v767 = vunpack.c.l.s8.bf16 %v388
        %v768 = vunpack.c.h.s8.bf16 %v388
        %v769 = vunpack.c.l.s8.bf16 %v389
        %v770 = vunpack.c.h.s8.bf16 %v389
        %v771 = vunpack.c.l.s8.bf16 %v390
        %v772 = vunpack.c.h.s8.bf16 %v390
        %v773 = vunpack.c.l.s8.bf16 %v391
        %v774 = vunpack.c.h.s8.bf16 %v391
        %v775 = vunpack.c.l.s8.bf16 %v392
        %v776 = vunpack.c.h.s8.bf16 %v392
        %v777 = vunpack.c.l.s8.bf16 %v393
        %v778 = vunpack.c.h.s8.bf16 %v393
        %v779 = vunpack.c.l.s8.bf16 %v394
        %v780 = vunpack.c.h.s8.bf16 %v394
        %v781 = vunpack.c.l.s8.bf16 %v395
        %v782 = vunpack.c.h.s8.bf16 %v395
        %v783 = vunpack.c.l.s8.bf16 %v396
        %v784 = vunpack.c.h.s8.bf16 %v396
        %v785 = vunpack.c.l.s8.bf16 %v397
        %v786 = vunpack.c.h.s8.bf16 %v397
        %v787 = vunpack.c.l.s8.bf16 %v398
        %v788 = vunpack.c.h.s8.bf16 %v398
        %v789 = vunpack.c.l.s8.bf16 %v399
        %v790 = vunpack.c.h.s8.bf16 %v399
        %v791 = vunpack.c.l.s8.bf16 %v400
        %v792 = vunpack.c.h.s8.bf16 %v400
        %v793 = vunpack.c.l.s8.bf16 %v401
        %v794 = vunpack.c.h.s8.bf16 %v401
        %v795 = vunpack.c.l.s8.bf16 %v402
        %v796 = vunpack.c.h.s8.bf16 %v402
        %v797 = vunpack.c.l.s8.bf16 %v403
        %v798 = vunpack.c.h.s8.bf16 %v403
        %v799 = vunpack.c.l.s8.bf16 %v404
        %v800 = vunpack.c.h.s8.bf16 %v404
        %v801 = vunpack.c.l.s8.bf16 %v405
        %v802 = vunpack.c.h.s8.bf16 %v405
        %v803 = vunpack.c.l.s8.bf16 %v406
        %v804 = vunpack.c.h.s8.bf16 %v406
        %v805 = vunpack.c.l.s8.bf16 %v407
        %v806 = vunpack.c.h.s8.bf16 %v407
        %v807 = vunpack.c.l.s8.bf16 %v408
        %v808 = vunpack.c.h.s8.bf16 %v408
        %v809 = vunpack.c.l.s8.bf16 %v409
        %v810 = vunpack.c.h.s8.bf16 %v409
        %v811 = vunpack.c.l.s8.bf16 %v410
        %v812 = vunpack.c.h.s8.bf16 %v410
        %v813 = vunpack.c.l.s8.bf16 %v411
        %v814 = vunpack.c.h.s8.bf16 %v411
        %v815 = vunpack.c.l.s8.bf16 %v412
        %v816 = vunpack.c.h.s8.bf16 %v412
        %v817 = vunpack.c.l.s8.bf16 %v413
        %v818 = vunpack.c.h.s8.bf16 %v413
        %v819 = vunpack.c.l.s8.bf16 %v414
        %v820 = vunpack.c.h.s8.bf16 %v414
        %v821 = vunpack.c.l.s8.bf16 %v415
        %v822 = vunpack.c.h.s8.bf16 %v415
        %v823 = vunpack.c.l.s8.bf16 %v416
        %v824 = vunpack.c.h.s8.bf16 %v416
        %v825 = vunpack.c.l.s8.bf16 %v417
        %v826 = vunpack.c.h.s8.bf16 %v417
        %v827 = vunpack.c.l.s8.bf16 %v418
        %v828 = vunpack.c.h.s8.bf16 %v418
        %v829 = vunpack.c.l.s8.bf16 %v419
        %v830 = vunpack.c.h.s8.bf16 %v419
        %v831 = vunpack.c.l.s8.bf16 %v420
        %v832 = vunpack.c.h.s8.bf16 %v420
        %v833 = vunpack.c.l.s8.bf16 %v421
        %v834 = vunpack.c.h.s8.bf16 %v421
        %v835 = vunpack.c.l.s8.bf16 %v422
        %v836 = vunpack.c.h.s8.bf16 %v422
        %v837 = vunpack.c.l.s8.bf16 %v423
        %v838 = vunpack.c.h.s8.bf16 %v423
        %v839 = vunpack.c.l.s8.bf16 %v424
        %v840 = vunpack.c.h.s8.bf16 %v424
        %v841 = vunpack.c.l.s8.bf16 %v425
        %v842 = vunpack.c.h.s8.bf16 %v425
        %v843 = vunpack.c.l.s8.bf16 %v426
        %v844 = vunpack.c.h.s8.bf16 %v426
        %v845 = vunpack.c.l.s8.bf16 %v427
        %v846 = vunpack.c.h.s8.bf16 %v427
        %v847 = vunpack.c.l.s8.bf16 %v428
        %v848 = vunpack.c.h.s8.bf16 %v428
        %v849 = vunpack.c.l.s8.bf16 %v429
        %v850 = vunpack.c.h.s8.bf16 %v429
        %v851 = vunpack.c.l.s8.bf16 %v430
        %v852 = vunpack.c.h.s8.bf16 %v430
        %v853 = vunpack.c.l.s8.bf16 %v431
        %v854 = vunpack.c.h.s8.bf16 %v431
        %v855 = vunpack.c.l.s8.bf16 %v432
        %v856 = vunpack.c.h.s8.bf16 %v432
        %v857 = vunpack.c.l.s8.bf16 %v433
        %v858 = vunpack.c.h.s8.bf16 %v433
        %v859 = vunpack.c.l.s8.bf16 %v434
        %v860 = vunpack.c.h.s8.bf16 %v434
        %v861 = vunpack.c.l.s8.bf16 %v435
        %v862 = vunpack.c.h.s8.bf16 %v435
        %v863 = vunpack.c.l.s8.bf16 %v436
        %v864 = vunpack.c.h.s8.bf16 %v436
        %v865 = vunpack.c.l.s8.bf16 %v437
        %v866 = vunpack.c.h.s8.bf16 %v437
        %v867 = vunpack.c.l.s8.bf16 %v438
        %v868 = vunpack.c.h.s8.bf16 %v438
        %v869 = vunpack.c.l.s8.bf16 %v439
        %v870 = vunpack.c.h.s8.bf16 %v439
        %v871 = vunpack.c.l.s8.bf16 %v440
        %v872 = vunpack.c.h.s8.bf16 %v440
        %v873 = vunpack.c.l.s8.bf16 %v441
        %v874 = vunpack.c.h.s8.bf16 %v441
        %v875 = vunpack.c.l.s8.bf16 %v442
        %v876 = vunpack.c.h.s8.bf16 %v442
        %v877 = vunpack.c.l.s8.bf16 %v443
        %v878 = vunpack.c.h.s8.bf16 %v443
        %v879 = vunpack.c.l.s8.bf16 %v444
        %v880 = vunpack.c.h.s8.bf16 %v444
        %v881 = vunpack.c.l.s8.bf16 %v445
        %v882 = vunpack.c.h.s8.bf16 %v445
        %v883 = vunpack.c.l.s8.bf16 %v446
        %v884 = vunpack.c.h.s8.bf16 %v446
        %v885 = vunpack.c.l.s8.bf16 %v447
        %v886 = vunpack.c.h.s8.bf16 %v447
        %v887 = vunpack.c.l.s8.bf16 %v448
        %v888 = vunpack.c.h.s8.bf16 %v448
        %v889 = vunpack.c.l.s8.bf16 %v449
        %v890 = vunpack.c.h.s8.bf16 %v449
        %v891 = vunpack.c.l.s8.bf16 %v450
        %v892 = vunpack.c.h.s8.bf16 %v450
        %v893 = vunpack.c.l.s8.bf16 %v451
        %v894 = vunpack.c.h.s8.bf16 %v451
        %v895 = vunpack.c.l.s8.bf16 %v452
        %v896 = vunpack.c.h.s8.bf16 %v452
        %v897 = vunpack.c.l.s8.bf16 %v453
        %v898 = vunpack.c.h.s8.bf16 %v453
        %v899 = vunpack.c.l.s8.bf16 %v454
        %v900 = vunpack.c.h.s8.bf16 %v454
        %v901 = vunpack.c.l.s8.bf16 %v455
        %v902 = vunpack.c.h.s8.bf16 %v455
        %v903 = vunpack.c.l.s8.bf16 %v456
        %v904 = vunpack.c.h.s8.bf16 %v456
        %v905 = vunpack.c.l.s8.bf16 %v457
        %v906 = vunpack.c.h.s8.bf16 %v457
        %v907 = vunpack.c.l.s8.bf16 %v458
        %v908 = vunpack.c.h.s8.bf16 %v458
        %v909 = vunpack.c.l.s8.bf16 %v459
        %v910 = vunpack.c.h.s8.bf16 %v459
        %v911 = vunpack.c.l.s8.bf16 %v460
        %v912 = vunpack.c.h.s8.bf16 %v460
        %v913 = vunpack.c.l.s8.bf16 %v461
        %v914 = vunpack.c.h.s8.bf16 %v461
        %v915 = vunpack.c.l.s8.bf16 %v462
        %v916 = vunpack.c.h.s8.bf16 %v462
        %v917 = vunpack.c.l.s8.bf16 %v463
        %v918 = vunpack.c.h.s8.bf16 %v463
        %v919 = vunpack.c.l.s8.bf16 %v464
        %v920 = vunpack.c.h.s8.bf16 %v464
        %v921 = vunpack.c.l.s8.bf16 %v465
        %v922 = vunpack.c.h.s8.bf16 %v465
        %v923 = vunpack.c.l.s8.bf16 %v466
        %v924 = vunpack.c.h.s8.bf16 %v466
        %v925 = vunpack.c.l.s8.bf16 %v467
        %v926 = vunpack.c.h.s8.bf16 %v467
        %v927 = vunpack.c.l.s8.bf16 %v468
        %v928 = vunpack.c.h.s8.bf16 %v468
        %v929 = vunpack.c.l.s8.bf16 %v469
        %v930 = vunpack.c.h.s8.bf16 %v469
        %v931 = vunpack.c.l.s8.bf16 %v470
        %v932 = vunpack.c.h.s8.bf16 %v470
        %v933 = vunpack.c.l.s8.bf16 %v471
        %v934 = vunpack.c.h.s8.bf16 %v471
        %v935 = vunpack.c.l.s8.bf16 %v472
        %v936 = vunpack.c.h.s8.bf16 %v472
        %v937 = vunpack.c.l.s8.bf16 %v473
        %v938 = vunpack.c.h.s8.bf16 %v473
        %v939 = vunpack.c.l.s8.bf16 %v474
        %v940 = vunpack.c.h.s8.bf16 %v474
        %v941 = vunpack.c.l.s8.bf16 %v475
        %v942 = vunpack.c.h.s8.bf16 %v475
        %v943 = vunpack.c.l.s8.bf16 %v476
        %v944 = vunpack.c.h.s8.bf16 %v476
        %v945 = vunpack.c.l.s8.bf16 %v477
        %v946 = vunpack.c.h.s8.bf16 %v477
        %v947 = vunpack.c.l.s8.bf16 %v478
        %v948 = vunpack.c.h.s8.bf16 %v478
        %v949 = vunpack.c.l.s8.bf16 %v479
        %v950 = vunpack.c.h.s8.bf16 %v479
        %v951 = vunpack.c.l.s8.bf16 %v480
        %v952 = vunpack.c.h.s8.bf16 %v480
        %v953 = vunpack.c.l.s8.bf16 %v481
        %v954 = vunpack.c.h.s8.bf16 %v481
        %v955 = vunpack.c.l.s8.bf16 %v482
        %v956 = vunpack.c.h.s8.bf16 %v482
        %v957 = vunpack.c.l.s8.bf16 %v483
        %v958 = vunpack.c.h.s8.bf16 %v483
        %v959 = vunpack.c.l.s8.bf16 %v484
        %v960 = vunpack.c.h.s8.bf16 %v484
        %v961 = vunpack.c.l.s8.bf16 %v485
        %v962 = vunpack.c.h.s8.bf16 %v485
        %v963 = vunpack.c.l.s8.bf16 %v486
        %v964 = vunpack.c.h.s8.bf16 %v486
        %v965 = vunpack.c.l.s8.bf16 %v487
        %v966 = vunpack.c.h.s8.bf16 %v487
        %v967 = vunpack.c.l.s8.bf16 %v488
        %v968 = vunpack.c.h.s8.bf16 %v488
        %v969 = vunpack.c.l.s8.bf16 %v489
        %v970 = vunpack.c.h.s8.bf16 %v489
        %v971 = vunpack.c.l.s8.bf16 %v490
        %v972 = vunpack.c.h.s8.bf16 %v490
        %v973 = vunpack.c.l.s8.bf16 %v491
        %v974 = vunpack.c.h.s8.bf16 %v491
        %v975 = vunpack.c.l.s8.bf16 %v492
        %v976 = vunpack.c.h.s8.bf16 %v492
        %v977 = vunpack.c.l.s8.bf16 %v493
        %v978 = vunpack.c.h.s8.bf16 %v493
        %v979 = vunpack.c.l.s8.bf16 %v494
        %v980 = vunpack.c.h.s8.bf16 %v494
        %v981 = vunpack.c.l.s8.bf16 %v495
        %v982 = vunpack.c.h.s8.bf16 %v495
        %v983 = vunpack.c.l.s8.bf16 %v496
        %v984 = vunpack.c.h.s8.bf16 %v496
        %v985 = vunpack.c.l.s8.bf16 %v497
        %v986 = vunpack.c.h.s8.bf16 %v497
        %v987 = vunpack.c.l.s8.bf16 %v498
        %v988 = vunpack.c.h.s8.bf16 %v498
        %v989 = vunpack.c.l.s8.bf16 %v499
        %v990 = vunpack.c.h.s8.bf16 %v499
        %v991 = vunpack.c.l.s8.bf16 %v500
        %v992 = vunpack.c.h.s8.bf16 %v500
        %v993 = vunpack.c.l.s8.bf16 %v501
        %v994 = vunpack.c.h.s8.bf16 %v501
        %v995 = vunpack.c.l.s8.bf16 %v502
        %v996 = vunpack.c.h.s8.bf16 %v502
        %v997 = vunpack.c.l.s8.bf16 %v503
        %v998 = vunpack.c.h.s8.bf16 %v503
        %v999 = vunpack.c.l.s8.bf16 %v504
        %v1000 = vunpack.c.h.s8.bf16 %v504
        %v1001 = vunpack.c.l.s8.bf16 %v505
        %v1002 = vunpack.c.h.s8.bf16 %v505
        %v1003 = vunpack.c.l.s8.bf16 %v506
        %v1004 = vunpack.c.h.s8.bf16 %v506
        %v1005 = vunpack.c.l.s8.bf16 %v507
        %v1006 = vunpack.c.h.s8.bf16 %v507
        %v1007 = vunpack.c.l.s8.bf16 %v508
        %v1008 = vunpack.c.h.s8.bf16 %v508
        %v1009 = vunpack.c.l.s8.bf16 %v509
        %v1010 = vunpack.c.h.s8.bf16 %v509
        %v1011 = vunpack.c.l.s8.bf16 %v510
        %v1012 = vunpack.c.h.s8.bf16 %v510
        %v1013 = vunpack.c.l.s8.bf16 %v511
        %v1014 = vunpack.c.h.s8.bf16 %v511
        %v1015 = vunpack.c.l.s8.bf16 %v512
        %v1016 = vunpack.c.h.s8.bf16 %v512
        %v1017 = vunpack.c.l.s8.bf16 %v513
        %v1018 = vunpack.c.h.s8.bf16 %v513
        %v1019 = vunpack.c.l.s8.bf16 %v514
        %v1020 = vunpack.c.h.s8.bf16 %v514
        %v1021 = vunpack.c.l.s8.bf16 %v515
        %v1022 = vunpack.c.h.s8.bf16 %v515
        %v1023 = vunpack.c.l.s8.bf16 %v516
        %v1024 = vunpack.c.h.s8.bf16 %v516
        %v1025 = vunpack.c.l.s8.bf16 %v517
        %v1026 = vunpack.c.h.s8.bf16 %v517
        %v1027 = vunpack.c.l.s8.bf16 %v518
        %v1028 = vunpack.c.h.s8.bf16 %v518
        %v1029 = vunpack.c.l.s8.bf16 %v519
        %v1030 = vunpack.c.h.s8.bf16 %v519
        %v1031 = vunpack.c.l.s8.bf16 %v520
        %v1032 = vunpack.c.h.s8.bf16 %v520
        %v1033 = vld [vmem:[#allocation2] sm:$0x3]
        %v1034 = vld [vmem:[%s251] sm:$0xff]
        %v1035 = vld [vmem:[%s251 + $0x8] sm:$0xff]
        %v1036 = vld [vmem:[%s251 + $0x10] sm:$0xff]
        %v1037 = vld [vmem:[%s251 + $0x18] sm:$0xff]
        %v1038 = vld [vmem:[%s251 + $0x20] sm:$0xff]
        %v1039 = vld [vmem:[%s251 + $0x28] sm:$0xff]
        %v1040 = vld [vmem:[%s251 + $0x30] sm:$0xff]
        %v1041 = vld [vmem:[%s251 + $0x38] sm:$0xff]
        %v1050 = vcombine.high %v1034, %v1034
        %v1052 = vunpack.c.l.s4 1966171168
        %v1053 = vunpack.c.0.s8 %v1052
        %v1054 = vlaneseq
        %v1055 = vshrl.u32 %v1054, 7
        %v1056 = vsub.s32 %v1053, %v1055
        %v1057 = vrot.slane %v1034, %v1056
        %v1059 = vunpack.c.l.s4 1966171168
        %v1060 = vunpack.c.0.s8 %v1059
        %v1061 = vlaneseq
        %v1062 = vshrl.u32 %v1061, 7
        %v1063 = vsub.s32 %v1060, %v1062
        %v1064 = vrot.slane %v1050, %v1063
        %v1065 = vcombine.high %v1057, %v1057
        %v1066 = vcombine.high %v1064, %v1064
        %v1068 = vunpack.c.l.s4 1966171168
        %v1069 = vunpack.c.0.s8 %v1068
        %v1070 = vlaneseq
        %v1071 = vshrl.u32 %v1070, 7
        %v1072 = vsub.s32 %v1069, %v1071
        %v1073 = vrot.slane %v1057, %v1072
        %v1075 = vunpack.c.l.s4 1966171168
        %v1076 = vunpack.c.0.s8 %v1075
        %v1077 = vlaneseq
        %v1078 = vshrl.u32 %v1077, 7
        %v1079 = vsub.s32 %v1076, %v1078
        %v1080 = vrot.slane %v1064, %v1079
        %v1082 = vunpack.c.l.s4 1966171168
        %v1083 = vunpack.c.0.s8 %v1082
        %v1084 = vlaneseq
        %v1085 = vshrl.u32 %v1084, 7
        %v1086 = vsub.s32 %v1083, %v1085
        %v1087 = vrot.slane %v1065, %v1086
        %v1089 = vunpack.c.l.s4 1966171168
        %v1090 = vunpack.c.0.s8 %v1089
        %v1091 = vlaneseq
        %v1092 = vshrl.u32 %v1091, 7
        %v1093 = vsub.s32 %v1090, %v1092
        %v1094 = vrot.slane %v1066, %v1093
        %v1095 = vcombine.high %v1073, %v1073
        %v1096 = vcombine.high %v1080, %v1080
        %v1097 = vcombine.high %v1087, %v1087
        %v1098 = vcombine.high %v1094, %v1094
        %v1099 = vcombine.high %v1035, %v1035
        %v1101 = vunpack.c.l.s4 1966171168
        %v1102 = vunpack.c.0.s8 %v1101
        %v1103 = vlaneseq
        %v1104 = vshrl.u32 %v1103, 7
        %v1105 = vsub.s32 %v1102, %v1104
        %v1106 = vrot.slane %v1035, %v1105
        %v1108 = vunpack.c.l.s4 1966171168
        %v1109 = vunpack.c.0.s8 %v1108
        %v1110 = vlaneseq
        %v1111 = vshrl.u32 %v1110, 7
        %v1112 = vsub.s32 %v1109, %v1111
        %v1113 = vrot.slane %v1099, %v1112
        %v1114 = vcombine.high %v1106, %v1106
        %v1115 = vcombine.high %v1113, %v1113
        %v1117 = vunpack.c.l.s4 1966171168
        %v1118 = vunpack.c.0.s8 %v1117
        %v1119 = vlaneseq
        %v1120 = vshrl.u32 %v1119, 7
        %v1121 = vsub.s32 %v1118, %v1120
        %v1122 = vrot.slane %v1106, %v1121
        %v1124 = vunpack.c.l.s4 1966171168
        %v1125 = vunpack.c.0.s8 %v1124
        %v1126 = vlaneseq
        %v1127 = vshrl.u32 %v1126, 7
        %v1128 = vsub.s32 %v1125, %v1127
        %v1129 = vrot.slane %v1113, %v1128
        %v1131 = vunpack.c.l.s4 1966171168
        %v1132 = vunpack.c.0.s8 %v1131
        %v1133 = vlaneseq
        %v1134 = vshrl.u32 %v1133, 7
        %v1135 = vsub.s32 %v1132, %v1134
        %v1136 = vrot.slane %v1114, %v1135
        %v1138 = vunpack.c.l.s4 1966171168
        %v1139 = vunpack.c.0.s8 %v1138
        %v1140 = vlaneseq
        %v1141 = vshrl.u32 %v1140, 7
        %v1142 = vsub.s32 %v1139, %v1141
        %v1143 = vrot.slane %v1115, %v1142
        %v1144 = vcombine.high %v1122, %v1122
        %v1145 = vcombine.high %v1129, %v1129
        %v1146 = vcombine.high %v1136, %v1136
        %v1147 = vcombine.high %v1143, %v1143
        %v1148 = vcombine.high %v1036, %v1036
        %v1150 = vunpack.c.l.s4 1966171168
        %v1151 = vunpack.c.0.s8 %v1150
        %v1152 = vlaneseq
        %v1153 = vshrl.u32 %v1152, 7
        %v1154 = vsub.s32 %v1151, %v1153
        %v1155 = vrot.slane %v1036, %v1154
        %v1157 = vunpack.c.l.s4 1966171168
        %v1158 = vunpack.c.0.s8 %v1157
        %v1159 = vlaneseq
        %v1160 = vshrl.u32 %v1159, 7
        %v1161 = vsub.s32 %v1158, %v1160
        %v1162 = vrot.slane %v1148, %v1161
        %v1163 = vcombine.high %v1155, %v1155
        %v1164 = vcombine.high %v1162, %v1162
        %v1166 = vunpack.c.l.s4 1966171168
        %v1167 = vunpack.c.0.s8 %v1166
        %v1168 = vlaneseq
        %v1169 = vshrl.u32 %v1168, 7
        %v1170 = vsub.s32 %v1167, %v1169
        %v1171 = vrot.slane %v1155, %v1170
        %v1173 = vunpack.c.l.s4 1966171168
        %v1174 = vunpack.c.0.s8 %v1173
        %v1175 = vlaneseq
        %v1176 = vshrl.u32 %v1175, 7
        %v1177 = vsub.s32 %v1174, %v1176
        %v1178 = vrot.slane %v1162, %v1177
        %v1180 = vunpack.c.l.s4 1966171168
        %v1181 = vunpack.c.0.s8 %v1180
        %v1182 = vlaneseq
        %v1183 = vshrl.u32 %v1182, 7
        %v1184 = vsub.s32 %v1181, %v1183
        %v1185 = vrot.slane %v1163, %v1184
        %v1187 = vunpack.c.l.s4 1966171168
        %v1188 = vunpack.c.0.s8 %v1187
        %v1189 = vlaneseq
        %v1190 = vshrl.u32 %v1189, 7
        %v1191 = vsub.s32 %v1188, %v1190
        %v1192 = vrot.slane %v1164, %v1191
        %v1193 = vcombine.high %v1171, %v1171
        %v1194 = vcombine.high %v1178, %v1178
        %v1195 = vcombine.high %v1185, %v1185
        %v1196 = vcombine.high %v1192, %v1192
        %v1197 = vcombine.high %v1037, %v1037
        %v1199 = vunpack.c.l.s4 1966171168
        %v1200 = vunpack.c.0.s8 %v1199
        %v1201 = vlaneseq
        %v1202 = vshrl.u32 %v1201, 7
        %v1203 = vsub.s32 %v1200, %v1202
        %v1204 = vrot.slane %v1037, %v1203
        %v1206 = vunpack.c.l.s4 1966171168
        %v1207 = vunpack.c.0.s8 %v1206
        %v1208 = vlaneseq
        %v1209 = vshrl.u32 %v1208, 7
        %v1210 = vsub.s32 %v1207, %v1209
        %v1211 = vrot.slane %v1197, %v1210
        %v1212 = vcombine.high %v1204, %v1204
        %v1213 = vcombine.high %v1211, %v1211
        %v1215 = vunpack.c.l.s4 1966171168
        %v1216 = vunpack.c.0.s8 %v1215
        %v1217 = vlaneseq
        %v1218 = vshrl.u32 %v1217, 7
        %v1219 = vsub.s32 %v1216, %v1218
        %v1220 = vrot.slane %v1204, %v1219
        %v1222 = vunpack.c.l.s4 1966171168
        %v1223 = vunpack.c.0.s8 %v1222
        %v1224 = vlaneseq
        %v1225 = vshrl.u32 %v1224, 7
        %v1226 = vsub.s32 %v1223, %v1225
        %v1227 = vrot.slane %v1211, %v1226
        %v1229 = vunpack.c.l.s4 1966171168
        %v1230 = vunpack.c.0.s8 %v1229
        %v1231 = vlaneseq
        %v1232 = vshrl.u32 %v1231, 7
        %v1233 = vsub.s32 %v1230, %v1232
        %v1234 = vrot.slane %v1212, %v1233
        %v1236 = vunpack.c.l.s4 1966171168
        %v1237 = vunpack.c.0.s8 %v1236
        %v1238 = vlaneseq
        %v1239 = vshrl.u32 %v1238, 7
        %v1240 = vsub.s32 %v1237, %v1239
        %v1241 = vrot.slane %v1213, %v1240
        %v1242 = vcombine.high %v1220, %v1220
        %v1243 = vcombine.high %v1227, %v1227
        %v1244 = vcombine.high %v1234, %v1234
        %v1245 = vcombine.high %v1241, %v1241
        %v1246 = vcombine.high %v1038, %v1038
        %v1248 = vunpack.c.l.s4 1966171168
        %v1249 = vunpack.c.0.s8 %v1248
        %v1250 = vlaneseq
        %v1251 = vshrl.u32 %v1250, 7
        %v1252 = vsub.s32 %v1249, %v1251
        %v1253 = vrot.slane %v1038, %v1252
        %v1255 = vunpack.c.l.s4 1966171168
        %v1256 = vunpack.c.0.s8 %v1255
        %v1257 = vlaneseq
        %v1258 = vshrl.u32 %v1257, 7
        %v1259 = vsub.s32 %v1256, %v1258
        %v1260 = vrot.slane %v1246, %v1259
        %v1261 = vcombine.high %v1253, %v1253
        %v1262 = vcombine.high %v1260, %v1260
        %v1264 = vunpack.c.l.s4 1966171168
        %v1265 = vunpack.c.0.s8 %v1264
        %v1266 = vlaneseq
        %v1267 = vshrl.u32 %v1266, 7
        %v1268 = vsub.s32 %v1265, %v1267
        %v1269 = vrot.slane %v1253, %v1268
        %v1271 = vunpack.c.l.s4 1966171168
        %v1272 = vunpack.c.0.s8 %v1271
        %v1273 = vlaneseq
        %v1274 = vshrl.u32 %v1273, 7
        %v1275 = vsub.s32 %v1272, %v1274
        %v1276 = vrot.slane %v1260, %v1275
        %v1278 = vunpack.c.l.s4 1966171168
        %v1279 = vunpack.c.0.s8 %v1278
        %v1280 = vlaneseq
        %v1281 = vshrl.u32 %v1280, 7
        %v1282 = vsub.s32 %v1279, %v1281
        %v1283 = vrot.slane %v1261, %v1282
        %v1285 = vunpack.c.l.s4 1966171168
        %v1286 = vunpack.c.0.s8 %v1285
        %v1287 = vlaneseq
        %v1288 = vshrl.u32 %v1287, 7
        %v1289 = vsub.s32 %v1286, %v1288
        %v1290 = vrot.slane %v1262, %v1289
        %v1291 = vcombine.high %v1269, %v1269
        %v1292 = vcombine.high %v1276, %v1276
        %v1293 = vcombine.high %v1283, %v1283
        %v1294 = vcombine.high %v1290, %v1290
        %v1295 = vcombine.high %v1039, %v1039
        %v1297 = vunpack.c.l.s4 1966171168
        %v1298 = vunpack.c.0.s8 %v1297
        %v1299 = vlaneseq
        %v1300 = vshrl.u32 %v1299, 7
        %v1301 = vsub.s32 %v1298, %v1300
        %v1302 = vrot.slane %v1039, %v1301
        %v1304 = vunpack.c.l.s4 1966171168
        %v1305 = vunpack.c.0.s8 %v1304
        %v1306 = vlaneseq
        %v1307 = vshrl.u32 %v1306, 7
        %v1308 = vsub.s32 %v1305, %v1307
        %v1309 = vrot.slane %v1295, %v1308
        %v1310 = vcombine.high %v1302, %v1302
        %v1311 = vcombine.high %v1309, %v1309
        %v1313 = vunpack.c.l.s4 1966171168
        %v1314 = vunpack.c.0.s8 %v1313
        %v1315 = vlaneseq
        %v1316 = vshrl.u32 %v1315, 7
        %v1317 = vsub.s32 %v1314, %v1316
        %v1318 = vrot.slane %v1302, %v1317
        %v1320 = vunpack.c.l.s4 1966171168
        %v1321 = vunpack.c.0.s8 %v1320
        %v1322 = vlaneseq
        %v1323 = vshrl.u32 %v1322, 7
        %v1324 = vsub.s32 %v1321, %v1323
        %v1325 = vrot.slane %v1309, %v1324
        %v1327 = vunpack.c.l.s4 1966171168
        %v1328 = vunpack.c.0.s8 %v1327
        %v1329 = vlaneseq
        %v1330 = vshrl.u32 %v1329, 7
        %v1331 = vsub.s32 %v1328, %v1330
        %v1332 = vrot.slane %v1310, %v1331
        %v1334 = vunpack.c.l.s4 1966171168
        %v1335 = vunpack.c.0.s8 %v1334
        %v1336 = vlaneseq
        %v1337 = vshrl.u32 %v1336, 7
        %v1338 = vsub.s32 %v1335, %v1337
        %v1339 = vrot.slane %v1311, %v1338
        %v1340 = vcombine.high %v1318, %v1318
        %v1341 = vcombine.high %v1325, %v1325
        %v1342 = vcombine.high %v1332, %v1332
        %v1343 = vcombine.high %v1339, %v1339
        %v1344 = vcombine.high %v1040, %v1040
        %v1346 = vunpack.c.l.s4 1966171168
        %v1347 = vunpack.c.0.s8 %v1346
        %v1348 = vlaneseq
        %v1349 = vshrl.u32 %v1348, 7
        %v1350 = vsub.s32 %v1347, %v1349
        %v1351 = vrot.slane %v1040, %v1350
        %v1353 = vunpack.c.l.s4 1966171168
        %v1354 = vunpack.c.0.s8 %v1353
        %v1355 = vlaneseq
        %v1356 = vshrl.u32 %v1355, 7
        %v1357 = vsub.s32 %v1354, %v1356
        %v1358 = vrot.slane %v1344, %v1357
        %v1359 = vcombine.high %v1351, %v1351
        %v1360 = vcombine.high %v1358, %v1358
        %v1362 = vunpack.c.l.s4 1966171168
        %v1363 = vunpack.c.0.s8 %v1362
        %v1364 = vlaneseq
        %v1365 = vshrl.u32 %v1364, 7
        %v1366 = vsub.s32 %v1363, %v1365
        %v1367 = vrot.slane %v1351, %v1366
        %v1369 = vunpack.c.l.s4 1966171168
        %v1370 = vunpack.c.0.s8 %v1369
        %v1371 = vlaneseq
        %v1372 = vshrl.u32 %v1371, 7
        %v1373 = vsub.s32 %v1370, %v1372
        %v1374 = vrot.slane %v1358, %v1373
        %v1376 = vunpack.c.l.s4 1966171168
        %v1377 = vunpack.c.0.s8 %v1376
        %v1378 = vlaneseq
        %v1379 = vshrl.u32 %v1378, 7
        %v1380 = vsub.s32 %v1377, %v1379
        %v1381 = vrot.slane %v1359, %v1380
        %v1383 = vunpack.c.l.s4 1966171168
        %v1384 = vunpack.c.0.s8 %v1383
        %v1385 = vlaneseq
        %v1386 = vshrl.u32 %v1385, 7
        %v1387 = vsub.s32 %v1384, %v1386
        %v1388 = vrot.slane %v1360, %v1387
        %v1389 = vcombine.high %v1367, %v1367
        %v1390 = vcombine.high %v1374, %v1374
        %v1391 = vcombine.high %v1381, %v1381
        %v1392 = vcombine.high %v1388, %v1388
        %v1393 = vcombine.high %v1041, %v1041
        %v1395 = vunpack.c.l.s4 1966171168
        %v1396 = vunpack.c.0.s8 %v1395
        %v1397 = vlaneseq
        %v1398 = vshrl.u32 %v1397, 7
        %v1399 = vsub.s32 %v1396, %v1398
        %v1400 = vrot.slane %v1041, %v1399
        %v1402 = vunpack.c.l.s4 1966171168
        %v1403 = vunpack.c.0.s8 %v1402
        %v1404 = vlaneseq
        %v1405 = vshrl.u32 %v1404, 7
        %v1406 = vsub.s32 %v1403, %v1405
        %v1407 = vrot.slane %v1393, %v1406
        %v1408 = vcombine.high %v1400, %v1400
        %v1409 = vcombine.high %v1407, %v1407
        %v1411 = vunpack.c.l.s4 1966171168
        %v1412 = vunpack.c.0.s8 %v1411
        %v1413 = vlaneseq
        %v1414 = vshrl.u32 %v1413, 7
        %v1415 = vsub.s32 %v1412, %v1414
        %v1416 = vrot.slane %v1400, %v1415
        %v1418 = vunpack.c.l.s4 1966171168
        %v1419 = vunpack.c.0.s8 %v1418
        %v1420 = vlaneseq
        %v1421 = vshrl.u32 %v1420, 7
        %v1422 = vsub.s32 %v1419, %v1421
        %v1423 = vrot.slane %v1407, %v1422
        %v1425 = vunpack.c.l.s4 1966171168
        %v1426 = vunpack.c.0.s8 %v1425
        %v1427 = vlaneseq
        %v1428 = vshrl.u32 %v1427, 7
        %v1429 = vsub.s32 %v1426, %v1428
        %v1430 = vrot.slane %v1408, %v1429
        %v1432 = vunpack.c.l.s4 1966171168
        %v1433 = vunpack.c.0.s8 %v1432
        %v1434 = vlaneseq
        %v1435 = vshrl.u32 %v1434, 7
        %v1436 = vsub.s32 %v1433, %v1435
        %v1437 = vrot.slane %v1409, %v1436
        %v1438 = vcombine.high %v1416, %v1416
        %v1439 = vcombine.high %v1423, %v1423
        %v1440 = vcombine.high %v1430, %v1430
        %v1441 = vcombine.high %v1437, %v1437
        %1506 = vmatprep.subr.bf16.mxu0 0
        %1507 = vmatpush1.bf16.msra.mxu0 %v521
        %1508 = vmatprep.subr.bf16.mxu0 0
        %1509 = vmatpush1.bf16.msra.mxu0 %v522
        %1510 = vmatprep.subr.bf16.mxu0 0
        %1511 = vmatpush1.bf16.msra.mxu0 %v523
        %1512 = vmatprep.subr.bf16.mxu0 0
        %1513 = vmatpush1.bf16.msra.mxu0 %v524
        %1514 = vmatprep.subr.bf16.mxu0 0
        %1515 = vmatpush1.bf16.msra.mxu0 %v525
        %1516 = vmatprep.subr.bf16.mxu0 0
        %1517 = vmatpush1.bf16.msra.mxu0 %v526
        %1518 = vmatprep.subr.bf16.mxu0 0
        %1519 = vmatpush1.bf16.msra.mxu0 %v527
        %1520 = vmatprep.subr.bf16.mxu0 0
        %1521 = vmatpush1.bf16.msra.mxu0 %v528
        %1522 = vmatprep.subr.bf16.mxu0 0
        %1523 = vmatpush1.bf16.msra.mxu0 %v529
        %1524 = vmatprep.subr.bf16.mxu0 0
        %1525 = vmatpush1.bf16.msra.mxu0 %v530
        %1526 = vmatprep.subr.bf16.mxu0 0
        %1527 = vmatpush1.bf16.msra.mxu0 %v531
        %1528 = vmatprep.subr.bf16.mxu0 0
        %1529 = vmatpush1.bf16.msra.mxu0 %v532
        %1530 = vmatprep.subr.bf16.mxu0 0
        %1531 = vmatpush1.bf16.msra.mxu0 %v533
        %1532 = vmatprep.subr.bf16.mxu0 0
        %1533 = vmatpush1.bf16.msra.mxu0 %v534
        %1534 = vmatprep.subr.bf16.mxu0 0
        %1535 = vmatpush1.bf16.msra.mxu0 %v535
        %1536 = vmatprep.subr.bf16.mxu0 0
        %1537 = vmatpush1.bf16.msra.mxu0 %v536
        %1538 = vmatprep.mubr.bf16.mxu0 %v1087
        %1539 = vmatmul.mubr.bf16.gmra.mrb[0].mxu0 %v1073
        %v1540 = vpop.f32.mrb[0].mxu0
        %v1541 = vadd.f32 0.0, %v1540
        %v1542 = vpop.f32.mrb[0].mxu0
        %v1543 = vpop.f32.mrb[0].mxu0
        %v1544 = vpop.f32.mrb[0].mxu0
        %1545 = vdwg.mxu0
        %1546 = vmatprep.subr.bf16.mxu0 0
        %1547 = vmatpush1.bf16.msra.mxu0 %v537
        %1548 = vmatprep.subr.bf16.mxu0 0
        %1549 = vmatpush1.bf16.msra.mxu0 %v538
        %1550 = vmatprep.subr.bf16.mxu0 0
        %1551 = vmatpush1.bf16.msra.mxu0 %v539
        %1552 = vmatprep.subr.bf16.mxu0 0
        %1553 = vmatpush1.bf16.msra.mxu0 %v540
        %1554 = vmatprep.subr.bf16.mxu0 0
        %1555 = vmatpush1.bf16.msra.mxu0 %v541
        %1556 = vmatprep.subr.bf16.mxu0 0
        %1557 = vmatpush1.bf16.msra.mxu0 %v542
        %1558 = vmatprep.subr.bf16.mxu0 0
        %1559 = vmatpush1.bf16.msra.mxu0 %v543
        %1560 = vmatprep.subr.bf16.mxu0 0
        %1561 = vmatpush1.bf16.msra.mxu0 %v544
        %1562 = vmatprep.subr.bf16.mxu0 0
        %1563 = vmatpush1.bf16.msra.mxu0 %v545
        %1564 = vmatprep.subr.bf16.mxu0 0
        %1565 = vmatpush1.bf16.msra.mxu0 %v546
        %1566 = vmatprep.subr.bf16.mxu0 0
        %1567 = vmatpush1.bf16.msra.mxu0 %v547
        %1568 = vmatprep.subr.bf16.mxu0 0
        %1569 = vmatpush1.bf16.msra.mxu0 %v548
        %1570 = vmatprep.subr.bf16.mxu0 0
        %1571 = vmatpush1.bf16.msra.mxu0 %v549
        %1572 = vmatprep.subr.bf16.mxu0 0
        %1573 = vmatpush1.bf16.msra.mxu0 %v550
        %1574 = vmatprep.subr.bf16.mxu0 0
        %1575 = vmatpush1.bf16.msra.mxu0 %v551
        %1576 = vmatprep.subr.bf16.mxu0 0
        %1577 = vmatpush1.bf16.msra.mxu0 %v552
        %1578 = vmatprep.mubr.bf16.mxu0 %v1097
        %1579 = vmatmul.mubr.bf16.gmra.mrb[0].mxu0 %v1095
        %v1580 = vpop.f32.mrb[0].mxu0
        %v1581 = vadd.f32 %v1541, %v1580
        %v1582 = vpop.f32.mrb[0].mxu0
        %v1583 = vpop.f32.mrb[0].mxu0
        %v1584 = vpop.f32.mrb[0].mxu0
        %1585 = vdwg.mxu0
        %1586 = vmatprep.subr.bf16.mxu0 0
        %1587 = vmatpush1.bf16.msra.mxu0 %v553
        %1588 = vmatprep.subr.bf16.mxu0 0
        %1589 = vmatpush1.bf16.msra.mxu0 %v554
        %1590 = vmatprep.subr.bf16.mxu0 0
        %1591 = vmatpush1.bf16.msra.mxu0 %v555
        %1592 = vmatprep.subr.bf16.mxu0 0
        %1593 = vmatpush1.bf16.msra.mxu0 %v556
        %1594 = vmatprep.subr.bf16.mxu0 0
        %1595 = vmatpush1.bf16.msra.mxu0 %v557
        %1596 = vmatprep.subr.bf16.mxu0 0
        %1597 = vmatpush1.bf16.msra.mxu0 %v558
        %1598 = vmatprep.subr.bf16.mxu0 0
        %1599 = vmatpush1.bf16.msra.mxu0 %v559
        %1600 = vmatprep.subr.bf16.mxu0 0
        %1601 = vmatpush1.bf16.msra.mxu0 %v560
        %1602 = vmatprep.subr.bf16.mxu0 0
        %1603 = vmatpush1.bf16.msra.mxu0 %v561
        %1604 = vmatprep.subr.bf16.mxu0 0
        %1605 = vmatpush1.bf16.msra.mxu0 %v562
        %1606 = vmatprep.subr.bf16.mxu0 0
        %1607 = vmatpush1.bf16.msra.mxu0 %v563
        %1608 = vmatprep.subr.bf16.mxu0 0
        %1609 = vmatpush1.bf16.msra.mxu0 %v564
        %1610 = vmatprep.subr.bf16.mxu0 0
        %1611 = vmatpush1.bf16.msra.mxu0 %v565
        %1612 = vmatprep.subr.bf16.mxu0 0
        %1613 = vmatpush1.bf16.msra.mxu0 %v566
        %1614 = vmatprep.subr.bf16.mxu0 0
        %1615 = vmatpush1.bf16.msra.mxu0 %v567
        %1616 = vmatprep.subr.bf16.mxu0 0
        %1617 = vmatpush1.bf16.msra.mxu0 %v568
        %1618 = vmatprep.mubr.bf16.mxu0 %v1094
        %1619 = vmatmul.mubr.bf16.gmra.mrb[0].mxu0 %v1080
        %v1620 = vpop.f32.mrb[0].mxu0
        %v1621 = vadd.f32 %v1581, %v1620
        %v1622 = vpop.f32.mrb[0].mxu0
        %v1623 = vpop.f32.mrb[0].mxu0
        %v1624 = vpop.f32.mrb[0].mxu0
        %1625 = vdwg.mxu0
        %1626 = vmatprep.subr.bf16.mxu0 0
        %1627 = vmatpush1.bf16.msra.mxu0 %v569
        %1628 = vmatprep.subr.bf16.mxu0 0
        %1629 = vmatpush1.bf16.msra.mxu0 %v570
        %1630 = vmatprep.subr.bf16.mxu0 0
        %1631 = vmatpush1.bf16.msra.mxu0 %v571
        %1632 = vmatprep.subr.bf16.mxu0 0
        %1633 = vmatpush1.bf16.msra.mxu0 %v572
        %1634 = vmatprep.subr.bf16.mxu0 0
        %1635 = vmatpush1.bf16.msra.mxu0 %v573
        %1636 = vmatprep.subr.bf16.mxu0 0
        %1637 = vmatpush1.bf16.msra.mxu0 %v574
        %1638 = vmatprep.subr.bf16.mxu0 0
        %1639 = vmatpush1.bf16.msra.mxu0 %v575
        %1640 = vmatprep.subr.bf16.mxu0 0
        %1641 = vmatpush1.bf16.msra.mxu0 %v576
        %1642 = vmatprep.subr.bf16.mxu0 0
        %1643 = vmatpush1.bf16.msra.mxu0 %v577
        %1644 = vmatprep.subr.bf16.mxu0 0
        %1645 = vmatpush1.bf16.msra.mxu0 %v578
        %1646 = vmatprep.subr.bf16.mxu0 0
        %1647 = vmatpush1.bf16.msra.mxu0 %v579
        %1648 = vmatprep.subr.bf16.mxu0 0
        %1649 = vmatpush1.bf16.msra.mxu0 %v580
        %1650 = vmatprep.subr.bf16.mxu0 0
        %1651 = vmatpush1.bf16.msra.mxu0 %v581
        %1652 = vmatprep.subr.bf16.mxu0 0
        %1653 = vmatpush1.bf16.msra.mxu0 %v582
        %1654 = vmatprep.subr.bf16.mxu0 0
        %1655 = vmatpush1.bf16.msra.mxu0 %v583
        %1656 = vmatprep.subr.bf16.mxu0 0
        %1657 = vmatpush1.bf16.msra.mxu0 %v584
        %1658 = vmatprep.mubr.bf16.mxu0 %v1098
        %1659 = vmatmul.mubr.bf16.gmra.mrb[0].mxu0 %v1096
        %v1660 = vpop.f32.mrb[0].mxu0
        %v1661 = vadd.f32 %v1621, %v1660
        %v1662 = vpop.f32.mrb[0].mxu0
        %v1663 = vpop.f32.mrb[0].mxu0
        %v1664 = vpop.f32.mrb[0].mxu0
        %1665 = vdwg.mxu0
        %1666 = vmatprep.subr.bf16.mxu0 0
        %1667 = vmatpush1.bf16.msra.mxu0 %v585
        %1668 = vmatprep.subr.bf16.mxu0 0
        %1669 = vmatpush1.bf16.msra.mxu0 %v586
        %1670 = vmatprep.subr.bf16.mxu0 0
        %1671 = vmatpush1.bf16.msra.mxu0 %v587
        %1672 = vmatprep.subr.bf16.mxu0 0
        %1673 = vmatpush1.bf16.msra.mxu0 %v588
        %1674 = vmatprep.subr.bf16.mxu0 0
        %1675 = vmatpush1.bf16.msra.mxu0 %v589
        %1676 = vmatprep.subr.bf16.mxu0 0
        %1677 = vmatpush1.bf16.msra.mxu0 %v590
        %1678 = vmatprep.subr.bf16.mxu0 0
        %1679 = vmatpush1.bf16.msra.mxu0 %v591
        %1680 = vmatprep.subr.bf16.mxu0 0
        %1681 = vmatpush1.bf16.msra.mxu0 %v592
        %1682 = vmatprep.subr.bf16.mxu0 0
        %1683 = vmatpush1.bf16.msra.mxu0 %v593
        %1684 = vmatprep.subr.bf16.mxu0 0
        %1685 = vmatpush1.bf16.msra.mxu0 %v594
        %1686 = vmatprep.subr.bf16.mxu0 0
        %1687 = vmatpush1.bf16.msra.mxu0 %v595
        %1688 = vmatprep.subr.bf16.mxu0 0
        %1689 = vmatpush1.bf16.msra.mxu0 %v596
        %1690 = vmatprep.subr.bf16.mxu0 0
        %1691 = vmatpush1.bf16.msra.mxu0 %v597
        %1692 = vmatprep.subr.bf16.mxu0 0
        %1693 = vmatpush1.bf16.msra.mxu0 %v598
        %1694 = vmatprep.subr.bf16.mxu0 0
        %1695 = vmatpush1.bf16.msra.mxu0 %v599
        %1696 = vmatprep.subr.bf16.mxu0 0
        %1697 = vmatpush1.bf16.msra.mxu0 %v600
        %1698 = vmatprep.mubr.bf16.mxu0 %v1136
        %1699 = vmatmul.mubr.bf16.gmra.mrb[0].mxu0 %v1122
        %v1700 = vpop.f32.mrb[0].mxu0
        %v1701 = vadd.f32 %v1661, %v1700
        %v1702 = vpop.f32.mrb[0].mxu0
        %v1703 = vpop.f32.mrb[0].mxu0
        %v1704 = vpop.f32.mrb[0].mxu0
        %1705 = vdwg.mxu0
        %1706 = vmatprep.subr.bf16.mxu0 0
        %1707 = vmatpush1.bf16.msra.mxu0 %v601
        %1708 = vmatprep.subr.bf16.mxu0 0
        %1709 = vmatpush1.bf16.msra.mxu0 %v602
        %1710 = vmatprep.subr.bf16.mxu0 0
        %1711 = vmatpush1.bf16.msra.mxu0 %v603
        %1712 = vmatprep.subr.bf16.mxu0 0
        %1713 = vmatpush1.bf16.msra.mxu0 %v604
        %1714 = vmatprep.subr.bf16.mxu0 0
        %1715 = vmatpush1.bf16.msra.mxu0 %v605
        %1716 = vmatprep.subr.bf16.mxu0 0
        %1717 = vmatpush1.bf16.msra.mxu0 %v606
        %1718 = vmatprep.subr.bf16.mxu0 0
        %1719 = vmatpush1.bf16.msra.mxu0 %v607
        %1720 = vmatprep.subr.bf16.mxu0 0
        %1721 = vmatpush1.bf16.msra.mxu0 %v608
        %1722 = vmatprep.subr.bf16.mxu0 0
        %1723 = vmatpush1.bf16.msra.mxu0 %v609
        %1724 = vmatprep.subr.bf16.mxu0 0
        %1725 = vmatpush1.bf16.msra.mxu0 %v610
        %1726 = vmatprep.subr.bf16.mxu0 0
        %1727 = vmatpush1.bf16.msra.mxu0 %v611
        %1728 = vmatprep.subr.bf16.mxu0 0
        %1729 = vmatpush1.bf16.msra.mxu0 %v612
        %1730 = vmatprep.subr.bf16.mxu0 0
        %1731 = vmatpush1.bf16.msra.mxu0 %v613
        %1732 = vmatprep.subr.bf16.mxu0 0
        %1733 = vmatpush1.bf16.msra.mxu0 %v614
        %1734 = vmatprep.subr.bf16.mxu0 0
        %1735 = vmatpush1.bf16.msra.mxu0 %v615
        %1736 = vmatprep.subr.bf16.mxu0 0
        %1737 = vmatpush1.bf16.msra.mxu0 %v616
        %1738 = vmatprep.mubr.bf16.mxu0 %v1146
        %1739 = vmatmul.mubr.bf16.gmra.mrb[0].mxu0 %v1144
        %v1740 = vpop.f32.mrb[0].mxu0
        %v1741 = vadd.f32 %v1701, %v1740
        %v1742 = vpop.f32.mrb[0].mxu0
        %v1743 = vpop.f32.mrb[0].mxu0
        %v1744 = vpop.f32.mrb[0].mxu0
        %1745 = vdwg.mxu0
        %1746 = vmatprep.subr.bf16.mxu0 0
        %1747 = vmatpush1.bf16.msra.mxu0 %v617
        %1748 = vmatprep.subr.bf16.mxu0 0
        %1749 = vmatpush1.bf16.msra.mxu0 %v618
        %1750 = vmatprep.subr.bf16.mxu0 0
        %1751 = vmatpush1.bf16.msra.mxu0 %v619
        %1752 = vmatprep.subr.bf16.mxu0 0
        %1753 = vmatpush1.bf16.msra.mxu0 %v620
        %1754 = vmatprep.subr.bf16.mxu0 0
        %1755 = vmatpush1.bf16.msra.mxu0 %v621
        %1756 = vmatprep.subr.bf16.mxu0 0
        %1757 = vmatpush1.bf16.msra.mxu0 %v622
        %1758 = vmatprep.subr.bf16.mxu0 0
        %1759 = vmatpush1.bf16.msra.mxu0 %v623
        %1760 = vmatprep.subr.bf16.mxu0 0
        %1761 = vmatpush1.bf16.msra.mxu0 %v624
        %1762 = vmatprep.subr.bf16.mxu0 0
        %1763 = vmatpush1.bf16.msra.mxu0 %v625
        %1764 = vmatprep.subr.bf16.mxu0 0
        %1765 = vmatpush1.bf16.msra.mxu0 %v626
        %1766 = vmatprep.subr.bf16.mxu0 0
        %1767 = vmatpush1.bf16.msra.mxu0 %v627
        %1768 = vmatprep.subr.bf16.mxu0 0
        %1769 = vmatpush1.bf16.msra.mxu0 %v628
        %1770 = vmatprep.subr.bf16.mxu0 0
        %1771 = vmatpush1.bf16.msra.mxu0 %v629
        %1772 = vmatprep.subr.bf16.mxu0 0
        %1773 = vmatpush1.bf16.msra.mxu0 %v630
        %1774 = vmatprep.subr.bf16.mxu0 0
        %1775 = vmatpush1.bf16.msra.mxu0 %v631
        %1776 = vmatprep.subr.bf16.mxu0 0
        %1777 = vmatpush1.bf16.msra.mxu0 %v632
        %1778 = vmatprep.mubr.bf16.mxu0 %v1143
        %1779 = vmatmul.mubr.bf16.gmra.mrb[0].mxu0 %v1129
        %v1780 = vpop.f32.mrb[0].mxu0
        %v1781 = vadd.f32 %v1741, %v1780
        %v1782 = vpop.f32.mrb[0].mxu0
        %v1783 = vpop.f32.mrb[0].mxu0
        %v1784 = vpop.f32.mrb[0].mxu0
        %1785 = vdwg.mxu0
        %1786 = vmatprep.subr.bf16.mxu0 0
        %1787 = vmatpush1.bf16.msra.mxu0 %v633
        %1788 = vmatprep.subr.bf16.mxu0 0
        %1789 = vmatpush1.bf16.msra.mxu0 %v634
        %1790 = vmatprep.subr.bf16.mxu0 0
        %1791 = vmatpush1.bf16.msra.mxu0 %v635
        %1792 = vmatprep.subr.bf16.mxu0 0
        %1793 = vmatpush1.bf16.msra.mxu0 %v636
        %1794 = vmatprep.subr.bf16.mxu0 0
        %1795 = vmatpush1.bf16.msra.mxu0 %v637
        %1796 = vmatprep.subr.bf16.mxu0 0
        %1797 = vmatpush1.bf16.msra.mxu0 %v638
        %1798 = vmatprep.subr.bf16.mxu0 0
        %1799 = vmatpush1.bf16.msra.mxu0 %v639
        %1800 = vmatprep.subr.bf16.mxu0 0
        %1801 = vmatpush1.bf16.msra.mxu0 %v640
        %1802 = vmatprep.subr.bf16.mxu0 0
        %1803 = vmatpush1.bf16.msra.mxu0 %v641
        %1804 = vmatprep.subr.bf16.mxu0 0
        %1805 = vmatpush1.bf16.msra.mxu0 %v642
        %1806 = vmatprep.subr.bf16.mxu0 0
        %1807 = vmatpush1.bf16.msra.mxu0 %v643
        %1808 = vmatprep.subr.bf16.mxu0 0
        %1809 = vmatpush1.bf16.msra.mxu0 %v644
        %1810 = vmatprep.subr.bf16.mxu0 0
        %1811 = vmatpush1.bf16.msra.mxu0 %v645
        %1812 = vmatprep.subr.bf16.mxu0 0
        %1813 = vmatpush1.bf16.msra.mxu0 %v646
        %1814 = vmatprep.subr.bf16.mxu0 0
        %1815 = vmatpush1.bf16.msra.mxu0 %v647
        %1816 = vmatprep.subr.bf16.mxu0 0
        %1817 = vmatpush1.bf16.msra.mxu0 %v648
        %1818 = vmatprep.mubr.bf16.mxu0 %v1147
        %1819 = vmatmul.mubr.bf16.gmra.mrb[0].mxu0 %v1145
        %v1820 = vpop.f32.mrb[0].mxu0
        %v1821 = vadd.f32 %v1781, %v1820
        %v1822 = vpop.f32.mrb[0].mxu0
        %v1823 = vpop.f32.mrb[0].mxu0
        %v1824 = vpop.f32.mrb[0].mxu0
        %1825 = vdwg.mxu0
        %1826 = vmatprep.subr.bf16.mxu0 0
        %1827 = vmatpush1.bf16.msra.mxu0 %v649
        %1828 = vmatprep.subr.bf16.mxu0 0
        %1829 = vmatpush1.bf16.msra.mxu0 %v650
        %1830 = vmatprep.subr.bf16.mxu0 0
        %1831 = vmatpush1.bf16.msra.mxu0 %v651
        %1832 = vmatprep.subr.bf16.mxu0 0
        %1833 = vmatpush1.bf16.msra.mxu0 %v652
        %1834 = vmatprep.subr.bf16.mxu0 0
        %1835 = vmatpush1.bf16.msra.mxu0 %v653
        %1836 = vmatprep.subr.bf16.mxu0 0
        %1837 = vmatpush1.bf16.msra.mxu0 %v654
        %1838 = vmatprep.subr.bf16.mxu0 0
        %1839 = vmatpush1.bf16.msra.mxu0 %v655
        %1840 = vmatprep.subr.bf16.mxu0 0
        %1841 = vmatpush1.bf16.msra.mxu0 %v656
        %1842 = vmatprep.subr.bf16.mxu0 0
        %1843 = vmatpush1.bf16.msra.mxu0 %v657
        %1844 = vmatprep.subr.bf16.mxu0 0
        %1845 = vmatpush1.bf16.msra.mxu0 %v658
        %1846 = vmatprep.subr.bf16.mxu0 0
        %1847 = vmatpush1.bf16.msra.mxu0 %v659
        %1848 = vmatprep.subr.bf16.mxu0 0
        %1849 = vmatpush1.bf16.msra.mxu0 %v660
        %1850 = vmatprep.subr.bf16.mxu0 0
        %1851 = vmatpush1.bf16.msra.mxu0 %v661
        %1852 = vmatprep.subr.bf16.mxu0 0
        %1853 = vmatpush1.bf16.msra.mxu0 %v662
        %1854 = vmatprep.subr.bf16.mxu0 0
        %1855 = vmatpush1.bf16.msra.mxu0 %v663
        %1856 = vmatprep.subr.bf16.mxu0 0
        %1857 = vmatpush1.bf16.msra.mxu0 %v664
        %1858 = vmatprep.mubr.bf16.mxu0 %v1185
        %1859 = vmatmul.mubr.bf16.gmra.mrb[0].mxu0 %v1171
        %v1860 = vpop.f32.mrb[0].mxu0
        %v1861 = vadd.f32 %v1821, %v1860
        %v1862 = vpop.f32.mrb[0].mxu0
        %v1863 = vpop.f32.mrb[0].mxu0
        %v1864 = vpop.f32.mrb[0].mxu0
        %1865 = vdwg.mxu0
        %1866 = vmatprep.subr.bf16.mxu0 0
        %1867 = vmatpush1.bf16.msra.mxu0 %v665
        %1868 = vmatprep.subr.bf16.mxu0 0
        %1869 = vmatpush1.bf16.msra.mxu0 %v666
        %1870 = vmatprep.subr.bf16.mxu0 0
        %1871 = vmatpush1.bf16.msra.mxu0 %v667
        %1872 = vmatprep.subr.bf16.mxu0 0
        %1873 = vmatpush1.bf16.msra.mxu0 %v668
        %1874 = vmatprep.subr.bf16.mxu0 0
        %1875 = vmatpush1.bf16.msra.mxu0 %v669
        %1876 = vmatprep.subr.bf16.mxu0 0
        %1877 = vmatpush1.bf16.msra.mxu0 %v670
        %1878 = vmatprep.subr.bf16.mxu0 0
        %1879 = vmatpush1.bf16.msra.mxu0 %v671
        %1880 = vmatprep.subr.bf16.mxu0 0
        %1881 = vmatpush1.bf16.msra.mxu0 %v672
        %1882 = vmatprep.subr.bf16.mxu0 0
        %1883 = vmatpush1.bf16.msra.mxu0 %v673
        %1884 = vmatprep.subr.bf16.mxu0 0
        %1885 = vmatpush1.bf16.msra.mxu0 %v674
        %1886 = vmatprep.subr.bf16.mxu0 0
        %1887 = vmatpush1.bf16.msra.mxu0 %v675
        %1888 = vmatprep.subr.bf16.mxu0 0
        %1889 = vmatpush1.bf16.msra.mxu0 %v676
        %1890 = vmatprep.subr.bf16.mxu0 0
        %1891 = vmatpush1.bf16.msra.mxu0 %v677
        %1892 = vmatprep.subr.bf16.mxu0 0
        %1893 = vmatpush1.bf16.msra.mxu0 %v678
        %1894 = vmatprep.subr.bf16.mxu0 0
        %1895 = vmatpush1.bf16.msra.mxu0 %v679
        %1896 = vmatprep.subr.bf16.mxu0 0
        %1897 = vmatpush1.bf16.msra.mxu0 %v680
        %1898 = vmatprep.mubr.bf16.mxu0 %v1195
        %1899 = vmatmul.mubr.bf16.gmra.mrb[0].mxu0 %v1193
        %v1900 = vpop.f32.mrb[0].mxu0
        %v1901 = vadd.f32 %v1861, %v1900
        %v1902 = vpop.f32.mrb[0].mxu0
        %v1903 = vpop.f32.mrb[0].mxu0
        %v1904 = vpop.f32.mrb[0].mxu0
        %1905 = vdwg.mxu0
        %1906 = vmatprep.subr.bf16.mxu0 0
        %1907 = vmatpush1.bf16.msra.mxu0 %v681
        %1908 = vmatprep.subr.bf16.mxu0 0
        %1909 = vmatpush1.bf16.msra.mxu0 %v682
        %1910 = vmatprep.subr.bf16.mxu0 0
        %1911 = vmatpush1.bf16.msra.mxu0 %v683
        %1912 = vmatprep.subr.bf16.mxu0 0
        %1913 = vmatpush1.bf16.msra.mxu0 %v684
        %1914 = vmatprep.subr.bf16.mxu0 0
        %1915 = vmatpush1.bf16.msra.mxu0 %v685
        %1916 = vmatprep.subr.bf16.mxu0 0
        %1917 = vmatpush1.bf16.msra.mxu0 %v686
        %1918 = vmatprep.subr.bf16.mxu0 0
        %1919 = vmatpush1.bf16.msra.mxu0 %v687
        %1920 = vmatprep.subr.bf16.mxu0 0
        %1921 = vmatpush1.bf16.msra.mxu0 %v688
        %1922 = vmatprep.subr.bf16.mxu0 0
        %1923 = vmatpush1.bf16.msra.mxu0 %v689
        %1924 = vmatprep.subr.bf16.mxu0 0
        %1925 = vmatpush1.bf16.msra.mxu0 %v690
        %1926 = vmatprep.subr.bf16.mxu0 0
        %1927 = vmatpush1.bf16.msra.mxu0 %v691
        %1928 = vmatprep.subr.bf16.mxu0 0
        %1929 = vmatpush1.bf16.msra.mxu0 %v692
        %1930 = vmatprep.subr.bf16.mxu0 0
        %1931 = vmatpush1.bf16.msra.mxu0 %v693
        %1932 = vmatprep.subr.bf16.mxu0 0
        %1933 = vmatpush1.bf16.msra.mxu0 %v694
        %1934 = vmatprep.subr.bf16.mxu0 0
        %1935 = vmatpush1.bf16.msra.mxu0 %v695
        %1936 = vmatprep.subr.bf16.mxu0 0
        %1937 = vmatpush1.bf16.msra.mxu0 %v696
        %1938 = vmatprep.mubr.bf16.mxu0 %v1192
        %1939 = vmatmul.mubr.bf16.gmra.mrb[0].mxu0 %v1178
        %v1940 = vpop.f32.mrb[0].mxu0
        %v1941 = vadd.f32 %v1901, %v1940
        %v1942 = vpop.f32.mrb[0].mxu0
        %v1943 = vpop.f32.mrb[0].mxu0
        %v1944 = vpop.f32.mrb[0].mxu0
        %1945 = vdwg.mxu0
        %1946 = vmatprep.subr.bf16.mxu0 0
        %1947 = vmatpush1.bf16.msra.mxu0 %v697
        %1948 = vmatprep.subr.bf16.mxu0 0
        %1949 = vmatpush1.bf16.msra.mxu0 %v698
        %1950 = vmatprep.subr.bf16.mxu0 0
        %1951 = vmatpush1.bf16.msra.mxu0 %v699
        %1952 = vmatprep.subr.bf16.mxu0 0
        %1953 = vmatpush1.bf16.msra.mxu0 %v700
        %1954 = vmatprep.subr.bf16.mxu0 0
        %1955 = vmatpush1.bf16.msra.mxu0 %v701
        %1956 = vmatprep.subr.bf16.mxu0 0
        %1957 = vmatpush1.bf16.msra.mxu0 %v702
        %1958 = vmatprep.subr.bf16.mxu0 0
        %1959 = vmatpush1.bf16.msra.mxu0 %v703
        %1960 = vmatprep.subr.bf16.mxu0 0
        %1961 = vmatpush1.bf16.msra.mxu0 %v704
        %1962 = vmatprep.subr.bf16.mxu0 0
        %1963 = vmatpush1.bf16.msra.mxu0 %v705
        %1964 = vmatprep.subr.bf16.mxu0 0
        %1965 = vmatpush1.bf16.msra.mxu0 %v706
        %1966 = vmatprep.subr.bf16.mxu0 0
        %1967 = vmatpush1.bf16.msra.mxu0 %v707
        %1968 = vmatprep.subr.bf16.mxu0 0
        %1969 = vmatpush1.bf16.msra.mxu0 %v708
        %1970 = vmatprep.subr.bf16.mxu0 0
        %1971 = vmatpush1.bf16.msra.mxu0 %v709
        %1972 = vmatprep.subr.bf16.mxu0 0
        %1973 = vmatpush1.bf16.msra.mxu0 %v710
        %1974 = vmatprep.subr.bf16.mxu0 0
        %1975 = vmatpush1.bf16.msra.mxu0 %v711
        %1976 = vmatprep.subr.bf16.mxu0 0
        %1977 = vmatpush1.bf16.msra.mxu0 %v712
        %1978 = vmatprep.mubr.bf16.mxu0 %v1196
        %1979 = vmatmul.mubr.bf16.gmra.mrb[0].mxu0 %v1194
        %v1980 = vpop.f32.mrb[0].mxu0
        %v1981 = vadd.f32 %v1941, %v1980
        %v1982 = vpop.f32.mrb[0].mxu0
        %v1983 = vpop.f32.mrb[0].mxu0
        %v1984 = vpop.f32.mrb[0].mxu0
        %1985 = vdwg.mxu0
        %1986 = vmatprep.subr.bf16.mxu0 0
        %1987 = vmatpush1.bf16.msra.mxu0 %v713
        %1988 = vmatprep.subr.bf16.mxu0 0
        %1989 = vmatpush1.bf16.msra.mxu0 %v714
        %1990 = vmatprep.subr.bf16.mxu0 0
        %1991 = vmatpush1.bf16.msra.mxu0 %v715
        %1992 = vmatprep.subr.bf16.mxu0 0
        %1993 = vmatpush1.bf16.msra.mxu0 %v716
        %1994 = vmatprep.subr.bf16.mxu0 0
        %1995 = vmatpush1.bf16.msra.mxu0 %v717
        %1996 = vmatprep.subr.bf16.mxu0 0
        %1997 = vmatpush1.bf16.msra.mxu0 %v718
        %1998 = vmatprep.subr.bf16.mxu0 0
        %1999 = vmatpush1.bf16.msra.mxu0 %v719
        %2000 = vmatprep.subr.bf16.mxu0 0
        %2001 = vmatpush1.bf16.msra.mxu0 %v720
        %2002 = vmatprep.subr.bf16.mxu0 0
        %2003 = vmatpush1.bf16.msra.mxu0 %v721
        %2004 = vmatprep.subr.bf16.mxu0 0
        %2005 = vmatpush1.bf16.msra.mxu0 %v722
        %2006 = vmatprep.subr.bf16.mxu0 0
        %2007 = vmatpush1.bf16.msra.mxu0 %v723
        %2008 = vmatprep.subr.bf16.mxu0 0
        %2009 = vmatpush1.bf16.msra.mxu0 %v724
        %2010 = vmatprep.subr.bf16.mxu0 0
        %2011 = vmatpush1.bf16.msra.mxu0 %v725
        %2012 = vmatprep.subr.bf16.mxu0 0
        %2013 = vmatpush1.bf16.msra.mxu0 %v726
        %2014 = vmatprep.subr.bf16.mxu0 0
        %2015 = vmatpush1.bf16.msra.mxu0 %v727
        %2016 = vmatprep.subr.bf16.mxu0 0
        %2017 = vmatpush1.bf16.msra.mxu0 %v728
        %2018 = vmatprep.mubr.bf16.mxu0 %v1234
        %2019 = vmatmul.mubr.bf16.gmra.mrb[0].mxu0 %v1220
        %v2020 = vpop.f32.mrb[0].mxu0
        %v2021 = vadd.f32 %v1981, %v2020
        %v2022 = vpop.f32.mrb[0].mxu0
        %v2023 = vpop.f32.mrb[0].mxu0
        %v2024 = vpop.f32.mrb[0].mxu0
        %2025 = vdwg.mxu0
        %2026 = vmatprep.subr.bf16.mxu0 0
        %2027 = vmatpush1.bf16.msra.mxu0 %v729
        %2028 = vmatprep.subr.bf16.mxu0 0
        %2029 = vmatpush1.bf16.msra.mxu0 %v730
        %2030 = vmatprep.subr.bf16.mxu0 0
        %2031 = vmatpush1.bf16.msra.mxu0 %v731
        %2032 = vmatprep.subr.bf16.mxu0 0
        %2033 = vmatpush1.bf16.msra.mxu0 %v732
        %2034 = vmatprep.subr.bf16.mxu0 0
        %2035 = vmatpush1.bf16.msra.mxu0 %v733
        %2036 = vmatprep.subr.bf16.mxu0 0
        %2037 = vmatpush1.bf16.msra.mxu0 %v734
        %2038 = vmatprep.subr.bf16.mxu0 0
        %2039 = vmatpush1.bf16.msra.mxu0 %v735
        %2040 = vmatprep.subr.bf16.mxu0 0
        %2041 = vmatpush1.bf16.msra.mxu0 %v736
        %2042 = vmatprep.subr.bf16.mxu0 0
        %2043 = vmatpush1.bf16.msra.mxu0 %v737
        %2044 = vmatprep.subr.bf16.mxu0 0
        %2045 = vmatpush1.bf16.msra.mxu0 %v738
        %2046 = vmatprep.subr.bf16.mxu0 0
        %2047 = vmatpush1.bf16.msra.mxu0 %v739
        %2048 = vmatprep.subr.bf16.mxu0 0
        %2049 = vmatpush1.bf16.msra.mxu0 %v740
        %2050 = vmatprep.subr.bf16.mxu0 0
        %2051 = vmatpush1.bf16.msra.mxu0 %v741
        %2052 = vmatprep.subr.bf16.mxu0 0
        %2053 = vmatpush1.bf16.msra.mxu0 %v742
        %2054 = vmatprep.subr.bf16.mxu0 0
        %2055 = vmatpush1.bf16.msra.mxu0 %v743
        %2056 = vmatprep.subr.bf16.mxu0 0
        %2057 = vmatpush1.bf16.msra.mxu0 %v744
        %2058 = vmatprep.mubr.bf16.mxu0 %v1244
        %2059 = vmatmul.mubr.bf16.gmra.mrb[0].mxu0 %v1242
        %v2060 = vpop.f32.mrb[0].mxu0
        %v2061 = vadd.f32 %v2021, %v2060
        %v2062 = vpop.f32.mrb[0].mxu0
        %v2063 = vpop.f32.mrb[0].mxu0
        %v2064 = vpop.f32.mrb[0].mxu0
        %2065 = vdwg.mxu0
        %2066 = vmatprep.subr.bf16.mxu0 0
        %2067 = vmatpush1.bf16.msra.mxu0 %v745
        %2068 = vmatprep.subr.bf16.mxu0 0
        %2069 = vmatpush1.bf16.msra.mxu0 %v746
        %2070 = vmatprep.subr.bf16.mxu0 0
        %2071 = vmatpush1.bf16.msra.mxu0 %v747
        %2072 = vmatprep.subr.bf16.mxu0 0
        %2073 = vmatpush1.bf16.msra.mxu0 %v748
        %2074 = vmatprep.subr.bf16.mxu0 0
        %2075 = vmatpush1.bf16.msra.mxu0 %v749
        %2076 = vmatprep.subr.bf16.mxu0 0
        %2077 = vmatpush1.bf16.msra.mxu0 %v750
        %2078 = vmatprep.subr.bf16.mxu0 0
        %2079 = vmatpush1.bf16.msra.mxu0 %v751
        %2080 = vmatprep.subr.bf16.mxu0 0
        %2081 = vmatpush1.bf16.msra.mxu0 %v752
        %2082 = vmatprep.subr.bf16.mxu0 0
        %2083 = vmatpush1.bf16.msra.mxu0 %v753
        %2084 = vmatprep.subr.bf16.mxu0 0
        %2085 = vmatpush1.bf16.msra.mxu0 %v754
        %2086 = vmatprep.subr.bf16.mxu0 0
        %2087 = vmatpush1.bf16.msra.mxu0 %v755
        %2088 = vmatprep.subr.bf16.mxu0 0
        %2089 = vmatpush1.bf16.msra.mxu0 %v756
        %2090 = vmatprep.subr.bf16.mxu0 0
        %2091 = vmatpush1.bf16.msra.mxu0 %v757
        %2092 = vmatprep.subr.bf16.mxu0 0
        %2093 = vmatpush1.bf16.msra.mxu0 %v758
        %2094 = vmatprep.subr.bf16.mxu0 0
        %2095 = vmatpush1.bf16.msra.mxu0 %v759
        %2096 = vmatprep.subr.bf16.mxu0 0
        %2097 = vmatpush1.bf16.msra.mxu0 %v760
        %2098 = vmatprep.mubr.bf16.mxu0 %v1241
        %2099 = vmatmul.mubr.bf16.gmra.mrb[0].mxu0 %v1227
        %v2100 = vpop.f32.mrb[0].mxu0
        %v2101 = vadd.f32 %v2061, %v2100
        %v2102 = vpop.f32.mrb[0].mxu0
        %v2103 = vpop.f32.mrb[0].mxu0
        %v2104 = vpop.f32.mrb[0].mxu0
        %2105 = vdwg.mxu0
        %2106 = vmatprep.subr.bf16.mxu0 0
        %2107 = vmatpush1.bf16.msra.mxu0 %v761
        %2108 = vmatprep.subr.bf16.mxu0 0
        %2109 = vmatpush1.bf16.msra.mxu0 %v762
        %2110 = vmatprep.subr.bf16.mxu0 0
        %2111 = vmatpush1.bf16.msra.mxu0 %v763
        %2112 = vmatprep.subr.bf16.mxu0 0
        %2113 = vmatpush1.bf16.msra.mxu0 %v764
        %2114 = vmatprep.subr.bf16.mxu0 0
        %2115 = vmatpush1.bf16.msra.mxu0 %v765
        %2116 = vmatprep.subr.bf16.mxu0 0
        %2117 = vmatpush1.bf16.msra.mxu0 %v766
        %2118 = vmatprep.subr.bf16.mxu0 0
        %2119 = vmatpush1.bf16.msra.mxu0 %v767
        %2120 = vmatprep.subr.bf16.mxu0 0
        %2121 = vmatpush1.bf16.msra.mxu0 %v768
        %2122 = vmatprep.subr.bf16.mxu0 0
        %2123 = vmatpush1.bf16.msra.mxu0 %v769
        %2124 = vmatprep.subr.bf16.mxu0 0
        %2125 = vmatpush1.bf16.msra.mxu0 %v770
        %2126 = vmatprep.subr.bf16.mxu0 0
        %2127 = vmatpush1.bf16.msra.mxu0 %v771
        %2128 = vmatprep.subr.bf16.mxu0 0
        %2129 = vmatpush1.bf16.msra.mxu0 %v772
        %2130 = vmatprep.subr.bf16.mxu0 0
        %2131 = vmatpush1.bf16.msra.mxu0 %v773
        %2132 = vmatprep.subr.bf16.mxu0 0
        %2133 = vmatpush1.bf16.msra.mxu0 %v774
        %2134 = vmatprep.subr.bf16.mxu0 0
        %2135 = vmatpush1.bf16.msra.mxu0 %v775
        %2136 = vmatprep.subr.bf16.mxu0 0
        %2137 = vmatpush1.bf16.msra.mxu0 %v776
        %2138 = vmatprep.mubr.bf16.mxu0 %v1245
        %2139 = vmatmul.mubr.bf16.gmra.mrb[0].mxu0 %v1243
        %v2140 = vpop.f32.mrb[0].mxu0
        %v2141 = vadd.f32 %v2101, %v2140
        %v2142 = vpop.f32.mrb[0].mxu0
        %v2143 = vpop.f32.mrb[0].mxu0
        %v2144 = vpop.f32.mrb[0].mxu0
        %2145 = vdwg.mxu0
        %2146 = vmatprep.subr.bf16.mxu0 0
        %2147 = vmatpush1.bf16.msra.mxu0 %v777
        %2148 = vmatprep.subr.bf16.mxu0 0
        %2149 = vmatpush1.bf16.msra.mxu0 %v778
        %2150 = vmatprep.subr.bf16.mxu0 0
        %2151 = vmatpush1.bf16.msra.mxu0 %v779
        %2152 = vmatprep.subr.bf16.mxu0 0
        %2153 = vmatpush1.bf16.msra.mxu0 %v780
        %2154 = vmatprep.subr.bf16.mxu0 0
        %2155 = vmatpush1.bf16.msra.mxu0 %v781
        %2156 = vmatprep.subr.bf16.mxu0 0
        %2157 = vmatpush1.bf16.msra.mxu0 %v782
        %2158 = vmatprep.subr.bf16.mxu0 0
        %2159 = vmatpush1.bf16.msra.mxu0 %v783
        %2160 = vmatprep.subr.bf16.mxu0 0
        %2161 = vmatpush1.bf16.msra.mxu0 %v784
        %2162 = vmatprep.subr.bf16.mxu0 0
        %2163 = vmatpush1.bf16.msra.mxu0 %v785
        %2164 = vmatprep.subr.bf16.mxu0 0
        %2165 = vmatpush1.bf16.msra.mxu0 %v786
        %2166 = vmatprep.subr.bf16.mxu0 0
        %2167 = vmatpush1.bf16.msra.mxu0 %v787
        %2168 = vmatprep.subr.bf16.mxu0 0
        %2169 = vmatpush1.bf16.msra.mxu0 %v788
        %2170 = vmatprep.subr.bf16.mxu0 0
        %2171 = vmatpush1.bf16.msra.mxu0 %v789
        %2172 = vmatprep.subr.bf16.mxu0 0
        %2173 = vmatpush1.bf16.msra.mxu0 %v790
        %2174 = vmatprep.subr.bf16.mxu0 0
        %2175 = vmatpush1.bf16.msra.mxu0 %v791
        %2176 = vmatprep.subr.bf16.mxu0 0
        %2177 = vmatpush1.bf16.msra.mxu0 %v792
        %2178 = vmatprep.mubr.bf16.mxu0 %v1283
        %2179 = vmatmul.mubr.bf16.gmra.mrb[0].mxu0 %v1269
        %v2180 = vpop.f32.mrb[0].mxu0
        %v2181 = vadd.f32 %v2141, %v2180
        %v2182 = vpop.f32.mrb[0].mxu0
        %v2183 = vpop.f32.mrb[0].mxu0
        %v2184 = vpop.f32.mrb[0].mxu0
        %2185 = vdwg.mxu0
        %2186 = vmatprep.subr.bf16.mxu0 0
        %2187 = vmatpush1.bf16.msra.mxu0 %v793
        %2188 = vmatprep.subr.bf16.mxu0 0
        %2189 = vmatpush1.bf16.msra.mxu0 %v794
        %2190 = vmatprep.subr.bf16.mxu0 0
        %2191 = vmatpush1.bf16.msra.mxu0 %v795
        %2192 = vmatprep.subr.bf16.mxu0 0
        %2193 = vmatpush1.bf16.msra.mxu0 %v796
        %2194 = vmatprep.subr.bf16.mxu0 0
        %2195 = vmatpush1.bf16.msra.mxu0 %v797
        %2196 = vmatprep.subr.bf16.mxu0 0
        %2197 = vmatpush1.bf16.msra.mxu0 %v798
        %2198 = vmatprep.subr.bf16.mxu0 0
        %2199 = vmatpush1.bf16.msra.mxu0 %v799
        %2200 = vmatprep.subr.bf16.mxu0 0
        %2201 = vmatpush1.bf16.msra.mxu0 %v800
        %2202 = vmatprep.subr.bf16.mxu0 0
        %2203 = vmatpush1.bf16.msra.mxu0 %v801
        %2204 = vmatprep.subr.bf16.mxu0 0
        %2205 = vmatpush1.bf16.msra.mxu0 %v802
        %2206 = vmatprep.subr.bf16.mxu0 0
        %2207 = vmatpush1.bf16.msra.mxu0 %v803
        %2208 = vmatprep.subr.bf16.mxu0 0
        %2209 = vmatpush1.bf16.msra.mxu0 %v804
        %2210 = vmatprep.subr.bf16.mxu0 0
        %2211 = vmatpush1.bf16.msra.mxu0 %v805
        %2212 = vmatprep.subr.bf16.mxu0 0
        %2213 = vmatpush1.bf16.msra.mxu0 %v806
        %2214 = vmatprep.subr.bf16.mxu0 0
        %2215 = vmatpush1.bf16.msra.mxu0 %v807
        %2216 = vmatprep.subr.bf16.mxu0 0
        %2217 = vmatpush1.bf16.msra.mxu0 %v808
        %2218 = vmatprep.mubr.bf16.mxu0 %v1293
        %2219 = vmatmul.mubr.bf16.gmra.mrb[0].mxu0 %v1291
        %v2220 = vpop.f32.mrb[0].mxu0
        %v2221 = vadd.f32 %v2181, %v2220
        %v2222 = vpop.f32.mrb[0].mxu0
        %v2223 = vpop.f32.mrb[0].mxu0
        %v2224 = vpop.f32.mrb[0].mxu0
        %2225 = vdwg.mxu0
        %2226 = vmatprep.subr.bf16.mxu0 0
        %2227 = vmatpush1.bf16.msra.mxu0 %v809
        %2228 = vmatprep.subr.bf16.mxu0 0
        %2229 = vmatpush1.bf16.msra.mxu0 %v810
        %2230 = vmatprep.subr.bf16.mxu0 0
        %2231 = vmatpush1.bf16.msra.mxu0 %v811
        %2232 = vmatprep.subr.bf16.mxu0 0
        %2233 = vmatpush1.bf16.msra.mxu0 %v812
        %2234 = vmatprep.subr.bf16.mxu0 0
        %2235 = vmatpush1.bf16.msra.mxu0 %v813
        %2236 = vmatprep.subr.bf16.mxu0 0
        %2237 = vmatpush1.bf16.msra.mxu0 %v814
        %2238 = vmatprep.subr.bf16.mxu0 0
        %2239 = vmatpush1.bf16.msra.mxu0 %v815
        %2240 = vmatprep.subr.bf16.mxu0 0
        %2241 = vmatpush1.bf16.msra.mxu0 %v816
        %2242 = vmatprep.subr.bf16.mxu0 0
        %2243 = vmatpush1.bf16.msra.mxu0 %v817
        %2244 = vmatprep.subr.bf16.mxu0 0
        %2245 = vmatpush1.bf16.msra.mxu0 %v818
        %2246 = vmatprep.subr.bf16.mxu0 0
        %2247 = vmatpush1.bf16.msra.mxu0 %v819
        %2248 = vmatprep.subr.bf16.mxu0 0
        %2249 = vmatpush1.bf16.msra.mxu0 %v820
        %2250 = vmatprep.subr.bf16.mxu0 0
        %2251 = vmatpush1.bf16.msra.mxu0 %v821
        %2252 = vmatprep.subr.bf16.mxu0 0
        %2253 = vmatpush1.bf16.msra.mxu0 %v822
        %2254 = vmatprep.subr.bf16.mxu0 0
        %2255 = vmatpush1.bf16.msra.mxu0 %v823
        %2256 = vmatprep.subr.bf16.mxu0 0
        %2257 = vmatpush1.bf16.msra.mxu0 %v824
        %2258 = vmatprep.mubr.bf16.mxu0 %v1290
        %2259 = vmatmul.mubr.bf16.gmra.mrb[0].mxu0 %v1276
        %v2260 = vpop.f32.mrb[0].mxu0
        %v2261 = vadd.f32 %v2221, %v2260
        %v2262 = vpop.f32.mrb[0].mxu0
        %v2263 = vpop.f32.mrb[0].mxu0
        %v2264 = vpop.f32.mrb[0].mxu0
        %2265 = vdwg.mxu0
        %2266 = vmatprep.subr.bf16.mxu0 0
        %2267 = vmatpush1.bf16.msra.mxu0 %v825
        %2268 = vmatprep.subr.bf16.mxu0 0
        %2269 = vmatpush1.bf16.msra.mxu0 %v826
        %2270 = vmatprep.subr.bf16.mxu0 0
        %2271 = vmatpush1.bf16.msra.mxu0 %v827
        %2272 = vmatprep.subr.bf16.mxu0 0
        %2273 = vmatpush1.bf16.msra.mxu0 %v828
        %2274 = vmatprep.subr.bf16.mxu0 0
        %2275 = vmatpush1.bf16.msra.mxu0 %v829
        %2276 = vmatprep.subr.bf16.mxu0 0
        %2277 = vmatpush1.bf16.msra.mxu0 %v830
        %2278 = vmatprep.subr.bf16.mxu0 0
        %2279 = vmatpush1.bf16.msra.mxu0 %v831
        %2280 = vmatprep.subr.bf16.mxu0 0
        %2281 = vmatpush1.bf16.msra.mxu0 %v832
        %2282 = vmatprep.subr.bf16.mxu0 0
        %2283 = vmatpush1.bf16.msra.mxu0 %v833
        %2284 = vmatprep.subr.bf16.mxu0 0
        %2285 = vmatpush1.bf16.msra.mxu0 %v834
        %2286 = vmatprep.subr.bf16.mxu0 0
        %2287 = vmatpush1.bf16.msra.mxu0 %v835
        %2288 = vmatprep.subr.bf16.mxu0 0
        %2289 = vmatpush1.bf16.msra.mxu0 %v836
        %2290 = vmatprep.subr.bf16.mxu0 0
        %2291 = vmatpush1.bf16.msra.mxu0 %v837
        %2292 = vmatprep.subr.bf16.mxu0 0
        %2293 = vmatpush1.bf16.msra.mxu0 %v838
        %2294 = vmatprep.subr.bf16.mxu0 0
        %2295 = vmatpush1.bf16.msra.mxu0 %v839
        %2296 = vmatprep.subr.bf16.mxu0 0
        %2297 = vmatpush1.bf16.msra.mxu0 %v840
        %2298 = vmatprep.mubr.bf16.mxu0 %v1294
        %2299 = vmatmul.mubr.bf16.gmra.mrb[0].mxu0 %v1292
        %v2300 = vpop.f32.mrb[0].mxu0
        %v2301 = vadd.f32 %v2261, %v2300
        %v2302 = vpop.f32.mrb[0].mxu0
        %v2303 = vpop.f32.mrb[0].mxu0
        %v2304 = vpop.f32.mrb[0].mxu0
        %2305 = vdwg.mxu0
        %2306 = vmatprep.subr.bf16.mxu0 0
        %2307 = vmatpush1.bf16.msra.mxu0 %v841
        %2308 = vmatprep.subr.bf16.mxu0 0
        %2309 = vmatpush1.bf16.msra.mxu0 %v842
        %2310 = vmatprep.subr.bf16.mxu0 0
        %2311 = vmatpush1.bf16.msra.mxu0 %v843
        %2312 = vmatprep.subr.bf16.mxu0 0
        %2313 = vmatpush1.bf16.msra.mxu0 %v844
        %2314 = vmatprep.subr.bf16.mxu0 0
        %2315 = vmatpush1.bf16.msra.mxu0 %v845
        %2316 = vmatprep.subr.bf16.mxu0 0
        %2317 = vmatpush1.bf16.msra.mxu0 %v846
        %2318 = vmatprep.subr.bf16.mxu0 0
        %2319 = vmatpush1.bf16.msra.mxu0 %v847
        %2320 = vmatprep.subr.bf16.mxu0 0
        %2321 = vmatpush1.bf16.msra.mxu0 %v848
        %2322 = vmatprep.subr.bf16.mxu0 0
        %2323 = vmatpush1.bf16.msra.mxu0 %v849
        %2324 = vmatprep.subr.bf16.mxu0 0
        %2325 = vmatpush1.bf16.msra.mxu0 %v850
        %2326 = vmatprep.subr.bf16.mxu0 0
        %2327 = vmatpush1.bf16.msra.mxu0 %v851
        %2328 = vmatprep.subr.bf16.mxu0 0
        %2329 = vmatpush1.bf16.msra.mxu0 %v852
        %2330 = vmatprep.subr.bf16.mxu0 0
        %2331 = vmatpush1.bf16.msra.mxu0 %v853
        %2332 = vmatprep.subr.bf16.mxu0 0
        %2333 = vmatpush1.bf16.msra.mxu0 %v854
        %2334 = vmatprep.subr.bf16.mxu0 0
        %2335 = vmatpush1.bf16.msra.mxu0 %v855
        %2336 = vmatprep.subr.bf16.mxu0 0
        %2337 = vmatpush1.bf16.msra.mxu0 %v856
        %2338 = vmatprep.mubr.bf16.mxu0 %v1332
        %2339 = vmatmul.mubr.bf16.gmra.mrb[0].mxu0 %v1318
        %v2340 = vpop.f32.mrb[0].mxu0
        %v2341 = vadd.f32 %v2301, %v2340
        %v2342 = vpop.f32.mrb[0].mxu0
        %v2343 = vpop.f32.mrb[0].mxu0
        %v2344 = vpop.f32.mrb[0].mxu0
        %2345 = vdwg.mxu0
        %2346 = vmatprep.subr.bf16.mxu0 0
        %2347 = vmatpush1.bf16.msra.mxu0 %v857
        %2348 = vmatprep.subr.bf16.mxu0 0
        %2349 = vmatpush1.bf16.msra.mxu0 %v858
        %2350 = vmatprep.subr.bf16.mxu0 0
        %2351 = vmatpush1.bf16.msra.mxu0 %v859
        %2352 = vmatprep.subr.bf16.mxu0 0
        %2353 = vmatpush1.bf16.msra.mxu0 %v860
        %2354 = vmatprep.subr.bf16.mxu0 0
        %2355 = vmatpush1.bf16.msra.mxu0 %v861
        %2356 = vmatprep.subr.bf16.mxu0 0
        %2357 = vmatpush1.bf16.msra.mxu0 %v862
        %2358 = vmatprep.subr.bf16.mxu0 0
        %2359 = vmatpush1.bf16.msra.mxu0 %v863
        %2360 = vmatprep.subr.bf16.mxu0 0
        %2361 = vmatpush1.bf16.msra.mxu0 %v864
        %2362 = vmatprep.subr.bf16.mxu0 0
        %2363 = vmatpush1.bf16.msra.mxu0 %v865
        %2364 = vmatprep.subr.bf16.mxu0 0
        %2365 = vmatpush1.bf16.msra.mxu0 %v866
        %2366 = vmatprep.subr.bf16.mxu0 0
        %2367 = vmatpush1.bf16.msra.mxu0 %v867
        %2368 = vmatprep.subr.bf16.mxu0 0
        %2369 = vmatpush1.bf16.msra.mxu0 %v868
        %2370 = vmatprep.subr.bf16.mxu0 0
        %2371 = vmatpush1.bf16.msra.mxu0 %v869
        %2372 = vmatprep.subr.bf16.mxu0 0
        %2373 = vmatpush1.bf16.msra.mxu0 %v870
        %2374 = vmatprep.subr.bf16.mxu0 0
        %2375 = vmatpush1.bf16.msra.mxu0 %v871
        %2376 = vmatprep.subr.bf16.mxu0 0
        %2377 = vmatpush1.bf16.msra.mxu0 %v872
        %2378 = vmatprep.mubr.bf16.mxu0 %v1342
        %2379 = vmatmul.mubr.bf16.gmra.mrb[0].mxu0 %v1340
        %v2380 = vpop.f32.mrb[0].mxu0
        %v2381 = vadd.f32 %v2341, %v2380
        %v2382 = vpop.f32.mrb[0].mxu0
        %v2383 = vpop.f32.mrb[0].mxu0
        %v2384 = vpop.f32.mrb[0].mxu0
        %2385 = vdwg.mxu0
        %2386 = vmatprep.subr.bf16.mxu0 0
        %2387 = vmatpush1.bf16.msra.mxu0 %v873
        %2388 = vmatprep.subr.bf16.mxu0 0
        %2389 = vmatpush1.bf16.msra.mxu0 %v874
        %2390 = vmatprep.subr.bf16.mxu0 0
        %2391 = vmatpush1.bf16.msra.mxu0 %v875
        %2392 = vmatprep.subr.bf16.mxu0 0
        %2393 = vmatpush1.bf16.msra.mxu0 %v876
        %2394 = vmatprep.subr.bf16.mxu0 0
        %2395 = vmatpush1.bf16.msra.mxu0 %v877
        %2396 = vmatprep.subr.bf16.mxu0 0
        %2397 = vmatpush1.bf16.msra.mxu0 %v878
        %2398 = vmatprep.subr.bf16.mxu0 0
        %2399 = vmatpush1.bf16.msra.mxu0 %v879
        %2400 = vmatprep.subr.bf16.mxu0 0
        %2401 = vmatpush1.bf16.msra.mxu0 %v880
        %2402 = vmatprep.subr.bf16.mxu0 0
        %2403 = vmatpush1.bf16.msra.mxu0 %v881
        %2404 = vmatprep.subr.bf16.mxu0 0
        %2405 = vmatpush1.bf16.msra.mxu0 %v882
        %2406 = vmatprep.subr.bf16.mxu0 0
        %2407 = vmatpush1.bf16.msra.mxu0 %v883
        %2408 = vmatprep.subr.bf16.mxu0 0
        %2409 = vmatpush1.bf16.msra.mxu0 %v884
        %2410 = vmatprep.subr.bf16.mxu0 0
        %2411 = vmatpush1.bf16.msra.mxu0 %v885
        %2412 = vmatprep.subr.bf16.mxu0 0
        %2413 = vmatpush1.bf16.msra.mxu0 %v886
        %2414 = vmatprep.subr.bf16.mxu0 0
        %2415 = vmatpush1.bf16.msra.mxu0 %v887
        %2416 = vmatprep.subr.bf16.mxu0 0
        %2417 = vmatpush1.bf16.msra.mxu0 %v888
        %2418 = vmatprep.mubr.bf16.mxu0 %v1339
        %2419 = vmatmul.mubr.bf16.gmra.mrb[0].mxu0 %v1325
        %v2420 = vpop.f32.mrb[0].mxu0
        %v2421 = vadd.f32 %v2381, %v2420
        %v2422 = vpop.f32.mrb[0].mxu0
        %v2423 = vpop.f32.mrb[0].mxu0
        %v2424 = vpop.f32.mrb[0].mxu0
        %2425 = vdwg.mxu0
        %2426 = vmatprep.subr.bf16.mxu0 0
        %2427 = vmatpush1.bf16.msra.mxu0 %v889
        %2428 = vmatprep.subr.bf16.mxu0 0
        %2429 = vmatpush1.bf16.msra.mxu0 %v890
        %2430 = vmatprep.subr.bf16.mxu0 0
        %2431 = vmatpush1.bf16.msra.mxu0 %v891
        %2432 = vmatprep.subr.bf16.mxu0 0
        %2433 = vmatpush1.bf16.msra.mxu0 %v892
        %2434 = vmatprep.subr.bf16.mxu0 0
        %2435 = vmatpush1.bf16.msra.mxu0 %v893
        %2436 = vmatprep.subr.bf16.mxu0 0
        %2437 = vmatpush1.bf16.msra.mxu0 %v894
        %2438 = vmatprep.subr.bf16.mxu0 0
        %2439 = vmatpush1.bf16.msra.mxu0 %v895
        %2440 = vmatprep.subr.bf16.mxu0 0
        %2441 = vmatpush1.bf16.msra.mxu0 %v896
        %2442 = vmatprep.subr.bf16.mxu0 0
        %2443 = vmatpush1.bf16.msra.mxu0 %v897
        %2444 = vmatprep.subr.bf16.mxu0 0
        %2445 = vmatpush1.bf16.msra.mxu0 %v898
        %2446 = vmatprep.subr.bf16.mxu0 0
        %2447 = vmatpush1.bf16.msra.mxu0 %v899
        %2448 = vmatprep.subr.bf16.mxu0 0
        %2449 = vmatpush1.bf16.msra.mxu0 %v900
        %2450 = vmatprep.subr.bf16.mxu0 0
        %2451 = vmatpush1.bf16.msra.mxu0 %v901
        %2452 = vmatprep.subr.bf16.mxu0 0
        %2453 = vmatpush1.bf16.msra.mxu0 %v902
        %2454 = vmatprep.subr.bf16.mxu0 0
        %2455 = vmatpush1.bf16.msra.mxu0 %v903
        %2456 = vmatprep.subr.bf16.mxu0 0
        %2457 = vmatpush1.bf16.msra.mxu0 %v904
        %2458 = vmatprep.mubr.bf16.mxu0 %v1343
        %2459 = vmatmul.mubr.bf16.gmra.mrb[0].mxu0 %v1341
        %v2460 = vpop.f32.mrb[0].mxu0
        %v2461 = vadd.f32 %v2421, %v2460
        %v2462 = vpop.f32.mrb[0].mxu0
        %v2463 = vpop.f32.mrb[0].mxu0
        %v2464 = vpop.f32.mrb[0].mxu0
        %2465 = vdwg.mxu0
        %2466 = vmatprep.subr.bf16.mxu0 0
        %2467 = vmatpush1.bf16.msra.mxu0 %v905
        %2468 = vmatprep.subr.bf16.mxu0 0
        %2469 = vmatpush1.bf16.msra.mxu0 %v906
        %2470 = vmatprep.subr.bf16.mxu0 0
        %2471 = vmatpush1.bf16.msra.mxu0 %v907
        %2472 = vmatprep.subr.bf16.mxu0 0
        %2473 = vmatpush1.bf16.msra.mxu0 %v908
        %2474 = vmatprep.subr.bf16.mxu0 0
        %2475 = vmatpush1.bf16.msra.mxu0 %v909
        %2476 = vmatprep.subr.bf16.mxu0 0
        %2477 = vmatpush1.bf16.msra.mxu0 %v910
        %2478 = vmatprep.subr.bf16.mxu0 0
        %2479 = vmatpush1.bf16.msra.mxu0 %v911
        %2480 = vmatprep.subr.bf16.mxu0 0
        %2481 = vmatpush1.bf16.msra.mxu0 %v912
        %2482 = vmatprep.subr.bf16.mxu0 0
        %2483 = vmatpush1.bf16.msra.mxu0 %v913
        %2484 = vmatprep.subr.bf16.mxu0 0
        %2485 = vmatpush1.bf16.msra.mxu0 %v914
        %2486 = vmatprep.subr.bf16.mxu0 0
        %2487 = vmatpush1.bf16.msra.mxu0 %v915
        %2488 = vmatprep.subr.bf16.mxu0 0
        %2489 = vmatpush1.bf16.msra.mxu0 %v916
        %2490 = vmatprep.subr.bf16.mxu0 0
        %2491 = vmatpush1.bf16.msra.mxu0 %v917
        %2492 = vmatprep.subr.bf16.mxu0 0
        %2493 = vmatpush1.bf16.msra.mxu0 %v918
        %2494 = vmatprep.subr.bf16.mxu0 0
        %2495 = vmatpush1.bf16.msra.mxu0 %v919
        %2496 = vmatprep.subr.bf16.mxu0 0
        %2497 = vmatpush1.bf16.msra.mxu0 %v920
        %2498 = vmatprep.mubr.bf16.mxu0 %v1381
        %2499 = vmatmul.mubr.bf16.gmra.mrb[0].mxu0 %v1367
        %v2500 = vpop.f32.mrb[0].mxu0
        %v2501 = vadd.f32 %v2461, %v2500
        %v2502 = vpop.f32.mrb[0].mxu0
        %v2503 = vpop.f32.mrb[0].mxu0
        %v2504 = vpop.f32.mrb[0].mxu0
        %2505 = vdwg.mxu0
        %2506 = vmatprep.subr.bf16.mxu0 0
        %2507 = vmatpush1.bf16.msra.mxu0 %v921
        %2508 = vmatprep.subr.bf16.mxu0 0
        %2509 = vmatpush1.bf16.msra.mxu0 %v922
        %2510 = vmatprep.subr.bf16.mxu0 0
        %2511 = vmatpush1.bf16.msra.mxu0 %v923
        %2512 = vmatprep.subr.bf16.mxu0 0
        %2513 = vmatpush1.bf16.msra.mxu0 %v924
        %2514 = vmatprep.subr.bf16.mxu0 0
        %2515 = vmatpush1.bf16.msra.mxu0 %v925
        %2516 = vmatprep.subr.bf16.mxu0 0
        %2517 = vmatpush1.bf16.msra.mxu0 %v926
        %2518 = vmatprep.subr.bf16.mxu0 0
        %2519 = vmatpush1.bf16.msra.mxu0 %v927
        %2520 = vmatprep.subr.bf16.mxu0 0
        %2521 = vmatpush1.bf16.msra.mxu0 %v928
        %2522 = vmatprep.subr.bf16.mxu0 0
        %2523 = vmatpush1.bf16.msra.mxu0 %v929
        %2524 = vmatprep.subr.bf16.mxu0 0
        %2525 = vmatpush1.bf16.msra.mxu0 %v930
        %2526 = vmatprep.subr.bf16.mxu0 0
        %2527 = vmatpush1.bf16.msra.mxu0 %v931
        %2528 = vmatprep.subr.bf16.mxu0 0
        %2529 = vmatpush1.bf16.msra.mxu0 %v932
        %2530 = vmatprep.subr.bf16.mxu0 0
        %2531 = vmatpush1.bf16.msra.mxu0 %v933
        %2532 = vmatprep.subr.bf16.mxu0 0
        %2533 = vmatpush1.bf16.msra.mxu0 %v934
        %2534 = vmatprep.subr.bf16.mxu0 0
        %2535 = vmatpush1.bf16.msra.mxu0 %v935
        %2536 = vmatprep.subr.bf16.mxu0 0
        %2537 = vmatpush1.bf16.msra.mxu0 %v936
        %2538 = vmatprep.mubr.bf16.mxu0 %v1391
        %2539 = vmatmul.mubr.bf16.gmra.mrb[0].mxu0 %v1389
        %v2540 = vpop.f32.mrb[0].mxu0
        %v2541 = vadd.f32 %v2501, %v2540
        %v2542 = vpop.f32.mrb[0].mxu0
        %v2543 = vpop.f32.mrb[0].mxu0
        %v2544 = vpop.f32.mrb[0].mxu0
        %2545 = vdwg.mxu0
        %2546 = vmatprep.subr.bf16.mxu0 0
        %2547 = vmatpush1.bf16.msra.mxu0 %v937
        %2548 = vmatprep.subr.bf16.mxu0 0
        %2549 = vmatpush1.bf16.msra.mxu0 %v938
        %2550 = vmatprep.subr.bf16.mxu0 0
        %2551 = vmatpush1.bf16.msra.mxu0 %v939
        %2552 = vmatprep.subr.bf16.mxu0 0
        %2553 = vmatpush1.bf16.msra.mxu0 %v940
        %2554 = vmatprep.subr.bf16.mxu0 0
        %2555 = vmatpush1.bf16.msra.mxu0 %v941
        %2556 = vmatprep.subr.bf16.mxu0 0
        %2557 = vmatpush1.bf16.msra.mxu0 %v942
        %2558 = vmatprep.subr.bf16.mxu0 0
        %2559 = vmatpush1.bf16.msra.mxu0 %v943
        %2560 = vmatprep.subr.bf16.mxu0 0
        %2561 = vmatpush1.bf16.msra.mxu0 %v944
        %2562 = vmatprep.subr.bf16.mxu0 0
        %2563 = vmatpush1.bf16.msra.mxu0 %v945
        %2564 = vmatprep.subr.bf16.mxu0 0
        %2565 = vmatpush1.bf16.msra.mxu0 %v946
        %2566 = vmatprep.subr.bf16.mxu0 0
        %2567 = vmatpush1.bf16.msra.mxu0 %v947
        %2568 = vmatprep.subr.bf16.mxu0 0
        %2569 = vmatpush1.bf16.msra.mxu0 %v948
        %2570 = vmatprep.subr.bf16.mxu0 0
        %2571 = vmatpush1.bf16.msra.mxu0 %v949
        %2572 = vmatprep.subr.bf16.mxu0 0
        %2573 = vmatpush1.bf16.msra.mxu0 %v950
        %2574 = vmatprep.subr.bf16.mxu0 0
        %2575 = vmatpush1.bf16.msra.mxu0 %v951
        %2576 = vmatprep.subr.bf16.mxu0 0
        %2577 = vmatpush1.bf16.msra.mxu0 %v952
        %2578 = vmatprep.mubr.bf16.mxu0 %v1388
        %2579 = vmatmul.mubr.bf16.gmra.mrb[0].mxu0 %v1374
        %v2580 = vpop.f32.mrb[0].mxu0
        %v2581 = vadd.f32 %v2541, %v2580
        %v2582 = vpop.f32.mrb[0].mxu0
        %v2583 = vpop.f32.mrb[0].mxu0
        %v2584 = vpop.f32.mrb[0].mxu0
        %2585 = vdwg.mxu0
        %2586 = vmatprep.subr.bf16.mxu0 0
        %2587 = vmatpush1.bf16.msra.mxu0 %v953
        %2588 = vmatprep.subr.bf16.mxu0 0
        %2589 = vmatpush1.bf16.msra.mxu0 %v954
        %2590 = vmatprep.subr.bf16.mxu0 0
        %2591 = vmatpush1.bf16.msra.mxu0 %v955
        %2592 = vmatprep.subr.bf16.mxu0 0
        %2593 = vmatpush1.bf16.msra.mxu0 %v956
        %2594 = vmatprep.subr.bf16.mxu0 0
        %2595 = vmatpush1.bf16.msra.mxu0 %v957
        %2596 = vmatprep.subr.bf16.mxu0 0
        %2597 = vmatpush1.bf16.msra.mxu0 %v958
        %2598 = vmatprep.subr.bf16.mxu0 0
        %2599 = vmatpush1.bf16.msra.mxu0 %v959
        %2600 = vmatprep.subr.bf16.mxu0 0
        %2601 = vmatpush1.bf16.msra.mxu0 %v960
        %2602 = vmatprep.subr.bf16.mxu0 0
        %2603 = vmatpush1.bf16.msra.mxu0 %v961
        %2604 = vmatprep.subr.bf16.mxu0 0
        %2605 = vmatpush1.bf16.msra.mxu0 %v962
        %2606 = vmatprep.subr.bf16.mxu0 0
        %2607 = vmatpush1.bf16.msra.mxu0 %v963
        %2608 = vmatprep.subr.bf16.mxu0 0
        %2609 = vmatpush1.bf16.msra.mxu0 %v964
        %2610 = vmatprep.subr.bf16.mxu0 0
        %2611 = vmatpush1.bf16.msra.mxu0 %v965
        %2612 = vmatprep.subr.bf16.mxu0 0
        %2613 = vmatpush1.bf16.msra.mxu0 %v966
        %2614 = vmatprep.subr.bf16.mxu0 0
        %2615 = vmatpush1.bf16.msra.mxu0 %v967
        %2616 = vmatprep.subr.bf16.mxu0 0
        %2617 = vmatpush1.bf16.msra.mxu0 %v968
        %2618 = vmatprep.mubr.bf16.mxu0 %v1392
        %2619 = vmatmul.mubr.bf16.gmra.mrb[0].mxu0 %v1390
        %v2620 = vpop.f32.mrb[0].mxu0
        %v2621 = vadd.f32 %v2581, %v2620
        %v2622 = vpop.f32.mrb[0].mxu0
        %v2623 = vpop.f32.mrb[0].mxu0
        %v2624 = vpop.f32.mrb[0].mxu0
        %2625 = vdwg.mxu0
        %2626 = vmatprep.subr.bf16.mxu0 0
        %2627 = vmatpush1.bf16.msra.mxu0 %v969
        %2628 = vmatprep.subr.bf16.mxu0 0
        %2629 = vmatpush1.bf16.msra.mxu0 %v970
        %2630 = vmatprep.subr.bf16.mxu0 0
        %2631 = vmatpush1.bf16.msra.mxu0 %v971
        %2632 = vmatprep.subr.bf16.mxu0 0
        %2633 = vmatpush1.bf16.msra.mxu0 %v972
        %2634 = vmatprep.subr.bf16.mxu0 0
        %2635 = vmatpush1.bf16.msra.mxu0 %v973
        %2636 = vmatprep.subr.bf16.mxu0 0
        %2637 = vmatpush1.bf16.msra.mxu0 %v974
        %2638 = vmatprep.subr.bf16.mxu0 0
        %2639 = vmatpush1.bf16.msra.mxu0 %v975
        %2640 = vmatprep.subr.bf16.mxu0 0
        %2641 = vmatpush1.bf16.msra.mxu0 %v976
        %2642 = vmatprep.subr.bf16.mxu0 0
        %2643 = vmatpush1.bf16.msra.mxu0 %v977
        %2644 = vmatprep.subr.bf16.mxu0 0
        %2645 = vmatpush1.bf16.msra.mxu0 %v978
        %2646 = vmatprep.subr.bf16.mxu0 0
        %2647 = vmatpush1.bf16.msra.mxu0 %v979
        %2648 = vmatprep.subr.bf16.mxu0 0
        %2649 = vmatpush1.bf16.msra.mxu0 %v980
        %2650 = vmatprep.subr.bf16.mxu0 0
        %2651 = vmatpush1.bf16.msra.mxu0 %v981
        %2652 = vmatprep.subr.bf16.mxu0 0
        %2653 = vmatpush1.bf16.msra.mxu0 %v982
        %2654 = vmatprep.subr.bf16.mxu0 0
        %2655 = vmatpush1.bf16.msra.mxu0 %v983
        %2656 = vmatprep.subr.bf16.mxu0 0
        %2657 = vmatpush1.bf16.msra.mxu0 %v984
        %2658 = vmatprep.mubr.bf16.mxu0 %v1430
        %2659 = vmatmul.mubr.bf16.gmra.mrb[0].mxu0 %v1416
        %v2660 = vpop.f32.mrb[0].mxu0
        %v2661 = vadd.f32 %v2621, %v2660
        %v2662 = vpop.f32.mrb[0].mxu0
        %v2663 = vpop.f32.mrb[0].mxu0
        %v2664 = vpop.f32.mrb[0].mxu0
        %2665 = vdwg.mxu0
        %2666 = vmatprep.subr.bf16.mxu0 0
        %2667 = vmatpush1.bf16.msra.mxu0 %v985
        %2668 = vmatprep.subr.bf16.mxu0 0
        %2669 = vmatpush1.bf16.msra.mxu0 %v986
        %2670 = vmatprep.subr.bf16.mxu0 0
        %2671 = vmatpush1.bf16.msra.mxu0 %v987
        %2672 = vmatprep.subr.bf16.mxu0 0
        %2673 = vmatpush1.bf16.msra.mxu0 %v988
        %2674 = vmatprep.subr.bf16.mxu0 0
        %2675 = vmatpush1.bf16.msra.mxu0 %v989
        %2676 = vmatprep.subr.bf16.mxu0 0
        %2677 = vmatpush1.bf16.msra.mxu0 %v990
        %2678 = vmatprep.subr.bf16.mxu0 0
        %2679 = vmatpush1.bf16.msra.mxu0 %v991
        %2680 = vmatprep.subr.bf16.mxu0 0
        %2681 = vmatpush1.bf16.msra.mxu0 %v992
        %2682 = vmatprep.subr.bf16.mxu0 0
        %2683 = vmatpush1.bf16.msra.mxu0 %v993
        %2684 = vmatprep.subr.bf16.mxu0 0
        %2685 = vmatpush1.bf16.msra.mxu0 %v994
        %2686 = vmatprep.subr.bf16.mxu0 0
        %2687 = vmatpush1.bf16.msra.mxu0 %v995
        %2688 = vmatprep.subr.bf16.mxu0 0
        %2689 = vmatpush1.bf16.msra.mxu0 %v996
        %2690 = vmatprep.subr.bf16.mxu0 0
        %2691 = vmatpush1.bf16.msra.mxu0 %v997
        %2692 = vmatprep.subr.bf16.mxu0 0
        %2693 = vmatpush1.bf16.msra.mxu0 %v998
        %2694 = vmatprep.subr.bf16.mxu0 0
        %2695 = vmatpush1.bf16.msra.mxu0 %v999
        %2696 = vmatprep.subr.bf16.mxu0 0
        %2697 = vmatpush1.bf16.msra.mxu0 %v1000
        %2698 = vmatprep.mubr.bf16.mxu0 %v1440
        %2699 = vmatmul.mubr.bf16.gmra.mrb[0].mxu0 %v1438
        %v2700 = vpop.f32.mrb[0].mxu0
        %v2701 = vadd.f32 %v2661, %v2700
        %v2702 = vpop.f32.mrb[0].mxu0
        %v2703 = vpop.f32.mrb[0].mxu0
        %v2704 = vpop.f32.mrb[0].mxu0
        %2705 = vdwg.mxu0
        %2706 = vmatprep.subr.bf16.mxu0 0
        %2707 = vmatpush1.bf16.msra.mxu0 %v1001
        %2708 = vmatprep.subr.bf16.mxu0 0
        %2709 = vmatpush1.bf16.msra.mxu0 %v1002
        %2710 = vmatprep.subr.bf16.mxu0 0
        %2711 = vmatpush1.bf16.msra.mxu0 %v1003
        %2712 = vmatprep.subr.bf16.mxu0 0
        %2713 = vmatpush1.bf16.msra.mxu0 %v1004
        %2714 = vmatprep.subr.bf16.mxu0 0
        %2715 = vmatpush1.bf16.msra.mxu0 %v1005
        %2716 = vmatprep.subr.bf16.mxu0 0
        %2717 = vmatpush1.bf16.msra.mxu0 %v1006
        %2718 = vmatprep.subr.bf16.mxu0 0
        %2719 = vmatpush1.bf16.msra.mxu0 %v1007
        %2720 = vmatprep.subr.bf16.mxu0 0
        %2721 = vmatpush1.bf16.msra.mxu0 %v1008
        %2722 = vmatprep.subr.bf16.mxu0 0
        %2723 = vmatpush1.bf16.msra.mxu0 %v1009
        %2724 = vmatprep.subr.bf16.mxu0 0
        %2725 = vmatpush1.bf16.msra.mxu0 %v1010
        %2726 = vmatprep.subr.bf16.mxu0 0
        %2727 = vmatpush1.bf16.msra.mxu0 %v1011
        %2728 = vmatprep.subr.bf16.mxu0 0
        %2729 = vmatpush1.bf16.msra.mxu0 %v1012
        %2730 = vmatprep.subr.bf16.mxu0 0
        %2731 = vmatpush1.bf16.msra.mxu0 %v1013
        %2732 = vmatprep.subr.bf16.mxu0 0
        %2733 = vmatpush1.bf16.msra.mxu0 %v1014
        %2734 = vmatprep.subr.bf16.mxu0 0
        %2735 = vmatpush1.bf16.msra.mxu0 %v1015
        %2736 = vmatprep.subr.bf16.mxu0 0
        %2737 = vmatpush1.bf16.msra.mxu0 %v1016
        %2738 = vmatprep.mubr.bf16.mxu0 %v1437
        %2739 = vmatmul.mubr.bf16.gmra.mrb[0].mxu0 %v1423
        %v2740 = vpop.f32.mrb[0].mxu0
        %v2741 = vadd.f32 %v2701, %v2740
        %v2742 = vpop.f32.mrb[0].mxu0
        %v2743 = vpop.f32.mrb[0].mxu0
        %v2744 = vpop.f32.mrb[0].mxu0
        %2745 = vdwg.mxu0
        %2746 = vmatprep.subr.bf16.mxu0 0
        %2747 = vmatpush1.bf16.msra.mxu0 %v1017
        %2748 = vmatprep.subr.bf16.mxu0 0
        %2749 = vmatpush1.bf16.msra.mxu0 %v1018
        %2750 = vmatprep.subr.bf16.mxu0 0
        %2751 = vmatpush1.bf16.msra.mxu0 %v1019
        %2752 = vmatprep.subr.bf16.mxu0 0
        %2753 = vmatpush1.bf16.msra.mxu0 %v1020
        %2754 = vmatprep.subr.bf16.mxu0 0
        %2755 = vmatpush1.bf16.msra.mxu0 %v1021
        %2756 = vmatprep.subr.bf16.mxu0 0
        %2757 = vmatpush1.bf16.msra.mxu0 %v1022
        %2758 = vmatprep.subr.bf16.mxu0 0
        %2759 = vmatpush1.bf16.msra.mxu0 %v1023
        %2760 = vmatprep.subr.bf16.mxu0 0
        %2761 = vmatpush1.bf16.msra.mxu0 %v1024
        %2762 = vmatprep.subr.bf16.mxu0 0
        %2763 = vmatpush1.bf16.msra.mxu0 %v1025
        %2764 = vmatprep.subr.bf16.mxu0 0
        %2765 = vmatpush1.bf16.msra.mxu0 %v1026
        %2766 = vmatprep.subr.bf16.mxu0 0
        %2767 = vmatpush1.bf16.msra.mxu0 %v1027
        %2768 = vmatprep.subr.bf16.mxu0 0
        %2769 = vmatpush1.bf16.msra.mxu0 %v1028
        %2770 = vmatprep.subr.bf16.mxu0 0
        %2771 = vmatpush1.bf16.msra.mxu0 %v1029
        %2772 = vmatprep.subr.bf16.mxu0 0
        %2773 = vmatpush1.bf16.msra.mxu0 %v1030
        %2774 = vmatprep.subr.bf16.mxu0 0
        %2775 = vmatpush1.bf16.msra.mxu0 %v1031
        %2776 = vmatprep.subr.bf16.mxu0 0
        %2777 = vmatpush1.bf16.msra.mxu0 %v1032
        %2778 = vmatprep.mubr.bf16.mxu0 %v1441
        %2779 = vmatmul.mubr.bf16.gmra.mrb[0].mxu0 %v1439
        %v2780 = vpop.f32.mrb[0].mxu0
        %v2781 = vadd.f32 %v2741, %v2780
        %v2782 = vpop.f32.mrb[0].mxu0
        %v2783 = vpop.f32.mrb[0].mxu0
        %v2784 = vpop.f32.mrb[0].mxu0
        %2785 = vdwg.mxu0
        %v2786 = vadd.f32 %v1033, %v2781
        %2787 = vst [vmem:[#allocation2] sm:$0x3] %v2786
        %p2788 = scmp.eq.s32.totalorder %s18, 3
        // Predicated region
        $region49: #{simple_cnn_forward.5} parent=43 // pred_check
          %p2789 = pneg %p2788
        $region50: #{simple_cnn_forward.5} parent=43 // pred_check_branch
          %2791 = sbr.rel (%p2789) target = $region52
        $region51: #{simple_cnn_forward.5} parent=43 // pred_region
          %v2792 = vld [vmem:[#allocation2] sm:$0x3]
          %v2793 = vld [vmem:[%s2] sm:$0x1]
          %v2795 = vlaneseq
          %v2796 = vshrl.u32 %v2795, 7
          %v2797 = vsub.s32 0, %v2796
          %v2798 = vrot.slane %v2793, %v2797
          %v2800 = vmul.f32 %v2792, %v2798
          %v2801 = vld [vmem:[%s3] sm:$0x1]
          %v2803 = vlaneseq
          %v2804 = vshrl.u32 %v2803, 7
          %v2805 = vsub.s32 0, %v2804
          %v2806 = vrot.slane %v2801, %v2805
          %v2808 = vadd.f32 %v2800, %v2806
          %v2809 = vmax.f32 %v2808, 0.0
          %v2810 = vld [vmem:[%s4] sm:$0xff]
          %v2811 = vld [vmem:[%s4 + $0x8] sm:$0xff]
          %v2812 = vld [vmem:[%s4 + $0x10] sm:$0xff]
          %v2813 = vld [vmem:[%s4 + $0x18] sm:$0xff]
          %v2814 = vld [vmem:[%s4 + $0x20] sm:$0xff]
          %v2815 = vld [vmem:[%s4 + $0x28] sm:$0xff]
          %v2816 = vld [vmem:[%s4 + $0x30] sm:$0xff]
          %v2817 = vld [vmem:[%s4 + $0x38] sm:$0xff]
          %v2818 = vld [vmem:[%s4 + $0x40] sm:$0xff]
          %v2819 = vld [vmem:[%s4 + $0x48] sm:$0xff]
          %v2820 = vld [vmem:[%s4 + $0x50] sm:$0xff]
          %v2821 = vld [vmem:[%s4 + $0x58] sm:$0xff]
          %v2822 = vld [vmem:[%s4 + $0x60] sm:$0xff]
          %v2823 = vld [vmem:[%s4 + $0x68] sm:$0xff]
          %v2824 = vld [vmem:[%s4 + $0x70] sm:$0xff]
          %v2825 = vld [vmem:[%s4 + $0x78] sm:$0xff]
          %v2826 = vld [vmem:[%s5] sm:$0x1]
          %v2828 = vlaneseq
          %v2829 = vshrl.u32 %v2828, 7
          %v2830 = vsub.s32 0, %v2829
          %v2831 = vrot.slane %v2826, %v2830
          %2833 = vmatprep.subr.mxu0 0.0
          %2834 = vmatpush1.msra.mxu0 %v2810
          %2835 = vmatprep.subr.mxu0 0.0
          %2836 = vmatpush1.msra.mxu0 %v2811
          %2837 = vmatprep.subr.mxu0 0.0
          %2838 = vmatpush1.msra.mxu0 %v2812
          %2839 = vmatprep.subr.mxu0 0.0
          %2840 = vmatpush1.msra.mxu0 %v2813
          %2841 = vmatprep.subr.mxu0 0.0
          %2842 = vmatpush1.msra.mxu0 %v2814
          %2843 = vmatprep.subr.mxu0 0.0
          %2844 = vmatpush1.msra.mxu0 %v2815
          %2845 = vmatprep.subr.mxu0 0.0
          %2846 = vmatpush1.msra.mxu0 %v2816
          %2847 = vmatprep.subr.mxu0 0.0
          %2848 = vmatpush1.msra.mxu0 %v2817
          %2849 = vmatprep.subr.mxu0 0.0
          %2850 = vmatpush1.msra.mxu0 %v2818
          %2851 = vmatprep.subr.mxu0 0.0
          %2852 = vmatpush1.msra.mxu0 %v2819
          %2853 = vmatprep.subr.mxu0 0.0
          %2854 = vmatpush1.msra.mxu0 %v2820
          %2855 = vmatprep.subr.mxu0 0.0
          %2856 = vmatpush1.msra.mxu0 %v2821
          %2857 = vmatprep.subr.mxu0 0.0
          %2858 = vmatpush1.msra.mxu0 %v2822
          %2859 = vmatprep.subr.mxu0 0.0
          %2860 = vmatpush1.msra.mxu0 %v2823
          %2861 = vmatprep.subr.mxu0 0.0
          %2862 = vmatpush1.msra.mxu0 %v2824
          %2863 = vmatprep.subr.mxu0 0.0
          %2864 = vmatpush1.msra.mxu0 %v2825
          %2865 = vmatprep.subr.mxu0 0.0
          %2866 = vmatpush1.msra.mxu0 0.0
          %2867 = vmatprep.subr.mxu0 0.0
          %2868 = vmatpush1.msra.mxu0 0.0
          %2869 = vmatprep.subr.mxu0 0.0
          %2870 = vmatpush1.msra.mxu0 0.0
          %2871 = vmatprep.subr.mxu0 0.0
          %2872 = vmatpush1.msra.mxu0 0.0
          %2873 = vmatprep.subr.mxu0 0.0
          %2874 = vmatpush1.msra.mxu0 0.0
          %2875 = vmatprep.subr.mxu0 0.0
          %2876 = vmatpush1.msra.mxu0 0.0
          %2877 = vmatprep.subr.mxu0 0.0
          %2878 = vmatpush1.msra.mxu0 0.0
          %2879 = vmatprep.subr.mxu0 0.0
          %2880 = vmatpush1.msra.mxu0 0.0
          %2881 = vmatprep.subr.mxu0 0.0
          %2882 = vmatpush1.msra.mxu0 0.0
          %2883 = vmatprep.subr.mxu0 0.0
          %2884 = vmatpush1.msra.mxu0 0.0
          %2885 = vmatprep.subr.mxu0 0.0
          %2886 = vmatpush1.msra.mxu0 0.0
          %2887 = vmatprep.subr.mxu0 0.0
          %2888 = vmatpush1.msra.mxu0 0.0
          %2889 = vmatprep.subr.mxu0 0.0
          %2890 = vmatpush1.msra.mxu0 0.0
          %2891 = vmatprep.subr.mxu0 0.0
          %2892 = vmatpush1.msra.mxu0 0.0
          %2893 = vmatprep.subr.mxu0 0.0
          %2894 = vmatpush1.msra.mxu0 0.0
          %2895 = vmatprep.subr.mxu0 0.0
          %2896 = vmatpush1.msra.mxu0 0.0
          %2897 = vmatprep.mubr.f32.mxu0 0.0
          %2898 = vmatmul.mubr.f32.gmra.mrb[0].mxu0 %v2809
          %v2899 = vpop.f32.mrb[0].mxu0
          %v2900 = vadd.f32 %v2831, %v2899
          %v2901 = vpop.f32.mrb[0].mxu0
          %2902 = vdwg.mxu0
          %vm2903 = vcmask 9216
          %2904 = vst.msk [vmem:[#allocation3] sm:$0x3] %vm2903, %v2900
        $region52: #{simple_cnn_forward.5} parent=43 // pred_fallthru
          _
        // Predicated region
        $region53: #{simple_cnn_forward.5} parent=43 // pred_check
          %p2905 = pneg %p167
        $region54: #{simple_cnn_forward.5} parent=43 // pred_check_branch
          %2907 = sbr.rel (%p2905) target = $region56
        $region55: #{simple_cnn_forward.5} parent=43 // pred_region
          %s2909 = ssub.s32 32, 32
          %2910 = vsyncadd [#allocation4], %s2909
          %s2912 = sshll.u32 [#allocation3], 4
          %s2913 = int_to_ptr.vmem [resolvable:$true] %s2912
          %2915 = dma.vmem_to_hbm [thread:$0]  %s2913, 32, %s6, [#allocation4]
        $region56: #{simple_cnn_forward.5} parent=43 // pred_fallthru
          _
        // Predicated region
        $region57: #{simple_cnn_forward.5} parent=43 // pred_check
          %p2916 = pneg %p167
        $region58: #{simple_cnn_forward.5} parent=43 // pred_check_branch
          %2918 = sbr.rel (%p2916) target = $region60
        $region59: #{simple_cnn_forward.5} parent=43 // pred_region
          %2919 = dma.done [#allocation4], 32
        $region60: #{simple_cnn_forward.5} parent=43 // pred_fallthru
          _
      $region44: #{simple_cnn_forward.5} parent=5 // pred_fallthru
        _
      %p2920 = scmp.le.s32.totalorder 2, %s13
      // Predicated region
      $region61: #{simple_cnn_forward.5} parent=5 // pred_check
        %p2921 = pneg %p2920
      $region62: #{simple_cnn_forward.5} parent=5 // pred_check_branch
        %2923 = sbr.rel (%p2921) target = $region64
      $region63: #{simple_cnn_forward.5} parent=5 // pred_region
        %s2924 = ssub.s32 %s13, 2
      $region64: #{simple_cnn_forward.5} parent=5 // pred_fallthru
        _
    $region6: #{simple_cnn_forward.5} parent=1 // loop_footer
      %s17 = sadd.s32 1, %s13
    $region7: #{simple_cnn_forward.5} parent=1 // loop_footer_branch
      %12 = sbr.rel target = $region3
    $region8: #{simple_cnn_forward.5} parent=1 // loop_exit
      _
    %2925 = vsyncpa [#allocation4], 1
    %s2926 = scalar_lea.sflag [#allocation4], 1
    %2927 = vsyncpa %s2926, 1

</llo_original>
